<compile_context>
chip_gen: v7x
topology: tpu7x:2x2x1
jax: 0.10.0
libtpu: 0.0.40
codegen_flags: <defaults>
</compile_context>

<pallas_src>
import functools

import jax
import jax.numpy as jnp
from jax.experimental import pallas as pl
from jax.experimental.pallas import tpu as pltpu

_BN_EPS = 1e-5


def _round_up(x, m):
    return (x + m - 1) // m * m


@functools.lru_cache(maxsize=1)
def _vmem_limit_bytes():
    # ~3/4 of physical VMEM: ~48 MiB on v7x (64 MiB phys), ~96 MiB on v5e/v6e.
    try:
        cap = int(pltpu.get_tpu_info().vmem_capacity_bytes)
    except Exception:
        cap = 64 * 1024 * 1024
    return max(32 * 1024 * 1024, min(cap * 3 // 4, 100 * 1024 * 1024))


def _mosaic_params(dims=None):
    return pltpu.CompilerParams(dimension_semantics=dims,
                                vmem_limit_bytes=_vmem_limit_bytes())


def _pad2_bf16(w, rows, cols):
    return jnp.pad(w.astype(jnp.bfloat16),
                   ((0, rows - w.shape[0]), (0, cols - w.shape[1])))


def _pad_row_f32(v, cols):
    return jnp.pad(v.astype(jnp.float32), (0, cols - v.shape[0])).reshape(1, cols)


def _apply_act(y, act):
    if act == "relu":
        return jnp.maximum(y, 0.0)
    if act == "sigmoid":
        return 1.0 / (1.0 + jnp.exp(-y))
    return y


# ---------------------------------------------------------------------------
# Fused GEMM (+ bias + optional two-pass training-mode BN + activation)
# ---------------------------------------------------------------------------
def _gemm_kernel(a_ref, w_ref, b_ref, o_ref, *, act):
    y = jnp.dot(a_ref[...], w_ref[...], preferred_element_type=jnp.float32)
    y = y + b_ref[...]
    o_ref[...] = _apply_act(y, act).astype(o_ref.dtype)


def _gemm_stats_kernel(a_ref, w_ref, b_ref, y_ref, s_ref, ss_ref, *, tm, m_valid):
    i = pl.program_id(0)
    y = jnp.dot(a_ref[...], w_ref[...], preferred_element_type=jnp.float32)
    y = y + b_ref[...]
    y_ref[...] = y
    rows = jax.lax.broadcasted_iota(jnp.int32, (tm, 1), 0) + i * tm
    ym = jnp.where(rows < m_valid, y, 0.0)

    @pl.when(i == 0)
    def _():
        s_ref[...] = jnp.zeros_like(s_ref)
        ss_ref[...] = jnp.zeros_like(ss_ref)

    s_ref[...] = s_ref[...] + jnp.sum(ym, axis=0, keepdims=True)
    ss_ref[...] = ss_ref[...] + jnp.sum(ym * ym, axis=0, keepdims=True)


def _bn_act_kernel(y_ref, s_ref, ss_ref, g_ref, b_ref, o_ref, *, inv_n, act):
    mean = s_ref[...] * inv_n
    var = jnp.maximum(ss_ref[...] * inv_n - mean * mean, 0.0)
    y = (y_ref[...] - mean) * jax.lax.rsqrt(var + _BN_EPS) * g_ref[...] + b_ref[...]
    o_ref[...] = _apply_act(y, act).astype(o_ref.dtype)


def fused_gemm(a, w, bias, *, bn=None, act=None, out_dtype=jnp.bfloat16):
    """act(BN(a @ w + bias)).  a: (M, K); w: (K, Nc); bias: (Nc,)."""
    M, K = a.shape
    Nc = w.shape[-1]
    tm = min(256, _round_up(M, 16))          # 16-aligned bf16 M tiles
    Mp = _round_up(M, tm)
    Kp = _round_up(K, 128)
    Np = _round_up(Nc, 128)                  # lane-dense output columns
    grid_m = Mp // tm

    a_p = jnp.pad(a.astype(jnp.bfloat16), ((0, Mp - M), (0, Kp - K)))
    w_p = _pad2_bf16(w, Kp, Np)
    b_p = _pad_row_f32(bias, Np)

    a_spec = pl.BlockSpec((tm, Kp), lambda i: (i, 0))
    w_spec = pl.BlockSpec((Kp, Np), lambda i: (0, 0))
    row_spec = pl.BlockSpec((1, Np), lambda i: (0, 0))
    y_spec = pl.BlockSpec((tm, Np), lambda i: (i, 0))

    if bn is None:
        out = pl.pallas_call(
            functools.partial(_gemm_kernel, act=act),
            grid=(grid_m,),
            in_specs=[a_spec, w_spec, row_spec],
            out_specs=y_spec,
            out_shape=jax.ShapeDtypeStruct((Mp, Np), out_dtype),
            compiler_params=_mosaic_params(("parallel",)),
        )(a_p, w_p, b_p)
        return out[:M, :Nc]

    # Pass 1: GEMM + masked per-column sum / sum-of-squares (accumulator block).
    y, s, ss = pl.pallas_call(
        functools.partial(_gemm_stats_kernel, tm=tm, m_valid=M),
        grid=(grid_m,),
        in_specs=[a_spec, w_spec, row_spec],
        out_specs=(y_spec, row_spec, row_spec),
        out_shape=(jax.ShapeDtypeStruct((Mp, Np), jnp.float32),
                   jax.ShapeDtypeStruct((1, Np), jnp.float32),
                   jax.ShapeDtypeStruct((1, Np), jnp.float32)),
        compiler_params=_mosaic_params(("arbitrary",)),
    )(a_p, w_p, b_p)

    gamma_p = _pad_row_f32(bn[0], Np)
    beta_p = _pad_row_f32(bn[1], Np)

    # Pass 2: apply training-mode BatchNorm (+ activation), pipelined over M.
    out = pl.pallas_call(
        functools.partial(_bn_act_kernel, inv_n=1.0 / float(M), act=act),
        grid=(grid_m,),
        in_specs=[y_spec, row_spec, row_spec, row_spec, row_spec],
        out_specs=y_spec,
        out_shape=jax.ShapeDtypeStruct((Mp, Np), out_dtype),
        compiler_params=_mosaic_params(("parallel",)),
    )(y, s, ss, gamma_p, beta_p)
    return out[:M, :Nc]


# ---------------------------------------------------------------------------
# Conv building blocks (all feed the fused GEMM)
# ---------------------------------------------------------------------------
def conv2d(x, w, b, *, stride, padding, bn=None, act=None, out_dtype=jnp.bfloat16):
    """x: (N,H,W,Cin); w: (KH,KW,Cin,Cout). Conv + optional fused BN + act."""
    N, H, W, Cin = x.shape
    KH, KW, _, Cout = w.shape
    xp = jnp.pad(x, ((0, 0), (padding, padding), (padding, padding), (0, 0)))
    Ho = (H + 2 * padding - KH) // stride + 1
    Wo = (W + 2 * padding - KW) // stride + 1
    taps = []
    for dy in range(KH):
        for dx in range(KW):
            taps.append(
                xp[:, dy:dy + stride * (Ho - 1) + 1:stride,
                      dx:dx + stride * (Wo - 1) + 1:stride, :].reshape(N * Ho * Wo, Cin))
    # Tap axis folded into the contraction: one deep (M, KH*KW*Cin) GEMM.
    # TODO(synk): slice taps in-kernel from a VMEM-resident padded input to
    #             avoid the wrapper-side im2col replication.
    a = jnp.concatenate(taps, axis=-1)
    y = fused_gemm(a, w.reshape(KH * KW * Cin, Cout), b, bn=bn, act=act,
                   out_dtype=out_dtype)
    return y.reshape(N, Ho, Wo, Cout)


def conv1x1(x, w, b, *, bn=None, act=None, out_dtype=jnp.bfloat16):
    N, H, W, Cin = x.shape
    y = fused_gemm(x.reshape(N * H * W, Cin), w, b, bn=bn, act=act,
                   out_dtype=out_dtype)
    return y.reshape(N, H, W, -1)


def conv_transpose2x2(x, w, b):
    """ConvTranspose2d(kernel=2, stride=2) as ONE GEMM. w: (2,2,Cin,Cout)."""
    # TODO(synk): fold the (N,H,2,W,2,C) sub-pixel scatter into the next conv's
    #             tap slicing / an output index_map to avoid the XLA transpose.
    N, H, W, Cin = x.shape
    Cout = w.shape[-1]
    w2 = jnp.transpose(w, (2, 0, 1, 3)).reshape(Cin, 4 * Cout)
    b2 = jnp.tile(b, 4)
    y = fused_gemm(x.reshape(N * H * W, Cin), w2, b2)          # (M, 4*Cout) bf16
    y = y.reshape(N, H, W, 2, 2, Cout)
    y = jnp.transpose(y, (0, 1, 3, 2, 4, 5)).reshape(N, 2 * H, 2 * W, Cout)
    return y


# ---------------------------------------------------------------------------
# Fully fused AttentionGate kernel
#   out = x * sigmoid(BN(Wpsi(relu(BN(Wg g) + BN(Wx x)))))
# ---------------------------------------------------------------------------
def _gate_kernel(g_ref, x_ref, wg_ref, bg_ref, gg_ref, btg_ref,
                 wx_ref, bx_ref, gx_ref, btx_ref,
                 wp_ref, bp_ref, gp_ref, btp_ref, o_ref, *, m_valid):
    mp = o_ref.shape[0]
    inv_n = 1.0 / float(m_valid)
    rows = jax.lax.broadcasted_iota(jnp.int32, (mp, 1), 0)
    mask = (rows < m_valid).astype(jnp.float32)

    def bn(y, gam, bet):                      # training-mode BN, masked stats
        mean = jnp.sum(y * mask, axis=0, keepdims=True) * inv_n
        d = (y - mean) * mask
        var = jnp.sum(d * d, axis=0, keepdims=True) * inv_n
        return (y - mean) * jax.lax.rsqrt(var + _BN_EPS) * gam + bet

    g1 = bn(jnp.dot(g_ref[...], wg_ref[...],
                    preferred_element_type=jnp.float32) + bg_ref[...],
            gg_ref[...], btg_ref[...])
    x1 = bn(jnp.dot(x_ref[...], wx_ref[...],
                    preferred_element_type=jnp.float32) + bx_ref[...],
            gx_ref[...], btx_ref[...])
    pre = jnp.maximum(g1 + x1, 0.0)
    psi = bn(jnp.dot(pre.astype(jnp.bfloat16), wp_ref[...],
                     preferred_element_type=jnp.float32) + bp_ref[...],
             gp_ref[...], btp_ref[...])
    psi = 1.0 / (1.0 + jnp.exp(-psi))
    o_ref[...] = (x_ref[...].astype(jnp.float32) * psi[:, 0:1]).astype(o_ref.dtype)


def attention_gate(g, x, p):
    # TODO(synk): tile M with a two-pass BN (like fused_gemm) for large H*W.
    N, H, W, Cg = g.shape
    Cl = x.shape[-1]
    Fi = p["wg"]["w"].shape[-1]
    M = N * H * W
    Mp = _round_up(M, 16)
    Cgp = _round_up(Cg, 128)
    Clp = _round_up(Cl, 128)
    Fp = _round_up(Fi, 128)

    gm = jnp.pad(g.reshape(M, Cg).astype(jnp.bfloat16), ((0, Mp - M), (0, Cgp - Cg)))
    xm = jnp.pad(x.reshape(M, Cl).astype(jnp.bfloat16), ((0, Mp - M), (0, Clp - Cl)))

    wg = _pad2_bf16(p["wg"]["w"], Cgp, Fp);  bg = _pad_row_f32(p["wg"]["b"], Fp)
    gg = _pad_row_f32(p["bn_g"]["gamma"], Fp); btg = _pad_row_f32(p["bn_g"]["beta"], Fp)
    wx = _pad2_bf16(p["wx"]["w"], Clp, Fp);  bx = _pad_row_f32(p["wx"]["b"], Fp)
    gx = _pad_row_f32(p["bn_x"]["gamma"], Fp); btx = _pad_row_f32(p["bn_x"]["beta"], Fp)
    wp_ = _pad2_bf16(p["wpsi"]["w"], Fp, 128); bp = _pad_row_f32(p["wpsi"]["b"], 128)
    gp = _pad_row_f32(p["bn_psi"]["gamma"], 128)
    btp = _pad_row_f32(p["bn_psi"]["beta"], 128)

    out = pl.pallas_call(
        functools.partial(_gate_kernel, m_valid=M),
        out_shape=jax.ShapeDtypeStruct((Mp, Clp), jnp.bfloat16),
        compiler_params=_mosaic_params(),
    )(gm, xm, wg, bg, gg, btg, wx, bx, gx, btx, wp_, bp, gp, btp)
    return out[:M, :Cl].reshape(N, H, W, Cl)


# ---------------------------------------------------------------------------
# Fused SelfAttention kernel (per batch element; q/k/v in ONE projection GEMM)
#   out = gamma * softmax(q k^T) v + x
# ---------------------------------------------------------------------------
def _sa_kernel(x_ref, w_ref, b_ref, gamma_ref, o_ref, *, cqp, cp):
    x = x_ref[0]                                                 # (L, Cp) bf16
    proj = jnp.dot(x, w_ref[...], preferred_element_type=jnp.float32) + b_ref[...]
    q = proj[:, :cqp].astype(jnp.bfloat16)
    k = proj[:, cqp:2 * cqp].astype(jnp.bfloat16)
    v = proj[:, 2 * cqp:2 * cqp + cp].astype(jnp.bfloat16)
    # energy[i, j] = <q_i, k_j> — contract the shared Cq axis (no k.T relayout).
    energy = jax.lax.dot_general(q, k, (((1,), (1,)), ((), ())),
                                 preferred_element_type=jnp.float32)   # (L, L)
    m = jnp.max(energy, axis=-1, keepdims=True)
    e = jnp.exp(energy - m)
    attn = e * pl.reciprocal(jnp.sum(e, axis=-1, keepdims=True), approx=False)
    out = jnp.dot(attn.astype(jnp.bfloat16), v,
                  preferred_element_type=jnp.float32)                  # (L, Cp)
    gamma = gamma_ref[0, 0]
    o_ref[...] = (gamma * out + x.astype(jnp.float32))[None].astype(o_ref.dtype)


def self_attention(x, p):
    # TODO(synk): flash-style KV tiling with online softmax once (L,L) no longer
    #             fits VMEM (L here is <= 64 at the toy resolutions).
    N, H, W, C = x.shape
    L = H * W
    Cq = p["q"]["w"].shape[-1]
    Cp = _round_up(C, 128)
    Cqp = _round_up(Cq, 128)
    Wtot = 2 * Cqp + Cp

    xr = jnp.pad(x.reshape(N, L, C).astype(jnp.bfloat16),
                 ((0, 0), (0, 0), (0, Cp - C)))
    wqkv = jnp.concatenate([_pad2_bf16(p["q"]["w"], Cp, Cqp),
                            _pad2_bf16(p["k"]["w"], Cp, Cqp),
                            _pad2_bf16(p["v"]["w"], Cp, Cp)], axis=1)
    bqkv = jnp.concatenate([_pad_row_f32(p["q"]["b"], Cqp),
                            _pad_row_f32(p["k"]["b"], Cqp),
                            _pad_row_f32(p["v"]["b"], Cp)], axis=1)
    gamma = p["gamma"].astype(jnp.float32).reshape(1, 1)

    out = pl.pallas_call(
        functools.partial(_sa_kernel, cqp=Cqp, cp=Cp),
        out_shape=jax.ShapeDtypeStruct((N, L, Cp), jnp.bfloat16),
        grid=(N,),
        in_specs=[
            pl.BlockSpec((1, L, Cp), lambda b: (b, 0, 0)),
            pl.BlockSpec((Cp, Wtot), lambda b: (0, 0)),
            pl.BlockSpec((1, Wtot), lambda b: (0, 0)),
            pl.BlockSpec(memory_space=pltpu.MemorySpace.SMEM),
        ],
        out_specs=pl.BlockSpec((1, L, Cp), lambda b: (b, 0, 0)),
        compiler_params=_mosaic_params(("parallel",)),
    )(xr, wqkv, bqkv, gamma)
    return out[:, :, :C].reshape(N, H, W, C)


# ---------------------------------------------------------------------------
# Parameter init (deterministic; shapes from the PyTorch module's __init__)
# ---------------------------------------------------------------------------
def _conv_params(key, kh, kw, cin, cout, scale=0.1):
    kw_, kb_ = jax.random.split(key)
    return {"w": jax.random.normal(kw_, (kh, kw, cin, cout), jnp.float32) * scale,
            "b": jax.random.normal(kb_, (cout,), jnp.float32) * 0.01}


def _lin_params(key, cin, cout, scale=0.1):              # 1x1 conv
    kw_, kb_ = jax.random.split(key)
    return {"w": jax.random.normal(kw_, (cin, cout), jnp.float32) * scale,
            "b": jax.random.normal(kb_, (cout,), jnp.float32) * 0.01}


def _bn_params(c):
    return {"gamma": jnp.ones((c,), jnp.float32), "beta": jnp.zeros((c,), jnp.float32)}


def _sa_params(key, c):
    k1, k2, k3 = jax.random.split(key, 3)
    return {"q": _lin_params(k1, c, c // 8),
            "k": _lin_params(k2, c, c // 8),
            "v": _lin_params(k3, c, c),
            "gamma": jnp.zeros((1, 1), jnp.float32)}     # PyTorch init: zeros


def init_params(key, num_narrowings, c_dim, channels_first, use_camera_in):
    it = iter(jax.random.split(key, 128))
    nk = lambda: next(it)
    p = {}
    cin0 = 1 + (2 * c_dim if use_camera_in else c_dim)
    p["init_conv"] = _conv_params(nk(), 3, 3, cin0, channels_first)

    enc, sa_enc, enc_ch = [], [], []
    cur = channels_first
    for _ in range(num_narrowings):
        out_c = cur * 2
        enc.append({"conv1": _conv_params(nk(), 3, 3, cur, out_c),
                    "bn1": _bn_params(out_c),
                    "conv2": _conv_params(nk(), 3, 3, out_c, out_c),
                    "bn2": _bn_params(out_c)})
        sa_enc.append(_sa_params(nk(), out_c))
        enc_ch.append(out_c)
        cur = out_c

    dec, ags, sa_dec = [], [], []
    for i in range(num_narrowings):
        out_c = cur // 2
        dec.append({"convT": _conv_params(nk(), 2, 2, cur, out_c),
                    "conv1": _conv_params(nk(), 3, 3, out_c, out_c),
                    "bn1": _bn_params(out_c),
                    "conv2": _conv_params(nk(), 3, 3, out_c, out_c),
                    "bn2": _bn_params(out_c)})
        if i < num_narrowings - 1:
            F_g = out_c
            F_l = enc_ch[-(i + 2)]
            F_int = F_g // 2
            ags.append({"wg": _lin_params(nk(), F_g, F_int), "bn_g": _bn_params(F_int),
                        "wx": _lin_params(nk(), F_l, F_int), "bn_x": _bn_params(F_int),
                        "wpsi": _lin_params(nk(), F_int, 1), "bn_psi": _bn_params(1)})
            sa_dec.append(_sa_params(nk(), out_c))
        cur = out_c

    p["encoder"] = enc
    p["sa_enc"] = sa_enc
    p["decoder"] = dec
    p["att_gates"] = ags
    p["sa_dec"] = sa_dec
    p["final_conv"] = _lin_params(nk(), channels_first, 1)
    return p


# ---------------------------------------------------------------------------
# Full forward pass (NCHW in / NCHW out, like the PyTorch module)
# ---------------------------------------------------------------------------
def forward(params, x_nchw, c_in, c_out, num_narrowings, use_camera_in):
    x = jnp.transpose(x_nchw, (0, 2, 3, 1)).astype(jnp.float32)    # NHWC
    N, H, W, _ = x.shape
    if use_camera_in:
        ci = jnp.broadcast_to(c_in[:, None, None, :], (N, H, W, c_in.shape[-1]))
        co = jnp.broadcast_to(c_out[:, None, None, :], (N, H, W, c_out.shape[-1]))
        x = jnp.concatenate([x, ci, co], axis=-1)
    else:
        co = jnp.broadcast_to(c_out[:, None, None, :], (N, H, W, c_out.shape[-1]))
        x = jnp.concatenate([x, co], axis=-1)
    x = x.astype(jnp.bfloat16)                          # bf16 activations everywhere

    ic = params["init_conv"]
    x = conv2d(x, ic["w"], ic["b"], stride=1, padding=1)

    # TODO(synk): fuse each level's conv1->conv2->self-attention into one kernel
    #             to cut pallas_call count at small H,W.
    encoder_outputs = []
    for idx in range(num_narrowings):
        blk = params["encoder"][idx]
        x = conv2d(x, blk["conv1"]["w"], blk["conv1"]["b"], stride=2, padding=1,
                   bn=(blk["bn1"]["gamma"], blk["bn1"]["beta"]), act="relu")
        x = conv2d(x, blk["conv2"]["w"], blk["conv2"]["b"], stride=1, padding=1,
                   bn=(blk["bn2"]["gamma"], blk["bn2"]["beta"]), act="relu")
        x = self_attention(x, params["sa_enc"][idx])
        encoder_outputs.append(x)

    for idx in range(num_narrowings):
        blk = params["decoder"][idx]
        x = conv_transpose2x2(x, blk["convT"]["w"], blk["convT"]["b"])
        x = conv2d(x, blk["conv1"]["w"], blk["conv1"]["b"], stride=1, padding=1,
                   bn=(blk["bn1"]["gamma"], blk["bn1"]["beta"]), act="relu")
        x = conv2d(x, blk["conv2"]["w"], blk["conv2"]["b"], stride=1, padding=1,
                   bn=(blk["bn2"]["gamma"], blk["bn2"]["beta"]), act="relu")
        if idx < len(params["att_gates"]):
            skip = encoder_outputs[-(idx + 2)]
            x = attention_gate(x, skip, params["att_gates"][idx])
            x = self_attention(x, params["sa_dec"][idx])
            x = x + skip

    fc = params["final_conv"]
    x = conv1x1(x, fc["w"], fc["b"], out_dtype=jnp.float32)
    return jnp.transpose(x, (0, 3, 1, 2))               # NCHW (N, 1, H, W)


# ---------------------------------------------------------------------------
if __name__ == "__main__":
    NUM_NARROWINGS = 2
    C_DIM = 4
    CHANNELS_FIRST = 16
    USE_CAMERA_IN = True
    N, H, W = 2, 16, 16

    key = jax.random.PRNGKey(0)
    kx, kci, kco, kp = jax.random.split(key, 4)
    x = jax.random.normal(kx, (N, 1, H, W), jnp.float32)
    c_in = jax.random.normal(kci, (N, C_DIM), jnp.float32)
    c_out = jax.random.normal(kco, (N, C_DIM), jnp.float32)

    params = init_params(kp, NUM_NARROWINGS, C_DIM, CHANNELS_FIRST, USE_CAMERA_IN)

    fwd = jax.jit(lambda p, a, b, c: forward(p, a, b, c, NUM_NARROWINGS, USE_CAMERA_IN))
    y = fwd(params, x, c_in, c_out)
    jax.block_until_ready(y)

    assert y.shape == (N, 1, H, W), y.shape
    assert bool(jnp.all(jnp.isfinite(y)))
    print("KERNEL_OK")
</pallas_src>

<mosaic_0001>
module attributes {stable_mosaic.version = 11 : i64} {
  func.func @_gemm_kernel(%arg0: i32, %arg1: memref<256x128xbf16, #tpu.memory_space<vmem>>, %arg2: memref<128x128xbf16, #tpu.memory_space<vmem>>, %arg3: memref<1x128xf32, #tpu.memory_space<vmem>>, %arg4: memref<256x128xbf16, #tpu.memory_space<vmem>>) attributes {dimension_semantics = [#tpu.dimension_semantics<parallel>], iteration_bounds = array<i64: 2>, scalar_prefetch = 0 : i64, scratch_operands = 0 : i64, tpu.core_type = #tpu.core_type<tc>, window_params = [{transform_indices = @transform_0, window_bounds = array<i64: 256, 128>}, {pipeline_mode = #tpu.pipeline_mode<synchronous>, transform_indices = @transform_1, window_bounds = array<i64: 128, 128>}, {pipeline_mode = #tpu.pipeline_mode<synchronous>, transform_indices = @transform_2, window_bounds = array<i64: 1, 128>}, {transform_indices = @transform_3, window_bounds = array<i64: 256, 128>}]} {
    %c0 = arith.constant 0 : index
    %c0_0 = arith.constant 0 : index
    %0 = vector.load %arg1[%c0, %c0_0] : memref<256x128xbf16, #tpu.memory_space<vmem>>, vector<256x128xbf16>
    %c0_1 = arith.constant 0 : index
    %c0_2 = arith.constant 0 : index
    %1 = vector.load %arg2[%c0_1, %c0_2] : memref<128x128xbf16, #tpu.memory_space<vmem>>, vector<128x128xbf16>
    %cst = arith.constant dense<0.000000e+00> : vector<256x128xf32>
    %2 = tpu.matmul %0, %1, %cst {dimension_numbers = #tpu.dot_dimension_numbers<[1], [0], [0], [1], [0, 0, 1, 1], [], []>} : vector<256x128xbf16>, vector<128x128xbf16>, vector<256x128xf32> -> vector<256x128xf32>
    %c0_3 = arith.constant 0 : index
    %c0_4 = arith.constant 0 : index
    %3 = vector.load %arg3[%c0_3, %c0_4] : memref<1x128xf32, #tpu.memory_space<vmem>>, vector<1x128xf32>
    %4 = vector.broadcast %3 : vector<1x128xf32> to vector<256x128xf32>
    %5 = arith.addf %2, %4 : vector<256x128xf32>
    %6 = arith.truncf %5 : vector<256x128xf32> to vector<256x128xbf16>
    %c0_5 = arith.constant 0 : index
    %c0_6 = arith.constant 0 : index
    %7 = vector.load %arg4[%c0_5, %c0_6] : memref<256x128xbf16, #tpu.memory_space<vmem>>, vector<256x128xbf16>
    tpu.vector_store %arg4[%c0_5, %c0_6], %6 {strides = array<i32>} : memref<256x128xbf16, #tpu.memory_space<vmem>>, vector<256x128xbf16>,
    return
  }
  func.func @transform_0(%arg0: i32) -> (i32, i32) {
    %c0_i32 = arith.constant 0 : i32
    %c0_i32_0 = arith.constant 0 : i32
    return %arg0, %c0_i32 : i32, i32
  }
  func.func @transform_1(%arg0: i32) -> (i32, i32) {
    %c0_i32 = arith.constant 0 : i32
    %c0_i32_0 = arith.constant 0 : i32
    %c0_i32_1 = arith.constant 0 : i32
    return %c0_i32, %c0_i32_0 : i32, i32
  }
  func.func @transform_2(%arg0: i32) -> (i32, i32) {
    %c0_i32 = arith.constant 0 : i32
    %c0_i32_0 = arith.constant 0 : i32
    %c0_i32_1 = arith.constant 0 : i32
    return %c0_i32, %c0_i32_0 : i32, i32
  }
  func.func @transform_3(%arg0: i32) -> (i32, i32) {
    %c0_i32 = arith.constant 0 : i32
    %c0_i32_0 = arith.constant 0 : i32
    return %arg0, %c0_i32 : i32, i32
  }
}

module attributes {stable_mosaic.version = 11 : i64} {
  func.func @_gemm_stats_kernel(%arg0: i32, %arg1: memref<128x256xbf16, #tpu.memory_space<vmem>>, %arg2: memref<256x128xbf16, #tpu.memory_space<vmem>>, %arg3: memref<1x128xf32, #tpu.memory_space<vmem>>, %arg4: memref<128x128xf32, #tpu.memory_space<vmem>>, %arg5: memref<1x128xf32, #tpu.memory_space<vmem>>, %arg6: memref<1x128xf32, #tpu.memory_space<vmem>>) attributes {dimension_semantics = [#tpu.dimension_semantics<arbitrary>], iteration_bounds = array<i64: 1>, scalar_prefetch = 0 : i64, scratch_operands = 0 : i64, tpu.core_type = #tpu.core_type<tc>, window_params = [{transform_indices = @transform_0, window_bounds = array<i64: 128, 256>}, {pipeline_mode = #tpu.pipeline_mode<synchronous>, transform_indices = @transform_1, window_bounds = array<i64: 256, 128>}, {pipeline_mode = #tpu.pipeline_mode<synchronous>, transform_indices = @transform_2, window_bounds = array<i64: 1, 128>}, {transform_indices = @transform_3, window_bounds = array<i64: 128, 128>}, {pipeline_mode = #tpu.pipeline_mode<synchronous>, transform_indices = @transform_4, window_bounds = array<i64: 1, 128>}, {pipeline_mode = #tpu.pipeline_mode<synchronous>, transform_indices = @transform_5, window_bounds = array<i64: 1, 128>}]} {
    %c0 = arith.constant 0 : index
    %c0_0 = arith.constant 0 : index
    %0 = vector.load %arg1[%c0, %c0_0] : memref<128x256xbf16, #tpu.memory_space<vmem>>, vector<128x256xbf16>
    %c0_1 = arith.constant 0 : index
    %c0_2 = arith.constant 0 : index
    %1 = vector.load %arg2[%c0_1, %c0_2] : memref<256x128xbf16, #tpu.memory_space<vmem>>, vector<256x128xbf16>
    %cst = arith.constant dense<0.000000e+00> : vector<128x128xf32>
    %2 = tpu.matmul %0, %1, %cst {dimension_numbers = #tpu.dot_dimension_numbers<[1], [0], [0], [1], [0, 0, 1, 1], [], []>} : vector<128x256xbf16>, vector<256x128xbf16>, vector<128x128xf32> -> vector<128x128xf32>
    %c0_3 = arith.constant 0 : index
    %c0_4 = arith.constant 0 : index
    %3 = vector.load %arg3[%c0_3, %c0_4] : memref<1x128xf32, #tpu.memory_space<vmem>>, vector<1x128xf32>
    %4 = vector.broadcast %3 : vector<1x128xf32> to vector<128x128xf32>
    %5 = arith.addf %2, %4 : vector<128x128xf32>
    %c0_5 = arith.constant 0 : index
    %c0_6 = arith.constant 0 : index
    %6 = vector.load %arg4[%c0_5, %c0_6] : memref<128x128xf32, #tpu.memory_space<vmem>>, vector<128x128xf32>
    tpu.vector_store %arg4[%c0_5, %c0_6], %5 {strides = array<i32>} : memref<128x128xf32, #tpu.memory_space<vmem>>, vector<128x128xf32>,
    %7 = tpu.iota {dimensions = array<i32: 0>} : vector<128x1xi32>
    %c128_i32 = arith.constant 128 : i32
    %8 = arith.muli %arg0, %c128_i32 : i32
    %9 = vector.broadcast %8 : i32 to vector<128x1xi32>
    %10 = arith.addi %7, %9 : vector<128x1xi32>
    %c128_i32_7 = arith.constant 128 : i32
    %11 = vector.broadcast %c128_i32_7 : i32 to vector<128x1xi32>
    %12 = arith.cmpi slt, %10, %11 : vector<128x1xi32>
    %cst_8 = arith.constant 0.000000e+00 : f32
    %13 = vector.shape_cast %12 : vector<128x1xi1> to vector<128x1xi1>
    %14 = vector.broadcast %13 : vector<128x1xi1> to vector<128x128xi1>
    %15 = vector.broadcast %cst_8 : f32 to vector<128x128xf32>
    %16 = arith.select %14, %5, %15 : vector<128x128xi1>, vector<128x128xf32>
    %c0_i32 = arith.constant 0 : i32
    %17 = arith.cmpi eq, %arg0, %c0_i32 : i32
    %18 = arith.extui %17 : i1 to i32
    %c0_i32_9 = arith.constant 0 : i32
    %19 = arith.cmpi ne, %18, %c0_i32_9 : i32
    scf.if %19 {
      %cst_20 = arith.constant 0.000000e+00 : f32
      %31 = vector.broadcast %cst_20 : f32 to vector<1x128xf32>
      %c0_21 = arith.constant 0 : index
      %c0_22 = arith.constant 0 : index
      %32 = vector.load %arg5[%c0_21, %c0_22] : memref<1x128xf32, #tpu.memory_space<vmem>>, vector<1x128xf32>
      tpu.vector_store %arg5[%c0_21, %c0_22], %31 {strides = array<i32>} : memref<1x128xf32, #tpu.memory_space<vmem>>, vector<1x128xf32>,
      %cst_23 = arith.constant 0.000000e+00 : f32
      %33 = vector.broadcast %cst_23 : f32 to vector<1x128xf32>
      %c0_24 = arith.constant 0 : index
      %c0_25 = arith.constant 0 : index
      %34 = vector.load %arg6[%c0_24, %c0_25] : memref<1x128xf32, #tpu.memory_space<vmem>>, vector<1x128xf32>
      tpu.vector_store %arg6[%c0_24, %c0_25], %33 {strides = array<i32>} : memref<1x128xf32, #tpu.memory_space<vmem>>, vector<1x128xf32>,
    } else {
    }
    %c0_10 = arith.constant 0 : index
    %c0_11 = arith.constant 0 : index
    %20 = vector.load %arg5[%c0_10, %c0_11] : memref<1x128xf32, #tpu.memory_space<vmem>>, vector<1x128xf32>
    %cst_12 = arith.constant dense<0.000000e+00> : vector<128xf32>
    %21 = vector.multi_reduction <add>, %16, %cst_12 [0] : vector<128x128xf32> to vector<128xf32>
    %22 = vector.shape_cast %21 : vector<128xf32> to vector<1x128xf32>
    %23 = arith.addf %20, %22 : vector<1x128xf32>
    %c0_13 = arith.constant 0 : index
    %c0_14 = arith.constant 0 : index
    %24 = vector.load %arg5[%c0_13, %c0_14] : memref<1x128xf32, #tpu.memory_space<vmem>>, vector<1x128xf32>
    tpu.vector_store %arg5[%c0_13, %c0_14], %23 {strides = array<i32>} : memref<1x128xf32, #tpu.memory_space<vmem>>, vector<1x128xf32>,
    %c0_15 = arith.constant 0 : index
    %c0_16 = arith.constant 0 : index
    %25 = vector.load %arg6[%c0_15, %c0_16] : memref<1x128xf32, #tpu.memory_space<vmem>>, vector<1x128xf32>
    %26 = arith.mulf %16, %16 : vector<128x128xf32>
    %cst_17 = arith.constant dense<0.000000e+00> : vector<128xf32>
    %27 = vector.multi_reduction <add>, %26, %cst_17 [0] : vector<128x128xf32> to vector<128xf32>
    %28 = vector.shape_cast %27 : vector<128xf32> to vector<1x128xf32>
    %29 = arith.addf %25, %28 : vector<1x128xf32>
    %c0_18 = arith.constant 0 : index
    %c0_19 = arith.constant 0 : index
    %30 = vector.load %arg6[%c0_18, %c0_19] : memref<1x128xf32, #tpu.memory_space<vmem>>, vector<1x128xf32>
    tpu.vector_store %arg6[%c0_18, %c0_19], %29 {strides = array<i32>} : memref<1x128xf32, #tpu.memory_space<vmem>>, vector<1x128xf32>,
    return
  }
  func.func @transform_0(%arg0: i32) -> (i32, i32) {
    %c0_i32 = arith.constant 0 : i32
    %c0_i32_0 = arith.constant 0 : i32
    return %arg0, %c0_i32 : i32, i32
  }
  func.func @transform_1(%arg0: i32) -> (i32, i32) {
    %c0_i32 = arith.constant 0 : i32
    %c0_i32_0 = arith.constant 0 : i32
    %c0_i32_1 = arith.constant 0 : i32
    return %c0_i32, %c0_i32_0 : i32, i32
  }
  func.func @transform_2(%arg0: i32) -> (i32, i32) {
    %c0_i32 = arith.constant 0 : i32
    %c0_i32_0 = arith.constant 0 : i32
    %c0_i32_1 = arith.constant 0 : i32
    return %c0_i32, %c0_i32_0 : i32, i32
  }
  func.func @transform_3(%arg0: i32) -> (i32, i32) {
    %c0_i32 = arith.constant 0 : i32
    %c0_i32_0 = arith.constant 0 : i32
    return %arg0, %c0_i32 : i32, i32
  }
  func.func @transform_4(%arg0: i32) -> (i32, i32) {
    %c0_i32 = arith.constant 0 : i32
    %c0_i32_0 = arith.constant 0 : i32
    %c0_i32_1 = arith.constant 0 : i32
    return %c0_i32, %c0_i32_0 : i32, i32
  }
  func.func @transform_5(%arg0: i32) -> (i32, i32) {
    %c0_i32 = arith.constant 0 : i32
    %c0_i32_0 = arith.constant 0 : i32
    %c0_i32_1 = arith.constant 0 : i32
    return %c0_i32, %c0_i32_0 : i32, i32
  }
}

module attributes {stable_mosaic.version = 11 : i64} {
  func.func @_bn_act_kernel(%arg0: i32, %arg1: memref<128x128xf32, #tpu.memory_space<vmem>>, %arg2: memref<1x128xf32, #tpu.memory_space<vmem>>, %arg3: memref<1x128xf32, #tpu.memory_space<vmem>>, %arg4: memref<1x128xf32, #tpu.memory_space<vmem>>, %arg5: memref<1x128xf32, #tpu.memory_space<vmem>>, %arg6: memref<128x128xbf16, #tpu.memory_space<vmem>>) attributes {dimension_semantics = [#tpu.dimension_semantics<parallel>], iteration_bounds = array<i64: 1>, scalar_prefetch = 0 : i64, scratch_operands = 0 : i64, tpu.core_type = #tpu.core_type<tc>, window_params = [{transform_indices = @transform_0, window_bounds = array<i64: 128, 128>}, {pipeline_mode = #tpu.pipeline_mode<synchronous>, transform_indices = @transform_1, window_bounds = array<i64: 1, 128>}, {pipeline_mode = #tpu.pipeline_mode<synchronous>, transform_indices = @transform_2, window_bounds = array<i64: 1, 128>}, {pipeline_mode = #tpu.pipeline_mode<synchronous>, transform_indices = @transform_3, window_bounds = array<i64: 1, 128>}, {pipeline_mode = #tpu.pipeline_mode<synchronous>, transform_indices = @transform_4, window_bounds = array<i64: 1, 128>}, {transform_indices = @transform_5, window_bounds = array<i64: 128, 128>}]} {
    %c0 = arith.constant 0 : index
    %c0_0 = arith.constant 0 : index
    %0 = vector.load %arg2[%c0, %c0_0] : memref<1x128xf32, #tpu.memory_space<vmem>>, vector<1x128xf32>
    %cst = arith.constant 7.812500e-03 : f32
    %1 = vector.broadcast %cst : f32 to vector<1x128xf32>
    %2 = arith.mulf %0, %1 : vector<1x128xf32>
    %c0_1 = arith.constant 0 : index
    %c0_2 = arith.constant 0 : index
    %3 = vector.load %arg3[%c0_1, %c0_2] : memref<1x128xf32, #tpu.memory_space<vmem>>, vector<1x128xf32>
    %cst_3 = arith.constant 7.812500e-03 : f32
    %4 = vector.broadcast %cst_3 : f32 to vector<1x128xf32>
    %5 = arith.mulf %3, %4 : vector<1x128xf32>
    %6 = arith.mulf %2, %2 : vector<1x128xf32>
    %7 = arith.subf %5, %6 : vector<1x128xf32>
    %cst_4 = arith.constant 0.000000e+00 : f32
    %8 = vector.broadcast %cst_4 : f32 to vector<1x128xf32>
    %9 = arith.maximumf %7, %8 : vector<1x128xf32>
    %c0_5 = arith.constant 0 : index
    %c0_6 = arith.constant 0 : index
    %10 = vector.load %arg1[%c0_5, %c0_6] : memref<128x128xf32, #tpu.memory_space<vmem>>, vector<128x128xf32>
    %11 = vector.broadcast %2 : vector<1x128xf32> to vector<128x128xf32>
    %12 = arith.subf %10, %11 : vector<128x128xf32>
    %cst_7 = arith.constant 9.99999974E-6 : f32
    %13 = vector.broadcast %cst_7 : f32 to vector<1x128xf32>
    %14 = arith.addf %9, %13 : vector<1x128xf32>
    %15 = math.rsqrt %14 : vector<1x128xf32>
    %16 = vector.broadcast %15 : vector<1x128xf32> to vector<128x128xf32>
    %17 = arith.mulf %12, %16 : vector<128x128xf32>
    %c0_8 = arith.constant 0 : index
    %c0_9 = arith.constant 0 : index
    %18 = vector.load %arg4[%c0_8, %c0_9] : memref<1x128xf32, #tpu.memory_space<vmem>>, vector<1x128xf32>
    %19 = vector.broadcast %18 : vector<1x128xf32> to vector<128x128xf32>
    %20 = arith.mulf %17, %19 : vector<128x128xf32>
    %c0_10 = arith.constant 0 : index
    %c0_11 = arith.constant 0 : index
    %21 = vector.load %arg5[%c0_10, %c0_11] : memref<1x128xf32, #tpu.memory_space<vmem>>, vector<1x128xf32>
    %22 = vector.broadcast %21 : vector<1x128xf32> to vector<128x128xf32>
    %23 = arith.addf %20, %22 : vector<128x128xf32>
    %cst_12 = arith.constant 0.000000e+00 : f32
    %24 = vector.broadcast %cst_12 : f32 to vector<128x128xf32>
    %25 = arith.maximumf %23, %24 : vector<128x128xf32>
    %26 = arith.truncf %25 : vector<128x128xf32> to vector<128x128xbf16>
    %c0_13 = arith.constant 0 : index
    %c0_14 = arith.constant 0 : index
    %27 = vector.load %arg6[%c0_13, %c0_14] : memref<128x128xbf16, #tpu.memory_space<vmem>>, vector<128x128xbf16>
    tpu.vector_store %arg6[%c0_13, %c0_14], %26 {strides = array<i32>} : memref<128x128xbf16, #tpu.memory_space<vmem>>, vector<128x128xbf16>,
    return
  }
  func.func @transform_0(%arg0: i32) -> (i32, i32) {
    %c0_i32 = arith.constant 0 : i32
    %c0_i32_0 = arith.constant 0 : i32
    return %arg0, %c0_i32 : i32, i32
  }
  func.func @transform_1(%arg0: i32) -> (i32, i32) {
    %c0_i32 = arith.constant 0 : i32
    %c0_i32_0 = arith.constant 0 : i32
    %c0_i32_1 = arith.constant 0 : i32
    return %c0_i32, %c0_i32_0 : i32, i32
  }
  func.func @transform_2(%arg0: i32) -> (i32, i32) {
    %c0_i32 = arith.constant 0 : i32
    %c0_i32_0 = arith.constant 0 : i32
    %c0_i32_1 = arith.constant 0 : i32
    return %c0_i32, %c0_i32_0 : i32, i32
  }
  func.func @transform_3(%arg0: i32) -> (i32, i32) {
    %c0_i32 = arith.constant 0 : i32
    %c0_i32_0 = arith.constant 0 : i32
    %c0_i32_1 = arith.constant 0 : i32
    return %c0_i32, %c0_i32_0 : i32, i32
  }
  func.func @transform_4(%arg0: i32) -> (i32, i32) {
    %c0_i32 = arith.constant 0 : i32
    %c0_i32_0 = arith.constant 0 : i32
    %c0_i32_1 = arith.constant 0 : i32
    return %c0_i32, %c0_i32_0 : i32, i32
  }
  func.func @transform_5(%arg0: i32) -> (i32, i32) {
    %c0_i32 = arith.constant 0 : i32
    %c0_i32_0 = arith.constant 0 : i32
    return %arg0, %c0_i32 : i32, i32
  }
}

module attributes {stable_mosaic.version = 11 : i64} {
  func.func @_gemm_stats_kernel(%arg0: i32, %arg1: memref<128x384xbf16, #tpu.memory_space<vmem>>, %arg2: memref<384x128xbf16, #tpu.memory_space<vmem>>, %arg3: memref<1x128xf32, #tpu.memory_space<vmem>>, %arg4: memref<128x128xf32, #tpu.memory_space<vmem>>, %arg5: memref<1x128xf32, #tpu.memory_space<vmem>>, %arg6: memref<1x128xf32, #tpu.memory_space<vmem>>) attributes {dimension_semantics = [#tpu.dimension_semantics<arbitrary>], iteration_bounds = array<i64: 1>, scalar_prefetch = 0 : i64, scratch_operands = 0 : i64, tpu.core_type = #tpu.core_type<tc>, window_params = [{transform_indices = @transform_0, window_bounds = array<i64: 128, 384>}, {pipeline_mode = #tpu.pipeline_mode<synchronous>, transform_indices = @transform_1, window_bounds = array<i64: 384, 128>}, {pipeline_mode = #tpu.pipeline_mode<synchronous>, transform_indices = @transform_2, window_bounds = array<i64: 1, 128>}, {transform_indices = @transform_3, window_bounds = array<i64: 128, 128>}, {pipeline_mode = #tpu.pipeline_mode<synchronous>, transform_indices = @transform_4, window_bounds = array<i64: 1, 128>}, {pipeline_mode = #tpu.pipeline_mode<synchronous>, transform_indices = @transform_5, window_bounds = array<i64: 1, 128>}]} {
    %c0 = arith.constant 0 : index
    %c0_0 = arith.constant 0 : index
    %0 = vector.load %arg1[%c0, %c0_0] : memref<128x384xbf16, #tpu.memory_space<vmem>>, vector<128x384xbf16>
    %c0_1 = arith.constant 0 : index
    %c0_2 = arith.constant 0 : index
    %1 = vector.load %arg2[%c0_1, %c0_2] : memref<384x128xbf16, #tpu.memory_space<vmem>>, vector<384x128xbf16>
    %cst = arith.constant dense<0.000000e+00> : vector<128x128xf32>
    %2 = tpu.matmul %0, %1, %cst {dimension_numbers = #tpu.dot_dimension_numbers<[1], [0], [0], [1], [0, 0, 1, 1], [], []>} : vector<128x384xbf16>, vector<384x128xbf16>, vector<128x128xf32> -> vector<128x128xf32>
    %c0_3 = arith.constant 0 : index
    %c0_4 = arith.constant 0 : index
    %3 = vector.load %arg3[%c0_3, %c0_4] : memref<1x128xf32, #tpu.memory_space<vmem>>, vector<1x128xf32>
    %4 = vector.broadcast %3 : vector<1x128xf32> to vector<128x128xf32>
    %5 = arith.addf %2, %4 : vector<128x128xf32>
    %c0_5 = arith.constant 0 : index
    %c0_6 = arith.constant 0 : index
    %6 = vector.load %arg4[%c0_5, %c0_6] : memref<128x128xf32, #tpu.memory_space<vmem>>, vector<128x128xf32>
    tpu.vector_store %arg4[%c0_5, %c0_6], %5 {strides = array<i32>} : memref<128x128xf32, #tpu.memory_space<vmem>>, vector<128x128xf32>,
    %7 = tpu.iota {dimensions = array<i32: 0>} : vector<128x1xi32>
    %c128_i32 = arith.constant 128 : i32
    %8 = arith.muli %arg0, %c128_i32 : i32
    %9 = vector.broadcast %8 : i32 to vector<128x1xi32>
    %10 = arith.addi %7, %9 : vector<128x1xi32>
    %c128_i32_7 = arith.constant 128 : i32
    %11 = vector.broadcast %c128_i32_7 : i32 to vector<128x1xi32>
    %12 = arith.cmpi slt, %10, %11 : vector<128x1xi32>
    %cst_8 = arith.constant 0.000000e+00 : f32
    %13 = vector.shape_cast %12 : vector<128x1xi1> to vector<128x1xi1>
    %14 = vector.broadcast %13 : vector<128x1xi1> to vector<128x128xi1>
    %15 = vector.broadcast %cst_8 : f32 to vector<128x128xf32>
    %16 = arith.select %14, %5, %15 : vector<128x128xi1>, vector<128x128xf32>
    %c0_i32 = arith.constant 0 : i32
    %17 = arith.cmpi eq, %arg0, %c0_i32 : i32
    %18 = arith.extui %17 : i1 to i32
    %c0_i32_9 = arith.constant 0 : i32
    %19 = arith.cmpi ne, %18, %c0_i32_9 : i32
    scf.if %19 {
      %cst_20 = arith.constant 0.000000e+00 : f32
      %31 = vector.broadcast %cst_20 : f32 to vector<1x128xf32>
      %c0_21 = arith.constant 0 : index
      %c0_22 = arith.constant 0 : index
      %32 = vector.load %arg5[%c0_21, %c0_22] : memref<1x128xf32, #tpu.memory_space<vmem>>, vector<1x128xf32>
      tpu.vector_store %arg5[%c0_21, %c0_22], %31 {strides = array<i32>} : memref<1x128xf32, #tpu.memory_space<vmem>>, vector<1x128xf32>,
      %cst_23 = arith.constant 0.000000e+00 : f32
      %33 = vector.broadcast %cst_23 : f32 to vector<1x128xf32>
      %c0_24 = arith.constant 0 : index
      %c0_25 = arith.constant 0 : index
      %34 = vector.load %arg6[%c0_24, %c0_25] : memref<1x128xf32, #tpu.memory_space<vmem>>, vector<1x128xf32>
      tpu.vector_store %arg6[%c0_24, %c0_25], %33 {strides = array<i32>} : memref<1x128xf32, #tpu.memory_space<vmem>>, vector<1x128xf32>,
    } else {
    }
    %c0_10 = arith.constant 0 : index
    %c0_11 = arith.constant 0 : index
    %20 = vector.load %arg5[%c0_10, %c0_11] : memref<1x128xf32, #tpu.memory_space<vmem>>, vector<1x128xf32>
    %cst_12 = arith.constant dense<0.000000e+00> : vector<128xf32>
    %21 = vector.multi_reduction <add>, %16, %cst_12 [0] : vector<128x128xf32> to vector<128xf32>
    %22 = vector.shape_cast %21 : vector<128xf32> to vector<1x128xf32>
    %23 = arith.addf %20, %22 : vector<1x128xf32>
    %c0_13 = arith.constant 0 : index
    %c0_14 = arith.constant 0 : index
    %24 = vector.load %arg5[%c0_13, %c0_14] : memref<1x128xf32, #tpu.memory_space<vmem>>, vector<1x128xf32>
    tpu.vector_store %arg5[%c0_13, %c0_14], %23 {strides = array<i32>} : memref<1x128xf32, #tpu.memory_space<vmem>>, vector<1x128xf32>,
    %c0_15 = arith.constant 0 : index
    %c0_16 = arith.constant 0 : index
    %25 = vector.load %arg6[%c0_15, %c0_16] : memref<1x128xf32, #tpu.memory_space<vmem>>, vector<1x128xf32>
    %26 = arith.mulf %16, %16 : vector<128x128xf32>
    %cst_17 = arith.constant dense<0.000000e+00> : vector<128xf32>
    %27 = vector.multi_reduction <add>, %26, %cst_17 [0] : vector<128x128xf32> to vector<128xf32>
    %28 = vector.shape_cast %27 : vector<128xf32> to vector<1x128xf32>
    %29 = arith.addf %25, %28 : vector<1x128xf32>
    %c0_18 = arith.constant 0 : index
    %c0_19 = arith.constant 0 : index
    %30 = vector.load %arg6[%c0_18, %c0_19] : memref<1x128xf32, #tpu.memory_space<vmem>>, vector<1x128xf32>
    tpu.vector_store %arg6[%c0_18, %c0_19], %29 {strides = array<i32>} : memref<1x128xf32, #tpu.memory_space<vmem>>, vector<1x128xf32>,
    return
  }
  func.func @transform_0(%arg0: i32) -> (i32, i32) {
    %c0_i32 = arith.constant 0 : i32
    %c0_i32_0 = arith.constant 0 : i32
    return %arg0, %c0_i32 : i32, i32
  }
  func.func @transform_1(%arg0: i32) -> (i32, i32) {
    %c0_i32 = arith.constant 0 : i32
    %c0_i32_0 = arith.constant 0 : i32
    %c0_i32_1 = arith.constant 0 : i32
    return %c0_i32, %c0_i32_0 : i32, i32
  }
  func.func @transform_2(%arg0: i32) -> (i32, i32) {
    %c0_i32 = arith.constant 0 : i32
    %c0_i32_0 = arith.constant 0 : i32
    %c0_i32_1 = arith.constant 0 : i32
    return %c0_i32, %c0_i32_0 : i32, i32
  }
  func.func @transform_3(%arg0: i32) -> (i32, i32) {
    %c0_i32 = arith.constant 0 : i32
    %c0_i32_0 = arith.constant 0 : i32
    return %arg0, %c0_i32 : i32, i32
  }
  func.func @transform_4(%arg0: i32) -> (i32, i32) {
    %c0_i32 = arith.constant 0 : i32
    %c0_i32_0 = arith.constant 0 : i32
    %c0_i32_1 = arith.constant 0 : i32
    return %c0_i32, %c0_i32_0 : i32, i32
  }
  func.func @transform_5(%arg0: i32) -> (i32, i32) {
    %c0_i32 = arith.constant 0 : i32
    %c0_i32_0 = arith.constant 0 : i32
    %c0_i32_1 = arith.constant 0 : i32
    return %c0_i32, %c0_i32_0 : i32, i32
  }
}

module attributes {stable_mosaic.version = 11 : i64} {
  func.func @_sa_kernel(%arg0: i32, %arg1: memref<1x64x128xbf16, #tpu.memory_space<vmem>>, %arg2: memref<128x384xbf16, #tpu.memory_space<vmem>>, %arg3: memref<1x384xf32, #tpu.memory_space<vmem>>, %arg4: memref<1x1xf32, #tpu.memory_space<smem>>, %arg5: memref<1x64x128xbf16, #tpu.memory_space<vmem>>) attributes {dimension_semantics = [#tpu.dimension_semantics<parallel>], iteration_bounds = array<i64: 2>, scalar_prefetch = 0 : i64, scratch_operands = 0 : i64, tpu.core_type = #tpu.core_type<tc>, window_params = [{transform_indices = @transform_0, window_bounds = array<i64: 1, 64, 128>}, {pipeline_mode = #tpu.pipeline_mode<synchronous>, transform_indices = @transform_1, window_bounds = array<i64: 128, 384>}, {pipeline_mode = #tpu.pipeline_mode<synchronous>, transform_indices = @transform_2, window_bounds = array<i64: 1, 384>}, {transform_indices = @transform_3, window_bounds = array<i64: 1, 1>}, {transform_indices = @transform_4, window_bounds = array<i64: 1, 64, 128>}]} {
    %c0 = arith.constant 0 : index
    %c0_0 = arith.constant 0 : index
    %c0_1 = arith.constant 0 : index
    %0 = vector.load %arg1[%c0, %c0_0, %c0_1] : memref<1x64x128xbf16, #tpu.memory_space<vmem>>, vector<1x64x128xbf16>
    %1 = vector.shape_cast %0 : vector<1x64x128xbf16> to vector<64x128xbf16>
    %c0_2 = arith.constant 0 : index
    %c0_3 = arith.constant 0 : index
    %2 = vector.load %arg2[%c0_2, %c0_3] : memref<128x384xbf16, #tpu.memory_space<vmem>>, vector<128x384xbf16>
    %cst = arith.constant dense<0.000000e+00> : vector<64x384xf32>
    %3 = tpu.matmul %1, %2, %cst {dimension_numbers = #tpu.dot_dimension_numbers<[1], [0], [0], [1], [0, 0, 1, 1], [], []>} : vector<64x128xbf16>, vector<128x384xbf16>, vector<64x384xf32> -> vector<64x384xf32>
    %c0_4 = arith.constant 0 : index
    %c0_5 = arith.constant 0 : index
    %4 = vector.load %arg3[%c0_4, %c0_5] : memref<1x384xf32, #tpu.memory_space<vmem>>, vector<1x384xf32>
    %5 = vector.broadcast %4 : vector<1x384xf32> to vector<64x384xf32>
    %6 = arith.addf %3, %5 : vector<64x384xf32>
    %7 = vector.extract_strided_slice %6 {offsets = [0, 0], sizes = [64, 128], strides = [1, 1]} : vector<64x384xf32> to vector<64x128xf32>
    %8 = arith.truncf %7 : vector<64x128xf32> to vector<64x128xbf16>
    %9 = vector.extract_strided_slice %6 {offsets = [0, 128], sizes = [64, 128], strides = [1, 1]} : vector<64x384xf32> to vector<64x128xf32>
    %10 = arith.truncf %9 : vector<64x128xf32> to vector<64x128xbf16>
    %11 = vector.extract_strided_slice %6 {offsets = [0, 256], sizes = [64, 128], strides = [1, 1]} : vector<64x384xf32> to vector<64x128xf32>
    %12 = arith.truncf %11 : vector<64x128xf32> to vector<64x128xbf16>
    %cst_6 = arith.constant dense<0.000000e+00> : vector<64x64xf32>
    %13 = tpu.matmul %8, %10, %cst_6 {dimension_numbers = #tpu.dot_dimension_numbers<[1], [1], [0], [0], [0, 0, 1, 0], [], []>} : vector<64x128xbf16>, vector<64x128xbf16>, vector<64x64xf32> -> vector<64x64xf32>
    %cst_7 = arith.constant dense<0xFF800000> : vector<64xf32>
    %14 = vector.multi_reduction <maximumf>, %13, %cst_7 [1] : vector<64x64xf32> to vector<64xf32>
    %15 = vector.shape_cast %14 : vector<64xf32> to vector<64x1xf32>
    %16 = vector.broadcast %15 : vector<64x1xf32> to vector<64x64xf32>
    %17 = arith.subf %13, %16 : vector<64x64xf32>
    %18 = math.exp %17 : vector<64x64xf32>
    %cst_8 = arith.constant dense<0.000000e+00> : vector<64xf32>
    %19 = vector.multi_reduction <add>, %18, %cst_8 [1] : vector<64x64xf32> to vector<64xf32>
    %20 = vector.shape_cast %19 : vector<64xf32> to vector<64x1xf32>
    %21 = tpu.reciprocal %20 : vector<64x1xf32> -> vector<64x1xf32>
    %22 = vector.broadcast %21 : vector<64x1xf32> to vector<64x64xf32>
    %23 = arith.mulf %18, %22 : vector<64x64xf32>
    %24 = arith.truncf %23 : vector<64x64xf32> to vector<64x64xbf16>
    %cst_9 = arith.constant dense<0.000000e+00> : vector<64x128xf32>
    %25 = tpu.matmul %24, %12, %cst_9 {dimension_numbers = #tpu.dot_dimension_numbers<[1], [0], [0], [1], [0, 0, 1, 1], [], []>} : vector<64x64xbf16>, vector<64x128xbf16>, vector<64x128xf32> -> vector<64x128xf32>
    %c0_10 = arith.constant 0 : index
    %c0_11 = arith.constant 0 : index
    %26 = memref.load %arg4[%c0_10, %c0_11] : memref<1x1xf32, #tpu.memory_space<smem>>
    %27 = vector.broadcast %26 : f32 to vector<64x128xf32>
    %28 = arith.mulf %27, %25 : vector<64x128xf32>
    %29 = arith.extf %1 : vector<64x128xbf16> to vector<64x128xf32>
    %30 = arith.addf %28, %29 : vector<64x128xf32>
    %31 = vector.shape_cast %30 : vector<64x128xf32> to vector<1x64x128xf32>
    %32 = arith.truncf %31 : vector<1x64x128xf32> to vector<1x64x128xbf16>
    %c0_12 = arith.constant 0 : index
    %c0_13 = arith.constant 0 : index
    %c0_14 = arith.constant 0 : index
    %33 = vector.load %arg5[%c0_12, %c0_13, %c0_14] : memref<1x64x128xbf16, #tpu.memory_space<vmem>>, vector<1x64x128xbf16>
    tpu.vector_store %arg5[%c0_12, %c0_13, %c0_14], %32 {strides = array<i32>} : memref<1x64x128xbf16, #tpu.memory_space<vmem>>, vector<1x64x128xbf16>,
    return
  }
  func.func @transform_0(%arg0: i32) -> (i32, i32, i32) {
    %c0_i32 = arith.constant 0 : i32
    %c0_i32_0 = arith.constant 0 : i32
    %c0_i32_1 = arith.constant 0 : i32
    return %arg0, %c0_i32, %c0_i32_0 : i32, i32, i32
  }
  func.func @transform_1(%arg0: i32) -> (i32, i32) {
    %c0_i32 = arith.constant 0 : i32
    %c0_i32_0 = arith.constant 0 : i32
    %c0_i32_1 = arith.constant 0 : i32
    return %c0_i32, %c0_i32_0 : i32, i32
  }
  func.func @transform_2(%arg0: i32) -> (i32, i32) {
    %c0_i32 = arith.constant 0 : i32
    %c0_i32_0 = arith.constant 0 : i32
    %c0_i32_1 = arith.constant 0 : i32
    return %c0_i32, %c0_i32_0 : i32, i32
  }
  func.func @transform_3(%arg0: i32) -> (i32, i32) {
    %c0_i32 = arith.constant 0 : i32
    %c0_i32_0 = arith.constant 0 : i32
    %c0_i32_1 = arith.constant 0 : i32
    return %c0_i32, %c0_i32_0 : i32, i32
  }
  func.func @transform_4(%arg0: i32) -> (i32, i32, i32) {
    %c0_i32 = arith.constant 0 : i32
    %c0_i32_0 = arith.constant 0 : i32
    %c0_i32_1 = arith.constant 0 : i32
    return %arg0, %c0_i32, %c0_i32_0 : i32, i32, i32
  }
}

module attributes {stable_mosaic.version = 11 : i64} {
  func.func @_bn_act_kernel(%arg0: i32, %arg1: memref<32x128xf32, #tpu.memory_space<vmem>>, %arg2: memref<1x128xf32, #tpu.memory_space<vmem>>, %arg3: memref<1x128xf32, #tpu.memory_space<vmem>>, %arg4: memref<1x128xf32, #tpu.memory_space<vmem>>, %arg5: memref<1x128xf32, #tpu.memory_space<vmem>>, %arg6: memref<32x128xbf16, #tpu.memory_space<vmem>>) attributes {dimension_semantics = [#tpu.dimension_semantics<parallel>], iteration_bounds = array<i64: 1>, scalar_prefetch = 0 : i64, scratch_operands = 0 : i64, tpu.core_type = #tpu.core_type<tc>, window_params = [{transform_indices = @transform_0, window_bounds = array<i64: 32, 128>}, {pipeline_mode = #tpu.pipeline_mode<synchronous>, transform_indices = @transform_1, window_bounds = array<i64: 1, 128>}, {pipeline_mode = #tpu.pipeline_mode<synchronous>, transform_indices = @transform_2, window_bounds = array<i64: 1, 128>}, {pipeline_mode = #tpu.pipeline_mode<synchronous>, transform_indices = @transform_3, window_bounds = array<i64: 1, 128>}, {pipeline_mode = #tpu.pipeline_mode<synchronous>, transform_indices = @transform_4, window_bounds = array<i64: 1, 128>}, {transform_indices = @transform_5, window_bounds = array<i64: 32, 128>}]} {
    %c0 = arith.constant 0 : index
    %c0_0 = arith.constant 0 : index
    %0 = vector.load %arg2[%c0, %c0_0] : memref<1x128xf32, #tpu.memory_space<vmem>>, vector<1x128xf32>
    %cst = arith.constant 3.125000e-02 : f32
    %1 = vector.broadcast %cst : f32 to vector<1x128xf32>
    %2 = arith.mulf %0, %1 : vector<1x128xf32>
    %c0_1 = arith.constant 0 : index
    %c0_2 = arith.constant 0 : index
    %3 = vector.load %arg3[%c0_1, %c0_2] : memref<1x128xf32, #tpu.memory_space<vmem>>, vector<1x128xf32>
    %cst_3 = arith.constant 3.125000e-02 : f32
    %4 = vector.broadcast %cst_3 : f32 to vector<1x128xf32>
    %5 = arith.mulf %3, %4 : vector<1x128xf32>
    %6 = arith.mulf %2, %2 : vector<1x128xf32>
    %7 = arith.subf %5, %6 : vector<1x128xf32>
    %cst_4 = arith.constant 0.000000e+00 : f32
    %8 = vector.broadcast %cst_4 : f32 to vector<1x128xf32>
    %9 = arith.maximumf %7, %8 : vector<1x128xf32>
    %c0_5 = arith.constant 0 : index
    %c0_6 = arith.constant 0 : index
    %10 = vector.load %arg1[%c0_5, %c0_6] : memref<32x128xf32, #tpu.memory_space<vmem>>, vector<32x128xf32>
    %11 = vector.broadcast %2 : vector<1x128xf32> to vector<32x128xf32>
    %12 = arith.subf %10, %11 : vector<32x128xf32>
    %cst_7 = arith.constant 9.99999974E-6 : f32
    %13 = vector.broadcast %cst_7 : f32 to vector<1x128xf32>
    %14 = arith.addf %9, %13 : vector<1x128xf32>
    %15 = math.rsqrt %14 : vector<1x128xf32>
    %16 = vector.broadcast %15 : vector<1x128xf32> to vector<32x128xf32>
    %17 = arith.mulf %12, %16 : vector<32x128xf32>
    %c0_8 = arith.constant 0 : index
    %c0_9 = arith.constant 0 : index
    %18 = vector.load %arg4[%c0_8, %c0_9] : memref<1x128xf32, #tpu.memory_space<vmem>>, vector<1x128xf32>
    %19 = vector.broadcast %18 : vector<1x128xf32> to vector<32x128xf32>
    %20 = arith.mulf %17, %19 : vector<32x128xf32>
    %c0_10 = arith.constant 0 : index
    %c0_11 = arith.constant 0 : index
    %21 = vector.load %arg5[%c0_10, %c0_11] : memref<1x128xf32, #tpu.memory_space<vmem>>, vector<1x128xf32>
    %22 = vector.broadcast %21 : vector<1x128xf32> to vector<32x128xf32>
    %23 = arith.addf %20, %22 : vector<32x128xf32>
    %cst_12 = arith.constant 0.000000e+00 : f32
    %24 = vector.broadcast %cst_12 : f32 to vector<32x128xf32>
    %25 = arith.maximumf %23, %24 : vector<32x128xf32>
    %26 = arith.truncf %25 : vector<32x128xf32> to vector<32x128xbf16>
    %c0_13 = arith.constant 0 : index
    %c0_14 = arith.constant 0 : index
    %27 = vector.load %arg6[%c0_13, %c0_14] : memref<32x128xbf16, #tpu.memory_space<vmem>>, vector<32x128xbf16>
    tpu.vector_store %arg6[%c0_13, %c0_14], %26 {strides = array<i32>} : memref<32x128xbf16, #tpu.memory_space<vmem>>, vector<32x128xbf16>,
    return
  }
  func.func @transform_0(%arg0: i32) -> (i32, i32) {
    %c0_i32 = arith.constant 0 : i32
    %c0_i32_0 = arith.constant 0 : i32
    return %arg0, %c0_i32 : i32, i32
  }
  func.func @transform_1(%arg0: i32) -> (i32, i32) {
    %c0_i32 = arith.constant 0 : i32
    %c0_i32_0 = arith.constant 0 : i32
    %c0_i32_1 = arith.constant 0 : i32
    return %c0_i32, %c0_i32_0 : i32, i32
  }
  func.func @transform_2(%arg0: i32) -> (i32, i32) {
    %c0_i32 = arith.constant 0 : i32
    %c0_i32_0 = arith.constant 0 : i32
    %c0_i32_1 = arith.constant 0 : i32
    return %c0_i32, %c0_i32_0 : i32, i32
  }
  func.func @transform_3(%arg0: i32) -> (i32, i32) {
    %c0_i32 = arith.constant 0 : i32
    %c0_i32_0 = arith.constant 0 : i32
    %c0_i32_1 = arith.constant 0 : i32
    return %c0_i32, %c0_i32_0 : i32, i32
  }
  func.func @transform_4(%arg0: i32) -> (i32, i32) {
    %c0_i32 = arith.constant 0 : i32
    %c0_i32_0 = arith.constant 0 : i32
    %c0_i32_1 = arith.constant 0 : i32
    return %c0_i32, %c0_i32_0 : i32, i32
  }
  func.func @transform_5(%arg0: i32) -> (i32, i32) {
    %c0_i32 = arith.constant 0 : i32
    %c0_i32_0 = arith.constant 0 : i32
    return %arg0, %c0_i32 : i32, i32
  }
}

module attributes {stable_mosaic.version = 11 : i64} {
  func.func @_gemm_stats_kernel(%arg0: i32, %arg1: memref<32x384xbf16, #tpu.memory_space<vmem>>, %arg2: memref<384x128xbf16, #tpu.memory_space<vmem>>, %arg3: memref<1x128xf32, #tpu.memory_space<vmem>>, %arg4: memref<32x128xf32, #tpu.memory_space<vmem>>, %arg5: memref<1x128xf32, #tpu.memory_space<vmem>>, %arg6: memref<1x128xf32, #tpu.memory_space<vmem>>) attributes {dimension_semantics = [#tpu.dimension_semantics<arbitrary>], iteration_bounds = array<i64: 1>, scalar_prefetch = 0 : i64, scratch_operands = 0 : i64, tpu.core_type = #tpu.core_type<tc>, window_params = [{transform_indices = @transform_0, window_bounds = array<i64: 32, 384>}, {pipeline_mode = #tpu.pipeline_mode<synchronous>, transform_indices = @transform_1, window_bounds = array<i64: 384, 128>}, {pipeline_mode = #tpu.pipeline_mode<synchronous>, transform_indices = @transform_2, window_bounds = array<i64: 1, 128>}, {transform_indices = @transform_3, window_bounds = array<i64: 32, 128>}, {pipeline_mode = #tpu.pipeline_mode<synchronous>, transform_indices = @transform_4, window_bounds = array<i64: 1, 128>}, {pipeline_mode = #tpu.pipeline_mode<synchronous>, transform_indices = @transform_5, window_bounds = array<i64: 1, 128>}]} {
    %c0 = arith.constant 0 : index
    %c0_0 = arith.constant 0 : index
    %0 = vector.load %arg1[%c0, %c0_0] : memref<32x384xbf16, #tpu.memory_space<vmem>>, vector<32x384xbf16>
    %c0_1 = arith.constant 0 : index
    %c0_2 = arith.constant 0 : index
    %1 = vector.load %arg2[%c0_1, %c0_2] : memref<384x128xbf16, #tpu.memory_space<vmem>>, vector<384x128xbf16>
    %cst = arith.constant dense<0.000000e+00> : vector<32x128xf32>
    %2 = tpu.matmul %0, %1, %cst {dimension_numbers = #tpu.dot_dimension_numbers<[1], [0], [0], [1], [0, 0, 1, 1], [], []>} : vector<32x384xbf16>, vector<384x128xbf16>, vector<32x128xf32> -> vector<32x128xf32>
    %c0_3 = arith.constant 0 : index
    %c0_4 = arith.constant 0 : index
    %3 = vector.load %arg3[%c0_3, %c0_4] : memref<1x128xf32, #tpu.memory_space<vmem>>, vector<1x128xf32>
    %4 = vector.broadcast %3 : vector<1x128xf32> to vector<32x128xf32>
    %5 = arith.addf %2, %4 : vector<32x128xf32>
    %c0_5 = arith.constant 0 : index
    %c0_6 = arith.constant 0 : index
    %6 = vector.load %arg4[%c0_5, %c0_6] : memref<32x128xf32, #tpu.memory_space<vmem>>, vector<32x128xf32>
    tpu.vector_store %arg4[%c0_5, %c0_6], %5 {strides = array<i32>} : memref<32x128xf32, #tpu.memory_space<vmem>>, vector<32x128xf32>,
    %7 = tpu.iota {dimensions = array<i32: 0>} : vector<32x1xi32>
    %c32_i32 = arith.constant 32 : i32
    %8 = arith.muli %arg0, %c32_i32 : i32
    %9 = vector.broadcast %8 : i32 to vector<32x1xi32>
    %10 = arith.addi %7, %9 : vector<32x1xi32>
    %c32_i32_7 = arith.constant 32 : i32
    %11 = vector.broadcast %c32_i32_7 : i32 to vector<32x1xi32>
    %12 = arith.cmpi slt, %10, %11 : vector<32x1xi32>
    %cst_8 = arith.constant 0.000000e+00 : f32
    %13 = vector.shape_cast %12 : vector<32x1xi1> to vector<32x1xi1>
    %14 = vector.broadcast %13 : vector<32x1xi1> to vector<32x128xi1>
    %15 = vector.broadcast %cst_8 : f32 to vector<32x128xf32>
    %16 = arith.select %14, %5, %15 : vector<32x128xi1>, vector<32x128xf32>
    %c0_i32 = arith.constant 0 : i32
    %17 = arith.cmpi eq, %arg0, %c0_i32 : i32
    %18 = arith.extui %17 : i1 to i32
    %c0_i32_9 = arith.constant 0 : i32
    %19 = arith.cmpi ne, %18, %c0_i32_9 : i32
    scf.if %19 {
      %cst_20 = arith.constant 0.000000e+00 : f32
      %31 = vector.broadcast %cst_20 : f32 to vector<1x128xf32>
      %c0_21 = arith.constant 0 : index
      %c0_22 = arith.constant 0 : index
      %32 = vector.load %arg5[%c0_21, %c0_22] : memref<1x128xf32, #tpu.memory_space<vmem>>, vector<1x128xf32>
      tpu.vector_store %arg5[%c0_21, %c0_22], %31 {strides = array<i32>} : memref<1x128xf32, #tpu.memory_space<vmem>>, vector<1x128xf32>,
      %cst_23 = arith.constant 0.000000e+00 : f32
      %33 = vector.broadcast %cst_23 : f32 to vector<1x128xf32>
      %c0_24 = arith.constant 0 : index
      %c0_25 = arith.constant 0 : index
      %34 = vector.load %arg6[%c0_24, %c0_25] : memref<1x128xf32, #tpu.memory_space<vmem>>, vector<1x128xf32>
      tpu.vector_store %arg6[%c0_24, %c0_25], %33 {strides = array<i32>} : memref<1x128xf32, #tpu.memory_space<vmem>>, vector<1x128xf32>,
    } else {
    }
    %c0_10 = arith.constant 0 : index
    %c0_11 = arith.constant 0 : index
    %20 = vector.load %arg5[%c0_10, %c0_11] : memref<1x128xf32, #tpu.memory_space<vmem>>, vector<1x128xf32>
    %cst_12 = arith.constant dense<0.000000e+00> : vector<128xf32>
    %21 = vector.multi_reduction <add>, %16, %cst_12 [0] : vector<32x128xf32> to vector<128xf32>
    %22 = vector.shape_cast %21 : vector<128xf32> to vector<1x128xf32>
    %23 = arith.addf %20, %22 : vector<1x128xf32>
    %c0_13 = arith.constant 0 : index
    %c0_14 = arith.constant 0 : index
    %24 = vector.load %arg5[%c0_13, %c0_14] : memref<1x128xf32, #tpu.memory_space<vmem>>, vector<1x128xf32>
    tpu.vector_store %arg5[%c0_13, %c0_14], %23 {strides = array<i32>} : memref<1x128xf32, #tpu.memory_space<vmem>>, vector<1x128xf32>,
    %c0_15 = arith.constant 0 : index
    %c0_16 = arith.constant 0 : index
    %25 = vector.load %arg6[%c0_15, %c0_16] : memref<1x128xf32, #tpu.memory_space<vmem>>, vector<1x128xf32>
    %26 = arith.mulf %16, %16 : vector<32x128xf32>
    %cst_17 = arith.constant dense<0.000000e+00> : vector<128xf32>
    %27 = vector.multi_reduction <add>, %26, %cst_17 [0] : vector<32x128xf32> to vector<128xf32>
    %28 = vector.shape_cast %27 : vector<128xf32> to vector<1x128xf32>
    %29 = arith.addf %25, %28 : vector<1x128xf32>
    %c0_18 = arith.constant 0 : index
    %c0_19 = arith.constant 0 : index
    %30 = vector.load %arg6[%c0_18, %c0_19] : memref<1x128xf32, #tpu.memory_space<vmem>>, vector<1x128xf32>
    tpu.vector_store %arg6[%c0_18, %c0_19], %29 {strides = array<i32>} : memref<1x128xf32, #tpu.memory_space<vmem>>, vector<1x128xf32>,
    return
  }
  func.func @transform_0(%arg0: i32) -> (i32, i32) {
    %c0_i32 = arith.constant 0 : i32
    %c0_i32_0 = arith.constant 0 : i32
    return %arg0, %c0_i32 : i32, i32
  }
  func.func @transform_1(%arg0: i32) -> (i32, i32) {
    %c0_i32 = arith.constant 0 : i32
    %c0_i32_0 = arith.constant 0 : i32
    %c0_i32_1 = arith.constant 0 : i32
    return %c0_i32, %c0_i32_0 : i32, i32
  }
  func.func @transform_2(%arg0: i32) -> (i32, i32) {
    %c0_i32 = arith.constant 0 : i32
    %c0_i32_0 = arith.constant 0 : i32
    %c0_i32_1 = arith.constant 0 : i32
    return %c0_i32, %c0_i32_0 : i32, i32
  }
  func.func @transform_3(%arg0: i32) -> (i32, i32) {
    %c0_i32 = arith.constant 0 : i32
    %c0_i32_0 = arith.constant 0 : i32
    return %arg0, %c0_i32 : i32, i32
  }
  func.func @transform_4(%arg0: i32) -> (i32, i32) {
    %c0_i32 = arith.constant 0 : i32
    %c0_i32_0 = arith.constant 0 : i32
    %c0_i32_1 = arith.constant 0 : i32
    return %c0_i32, %c0_i32_0 : i32, i32
  }
  func.func @transform_5(%arg0: i32) -> (i32, i32) {
    %c0_i32 = arith.constant 0 : i32
    %c0_i32_0 = arith.constant 0 : i32
    %c0_i32_1 = arith.constant 0 : i32
    return %c0_i32, %c0_i32_0 : i32, i32
  }
}

module attributes {stable_mosaic.version = 11 : i64} {
  func.func @_gemm_stats_kernel(%arg0: i32, %arg1: memref<32x640xbf16, #tpu.memory_space<vmem>>, %arg2: memref<640x128xbf16, #tpu.memory_space<vmem>>, %arg3: memref<1x128xf32, #tpu.memory_space<vmem>>, %arg4: memref<32x128xf32, #tpu.memory_space<vmem>>, %arg5: memref<1x128xf32, #tpu.memory_space<vmem>>, %arg6: memref<1x128xf32, #tpu.memory_space<vmem>>) attributes {dimension_semantics = [#tpu.dimension_semantics<arbitrary>], iteration_bounds = array<i64: 1>, scalar_prefetch = 0 : i64, scratch_operands = 0 : i64, tpu.core_type = #tpu.core_type<tc>, window_params = [{transform_indices = @transform_0, window_bounds = array<i64: 32, 640>}, {pipeline_mode = #tpu.pipeline_mode<synchronous>, transform_indices = @transform_1, window_bounds = array<i64: 640, 128>}, {pipeline_mode = #tpu.pipeline_mode<synchronous>, transform_indices = @transform_2, window_bounds = array<i64: 1, 128>}, {transform_indices = @transform_3, window_bounds = array<i64: 32, 128>}, {pipeline_mode = #tpu.pipeline_mode<synchronous>, transform_indices = @transform_4, window_bounds = array<i64: 1, 128>}, {pipeline_mode = #tpu.pipeline_mode<synchronous>, transform_indices = @transform_5, window_bounds = array<i64: 1, 128>}]} {
    %c0 = arith.constant 0 : index
    %c0_0 = arith.constant 0 : index
    %0 = vector.load %arg1[%c0, %c0_0] : memref<32x640xbf16, #tpu.memory_space<vmem>>, vector<32x640xbf16>
    %c0_1 = arith.constant 0 : index
    %c0_2 = arith.constant 0 : index
    %1 = vector.load %arg2[%c0_1, %c0_2] : memref<640x128xbf16, #tpu.memory_space<vmem>>, vector<640x128xbf16>
    %cst = arith.constant dense<0.000000e+00> : vector<32x128xf32>
    %2 = tpu.matmul %0, %1, %cst {dimension_numbers = #tpu.dot_dimension_numbers<[1], [0], [0], [1], [0, 0, 1, 1], [], []>} : vector<32x640xbf16>, vector<640x128xbf16>, vector<32x128xf32> -> vector<32x128xf32>
    %c0_3 = arith.constant 0 : index
    %c0_4 = arith.constant 0 : index
    %3 = vector.load %arg3[%c0_3, %c0_4] : memref<1x128xf32, #tpu.memory_space<vmem>>, vector<1x128xf32>
    %4 = vector.broadcast %3 : vector<1x128xf32> to vector<32x128xf32>
    %5 = arith.addf %2, %4 : vector<32x128xf32>
    %c0_5 = arith.constant 0 : index
    %c0_6 = arith.constant 0 : index
    %6 = vector.load %arg4[%c0_5, %c0_6] : memref<32x128xf32, #tpu.memory_space<vmem>>, vector<32x128xf32>
    tpu.vector_store %arg4[%c0_5, %c0_6], %5 {strides = array<i32>} : memref<32x128xf32, #tpu.memory_space<vmem>>, vector<32x128xf32>,
    %7 = tpu.iota {dimensions = array<i32: 0>} : vector<32x1xi32>
    %c32_i32 = arith.constant 32 : i32
    %8 = arith.muli %arg0, %c32_i32 : i32
    %9 = vector.broadcast %8 : i32 to vector<32x1xi32>
    %10 = arith.addi %7, %9 : vector<32x1xi32>
    %c32_i32_7 = arith.constant 32 : i32
    %11 = vector.broadcast %c32_i32_7 : i32 to vector<32x1xi32>
    %12 = arith.cmpi slt, %10, %11 : vector<32x1xi32>
    %cst_8 = arith.constant 0.000000e+00 : f32
    %13 = vector.shape_cast %12 : vector<32x1xi1> to vector<32x1xi1>
    %14 = vector.broadcast %13 : vector<32x1xi1> to vector<32x128xi1>
    %15 = vector.broadcast %cst_8 : f32 to vector<32x128xf32>
    %16 = arith.select %14, %5, %15 : vector<32x128xi1>, vector<32x128xf32>
    %c0_i32 = arith.constant 0 : i32
    %17 = arith.cmpi eq, %arg0, %c0_i32 : i32
    %18 = arith.extui %17 : i1 to i32
    %c0_i32_9 = arith.constant 0 : i32
    %19 = arith.cmpi ne, %18, %c0_i32_9 : i32
    scf.if %19 {
      %cst_20 = arith.constant 0.000000e+00 : f32
      %31 = vector.broadcast %cst_20 : f32 to vector<1x128xf32>
      %c0_21 = arith.constant 0 : index
      %c0_22 = arith.constant 0 : index
      %32 = vector.load %arg5[%c0_21, %c0_22] : memref<1x128xf32, #tpu.memory_space<vmem>>, vector<1x128xf32>
      tpu.vector_store %arg5[%c0_21, %c0_22], %31 {strides = array<i32>} : memref<1x128xf32, #tpu.memory_space<vmem>>, vector<1x128xf32>,
      %cst_23 = arith.constant 0.000000e+00 : f32
      %33 = vector.broadcast %cst_23 : f32 to vector<1x128xf32>
      %c0_24 = arith.constant 0 : index
      %c0_25 = arith.constant 0 : index
      %34 = vector.load %arg6[%c0_24, %c0_25] : memref<1x128xf32, #tpu.memory_space<vmem>>, vector<1x128xf32>
      tpu.vector_store %arg6[%c0_24, %c0_25], %33 {strides = array<i32>} : memref<1x128xf32, #tpu.memory_space<vmem>>, vector<1x128xf32>,
    } else {
    }
    %c0_10 = arith.constant 0 : index
    %c0_11 = arith.constant 0 : index
    %20 = vector.load %arg5[%c0_10, %c0_11] : memref<1x128xf32, #tpu.memory_space<vmem>>, vector<1x128xf32>
    %cst_12 = arith.constant dense<0.000000e+00> : vector<128xf32>
    %21 = vector.multi_reduction <add>, %16, %cst_12 [0] : vector<32x128xf32> to vector<128xf32>
    %22 = vector.shape_cast %21 : vector<128xf32> to vector<1x128xf32>
    %23 = arith.addf %20, %22 : vector<1x128xf32>
    %c0_13 = arith.constant 0 : index
    %c0_14 = arith.constant 0 : index
    %24 = vector.load %arg5[%c0_13, %c0_14] : memref<1x128xf32, #tpu.memory_space<vmem>>, vector<1x128xf32>
    tpu.vector_store %arg5[%c0_13, %c0_14], %23 {strides = array<i32>} : memref<1x128xf32, #tpu.memory_space<vmem>>, vector<1x128xf32>,
    %c0_15 = arith.constant 0 : index
    %c0_16 = arith.constant 0 : index
    %25 = vector.load %arg6[%c0_15, %c0_16] : memref<1x128xf32, #tpu.memory_space<vmem>>, vector<1x128xf32>
    %26 = arith.mulf %16, %16 : vector<32x128xf32>
    %cst_17 = arith.constant dense<0.000000e+00> : vector<128xf32>
    %27 = vector.multi_reduction <add>, %26, %cst_17 [0] : vector<32x128xf32> to vector<128xf32>
    %28 = vector.shape_cast %27 : vector<128xf32> to vector<1x128xf32>
    %29 = arith.addf %25, %28 : vector<1x128xf32>
    %c0_18 = arith.constant 0 : index
    %c0_19 = arith.constant 0 : index
    %30 = vector.load %arg6[%c0_18, %c0_19] : memref<1x128xf32, #tpu.memory_space<vmem>>, vector<1x128xf32>
    tpu.vector_store %arg6[%c0_18, %c0_19], %29 {strides = array<i32>} : memref<1x128xf32, #tpu.memory_space<vmem>>, vector<1x128xf32>,
    return
  }
  func.func @transform_0(%arg0: i32) -> (i32, i32) {
    %c0_i32 = arith.constant 0 : i32
    %c0_i32_0 = arith.constant 0 : i32
    return %arg0, %c0_i32 : i32, i32
  }
  func.func @transform_1(%arg0: i32) -> (i32, i32) {
    %c0_i32 = arith.constant 0 : i32
    %c0_i32_0 = arith.constant 0 : i32
    %c0_i32_1 = arith.constant 0 : i32
    return %c0_i32, %c0_i32_0 : i32, i32
  }
  func.func @transform_2(%arg0: i32) -> (i32, i32) {
    %c0_i32 = arith.constant 0 : i32
    %c0_i32_0 = arith.constant 0 : i32
    %c0_i32_1 = arith.constant 0 : i32
    return %c0_i32, %c0_i32_0 : i32, i32
  }
  func.func @transform_3(%arg0: i32) -> (i32, i32) {
    %c0_i32 = arith.constant 0 : i32
    %c0_i32_0 = arith.constant 0 : i32
    return %arg0, %c0_i32 : i32, i32
  }
  func.func @transform_4(%arg0: i32) -> (i32, i32) {
    %c0_i32 = arith.constant 0 : i32
    %c0_i32_0 = arith.constant 0 : i32
    %c0_i32_1 = arith.constant 0 : i32
    return %c0_i32, %c0_i32_0 : i32, i32
  }
  func.func @transform_5(%arg0: i32) -> (i32, i32) {
    %c0_i32 = arith.constant 0 : i32
    %c0_i32_0 = arith.constant 0 : i32
    %c0_i32_1 = arith.constant 0 : i32
    return %c0_i32, %c0_i32_0 : i32, i32
  }
}

module attributes {stable_mosaic.version = 11 : i64} {
  func.func @_sa_kernel(%arg0: i32, %arg1: memref<1x16x128xbf16, #tpu.memory_space<vmem>>, %arg2: memref<128x384xbf16, #tpu.memory_space<vmem>>, %arg3: memref<1x384xf32, #tpu.memory_space<vmem>>, %arg4: memref<1x1xf32, #tpu.memory_space<smem>>, %arg5: memref<1x16x128xbf16, #tpu.memory_space<vmem>>) attributes {dimension_semantics = [#tpu.dimension_semantics<parallel>], iteration_bounds = array<i64: 2>, scalar_prefetch = 0 : i64, scratch_operands = 0 : i64, tpu.core_type = #tpu.core_type<tc>, window_params = [{transform_indices = @transform_0, window_bounds = array<i64: 1, 16, 128>}, {pipeline_mode = #tpu.pipeline_mode<synchronous>, transform_indices = @transform_1, window_bounds = array<i64: 128, 384>}, {pipeline_mode = #tpu.pipeline_mode<synchronous>, transform_indices = @transform_2, window_bounds = array<i64: 1, 384>}, {transform_indices = @transform_3, window_bounds = array<i64: 1, 1>}, {transform_indices = @transform_4, window_bounds = array<i64: 1, 16, 128>}]} {
    %c0 = arith.constant 0 : index
    %c0_0 = arith.constant 0 : index
    %c0_1 = arith.constant 0 : index
    %0 = vector.load %arg1[%c0, %c0_0, %c0_1] : memref<1x16x128xbf16, #tpu.memory_space<vmem>>, vector<1x16x128xbf16>
    %1 = vector.shape_cast %0 : vector<1x16x128xbf16> to vector<16x128xbf16>
    %c0_2 = arith.constant 0 : index
    %c0_3 = arith.constant 0 : index
    %2 = vector.load %arg2[%c0_2, %c0_3] : memref<128x384xbf16, #tpu.memory_space<vmem>>, vector<128x384xbf16>
    %cst = arith.constant dense<0.000000e+00> : vector<16x384xf32>
    %3 = tpu.matmul %1, %2, %cst {dimension_numbers = #tpu.dot_dimension_numbers<[1], [0], [0], [1], [0, 0, 1, 1], [], []>} : vector<16x128xbf16>, vector<128x384xbf16>, vector<16x384xf32> -> vector<16x384xf32>
    %c0_4 = arith.constant 0 : index
    %c0_5 = arith.constant 0 : index
    %4 = vector.load %arg3[%c0_4, %c0_5] : memref<1x384xf32, #tpu.memory_space<vmem>>, vector<1x384xf32>
    %5 = vector.broadcast %4 : vector<1x384xf32> to vector<16x384xf32>
    %6 = arith.addf %3, %5 : vector<16x384xf32>
    %7 = vector.extract_strided_slice %6 {offsets = [0, 0], sizes = [16, 128], strides = [1, 1]} : vector<16x384xf32> to vector<16x128xf32>
    %8 = arith.truncf %7 : vector<16x128xf32> to vector<16x128xbf16>
    %9 = vector.extract_strided_slice %6 {offsets = [0, 128], sizes = [16, 128], strides = [1, 1]} : vector<16x384xf32> to vector<16x128xf32>
    %10 = arith.truncf %9 : vector<16x128xf32> to vector<16x128xbf16>
    %11 = vector.extract_strided_slice %6 {offsets = [0, 256], sizes = [16, 128], strides = [1, 1]} : vector<16x384xf32> to vector<16x128xf32>
    %12 = arith.truncf %11 : vector<16x128xf32> to vector<16x128xbf16>
    %cst_6 = arith.constant dense<0.000000e+00> : vector<16x16xf32>
    %13 = tpu.matmul %8, %10, %cst_6 {dimension_numbers = #tpu.dot_dimension_numbers<[1], [1], [0], [0], [0, 0, 1, 0], [], []>} : vector<16x128xbf16>, vector<16x128xbf16>, vector<16x16xf32> -> vector<16x16xf32>
    %cst_7 = arith.constant dense<0xFF800000> : vector<16xf32>
    %14 = vector.multi_reduction <maximumf>, %13, %cst_7 [1] : vector<16x16xf32> to vector<16xf32>
    %15 = vector.shape_cast %14 : vector<16xf32> to vector<16x1xf32>
    %16 = vector.broadcast %15 : vector<16x1xf32> to vector<16x16xf32>
    %17 = arith.subf %13, %16 : vector<16x16xf32>
    %18 = math.exp %17 : vector<16x16xf32>
    %cst_8 = arith.constant dense<0.000000e+00> : vector<16xf32>
    %19 = vector.multi_reduction <add>, %18, %cst_8 [1] : vector<16x16xf32> to vector<16xf32>
    %20 = vector.shape_cast %19 : vector<16xf32> to vector<16x1xf32>
    %21 = tpu.reciprocal %20 : vector<16x1xf32> -> vector<16x1xf32>
    %22 = vector.broadcast %21 : vector<16x1xf32> to vector<16x16xf32>
    %23 = arith.mulf %18, %22 : vector<16x16xf32>
    %24 = arith.truncf %23 : vector<16x16xf32> to vector<16x16xbf16>
    %cst_9 = arith.constant dense<0.000000e+00> : vector<16x128xf32>
    %25 = tpu.matmul %24, %12, %cst_9 {dimension_numbers = #tpu.dot_dimension_numbers<[1], [0], [0], [1], [0, 0, 1, 1], [], []>} : vector<16x16xbf16>, vector<16x128xbf16>, vector<16x128xf32> -> vector<16x128xf32>
    %c0_10 = arith.constant 0 : index
    %c0_11 = arith.constant 0 : index
    %26 = memref.load %arg4[%c0_10, %c0_11] : memref<1x1xf32, #tpu.memory_space<smem>>
    %27 = vector.broadcast %26 : f32 to vector<16x128xf32>
    %28 = arith.mulf %27, %25 : vector<16x128xf32>
    %29 = arith.extf %1 : vector<16x128xbf16> to vector<16x128xf32>
    %30 = arith.addf %28, %29 : vector<16x128xf32>
    %31 = vector.shape_cast %30 : vector<16x128xf32> to vector<1x16x128xf32>
    %32 = arith.truncf %31 : vector<1x16x128xf32> to vector<1x16x128xbf16>
    %c0_12 = arith.constant 0 : index
    %c0_13 = arith.constant 0 : index
    %c0_14 = arith.constant 0 : index
    %33 = vector.load %arg5[%c0_12, %c0_13, %c0_14] : memref<1x16x128xbf16, #tpu.memory_space<vmem>>, vector<1x16x128xbf16>
    tpu.vector_store %arg5[%c0_12, %c0_13, %c0_14], %32 {strides = array<i32>} : memref<1x16x128xbf16, #tpu.memory_space<vmem>>, vector<1x16x128xbf16>,
    return
  }
  func.func @transform_0(%arg0: i32) -> (i32, i32, i32) {
    %c0_i32 = arith.constant 0 : i32
    %c0_i32_0 = arith.constant 0 : i32
    %c0_i32_1 = arith.constant 0 : i32
    return %arg0, %c0_i32, %c0_i32_0 : i32, i32, i32
  }
  func.func @transform_1(%arg0: i32) -> (i32, i32) {
    %c0_i32 = arith.constant 0 : i32
    %c0_i32_0 = arith.constant 0 : i32
    %c0_i32_1 = arith.constant 0 : i32
    return %c0_i32, %c0_i32_0 : i32, i32
  }
  func.func @transform_2(%arg0: i32) -> (i32, i32) {
    %c0_i32 = arith.constant 0 : i32
    %c0_i32_0 = arith.constant 0 : i32
    %c0_i32_1 = arith.constant 0 : i32
    return %c0_i32, %c0_i32_0 : i32, i32
  }
  func.func @transform_3(%arg0: i32) -> (i32, i32) {
    %c0_i32 = arith.constant 0 : i32
    %c0_i32_0 = arith.constant 0 : i32
    %c0_i32_1 = arith.constant 0 : i32
    return %c0_i32, %c0_i32_0 : i32, i32
  }
  func.func @transform_4(%arg0: i32) -> (i32, i32, i32) {
    %c0_i32 = arith.constant 0 : i32
    %c0_i32_0 = arith.constant 0 : i32
    %c0_i32_1 = arith.constant 0 : i32
    return %arg0, %c0_i32, %c0_i32_0 : i32, i32, i32
  }
}

module attributes {stable_mosaic.version = 11 : i64} {
  func.func @_gemm_kernel(%arg0: i32, %arg1: memref<32x128xbf16, #tpu.memory_space<vmem>>, %arg2: memref<128x128xbf16, #tpu.memory_space<vmem>>, %arg3: memref<1x128xf32, #tpu.memory_space<vmem>>, %arg4: memref<32x128xbf16, #tpu.memory_space<vmem>>) attributes {dimension_semantics = [#tpu.dimension_semantics<parallel>], iteration_bounds = array<i64: 1>, scalar_prefetch = 0 : i64, scratch_operands = 0 : i64, tpu.core_type = #tpu.core_type<tc>, window_params = [{transform_indices = @transform_0, window_bounds = array<i64: 32, 128>}, {pipeline_mode = #tpu.pipeline_mode<synchronous>, transform_indices = @transform_1, window_bounds = array<i64: 128, 128>}, {pipeline_mode = #tpu.pipeline_mode<synchronous>, transform_indices = @transform_2, window_bounds = array<i64: 1, 128>}, {transform_indices = @transform_3, window_bounds = array<i64: 32, 128>}]} {
    %c0 = arith.constant 0 : index
    %c0_0 = arith.constant 0 : index
    %0 = vector.load %arg1[%c0, %c0_0] : memref<32x128xbf16, #tpu.memory_space<vmem>>, vector<32x128xbf16>
    %c0_1 = arith.constant 0 : index
    %c0_2 = arith.constant 0 : index
    %1 = vector.load %arg2[%c0_1, %c0_2] : memref<128x128xbf16, #tpu.memory_space<vmem>>, vector<128x128xbf16>
    %cst = arith.constant dense<0.000000e+00> : vector<32x128xf32>
    %2 = tpu.matmul %0, %1, %cst {dimension_numbers = #tpu.dot_dimension_numbers<[1], [0], [0], [1], [0, 0, 1, 1], [], []>} : vector<32x128xbf16>, vector<128x128xbf16>, vector<32x128xf32> -> vector<32x128xf32>
    %c0_3 = arith.constant 0 : index
    %c0_4 = arith.constant 0 : index
    %3 = vector.load %arg3[%c0_3, %c0_4] : memref<1x128xf32, #tpu.memory_space<vmem>>, vector<1x128xf32>
    %4 = vector.broadcast %3 : vector<1x128xf32> to vector<32x128xf32>
    %5 = arith.addf %2, %4 : vector<32x128xf32>
    %6 = arith.truncf %5 : vector<32x128xf32> to vector<32x128xbf16>
    %c0_5 = arith.constant 0 : index
    %c0_6 = arith.constant 0 : index
    %7 = vector.load %arg4[%c0_5, %c0_6] : memref<32x128xbf16, #tpu.memory_space<vmem>>, vector<32x128xbf16>
    tpu.vector_store %arg4[%c0_5, %c0_6], %6 {strides = array<i32>} : memref<32x128xbf16, #tpu.memory_space<vmem>>, vector<32x128xbf16>,
    return
  }
  func.func @transform_0(%arg0: i32) -> (i32, i32) {
    %c0_i32 = arith.constant 0 : i32
    %c0_i32_0 = arith.constant 0 : i32
    return %arg0, %c0_i32 : i32, i32
  }
  func.func @transform_1(%arg0: i32) -> (i32, i32) {
    %c0_i32 = arith.constant 0 : i32
    %c0_i32_0 = arith.constant 0 : i32
    %c0_i32_1 = arith.constant 0 : i32
    return %c0_i32, %c0_i32_0 : i32, i32
  }
  func.func @transform_2(%arg0: i32) -> (i32, i32) {
    %c0_i32 = arith.constant 0 : i32
    %c0_i32_0 = arith.constant 0 : i32
    %c0_i32_1 = arith.constant 0 : i32
    return %c0_i32, %c0_i32_0 : i32, i32
  }
  func.func @transform_3(%arg0: i32) -> (i32, i32) {
    %c0_i32 = arith.constant 0 : i32
    %c0_i32_0 = arith.constant 0 : i32
    return %arg0, %c0_i32 : i32, i32
  }
}

module attributes {stable_mosaic.version = 11 : i64} {
  func.func @_gate_kernel(%arg0: memref<128x128xbf16, #tpu.memory_space<vmem>>, %arg1: memref<128x128xbf16, #tpu.memory_space<vmem>>, %arg2: memref<128x128xbf16, #tpu.memory_space<vmem>>, %arg3: memref<1x128xf32, #tpu.memory_space<vmem>>, %arg4: memref<1x128xf32, #tpu.memory_space<vmem>>, %arg5: memref<1x128xf32, #tpu.memory_space<vmem>>, %arg6: memref<128x128xbf16, #tpu.memory_space<vmem>>, %arg7: memref<1x128xf32, #tpu.memory_space<vmem>>, %arg8: memref<1x128xf32, #tpu.memory_space<vmem>>, %arg9: memref<1x128xf32, #tpu.memory_space<vmem>>, %arg10: memref<128x128xbf16, #tpu.memory_space<vmem>>, %arg11: memref<1x128xf32, #tpu.memory_space<vmem>>, %arg12: memref<1x128xf32, #tpu.memory_space<vmem>>, %arg13: memref<1x128xf32, #tpu.memory_space<vmem>>, %arg14: memref<128x128xbf16, #tpu.memory_space<vmem>>) attributes {dimension_semantics = [], scalar_prefetch = 0 : i64, scratch_operands = 0 : i64, tpu.core_type = #tpu.core_type<tc>} {
    %0 = tpu.iota {dimensions = array<i32: 0>} : vector<128x1xi32>
    %c128_i32 = arith.constant 128 : i32
    %1 = vector.broadcast %c128_i32 : i32 to vector<128x1xi32>
    %2 = arith.cmpi slt, %0, %1 : vector<128x1xi32>
    %3 = arith.extui %2 : vector<128x1xi1> to vector<128x1xi32>
    %4 = arith.sitofp %3 : vector<128x1xi32> to vector<128x1xf32>
    %c0 = arith.constant 0 : index
    %c0_0 = arith.constant 0 : index
    %5 = vector.load %arg0[%c0, %c0_0] : memref<128x128xbf16, #tpu.memory_space<vmem>>, vector<128x128xbf16>
    %c0_1 = arith.constant 0 : index
    %c0_2 = arith.constant 0 : index
    %6 = vector.load %arg2[%c0_1, %c0_2] : memref<128x128xbf16, #tpu.memory_space<vmem>>, vector<128x128xbf16>
    %cst = arith.constant dense<0.000000e+00> : vector<128x128xf32>
    %7 = tpu.matmul %5, %6, %cst {dimension_numbers = #tpu.dot_dimension_numbers<[1], [0], [0], [1], [0, 0, 1, 1], [], []>} : vector<128x128xbf16>, vector<128x128xbf16>, vector<128x128xf32> -> vector<128x128xf32>
    %c0_3 = arith.constant 0 : index
    %c0_4 = arith.constant 0 : index
    %8 = vector.load %arg3[%c0_3, %c0_4] : memref<1x128xf32, #tpu.memory_space<vmem>>, vector<1x128xf32>
    %9 = vector.broadcast %8 : vector<1x128xf32> to vector<128x128xf32>
    %10 = arith.addf %7, %9 : vector<128x128xf32>
    %c0_5 = arith.constant 0 : index
    %c0_6 = arith.constant 0 : index
    %11 = vector.load %arg4[%c0_5, %c0_6] : memref<1x128xf32, #tpu.memory_space<vmem>>, vector<1x128xf32>
    %c0_7 = arith.constant 0 : index
    %c0_8 = arith.constant 0 : index
    %12 = vector.load %arg5[%c0_7, %c0_8] : memref<1x128xf32, #tpu.memory_space<vmem>>, vector<1x128xf32>
    %13 = vector.broadcast %4 : vector<128x1xf32> to vector<128x128xf32>
    %14 = arith.mulf %10, %13 : vector<128x128xf32>
    %cst_9 = arith.constant dense<0.000000e+00> : vector<128xf32>
    %15 = vector.multi_reduction <add>, %14, %cst_9 [0] : vector<128x128xf32> to vector<128xf32>
    %16 = vector.shape_cast %15 : vector<128xf32> to vector<1x128xf32>
    %cst_10 = arith.constant 7.812500e-03 : f32
    %17 = vector.broadcast %cst_10 : f32 to vector<1x128xf32>
    %18 = arith.mulf %16, %17 : vector<1x128xf32>
    %19 = vector.broadcast %18 : vector<1x128xf32> to vector<128x128xf32>
    %20 = arith.subf %10, %19 : vector<128x128xf32>
    %21 = vector.broadcast %4 : vector<128x1xf32> to vector<128x128xf32>
    %22 = arith.mulf %20, %21 : vector<128x128xf32>
    %23 = arith.mulf %22, %22 : vector<128x128xf32>
    %cst_11 = arith.constant dense<0.000000e+00> : vector<128xf32>
    %24 = vector.multi_reduction <add>, %23, %cst_11 [0] : vector<128x128xf32> to vector<128xf32>
    %25 = vector.shape_cast %24 : vector<128xf32> to vector<1x128xf32>
    %cst_12 = arith.constant 7.812500e-03 : f32
    %26 = vector.broadcast %cst_12 : f32 to vector<1x128xf32>
    %27 = arith.mulf %25, %26 : vector<1x128xf32>
    %28 = vector.broadcast %18 : vector<1x128xf32> to vector<128x128xf32>
    %29 = arith.subf %10, %28 : vector<128x128xf32>
    %cst_13 = arith.constant 9.99999974E-6 : f32
    %30 = vector.broadcast %cst_13 : f32 to vector<1x128xf32>
    %31 = arith.addf %27, %30 : vector<1x128xf32>
    %32 = math.rsqrt %31 : vector<1x128xf32>
    %33 = vector.broadcast %32 : vector<1x128xf32> to vector<128x128xf32>
    %34 = arith.mulf %29, %33 : vector<128x128xf32>
    %35 = vector.broadcast %11 : vector<1x128xf32> to vector<128x128xf32>
    %36 = arith.mulf %34, %35 : vector<128x128xf32>
    %37 = vector.broadcast %12 : vector<1x128xf32> to vector<128x128xf32>
    %38 = arith.addf %36, %37 : vector<128x128xf32>
    %c0_14 = arith.constant 0 : index
    %c0_15 = arith.constant 0 : index
    %39 = vector.load %arg1[%c0_14, %c0_15] : memref<128x128xbf16, #tpu.memory_space<vmem>>, vector<128x128xbf16>
    %c0_16 = arith.constant 0 : index
    %c0_17 = arith.constant 0 : index
    %40 = vector.load %arg6[%c0_16, %c0_17] : memref<128x128xbf16, #tpu.memory_space<vmem>>, vector<128x128xbf16>
    %cst_18 = arith.constant dense<0.000000e+00> : vector<128x128xf32>
    %41 = tpu.matmul %39, %40, %cst_18 {dimension_numbers = #tpu.dot_dimension_numbers<[1], [0], [0], [1], [0, 0, 1, 1], [], []>} : vector<128x128xbf16>, vector<128x128xbf16>, vector<128x128xf32> -> vector<128x128xf32>
    %c0_19 = arith.constant 0 : index
    %c0_20 = arith.constant 0 : index
    %42 = vector.load %arg7[%c0_19, %c0_20] : memref<1x128xf32, #tpu.memory_space<vmem>>, vector<1x128xf32>
    %43 = vector.broadcast %42 : vector<1x128xf32> to vector<128x128xf32>
    %44 = arith.addf %41, %43 : vector<128x128xf32>
    %c0_21 = arith.constant 0 : index
    %c0_22 = arith.constant 0 : index
    %45 = vector.load %arg8[%c0_21, %c0_22] : memref<1x128xf32, #tpu.memory_space<vmem>>, vector<1x128xf32>
    %c0_23 = arith.constant 0 : index
    %c0_24 = arith.constant 0 : index
    %46 = vector.load %arg9[%c0_23, %c0_24] : memref<1x128xf32, #tpu.memory_space<vmem>>, vector<1x128xf32>
    %47 = vector.broadcast %4 : vector<128x1xf32> to vector<128x128xf32>
    %48 = arith.mulf %44, %47 : vector<128x128xf32>
    %cst_25 = arith.constant dense<0.000000e+00> : vector<128xf32>
    %49 = vector.multi_reduction <add>, %48, %cst_25 [0] : vector<128x128xf32> to vector<128xf32>
    %50 = vector.shape_cast %49 : vector<128xf32> to vector<1x128xf32>
    %cst_26 = arith.constant 7.812500e-03 : f32
    %51 = vector.broadcast %cst_26 : f32 to vector<1x128xf32>
    %52 = arith.mulf %50, %51 : vector<1x128xf32>
    %53 = vector.broadcast %52 : vector<1x128xf32> to vector<128x128xf32>
    %54 = arith.subf %44, %53 : vector<128x128xf32>
    %55 = vector.broadcast %4 : vector<128x1xf32> to vector<128x128xf32>
    %56 = arith.mulf %54, %55 : vector<128x128xf32>
    %57 = arith.mulf %56, %56 : vector<128x128xf32>
    %cst_27 = arith.constant dense<0.000000e+00> : vector<128xf32>
    %58 = vector.multi_reduction <add>, %57, %cst_27 [0] : vector<128x128xf32> to vector<128xf32>
    %59 = vector.shape_cast %58 : vector<128xf32> to vector<1x128xf32>
    %cst_28 = arith.constant 7.812500e-03 : f32
    %60 = vector.broadcast %cst_28 : f32 to vector<1x128xf32>
    %61 = arith.mulf %59, %60 : vector<1x128xf32>
    %62 = vector.broadcast %52 : vector<1x128xf32> to vector<128x128xf32>
    %63 = arith.subf %44, %62 : vector<128x128xf32>
    %cst_29 = arith.constant 9.99999974E-6 : f32
    %64 = vector.broadcast %cst_29 : f32 to vector<1x128xf32>
    %65 = arith.addf %61, %64 : vector<1x128xf32>
    %66 = math.rsqrt %65 : vector<1x128xf32>
    %67 = vector.broadcast %66 : vector<1x128xf32> to vector<128x128xf32>
    %68 = arith.mulf %63, %67 : vector<128x128xf32>
    %69 = vector.broadcast %45 : vector<1x128xf32> to vector<128x128xf32>
    %70 = arith.mulf %68, %69 : vector<128x128xf32>
    %71 = vector.broadcast %46 : vector<1x128xf32> to vector<128x128xf32>
    %72 = arith.addf %70, %71 : vector<128x128xf32>
    %73 = arith.addf %38, %72 : vector<128x128xf32>
    %cst_30 = arith.constant 0.000000e+00 : f32
    %74 = vector.broadcast %cst_30 : f32 to vector<128x128xf32>
    %75 = arith.maximumf %73, %74 : vector<128x128xf32>
    %76 = arith.truncf %75 : vector<128x128xf32> to vector<128x128xbf16>
    %c0_31 = arith.constant 0 : index
    %c0_32 = arith.constant 0 : index
    %77 = vector.load %arg10[%c0_31, %c0_32] : memref<128x128xbf16, #tpu.memory_space<vmem>>, vector<128x128xbf16>
    %cst_33 = arith.constant dense<0.000000e+00> : vector<128x128xf32>
    %78 = tpu.matmul %76, %77, %cst_33 {dimension_numbers = #tpu.dot_dimension_numbers<[1], [0], [0], [1], [0, 0, 1, 1], [], []>} : vector<128x128xbf16>, vector<128x128xbf16>, vector<128x128xf32> -> vector<128x128xf32>
    %c0_34 = arith.constant 0 : index
    %c0_35 = arith.constant 0 : index
    %79 = vector.load %arg11[%c0_34, %c0_35] : memref<1x128xf32, #tpu.memory_space<vmem>>, vector<1x128xf32>
    %80 = vector.broadcast %79 : vector<1x128xf32> to vector<128x128xf32>
    %81 = arith.addf %78, %80 : vector<128x128xf32>
    %c0_36 = arith.constant 0 : index
    %c0_37 = arith.constant 0 : index
    %82 = vector.load %arg12[%c0_36, %c0_37] : memref<1x128xf32, #tpu.memory_space<vmem>>, vector<1x128xf32>
    %c0_38 = arith.constant 0 : index
    %c0_39 = arith.constant 0 : index
    %83 = vector.load %arg13[%c0_38, %c0_39] : memref<1x128xf32, #tpu.memory_space<vmem>>, vector<1x128xf32>
    %84 = vector.broadcast %4 : vector<128x1xf32> to vector<128x128xf32>
    %85 = arith.mulf %81, %84 : vector<128x128xf32>
    %cst_40 = arith.constant dense<0.000000e+00> : vector<128xf32>
    %86 = vector.multi_reduction <add>, %85, %cst_40 [0] : vector<128x128xf32> to vector<128xf32>
    %87 = vector.shape_cast %86 : vector<128xf32> to vector<1x128xf32>
    %cst_41 = arith.constant 7.812500e-03 : f32
    %88 = vector.broadcast %cst_41 : f32 to vector<1x128xf32>
    %89 = arith.mulf %87, %88 : vector<1x128xf32>
    %90 = vector.broadcast %89 : vector<1x128xf32> to vector<128x128xf32>
    %91 = arith.subf %81, %90 : vector<128x128xf32>
    %92 = vector.broadcast %4 : vector<128x1xf32> to vector<128x128xf32>
    %93 = arith.mulf %91, %92 : vector<128x128xf32>
    %94 = arith.mulf %93, %93 : vector<128x128xf32>
    %cst_42 = arith.constant dense<0.000000e+00> : vector<128xf32>
    %95 = vector.multi_reduction <add>, %94, %cst_42 [0] : vector<128x128xf32> to vector<128xf32>
    %96 = vector.shape_cast %95 : vector<128xf32> to vector<1x128xf32>
    %cst_43 = arith.constant 7.812500e-03 : f32
    %97 = vector.broadcast %cst_43 : f32 to vector<1x128xf32>
    %98 = arith.mulf %96, %97 : vector<1x128xf32>
    %99 = vector.broadcast %89 : vector<1x128xf32> to vector<128x128xf32>
    %100 = arith.subf %81, %99 : vector<128x128xf32>
    %cst_44 = arith.constant 9.99999974E-6 : f32
    %101 = vector.broadcast %cst_44 : f32 to vector<1x128xf32>
    %102 = arith.addf %98, %101 : vector<1x128xf32>
    %103 = math.rsqrt %102 : vector<1x128xf32>
    %104 = vector.broadcast %103 : vector<1x128xf32> to vector<128x128xf32>
    %105 = arith.mulf %100, %104 : vector<128x128xf32>
    %106 = vector.broadcast %82 : vector<1x128xf32> to vector<128x128xf32>
    %107 = arith.mulf %105, %106 : vector<128x128xf32>
    %108 = vector.broadcast %83 : vector<1x128xf32> to vector<128x128xf32>
    %109 = arith.addf %107, %108 : vector<128x128xf32>
    %cst_45 = arith.constant 0.000000e+00 : f32
    %110 = vector.broadcast %cst_45 : f32 to vector<128x128xf32>
    %111 = arith.subf %110, %109 : vector<128x128xf32>
    %112 = math.exp %111 : vector<128x128xf32>
    %cst_46 = arith.constant 1.000000e+00 : f32
    %113 = vector.broadcast %cst_46 : f32 to vector<128x128xf32>
    %114 = arith.addf %113, %112 : vector<128x128xf32>
    %cst_47 = arith.constant 1.000000e+00 : f32
    %115 = vector.broadcast %cst_47 : f32 to vector<128x128xf32>
    %116 = arith.divf %115, %114 : vector<128x128xf32>
    %c0_48 = arith.constant 0 : index
    %c0_49 = arith.constant 0 : index
    %117 = vector.load %arg1[%c0_48, %c0_49] : memref<128x128xbf16, #tpu.memory_space<vmem>>, vector<128x128xbf16>
    %118 = arith.extf %117 : vector<128x128xbf16> to vector<128x128xf32>
    %119 = vector.extract_strided_slice %116 {offsets = [0, 0], sizes = [128, 1], strides = [1, 1]} : vector<128x128xf32> to vector<128x1xf32>
    %120 = vector.broadcast %119 : vector<128x1xf32> to vector<128x128xf32>
    %121 = arith.mulf %118, %120 : vector<128x128xf32>
    %122 = arith.truncf %121 : vector<128x128xf32> to vector<128x128xbf16>
    %c0_50 = arith.constant 0 : index
    %c0_51 = arith.constant 0 : index
    %123 = vector.load %arg14[%c0_50, %c0_51] : memref<128x128xbf16, #tpu.memory_space<vmem>>, vector<128x128xbf16>
    tpu.vector_store %arg14[%c0_50, %c0_51], %122 {strides = array<i32>} : memref<128x128xbf16, #tpu.memory_space<vmem>>, vector<128x128xbf16>,
    return
  }
}

module attributes {stable_mosaic.version = 11 : i64} {
  func.func @_gemm_kernel(%arg0: i32, %arg1: memref<128x128xbf16, #tpu.memory_space<vmem>>, %arg2: memref<128x128xbf16, #tpu.memory_space<vmem>>, %arg3: memref<1x128xf32, #tpu.memory_space<vmem>>, %arg4: memref<128x128xbf16, #tpu.memory_space<vmem>>) attributes {dimension_semantics = [#tpu.dimension_semantics<parallel>], iteration_bounds = array<i64: 1>, scalar_prefetch = 0 : i64, scratch_operands = 0 : i64, tpu.core_type = #tpu.core_type<tc>, window_params = [{transform_indices = @transform_0, window_bounds = array<i64: 128, 128>}, {pipeline_mode = #tpu.pipeline_mode<synchronous>, transform_indices = @transform_1, window_bounds = array<i64: 128, 128>}, {pipeline_mode = #tpu.pipeline_mode<synchronous>, transform_indices = @transform_2, window_bounds = array<i64: 1, 128>}, {transform_indices = @transform_3, window_bounds = array<i64: 128, 128>}]} {
    %c0 = arith.constant 0 : index
    %c0_0 = arith.constant 0 : index
    %0 = vector.load %arg1[%c0, %c0_0] : memref<128x128xbf16, #tpu.memory_space<vmem>>, vector<128x128xbf16>
    %c0_1 = arith.constant 0 : index
    %c0_2 = arith.constant 0 : index
    %1 = vector.load %arg2[%c0_1, %c0_2] : memref<128x128xbf16, #tpu.memory_space<vmem>>, vector<128x128xbf16>
    %cst = arith.constant dense<0.000000e+00> : vector<128x128xf32>
    %2 = tpu.matmul %0, %1, %cst {dimension_numbers = #tpu.dot_dimension_numbers<[1], [0], [0], [1], [0, 0, 1, 1], [], []>} : vector<128x128xbf16>, vector<128x128xbf16>, vector<128x128xf32> -> vector<128x128xf32>
    %c0_3 = arith.constant 0 : index
    %c0_4 = arith.constant 0 : index
    %3 = vector.load %arg3[%c0_3, %c0_4] : memref<1x128xf32, #tpu.memory_space<vmem>>, vector<1x128xf32>
    %4 = vector.broadcast %3 : vector<1x128xf32> to vector<128x128xf32>
    %5 = arith.addf %2, %4 : vector<128x128xf32>
    %6 = arith.truncf %5 : vector<128x128xf32> to vector<128x128xbf16>
    %c0_5 = arith.constant 0 : index
    %c0_6 = arith.constant 0 : index
    %7 = vector.load %arg4[%c0_5, %c0_6] : memref<128x128xbf16, #tpu.memory_space<vmem>>, vector<128x128xbf16>
    tpu.vector_store %arg4[%c0_5, %c0_6], %6 {strides = array<i32>} : memref<128x128xbf16, #tpu.memory_space<vmem>>, vector<128x128xbf16>,
    return
  }
  func.func @transform_0(%arg0: i32) -> (i32, i32) {
    %c0_i32 = arith.constant 0 : i32
    %c0_i32_0 = arith.constant 0 : i32
    return %arg0, %c0_i32 : i32, i32
  }
  func.func @transform_1(%arg0: i32) -> (i32, i32) {
    %c0_i32 = arith.constant 0 : i32
    %c0_i32_0 = arith.constant 0 : i32
    %c0_i32_1 = arith.constant 0 : i32
    return %c0_i32, %c0_i32_0 : i32, i32
  }
  func.func @transform_2(%arg0: i32) -> (i32, i32) {
    %c0_i32 = arith.constant 0 : i32
    %c0_i32_0 = arith.constant 0 : i32
    %c0_i32_1 = arith.constant 0 : i32
    return %c0_i32, %c0_i32_0 : i32, i32
  }
  func.func @transform_3(%arg0: i32) -> (i32, i32) {
    %c0_i32 = arith.constant 0 : i32
    %c0_i32_0 = arith.constant 0 : i32
    return %arg0, %c0_i32 : i32, i32
  }
}

module attributes {stable_mosaic.version = 11 : i64} {
  func.func @_bn_act_kernel(%arg0: i32, %arg1: memref<256x128xf32, #tpu.memory_space<vmem>>, %arg2: memref<1x128xf32, #tpu.memory_space<vmem>>, %arg3: memref<1x128xf32, #tpu.memory_space<vmem>>, %arg4: memref<1x128xf32, #tpu.memory_space<vmem>>, %arg5: memref<1x128xf32, #tpu.memory_space<vmem>>, %arg6: memref<256x128xbf16, #tpu.memory_space<vmem>>) attributes {dimension_semantics = [#tpu.dimension_semantics<parallel>], iteration_bounds = array<i64: 2>, scalar_prefetch = 0 : i64, scratch_operands = 0 : i64, tpu.core_type = #tpu.core_type<tc>, window_params = [{transform_indices = @transform_0, window_bounds = array<i64: 256, 128>}, {pipeline_mode = #tpu.pipeline_mode<synchronous>, transform_indices = @transform_1, window_bounds = array<i64: 1, 128>}, {pipeline_mode = #tpu.pipeline_mode<synchronous>, transform_indices = @transform_2, window_bounds = array<i64: 1, 128>}, {pipeline_mode = #tpu.pipeline_mode<synchronous>, transform_indices = @transform_3, window_bounds = array<i64: 1, 128>}, {pipeline_mode = #tpu.pipeline_mode<synchronous>, transform_indices = @transform_4, window_bounds = array<i64: 1, 128>}, {transform_indices = @transform_5, window_bounds = array<i64: 256, 128>}]} {
    %c0 = arith.constant 0 : index
    %c0_0 = arith.constant 0 : index
    %0 = vector.load %arg2[%c0, %c0_0] : memref<1x128xf32, #tpu.memory_space<vmem>>, vector<1x128xf32>
    %cst = arith.constant 0.001953125 : f32
    %1 = vector.broadcast %cst : f32 to vector<1x128xf32>
    %2 = arith.mulf %0, %1 : vector<1x128xf32>
    %c0_1 = arith.constant 0 : index
    %c0_2 = arith.constant 0 : index
    %3 = vector.load %arg3[%c0_1, %c0_2] : memref<1x128xf32, #tpu.memory_space<vmem>>, vector<1x128xf32>
    %cst_3 = arith.constant 0.001953125 : f32
    %4 = vector.broadcast %cst_3 : f32 to vector<1x128xf32>
    %5 = arith.mulf %3, %4 : vector<1x128xf32>
    %6 = arith.mulf %2, %2 : vector<1x128xf32>
    %7 = arith.subf %5, %6 : vector<1x128xf32>
    %cst_4 = arith.constant 0.000000e+00 : f32
    %8 = vector.broadcast %cst_4 : f32 to vector<1x128xf32>
    %9 = arith.maximumf %7, %8 : vector<1x128xf32>
    %c0_5 = arith.constant 0 : index
    %c0_6 = arith.constant 0 : index
    %10 = vector.load %arg1[%c0_5, %c0_6] : memref<256x128xf32, #tpu.memory_space<vmem>>, vector<256x128xf32>
    %11 = vector.broadcast %2 : vector<1x128xf32> to vector<256x128xf32>
    %12 = arith.subf %10, %11 : vector<256x128xf32>
    %cst_7 = arith.constant 9.99999974E-6 : f32
    %13 = vector.broadcast %cst_7 : f32 to vector<1x128xf32>
    %14 = arith.addf %9, %13 : vector<1x128xf32>
    %15 = math.rsqrt %14 : vector<1x128xf32>
    %16 = vector.broadcast %15 : vector<1x128xf32> to vector<256x128xf32>
    %17 = arith.mulf %12, %16 : vector<256x128xf32>
    %c0_8 = arith.constant 0 : index
    %c0_9 = arith.constant 0 : index
    %18 = vector.load %arg4[%c0_8, %c0_9] : memref<1x128xf32, #tpu.memory_space<vmem>>, vector<1x128xf32>
    %19 = vector.broadcast %18 : vector<1x128xf32> to vector<256x128xf32>
    %20 = arith.mulf %17, %19 : vector<256x128xf32>
    %c0_10 = arith.constant 0 : index
    %c0_11 = arith.constant 0 : index
    %21 = vector.load %arg5[%c0_10, %c0_11] : memref<1x128xf32, #tpu.memory_space<vmem>>, vector<1x128xf32>
    %22 = vector.broadcast %21 : vector<1x128xf32> to vector<256x128xf32>
    %23 = arith.addf %20, %22 : vector<256x128xf32>
    %cst_12 = arith.constant 0.000000e+00 : f32
    %24 = vector.broadcast %cst_12 : f32 to vector<256x128xf32>
    %25 = arith.maximumf %23, %24 : vector<256x128xf32>
    %26 = arith.truncf %25 : vector<256x128xf32> to vector<256x128xbf16>
    %c0_13 = arith.constant 0 : index
    %c0_14 = arith.constant 0 : index
    %27 = vector.load %arg6[%c0_13, %c0_14] : memref<256x128xbf16, #tpu.memory_space<vmem>>, vector<256x128xbf16>
    tpu.vector_store %arg6[%c0_13, %c0_14], %26 {strides = array<i32>} : memref<256x128xbf16, #tpu.memory_space<vmem>>, vector<256x128xbf16>,
    return
  }
  func.func @transform_0(%arg0: i32) -> (i32, i32) {
    %c0_i32 = arith.constant 0 : i32
    %c0_i32_0 = arith.constant 0 : i32
    return %arg0, %c0_i32 : i32, i32
  }
  func.func @transform_1(%arg0: i32) -> (i32, i32) {
    %c0_i32 = arith.constant 0 : i32
    %c0_i32_0 = arith.constant 0 : i32
    %c0_i32_1 = arith.constant 0 : i32
    return %c0_i32, %c0_i32_0 : i32, i32
  }
  func.func @transform_2(%arg0: i32) -> (i32, i32) {
    %c0_i32 = arith.constant 0 : i32
    %c0_i32_0 = arith.constant 0 : i32
    %c0_i32_1 = arith.constant 0 : i32
    return %c0_i32, %c0_i32_0 : i32, i32
  }
  func.func @transform_3(%arg0: i32) -> (i32, i32) {
    %c0_i32 = arith.constant 0 : i32
    %c0_i32_0 = arith.constant 0 : i32
    %c0_i32_1 = arith.constant 0 : i32
    return %c0_i32, %c0_i32_0 : i32, i32
  }
  func.func @transform_4(%arg0: i32) -> (i32, i32) {
    %c0_i32 = arith.constant 0 : i32
    %c0_i32_0 = arith.constant 0 : i32
    %c0_i32_1 = arith.constant 0 : i32
    return %c0_i32, %c0_i32_0 : i32, i32
  }
  func.func @transform_5(%arg0: i32) -> (i32, i32) {
    %c0_i32 = arith.constant 0 : i32
    %c0_i32_0 = arith.constant 0 : i32
    return %arg0, %c0_i32 : i32, i32
  }
}

module attributes {stable_mosaic.version = 11 : i64} {
  func.func @_gemm_stats_kernel(%arg0: i32, %arg1: memref<256x256xbf16, #tpu.memory_space<vmem>>, %arg2: memref<256x128xbf16, #tpu.memory_space<vmem>>, %arg3: memref<1x128xf32, #tpu.memory_space<vmem>>, %arg4: memref<256x128xf32, #tpu.memory_space<vmem>>, %arg5: memref<1x128xf32, #tpu.memory_space<vmem>>, %arg6: memref<1x128xf32, #tpu.memory_space<vmem>>) attributes {dimension_semantics = [#tpu.dimension_semantics<arbitrary>], iteration_bounds = array<i64: 2>, scalar_prefetch = 0 : i64, scratch_operands = 0 : i64, tpu.core_type = #tpu.core_type<tc>, window_params = [{transform_indices = @transform_0, window_bounds = array<i64: 256, 256>}, {pipeline_mode = #tpu.pipeline_mode<synchronous>, transform_indices = @transform_1, window_bounds = array<i64: 256, 128>}, {pipeline_mode = #tpu.pipeline_mode<synchronous>, transform_indices = @transform_2, window_bounds = array<i64: 1, 128>}, {transform_indices = @transform_3, window_bounds = array<i64: 256, 128>}, {pipeline_mode = #tpu.pipeline_mode<synchronous>, transform_indices = @transform_4, window_bounds = array<i64: 1, 128>}, {pipeline_mode = #tpu.pipeline_mode<synchronous>, transform_indices = @transform_5, window_bounds = array<i64: 1, 128>}]} {
    %c0 = arith.constant 0 : index
    %c0_0 = arith.constant 0 : index
    %0 = vector.load %arg1[%c0, %c0_0] : memref<256x256xbf16, #tpu.memory_space<vmem>>, vector<256x256xbf16>
    %c0_1 = arith.constant 0 : index
    %c0_2 = arith.constant 0 : index
    %1 = vector.load %arg2[%c0_1, %c0_2] : memref<256x128xbf16, #tpu.memory_space<vmem>>, vector<256x128xbf16>
    %cst = arith.constant dense<0.000000e+00> : vector<256x128xf32>
    %2 = tpu.matmul %0, %1, %cst {dimension_numbers = #tpu.dot_dimension_numbers<[1], [0], [0], [1], [0, 0, 1, 1], [], []>} : vector<256x256xbf16>, vector<256x128xbf16>, vector<256x128xf32> -> vector<256x128xf32>
    %c0_3 = arith.constant 0 : index
    %c0_4 = arith.constant 0 : index
    %3 = vector.load %arg3[%c0_3, %c0_4] : memref<1x128xf32, #tpu.memory_space<vmem>>, vector<1x128xf32>
    %4 = vector.broadcast %3 : vector<1x128xf32> to vector<256x128xf32>
    %5 = arith.addf %2, %4 : vector<256x128xf32>
    %c0_5 = arith.constant 0 : index
    %c0_6 = arith.constant 0 : index
    %6 = vector.load %arg4[%c0_5, %c0_6] : memref<256x128xf32, #tpu.memory_space<vmem>>, vector<256x128xf32>
    tpu.vector_store %arg4[%c0_5, %c0_6], %5 {strides = array<i32>} : memref<256x128xf32, #tpu.memory_space<vmem>>, vector<256x128xf32>,
    %7 = tpu.iota {dimensions = array<i32: 0>} : vector<256x1xi32>
    %c256_i32 = arith.constant 256 : i32
    %8 = arith.muli %arg0, %c256_i32 : i32
    %9 = vector.broadcast %8 : i32 to vector<256x1xi32>
    %10 = arith.addi %7, %9 : vector<256x1xi32>
    %c512_i32 = arith.constant 512 : i32
    %11 = vector.broadcast %c512_i32 : i32 to vector<256x1xi32>
    %12 = arith.cmpi slt, %10, %11 : vector<256x1xi32>
    %cst_7 = arith.constant 0.000000e+00 : f32
    %13 = vector.shape_cast %12 : vector<256x1xi1> to vector<256x1xi1>
    %14 = vector.broadcast %13 : vector<256x1xi1> to vector<256x128xi1>
    %15 = vector.broadcast %cst_7 : f32 to vector<256x128xf32>
    %16 = arith.select %14, %5, %15 : vector<256x128xi1>, vector<256x128xf32>
    %c0_i32 = arith.constant 0 : i32
    %17 = arith.cmpi eq, %arg0, %c0_i32 : i32
    %18 = arith.extui %17 : i1 to i32
    %c0_i32_8 = arith.constant 0 : i32
    %19 = arith.cmpi ne, %18, %c0_i32_8 : i32
    scf.if %19 {
      %cst_19 = arith.constant 0.000000e+00 : f32
      %31 = vector.broadcast %cst_19 : f32 to vector<1x128xf32>
      %c0_20 = arith.constant 0 : index
      %c0_21 = arith.constant 0 : index
      %32 = vector.load %arg5[%c0_20, %c0_21] : memref<1x128xf32, #tpu.memory_space<vmem>>, vector<1x128xf32>
      tpu.vector_store %arg5[%c0_20, %c0_21], %31 {strides = array<i32>} : memref<1x128xf32, #tpu.memory_space<vmem>>, vector<1x128xf32>,
      %cst_22 = arith.constant 0.000000e+00 : f32
      %33 = vector.broadcast %cst_22 : f32 to vector<1x128xf32>
      %c0_23 = arith.constant 0 : index
      %c0_24 = arith.constant 0 : index
      %34 = vector.load %arg6[%c0_23, %c0_24] : memref<1x128xf32, #tpu.memory_space<vmem>>, vector<1x128xf32>
      tpu.vector_store %arg6[%c0_23, %c0_24], %33 {strides = array<i32>} : memref<1x128xf32, #tpu.memory_space<vmem>>, vector<1x128xf32>,
    } else {
    }
    %c0_9 = arith.constant 0 : index
    %c0_10 = arith.constant 0 : index
    %20 = vector.load %arg5[%c0_9, %c0_10] : memref<1x128xf32, #tpu.memory_space<vmem>>, vector<1x128xf32>
    %cst_11 = arith.constant dense<0.000000e+00> : vector<128xf32>
    %21 = vector.multi_reduction <add>, %16, %cst_11 [0] : vector<256x128xf32> to vector<128xf32>
    %22 = vector.shape_cast %21 : vector<128xf32> to vector<1x128xf32>
    %23 = arith.addf %20, %22 : vector<1x128xf32>
    %c0_12 = arith.constant 0 : index
    %c0_13 = arith.constant 0 : index
    %24 = vector.load %arg5[%c0_12, %c0_13] : memref<1x128xf32, #tpu.memory_space<vmem>>, vector<1x128xf32>
    tpu.vector_store %arg5[%c0_12, %c0_13], %23 {strides = array<i32>} : memref<1x128xf32, #tpu.memory_space<vmem>>, vector<1x128xf32>,
    %c0_14 = arith.constant 0 : index
    %c0_15 = arith.constant 0 : index
    %25 = vector.load %arg6[%c0_14, %c0_15] : memref<1x128xf32, #tpu.memory_space<vmem>>, vector<1x128xf32>
    %26 = arith.mulf %16, %16 : vector<256x128xf32>
    %cst_16 = arith.constant dense<0.000000e+00> : vector<128xf32>
    %27 = vector.multi_reduction <add>, %26, %cst_16 [0] : vector<256x128xf32> to vector<128xf32>
    %28 = vector.shape_cast %27 : vector<128xf32> to vector<1x128xf32>
    %29 = arith.addf %25, %28 : vector<1x128xf32>
    %c0_17 = arith.constant 0 : index
    %c0_18 = arith.constant 0 : index
    %30 = vector.load %arg6[%c0_17, %c0_18] : memref<1x128xf32, #tpu.memory_space<vmem>>, vector<1x128xf32>
    tpu.vector_store %arg6[%c0_17, %c0_18], %29 {strides = array<i32>} : memref<1x128xf32, #tpu.memory_space<vmem>>, vector<1x128xf32>,
    return
  }
  func.func @transform_0(%arg0: i32) -> (i32, i32) {
    %c0_i32 = arith.constant 0 : i32
    %c0_i32_0 = arith.constant 0 : i32
    return %arg0, %c0_i32 : i32, i32
  }
  func.func @transform_1(%arg0: i32) -> (i32, i32) {
    %c0_i32 = arith.constant 0 : i32
    %c0_i32_0 = arith.constant 0 : i32
    %c0_i32_1 = arith.constant 0 : i32
    return %c0_i32, %c0_i32_0 : i32, i32
  }
  func.func @transform_2(%arg0: i32) -> (i32, i32) {
    %c0_i32 = arith.constant 0 : i32
    %c0_i32_0 = arith.constant 0 : i32
    %c0_i32_1 = arith.constant 0 : i32
    return %c0_i32, %c0_i32_0 : i32, i32
  }
  func.func @transform_3(%arg0: i32) -> (i32, i32) {
    %c0_i32 = arith.constant 0 : i32
    %c0_i32_0 = arith.constant 0 : i32
    return %arg0, %c0_i32 : i32, i32
  }
  func.func @transform_4(%arg0: i32) -> (i32, i32) {
    %c0_i32 = arith.constant 0 : i32
    %c0_i32_0 = arith.constant 0 : i32
    %c0_i32_1 = arith.constant 0 : i32
    return %c0_i32, %c0_i32_0 : i32, i32
  }
  func.func @transform_5(%arg0: i32) -> (i32, i32) {
    %c0_i32 = arith.constant 0 : i32
    %c0_i32_0 = arith.constant 0 : i32
    %c0_i32_1 = arith.constant 0 : i32
    return %c0_i32, %c0_i32_0 : i32, i32
  }
}

module attributes {stable_mosaic.version = 11 : i64} {
  func.func @_gemm_kernel(%arg0: i32, %arg1: memref<256x128xbf16, #tpu.memory_space<vmem>>, %arg2: memref<128x128xbf16, #tpu.memory_space<vmem>>, %arg3: memref<1x128xf32, #tpu.memory_space<vmem>>, %arg4: memref<256x128xf32, #tpu.memory_space<vmem>>) attributes {dimension_semantics = [#tpu.dimension_semantics<parallel>], iteration_bounds = array<i64: 2>, scalar_prefetch = 0 : i64, scratch_operands = 0 : i64, tpu.core_type = #tpu.core_type<tc>, window_params = [{transform_indices = @transform_0, window_bounds = array<i64: 256, 128>}, {pipeline_mode = #tpu.pipeline_mode<synchronous>, transform_indices = @transform_1, window_bounds = array<i64: 128, 128>}, {pipeline_mode = #tpu.pipeline_mode<synchronous>, transform_indices = @transform_2, window_bounds = array<i64: 1, 128>}, {transform_indices = @transform_3, window_bounds = array<i64: 256, 128>}]} {
    %c0 = arith.constant 0 : index
    %c0_0 = arith.constant 0 : index
    %0 = vector.load %arg1[%c0, %c0_0] : memref<256x128xbf16, #tpu.memory_space<vmem>>, vector<256x128xbf16>
    %c0_1 = arith.constant 0 : index
    %c0_2 = arith.constant 0 : index
    %1 = vector.load %arg2[%c0_1, %c0_2] : memref<128x128xbf16, #tpu.memory_space<vmem>>, vector<128x128xbf16>
    %cst = arith.constant dense<0.000000e+00> : vector<256x128xf32>
    %2 = tpu.matmul %0, %1, %cst {dimension_numbers = #tpu.dot_dimension_numbers<[1], [0], [0], [1], [0, 0, 1, 1], [], []>} : vector<256x128xbf16>, vector<128x128xbf16>, vector<256x128xf32> -> vector<256x128xf32>
    %c0_3 = arith.constant 0 : index
    %c0_4 = arith.constant 0 : index
    %3 = vector.load %arg3[%c0_3, %c0_4] : memref<1x128xf32, #tpu.memory_space<vmem>>, vector<1x128xf32>
    %4 = vector.broadcast %3 : vector<1x128xf32> to vector<256x128xf32>
    %5 = arith.addf %2, %4 : vector<256x128xf32>
    %c0_5 = arith.constant 0 : index
    %c0_6 = arith.constant 0 : index
    %6 = vector.load %arg4[%c0_5, %c0_6] : memref<256x128xf32, #tpu.memory_space<vmem>>, vector<256x128xf32>
    tpu.vector_store %arg4[%c0_5, %c0_6], %5 {strides = array<i32>} : memref<256x128xf32, #tpu.memory_space<vmem>>, vector<256x128xf32>,
    return
  }
  func.func @transform_0(%arg0: i32) -> (i32, i32) {
    %c0_i32 = arith.constant 0 : i32
    %c0_i32_0 = arith.constant 0 : i32
    return %arg0, %c0_i32 : i32, i32
  }
  func.func @transform_1(%arg0: i32) -> (i32, i32) {
    %c0_i32 = arith.constant 0 : i32
    %c0_i32_0 = arith.constant 0 : i32
    %c0_i32_1 = arith.constant 0 : i32
    return %c0_i32, %c0_i32_0 : i32, i32
  }
  func.func @transform_2(%arg0: i32) -> (i32, i32) {
    %c0_i32 = arith.constant 0 : i32
    %c0_i32_0 = arith.constant 0 : i32
    %c0_i32_1 = arith.constant 0 : i32
    return %c0_i32, %c0_i32_0 : i32, i32
  }
  func.func @transform_3(%arg0: i32) -> (i32, i32) {
    %c0_i32 = arith.constant 0 : i32
    %c0_i32_0 = arith.constant 0 : i32
    return %arg0, %c0_i32 : i32, i32
  }
}

</mosaic_0001>

<llo_original>
// kernel: _lambda_.24
$region0: #{_lambda_.24}
  #allocation0 [shape = 'u32[]', space=smem, size = 0x4, offset = 0x4, fixed_abs, tag = 'smem constant byte address 0x4 - core index']
  #allocation1 [shape = 'u32[144,128]{1,0:T(1,128)}', space=vmem, size = 0x12000, scoped, tag = 'internal scratch']
  %s0 = inlined_call_operand.vmem [shape: bf16[512,128], index: 0, kind: input, shape index: {}]
  %s1 = inlined_call_operand.vmem [shape: bf16[128,128], index: 1, kind: input, shape index: {}]
  %s2 = inlined_call_operand.vmem [shape: f32[1,128], index: 2, kind: input, shape index: {}]
  %s3 = inlined_call_operand.vmem [shape: bf16[512,128], index: 3, kind: output, shape index: {}]
  %s4 = sld [smem:[#allocation0]]
  $region45: #{_lambda_.24} parent=0
    _
  %s6 = ssub.s32 1, %s4
  %s7 = scalar_select 0, %s6, %s4
  loop: start=0, step=1, limit=4
  $region2: #{_lambda_.24} parent=0 // loop_pre_header
    _
  $region3: #{_lambda_.24} parent=0 // loop_header
    %s9 = sphi 0, %s13
    %p10 = scmp.ge.s32.totalorder %s9, 4
    %s19 = sphi 0, %s21
    %s22 = sphi 0, %s19
    %s23 = sphi 0, %s22
    %s39 = sphi 0, %s23
    %s43 = sphi 0, %s43
    %s45 = sphi 0, %s43
    %s46 = sphi 0, %s45
    %s60 = sphi 0, %s46
    %s64 = sphi 0, %s64
    %s66 = sphi 0, %s64
    %s67 = sphi 0, %s66
    %s81 = sphi 0, %s67
    %s87 = sphi 0, %s89
    %s90 = sphi 0, %s87
    %s91 = sphi 0, %s90
    %s107 = sphi 0, %s91
  $region4: #{_lambda_.24} parent=0 // loop_header_branch
    %12 = sbr.rel (%p10) target = $region8
  $region5: #{_lambda_.24} parent=0 // loop_body
    %s14 = ssub.s32 %s9, 1
    %s15 = ssub.s32 %s9, 2
    %s16 = sadd.s32 %s9, 1
    %s17 = ssub.s32 %s9, %s16
    %p18 = scmp.eq.s32.totalorder %s17, 0
    %s20 = sadd.s32 %s19, 1
    %s21 = scalar_select %p18, %s19, %s20
    %p24 = pneg %p18
    %p25 = scmp.eq.s32.totalorder %s9, 1
    %p26 = por %p24, %p25
    %p27 = scmp.ne.s32.totalorder %s19, %s22
    %p28 = scmp.eq.s32.totalorder %s9, 0
    %p29 = por %p27, %p28
    %p30 = scmp.ne.s32.totalorder %s19, %s22
    %p31 = scmp.eq.s32.totalorder %s14, 1
    %p32 = por %p30, %p31
    %p33 = scmp.ne.s32.totalorder %s22, %s23
    %p34 = scmp.eq.s32.totalorder %s14, 0
    %p35 = por %p33, %p34
    %p36 = scmp.ne.s32.totalorder %s22, %s23
    %p37 = scmp.eq.s32.totalorder %s15, 1
    %p38 = por %p36, %p37
    %p40 = scmp.ne.s32.totalorder %s23, %s39
    %p41 = scmp.eq.s32.totalorder %s15, 0
    %p42 = por %p40, %p41
    %s44 = sadd.s32 %s43, 1
    %p47 = scmp.eq.s32.totalorder %s9, 1
    %p48 = scmp.ne.s32.totalorder %s43, %s45
    %p49 = scmp.eq.s32.totalorder %s9, 0
    %p50 = por %p48, %p49
    %p51 = scmp.ne.s32.totalorder %s43, %s45
    %p52 = scmp.eq.s32.totalorder %s14, 1
    %p53 = por %p51, %p52
    %p54 = scmp.ne.s32.totalorder %s45, %s46
    %p55 = scmp.eq.s32.totalorder %s14, 0
    %p56 = por %p54, %p55
    %p57 = scmp.ne.s32.totalorder %s45, %s46
    %p58 = scmp.eq.s32.totalorder %s15, 1
    %p59 = por %p57, %p58
    %p61 = scmp.ne.s32.totalorder %s46, %s60
    %p62 = scmp.eq.s32.totalorder %s15, 0
    %p63 = por %p61, %p62
    %s65 = sadd.s32 %s64, 1
    %p68 = scmp.eq.s32.totalorder %s9, 1
    %p69 = scmp.ne.s32.totalorder %s64, %s66
    %p70 = scmp.eq.s32.totalorder %s9, 0
    %p71 = por %p69, %p70
    %p72 = scmp.ne.s32.totalorder %s64, %s66
    %p73 = scmp.eq.s32.totalorder %s14, 1
    %p74 = por %p72, %p73
    %p75 = scmp.ne.s32.totalorder %s66, %s67
    %p76 = scmp.eq.s32.totalorder %s14, 0
    %p77 = por %p75, %p76
    %p78 = scmp.ne.s32.totalorder %s66, %s67
    %p79 = scmp.eq.s32.totalorder %s15, 1
    %p80 = por %p78, %p79
    %p82 = scmp.ne.s32.totalorder %s67, %s81
    %p83 = scmp.eq.s32.totalorder %s15, 0
    %p84 = por %p82, %p83
    %s85 = ssub.s32 %s9, %s16
    %p86 = scmp.eq.s32.totalorder %s85, 0
    %s88 = sadd.s32 %s87, 1
    %s89 = scalar_select %p86, %s87, %s88
    %p92 = pneg %p86
    %p93 = scmp.eq.s32.totalorder %s9, 1
    %p94 = por %p92, %p93
    %p95 = scmp.ne.s32.totalorder %s87, %s90
    %p96 = scmp.eq.s32.totalorder %s9, 0
    %p97 = por %p95, %p96
    %p98 = scmp.ne.s32.totalorder %s87, %s90
    %p99 = scmp.eq.s32.totalorder %s14, 1
    %p100 = por %p98, %p99
    %p101 = scmp.ne.s32.totalorder %s90, %s91
    %p102 = scmp.eq.s32.totalorder %s14, 0
    %p103 = por %p101, %p102
    %p104 = scmp.ne.s32.totalorder %s90, %s91
    %p105 = scmp.eq.s32.totalorder %s15, 1
    %p106 = por %p104, %p105
    %p108 = scmp.ne.s32.totalorder %s91, %s107
    %p109 = scmp.eq.s32.totalorder %s15, 0
    %p110 = por %p108, %p109
    %p111 = scmp.le.s32.totalorder 1, %s9
    %p112 = scmp.lt.s32.totalorder %s9, 3
    %p113 = pnand %p111, %p112
    %p114 = pneg %p113
    // Predicated region
    $region9: #{_lambda_.24} parent=5 // pred_check
      _
    $region10: #{_lambda_.24} parent=5 // pred_check_branch
      %116 = sbr.rel (%p113) target = $region12
    $region11: #{_lambda_.24} parent=5 // pred_region
      %s117 = ssub.s32 %s9, 1
      // Predicated region
      $region13: #{_lambda_.24} parent=11 // pred_check
        %p118 = pneg %p56
      $region14: #{_lambda_.24} parent=11 // pred_check_branch
        %120 = sbr.rel (%p118) target = $region16
      $region15: #{_lambda_.24} parent=11 // pred_region
        _
      $region16: #{_lambda_.24} parent=11 // pred_fallthru
        _
      // Predicated region
      $region17: #{_lambda_.24} parent=11 // pred_check
        %p121 = pneg %p77
      $region18: #{_lambda_.24} parent=11 // pred_check_branch
        %123 = sbr.rel (%p121) target = $region20
      $region19: #{_lambda_.24} parent=11 // pred_region
        _
      $region20: #{_lambda_.24} parent=11 // pred_fallthru
        _
    $region12: #{_lambda_.24} parent=5 // pred_fallthru
      _
    %p124 = scmp.lt.s32.totalorder %s9, 2
    // Predicated region
    $region21: #{_lambda_.24} parent=5 // pred_check
      %p125 = pneg %p124
    $region22: #{_lambda_.24} parent=5 // pred_check_branch
      %127 = sbr.rel (%p125) target = $region24
    $region23: #{_lambda_.24} parent=5 // pred_region
      // Predicated region
      $region25: #{_lambda_.24} parent=23 // pred_check
        %p128 = pneg %p29
      $region26: #{_lambda_.24} parent=23 // pred_check_branch
        %130 = sbr.rel (%p128) target = $region28
      $region27: #{_lambda_.24} parent=23 // pred_region
        %s131 = smul.u32 32, %s9
        %p132 = scmp.lt.s32.totalorder %s131, 63
        %s133 = scalar_select %p132, %s131, 63
        %s134 = smul.addr %s133, 4
        %s135 = scalar_lea.vmem %s0, %s134
        %s136 = smul.u32 32, %s9
      $region28: #{_lambda_.24} parent=23 // pred_fallthru
        _
    $region24: #{_lambda_.24} parent=5 // pred_fallthru
      _
    %p137 = scmp.le.s32.totalorder 1, %s9
    %p138 = scmp.lt.s32.totalorder %s9, 3
    %p139 = pnand %p137, %p138
    %p140 = pneg %p139
    // Predicated region
    $region29: #{_lambda_.24} parent=5 // pred_check
      _
    $region30: #{_lambda_.24} parent=5 // pred_check_branch
      %142 = sbr.rel (%p139) target = $region32
    $region31: #{_lambda_.24} parent=5 // pred_region
      %s143 = ssub.s32 %s9, 1
      %s144 = smul.u32 32, %s14
      %p145 = scmp.lt.s32.totalorder %s144, 63
      %s146 = scalar_select %p145, %s144, 63
      %s147 = smul.addr %s146, 4
      %s148 = scalar_lea.vmem %s0, %s147
      %p149 = pneg %p35
      %p150 = pneg %p32
      %p151 = pneg %p56
      %p152 = pneg %p53
      %p153 = pneg %p77
      %p154 = pneg %p74
      %p155 = pneg %p103
      %p156 = pneg %p100
      %s157 = smul.u32 32, %s14
      %p158 = scmp.lt.s32.totalorder %s157, 63
      %s159 = scalar_select %p158, %s157, 63
      %s160 = smul.addr %s159, 4
      %s161 = scalar_lea.vmem %s3, %s160
      %s162 = smul.u32 32, %s14
      %p163 = scmp.lt.s32.totalorder %s162, 63
      %s164 = scalar_select %p163, %s162, 63
      %s165 = smul.addr %s164, 4
      %s166 = scalar_lea.vmem %s0, %s165
      %s167 = smul.u32 32, %s14
      %s168 = smul.u32 32, %s14
      %p169 = scmp.lt.s32.totalorder %s168, 63
      %s170 = scalar_select %p169, %s168, 63
      %s171 = smul.addr %s170, 4
      %s172 = scalar_lea.vmem %s3, %s171
      %s173 = smul.u32 32, %s14
      %v175 = vld [vmem:[%s166] sm:$0xf]
      %v176 = vld [vmem:[%s166 + $0x4] sm:$0xf]
      %v177 = vld [vmem:[%s166 + $0x8] sm:$0xf]
      %v178 = vld [vmem:[%s166 + $0xc] sm:$0xf]
      %v179 = vld [vmem:[%s166 + $0x10] sm:$0xf]
      %v180 = vld [vmem:[%s166 + $0x14] sm:$0xf]
      %v181 = vld [vmem:[%s166 + $0x18] sm:$0xf]
      %v182 = vld [vmem:[%s166 + $0x1c] sm:$0xf]
      %v183 = vld [vmem:[%s166 + $0x20] sm:$0xf]
      %v184 = vld [vmem:[%s166 + $0x24] sm:$0xf]
      %v185 = vld [vmem:[%s166 + $0x28] sm:$0xf]
      %v186 = vld [vmem:[%s166 + $0x2c] sm:$0xf]
      %v187 = vld [vmem:[%s166 + $0x30] sm:$0xf]
      %v188 = vld [vmem:[%s166 + $0x34] sm:$0xf]
      %v189 = vld [vmem:[%s166 + $0x38] sm:$0xf]
      %v190 = vld [vmem:[%s166 + $0x3c] sm:$0xf]
      %v191 = vld [vmem:[%s166 + $0x40] sm:$0xf]
      %v192 = vld [vmem:[%s166 + $0x44] sm:$0xf]
      %v193 = vld [vmem:[%s166 + $0x48] sm:$0xf]
      %v194 = vld [vmem:[%s166 + $0x4c] sm:$0xf]
      %v195 = vld [vmem:[%s166 + $0x50] sm:$0xf]
      %v196 = vld [vmem:[%s166 + $0x54] sm:$0xf]
      %v197 = vld [vmem:[%s166 + $0x58] sm:$0xf]
      %v198 = vld [vmem:[%s166 + $0x5c] sm:$0xf]
      %v199 = vld [vmem:[%s166 + $0x60] sm:$0xf]
      %v200 = vld [vmem:[%s166 + $0x64] sm:$0xf]
      %v201 = vld [vmem:[%s166 + $0x68] sm:$0xf]
      %v202 = vld [vmem:[%s166 + $0x6c] sm:$0xf]
      %v203 = vld [vmem:[%s166 + $0x70] sm:$0xf]
      %v204 = vld [vmem:[%s166 + $0x74] sm:$0xf]
      %v205 = vld [vmem:[%s166 + $0x78] sm:$0xf]
      %v206 = vld [vmem:[%s166 + $0x7c] sm:$0xf]
      %v207 = vld [vmem:[%s1] sm:$0xf]
      %v208 = vld [vmem:[%s1 + $0x4] sm:$0xf]
      %v209 = vld [vmem:[%s1 + $0x8] sm:$0xf]
      %v210 = vld [vmem:[%s1 + $0xc] sm:$0xf]
      %v211 = vld [vmem:[%s1 + $0x10] sm:$0xf]
      %v212 = vld [vmem:[%s1 + $0x14] sm:$0xf]
      %v213 = vld [vmem:[%s1 + $0x18] sm:$0xf]
      %v214 = vld [vmem:[%s1 + $0x1c] sm:$0xf]
      %v215 = vld [vmem:[%s1 + $0x20] sm:$0xf]
      %v216 = vld [vmem:[%s1 + $0x24] sm:$0xf]
      %v217 = vld [vmem:[%s1 + $0x28] sm:$0xf]
      %v218 = vld [vmem:[%s1 + $0x2c] sm:$0xf]
      %v219 = vld [vmem:[%s1 + $0x30] sm:$0xf]
      %v220 = vld [vmem:[%s1 + $0x34] sm:$0xf]
      %v221 = vld [vmem:[%s1 + $0x38] sm:$0xf]
      %v222 = vld [vmem:[%s1 + $0x3c] sm:$0xf]
      %v223 = vld [vmem:[%s2] sm:$0x1]
      %v225 = vlaneseq
      %v226 = vshrl.u32 %v225, 7
      %v227 = vsub.s32 0, %v226
      %v228 = vrot.slane %v223, %v227
      %v262 = vunpack.c.l.b16 %v175
      %v263 = vunpack.c.l.b16 %v176
      %v264 = vunpack.c.l.b16 %v177
      %v265 = vunpack.c.l.b16 %v178
      %v266 = vunpack.c.l.b16 %v179
      %v267 = vunpack.c.l.b16 %v180
      %v268 = vunpack.c.l.b16 %v181
      %v269 = vunpack.c.l.b16 %v182
      %v270 = vunpack.c.l.b16 %v183
      %v271 = vunpack.c.l.b16 %v184
      %v272 = vunpack.c.l.b16 %v185
      %v273 = vunpack.c.l.b16 %v186
      %v274 = vunpack.c.l.b16 %v187
      %v275 = vunpack.c.l.b16 %v188
      %v276 = vunpack.c.l.b16 %v189
      %v277 = vunpack.c.l.b16 %v190
      %v278 = vunpack.c.l.b16 %v191
      %v279 = vunpack.c.l.b16 %v192
      %v280 = vunpack.c.l.b16 %v193
      %v281 = vunpack.c.l.b16 %v194
      %v282 = vunpack.c.l.b16 %v195
      %v283 = vunpack.c.l.b16 %v196
      %v284 = vunpack.c.l.b16 %v197
      %v285 = vunpack.c.l.b16 %v198
      %v286 = vunpack.c.l.b16 %v199
      %v287 = vunpack.c.l.b16 %v200
      %v288 = vunpack.c.l.b16 %v201
      %v289 = vunpack.c.l.b16 %v202
      %v290 = vunpack.c.l.b16 %v203
      %v291 = vunpack.c.l.b16 %v204
      %v292 = vunpack.c.l.b16 %v205
      %v293 = vunpack.c.l.b16 %v206
      %v294 = vpack.c.b16 %v263, %v262
      %v295 = vpack.c.b16 %v265, %v264
      %v296 = vpack.c.b16 %v267, %v266
      %v297 = vpack.c.b16 %v269, %v268
      %v298 = vpack.c.b16 %v271, %v270
      %v299 = vpack.c.b16 %v273, %v272
      %v300 = vpack.c.b16 %v275, %v274
      %v301 = vpack.c.b16 %v277, %v276
      %v302 = vpack.c.b16 %v279, %v278
      %v303 = vpack.c.b16 %v281, %v280
      %v304 = vpack.c.b16 %v283, %v282
      %v305 = vpack.c.b16 %v285, %v284
      %v306 = vpack.c.b16 %v287, %v286
      %v307 = vpack.c.b16 %v289, %v288
      %v308 = vpack.c.b16 %v291, %v290
      %v309 = vpack.c.b16 %v293, %v292
      %v342 = vunpack.c.l.b16 %v207
      %v343 = vunpack.c.l.b16 %v208
      %v344 = vunpack.c.l.b16 %v209
      %v345 = vunpack.c.l.b16 %v210
      %v346 = vunpack.c.l.b16 %v211
      %v347 = vunpack.c.l.b16 %v212
      %v348 = vunpack.c.l.b16 %v213
      %v349 = vunpack.c.l.b16 %v214
      %v350 = vunpack.c.l.b16 %v215
      %v351 = vunpack.c.l.b16 %v216
      %v352 = vunpack.c.l.b16 %v217
      %v353 = vunpack.c.l.b16 %v218
      %v354 = vunpack.c.l.b16 %v219
      %v355 = vunpack.c.l.b16 %v220
      %v356 = vunpack.c.l.b16 %v221
      %v357 = vunpack.c.l.b16 %v222
      %v358 = vpack.c.b16 %v343, %v342
      %v359 = vpack.c.b16 %v345, %v344
      %v360 = vpack.c.b16 %v347, %v346
      %v361 = vpack.c.b16 %v349, %v348
      %v362 = vpack.c.b16 %v351, %v350
      %v363 = vpack.c.b16 %v353, %v352
      %v364 = vpack.c.b16 %v355, %v354
      %v365 = vpack.c.b16 %v357, %v356
      %374 = vmatprep.subr.bf16.mxu0 0
      %375 = vmatpush1.bf16.msra.mxu0 %v358
      %376 = vmatprep.subr.bf16.mxu0 0
      %377 = vmatpush1.bf16.msra.mxu0 %v359
      %378 = vmatprep.subr.bf16.mxu0 0
      %379 = vmatpush1.bf16.msra.mxu0 %v360
      %380 = vmatprep.subr.bf16.mxu0 0
      %381 = vmatpush1.bf16.msra.mxu0 %v361
      %382 = vmatprep.subr.bf16.mxu0 0
      %383 = vmatpush1.bf16.msra.mxu0 %v362
      %384 = vmatprep.subr.bf16.mxu0 0
      %385 = vmatpush1.bf16.msra.mxu0 %v363
      %386 = vmatprep.subr.bf16.mxu0 0
      %387 = vmatpush1.bf16.msra.mxu0 %v364
      %388 = vmatprep.subr.bf16.mxu0 0
      %389 = vmatpush1.bf16.msra.mxu0 %v365
      %390 = vmatprep.subr.bf16.mxu0 0
      %391 = vmatpush1.bf16.msra.mxu0 0
      %392 = vmatprep.subr.bf16.mxu0 0
      %393 = vmatpush1.bf16.msra.mxu0 0
      %394 = vmatprep.subr.bf16.mxu0 0
      %395 = vmatpush1.bf16.msra.mxu0 0
      %396 = vmatprep.subr.bf16.mxu0 0
      %397 = vmatpush1.bf16.msra.mxu0 0
      %398 = vmatprep.subr.bf16.mxu0 0
      %399 = vmatpush1.bf16.msra.mxu0 0
      %400 = vmatprep.subr.bf16.mxu0 0
      %401 = vmatpush1.bf16.msra.mxu0 0
      %402 = vmatprep.subr.bf16.mxu0 0
      %403 = vmatpush1.bf16.msra.mxu0 0
      %404 = vmatprep.subr.bf16.mxu0 0
      %405 = vmatpush1.bf16.msra.mxu0 0
      %406 = vmatprep.mubr.bf16.mxu0 0
      %407 = vmatmul.mubr.bf16.gmra.mrb[0].mxu0 %v294
      %v408 = vpop.f32.mrb[0].mxu0
      %v409 = vadd.f32 %v228, %v408
      %v410 = vpop.f32.mrb[0].mxu0
      %v411 = vpop.f32.mrb[0].mxu0
      %v412 = vadd.f32 %v228, %v411
      %v413 = vpop.f32.mrb[0].mxu0
      %414 = vmatprep.mubr.bf16.mxu0 0
      %415 = vmatmul.mubr.bf16.gmra.mrb[0].mxu0 %v295
      %v416 = vpop.f32.mrb[0].mxu0
      %v417 = vadd.f32 %v228, %v416
      %v418 = vpop.f32.mrb[0].mxu0
      %v419 = vpop.f32.mrb[0].mxu0
      %v420 = vadd.f32 %v228, %v419
      %v421 = vpop.f32.mrb[0].mxu0
      %422 = vmatprep.mubr.bf16.mxu0 0
      %423 = vmatmul.mubr.bf16.gmra.mrb[0].mxu0 %v296
      %v424 = vpop.f32.mrb[0].mxu0
      %v425 = vadd.f32 %v228, %v424
      %v426 = vpop.f32.mrb[0].mxu0
      %v427 = vpop.f32.mrb[0].mxu0
      %v428 = vadd.f32 %v228, %v427
      %v429 = vpop.f32.mrb[0].mxu0
      %430 = vmatprep.mubr.bf16.mxu0 0
      %431 = vmatmul.mubr.bf16.gmra.mrb[0].mxu0 %v297
      %v432 = vpop.f32.mrb[0].mxu0
      %v433 = vadd.f32 %v228, %v432
      %v434 = vpop.f32.mrb[0].mxu0
      %v435 = vpop.f32.mrb[0].mxu0
      %v436 = vadd.f32 %v228, %v435
      %v437 = vpop.f32.mrb[0].mxu0
      %438 = vmatprep.mubr.bf16.mxu0 0
      %439 = vmatmul.mubr.bf16.gmra.mrb[0].mxu0 %v298
      %v440 = vpop.f32.mrb[0].mxu0
      %v441 = vadd.f32 %v228, %v440
      %v442 = vpop.f32.mrb[0].mxu0
      %v443 = vpop.f32.mrb[0].mxu0
      %v444 = vadd.f32 %v228, %v443
      %v445 = vpop.f32.mrb[0].mxu0
      %446 = vmatprep.mubr.bf16.mxu0 0
      %447 = vmatmul.mubr.bf16.gmra.mrb[0].mxu0 %v299
      %v448 = vpop.f32.mrb[0].mxu0
      %v449 = vadd.f32 %v228, %v448
      %v450 = vpop.f32.mrb[0].mxu0
      %v451 = vpop.f32.mrb[0].mxu0
      %v452 = vadd.f32 %v228, %v451
      %v453 = vpop.f32.mrb[0].mxu0
      %454 = vmatprep.mubr.bf16.mxu0 0
      %455 = vmatmul.mubr.bf16.gmra.mrb[0].mxu0 %v300
      %v456 = vpop.f32.mrb[0].mxu0
      %v457 = vadd.f32 %v228, %v456
      %v458 = vpop.f32.mrb[0].mxu0
      %v459 = vpop.f32.mrb[0].mxu0
      %v460 = vadd.f32 %v228, %v459
      %v461 = vpop.f32.mrb[0].mxu0
      %462 = vmatprep.mubr.bf16.mxu0 0
      %463 = vmatmul.mubr.bf16.gmra.mrb[0].mxu0 %v301
      %v464 = vpop.f32.mrb[0].mxu0
      %v465 = vadd.f32 %v228, %v464
      %v466 = vpop.f32.mrb[0].mxu0
      %v467 = vpop.f32.mrb[0].mxu0
      %v468 = vadd.f32 %v228, %v467
      %v469 = vpop.f32.mrb[0].mxu0
      %470 = vmatprep.mubr.bf16.mxu0 0
      %471 = vmatmul.mubr.bf16.gmra.mrb[0].mxu0 %v302
      %v472 = vpop.f32.mrb[0].mxu0
      %v473 = vadd.f32 %v228, %v472
      %v474 = vpop.f32.mrb[0].mxu0
      %v475 = vpop.f32.mrb[0].mxu0
      %v476 = vadd.f32 %v228, %v475
      %v477 = vpop.f32.mrb[0].mxu0
      %478 = vmatprep.mubr.bf16.mxu0 0
      %479 = vmatmul.mubr.bf16.gmra.mrb[0].mxu0 %v303
      %v480 = vpop.f32.mrb[0].mxu0
      %v481 = vadd.f32 %v228, %v480
      %v482 = vpop.f32.mrb[0].mxu0
      %v483 = vpop.f32.mrb[0].mxu0
      %v484 = vadd.f32 %v228, %v483
      %v485 = vpop.f32.mrb[0].mxu0
      %486 = vmatprep.mubr.bf16.mxu0 0
      %487 = vmatmul.mubr.bf16.gmra.mrb[0].mxu0 %v304
      %v488 = vpop.f32.mrb[0].mxu0
      %v489 = vadd.f32 %v228, %v488
      %v490 = vpop.f32.mrb[0].mxu0
      %v491 = vpop.f32.mrb[0].mxu0
      %v492 = vadd.f32 %v228, %v491
      %v493 = vpop.f32.mrb[0].mxu0
      %494 = vmatprep.mubr.bf16.mxu0 0
      %495 = vmatmul.mubr.bf16.gmra.mrb[0].mxu0 %v305
      %v496 = vpop.f32.mrb[0].mxu0
      %v497 = vadd.f32 %v228, %v496
      %v498 = vpop.f32.mrb[0].mxu0
      %v499 = vpop.f32.mrb[0].mxu0
      %v500 = vadd.f32 %v228, %v499
      %v501 = vpop.f32.mrb[0].mxu0
      %502 = vmatprep.mubr.bf16.mxu0 0
      %503 = vmatmul.mubr.bf16.gmra.mrb[0].mxu0 %v306
      %v504 = vpop.f32.mrb[0].mxu0
      %v505 = vadd.f32 %v228, %v504
      %v506 = vpop.f32.mrb[0].mxu0
      %v507 = vpop.f32.mrb[0].mxu0
      %v508 = vadd.f32 %v228, %v507
      %v509 = vpop.f32.mrb[0].mxu0
      %510 = vmatprep.mubr.bf16.mxu0 0
      %511 = vmatmul.mubr.bf16.gmra.mrb[0].mxu0 %v307
      %v512 = vpop.f32.mrb[0].mxu0
      %v513 = vadd.f32 %v228, %v512
      %v514 = vpop.f32.mrb[0].mxu0
      %v515 = vpop.f32.mrb[0].mxu0
      %v516 = vadd.f32 %v228, %v515
      %v517 = vpop.f32.mrb[0].mxu0
      %518 = vmatprep.mubr.bf16.mxu0 0
      %519 = vmatmul.mubr.bf16.gmra.mrb[0].mxu0 %v308
      %v520 = vpop.f32.mrb[0].mxu0
      %v521 = vadd.f32 %v228, %v520
      %v522 = vpop.f32.mrb[0].mxu0
      %v523 = vpop.f32.mrb[0].mxu0
      %v524 = vadd.f32 %v228, %v523
      %v525 = vpop.f32.mrb[0].mxu0
      %526 = vmatprep.mubr.bf16.mxu0 0
      %527 = vmatmul.mubr.bf16.gmra.mrb[0].mxu0 %v309
      %v528 = vpop.f32.mrb[0].mxu0
      %v529 = vadd.f32 %v228, %v528
      %v530 = vpop.f32.mrb[0].mxu0
      %v531 = vpop.f32.mrb[0].mxu0
      %v532 = vadd.f32 %v228, %v531
      %v533 = vpop.f32.mrb[0].mxu0
      %534 = vdwg.mxu0
      %v535 = vpack.c.bf16 %v412, %v409
      %v536 = vpack.c.bf16 %v420, %v417
      %v537 = vpack.c.bf16 %v428, %v425
      %v538 = vpack.c.bf16 %v436, %v433
      %v539 = vpack.c.bf16 %v444, %v441
      %v540 = vpack.c.bf16 %v452, %v449
      %v541 = vpack.c.bf16 %v460, %v457
      %v542 = vpack.c.bf16 %v468, %v465
      %v543 = vpack.c.bf16 %v476, %v473
      %v544 = vpack.c.bf16 %v484, %v481
      %v545 = vpack.c.bf16 %v492, %v489
      %v546 = vpack.c.bf16 %v500, %v497
      %v547 = vpack.c.bf16 %v508, %v505
      %v548 = vpack.c.bf16 %v516, %v513
      %v549 = vpack.c.bf16 %v524, %v521
      %v550 = vpack.c.bf16 %v532, %v529
      %v567 = vunpack.c.l.b16 %v535
      %v568 = vunpack.c.h.b16 %v535
      %v569 = vunpack.c.l.b16 %v536
      %v570 = vunpack.c.h.b16 %v536
      %v571 = vunpack.c.l.b16 %v537
      %v572 = vunpack.c.h.b16 %v537
      %v573 = vunpack.c.l.b16 %v538
      %v574 = vunpack.c.h.b16 %v538
      %v575 = vunpack.c.l.b16 %v539
      %v576 = vunpack.c.h.b16 %v539
      %v577 = vunpack.c.l.b16 %v540
      %v578 = vunpack.c.h.b16 %v540
      %v579 = vunpack.c.l.b16 %v541
      %v580 = vunpack.c.h.b16 %v541
      %v581 = vunpack.c.l.b16 %v542
      %v582 = vunpack.c.h.b16 %v542
      %v583 = vunpack.c.l.b16 %v543
      %v584 = vunpack.c.h.b16 %v543
      %v585 = vunpack.c.l.b16 %v544
      %v586 = vunpack.c.h.b16 %v544
      %v587 = vunpack.c.l.b16 %v545
      %v588 = vunpack.c.h.b16 %v545
      %v589 = vunpack.c.l.b16 %v546
      %v590 = vunpack.c.h.b16 %v546
      %v591 = vunpack.c.l.b16 %v547
      %v592 = vunpack.c.h.b16 %v547
      %v593 = vunpack.c.l.b16 %v548
      %v594 = vunpack.c.h.b16 %v548
      %v595 = vunpack.c.l.b16 %v549
      %v596 = vunpack.c.h.b16 %v549
      %v597 = vunpack.c.l.b16 %v550
      %v598 = vunpack.c.h.b16 %v550
      %v599 = vpack.c.b16 %v567, %v567
      %v600 = vpack.c.b16 %v568, %v568
      %v601 = vpack.c.b16 %v569, %v569
      %v602 = vpack.c.b16 %v570, %v570
      %v603 = vpack.c.b16 %v571, %v571
      %v604 = vpack.c.b16 %v572, %v572
      %v605 = vpack.c.b16 %v573, %v573
      %v606 = vpack.c.b16 %v574, %v574
      %v607 = vpack.c.b16 %v575, %v575
      %v608 = vpack.c.b16 %v576, %v576
      %v609 = vpack.c.b16 %v577, %v577
      %v610 = vpack.c.b16 %v578, %v578
      %v611 = vpack.c.b16 %v579, %v579
      %v612 = vpack.c.b16 %v580, %v580
      %v613 = vpack.c.b16 %v581, %v581
      %v614 = vpack.c.b16 %v582, %v582
      %v615 = vpack.c.b16 %v583, %v583
      %v616 = vpack.c.b16 %v584, %v584
      %v617 = vpack.c.b16 %v585, %v585
      %v618 = vpack.c.b16 %v586, %v586
      %v619 = vpack.c.b16 %v587, %v587
      %v620 = vpack.c.b16 %v588, %v588
      %v621 = vpack.c.b16 %v589, %v589
      %v622 = vpack.c.b16 %v590, %v590
      %v623 = vpack.c.b16 %v591, %v591
      %v624 = vpack.c.b16 %v592, %v592
      %v625 = vpack.c.b16 %v593, %v593
      %v626 = vpack.c.b16 %v594, %v594
      %v627 = vpack.c.b16 %v595, %v595
      %v628 = vpack.c.b16 %v596, %v596
      %v629 = vpack.c.b16 %v597, %v597
      %v630 = vpack.c.b16 %v598, %v598
      %663 = vst [vmem:[%s172] sm:$0xf] %v599
      %664 = vst [vmem:[%s172 + $0x4] sm:$0xf] %v600
      %665 = vst [vmem:[%s172 + $0x8] sm:$0xf] %v601
      %666 = vst [vmem:[%s172 + $0xc] sm:$0xf] %v602
      %667 = vst [vmem:[%s172 + $0x10] sm:$0xf] %v603
      %668 = vst [vmem:[%s172 + $0x14] sm:$0xf] %v604
      %669 = vst [vmem:[%s172 + $0x18] sm:$0xf] %v605
      %670 = vst [vmem:[%s172 + $0x1c] sm:$0xf] %v606
      %671 = vst [vmem:[%s172 + $0x20] sm:$0xf] %v607
      %672 = vst [vmem:[%s172 + $0x24] sm:$0xf] %v608
      %673 = vst [vmem:[%s172 + $0x28] sm:$0xf] %v609
      %674 = vst [vmem:[%s172 + $0x2c] sm:$0xf] %v610
      %675 = vst [vmem:[%s172 + $0x30] sm:$0xf] %v611
      %676 = vst [vmem:[%s172 + $0x34] sm:$0xf] %v612
      %677 = vst [vmem:[%s172 + $0x38] sm:$0xf] %v613
      %678 = vst [vmem:[%s172 + $0x3c] sm:$0xf] %v614
      %679 = vst [vmem:[%s172 + $0x40] sm:$0xf] %v615
      %680 = vst [vmem:[%s172 + $0x44] sm:$0xf] %v616
      %681 = vst [vmem:[%s172 + $0x48] sm:$0xf] %v617
      %682 = vst [vmem:[%s172 + $0x4c] sm:$0xf] %v618
      %683 = vst [vmem:[%s172 + $0x50] sm:$0xf] %v619
      %684 = vst [vmem:[%s172 + $0x54] sm:$0xf] %v620
      %685 = vst [vmem:[%s172 + $0x58] sm:$0xf] %v621
      %686 = vst [vmem:[%s172 + $0x5c] sm:$0xf] %v622
      %687 = vst [vmem:[%s172 + $0x60] sm:$0xf] %v623
      %688 = vst [vmem:[%s172 + $0x64] sm:$0xf] %v624
      %689 = vst [vmem:[%s172 + $0x68] sm:$0xf] %v625
      %690 = vst [vmem:[%s172 + $0x6c] sm:$0xf] %v626
      %691 = vst [vmem:[%s172 + $0x70] sm:$0xf] %v627
      %692 = vst [vmem:[%s172 + $0x74] sm:$0xf] %v628
      %693 = vst [vmem:[%s172 + $0x78] sm:$0xf] %v629
      %694 = vst [vmem:[%s172 + $0x7c] sm:$0xf] %v630
      %s695 = smul.u32 32, %s14
      %p696 = scmp.lt.s32.totalorder %s695, 63
      %s697 = scalar_select %p696, %s695, 63
      %s698 = smul.addr %s697, 4
      %s699 = scalar_lea.vmem %s3, %s698
      // Predicated region
      $region33: #{_lambda_.24} parent=31 // pred_check
        %p700 = pneg %p100
      $region34: #{_lambda_.24} parent=31 // pred_check_branch
        %702 = sbr.rel (%p700) target = $region36
      $region35: #{_lambda_.24} parent=31 // pred_region
        %s703 = smul.u32 32, %s14
      $region36: #{_lambda_.24} parent=31 // pred_fallthru
        _
    $region32: #{_lambda_.24} parent=5 // pred_fallthru
      _
    %p704 = scmp.le.s32.totalorder 2, %s9
    // Predicated region
    $region37: #{_lambda_.24} parent=5 // pred_check
      %p705 = pneg %p704
    $region38: #{_lambda_.24} parent=5 // pred_check_branch
      %707 = sbr.rel (%p705) target = $region40
    $region39: #{_lambda_.24} parent=5 // pred_region
      %s708 = ssub.s32 %s9, 2
      // Predicated region
      $region41: #{_lambda_.24} parent=39 // pred_check
        %p709 = pneg %p106
      $region42: #{_lambda_.24} parent=39 // pred_check_branch
        %711 = sbr.rel (%p709) target = $region44
      $region43: #{_lambda_.24} parent=39 // pred_region
        %s712 = smul.u32 32, %s15
        %p713 = scmp.lt.s32.totalorder %s712, 63
        %s714 = scalar_select %p713, %s712, 63
        %s715 = smul.addr %s714, 4
        %s716 = scalar_lea.vmem %s3, %s715
      $region44: #{_lambda_.24} parent=39 // pred_fallthru
        _
    $region40: #{_lambda_.24} parent=5 // pred_fallthru
      _
  $region6: #{_lambda_.24} parent=0 // loop_footer
    %s13 = sadd.s32 1, %s9
  $region7: #{_lambda_.24} parent=0 // loop_footer_branch
    %8 = sbr.rel target = $region3
  $region8: #{_lambda_.24} parent=0 // loop_exit
    _

// kernel: _lambda_.26
$region0: #{_lambda_.26}
  #allocation0 [shape = 'u32[]', space=smem, size = 0x4, offset = 0x4, fixed_abs, tag = 'smem constant byte address 0x4 - core index']
  #allocation1 [shape = 'u32[144,128]{1,0:T(1,128)}', space=vmem, size = 0x12000, scoped, tag = 'internal scratch']
  %s0 = inlined_call_operand.vmem [shape: f32[128,128], index: 0, kind: input, shape index: {}]
  %s1 = inlined_call_operand.vmem [shape: f32[1,128], index: 1, kind: input, shape index: {}]
  %s2 = inlined_call_operand.vmem [shape: f32[1,128], index: 2, kind: input, shape index: {}]
  %s3 = inlined_call_operand.vmem [shape: f32[1,128], index: 3, kind: input, shape index: {}]
  %s4 = inlined_call_operand.vmem [shape: f32[1,128], index: 4, kind: input, shape index: {}]
  %s5 = inlined_call_operand.vmem [shape: bf16[128,128], index: 5, kind: output, shape index: {}]
  %s6 = sld [smem:[#allocation0]]
  $region30: #{_lambda_.26} parent=0
    _
  %s8 = ssub.s32 1, %s6
  %s9 = scalar_select 0, %s8, %s6
  // Predicated region
  $region2: #{_lambda_.26} parent=0 // pred_check
    _
  $region3: #{_lambda_.26} parent=0 // pred_check_branch
    %11 = sbr.rel (0) target = $region5
  $region4: #{_lambda_.26} parent=0 // pred_region
    _
  $region5: #{_lambda_.26} parent=0 // pred_fallthru
    _
  // Predicated region
  $region6: #{_lambda_.26} parent=0 // pred_check
    _
  $region7: #{_lambda_.26} parent=0 // pred_check_branch
    %13 = sbr.rel (0) target = $region9
  $region8: #{_lambda_.26} parent=0 // pred_region
    _
  $region9: #{_lambda_.26} parent=0 // pred_fallthru
    _
  // Predicated region
  $region10: #{_lambda_.26} parent=0 // pred_check
    _
  $region11: #{_lambda_.26} parent=0 // pred_check_branch
    %15 = sbr.rel (0) target = $region13
  $region12: #{_lambda_.26} parent=0 // pred_region
    _
  $region13: #{_lambda_.26} parent=0 // pred_fallthru
    _
  // Predicated region
  $region14: #{_lambda_.26} parent=0 // pred_check
    _
  $region15: #{_lambda_.26} parent=0 // pred_check_branch
    %17 = sbr.rel (0) target = $region17
  $region16: #{_lambda_.26} parent=0 // pred_region
    _
  $region17: #{_lambda_.26} parent=0 // pred_fallthru
    _
  // Predicated region
  $region18: #{_lambda_.26} parent=0 // pred_check
    _
  $region19: #{_lambda_.26} parent=0 // pred_check_branch
    %19 = sbr.rel (0) target = $region21
  $region20: #{_lambda_.26} parent=0 // pred_region
    _
  $region21: #{_lambda_.26} parent=0 // pred_fallthru
    _
  %v20 = vld [vmem:[%s1] sm:$0x1]
  %v21 = vmul.f32 %v20, 0.0078125
  %v22 = vld [vmem:[%s2] sm:$0x1]
  %v23 = vmul.f32 %v22, 0.0078125
  %v24 = vmul.f32 %v21, %v21
  %v25 = vsub.f32 %v23, %v24
  %v26 = vmax.f32 %v25, 0.0
  %v27 = vld [vmem:[%s0] sm:$0xff]
  %v28 = vld [vmem:[%s0 + $0x8] sm:$0xff]
  %v29 = vld [vmem:[%s0 + $0x10] sm:$0xff]
  %v30 = vld [vmem:[%s0 + $0x18] sm:$0xff]
  %v31 = vld [vmem:[%s0 + $0x20] sm:$0xff]
  %v32 = vld [vmem:[%s0 + $0x28] sm:$0xff]
  %v33 = vld [vmem:[%s0 + $0x30] sm:$0xff]
  %v34 = vld [vmem:[%s0 + $0x38] sm:$0xff]
  %v35 = vld [vmem:[%s0 + $0x40] sm:$0xff]
  %v36 = vld [vmem:[%s0 + $0x48] sm:$0xff]
  %v37 = vld [vmem:[%s0 + $0x50] sm:$0xff]
  %v38 = vld [vmem:[%s0 + $0x58] sm:$0xff]
  %v39 = vld [vmem:[%s0 + $0x60] sm:$0xff]
  %v40 = vld [vmem:[%s0 + $0x68] sm:$0xff]
  %v41 = vld [vmem:[%s0 + $0x70] sm:$0xff]
  %v42 = vld [vmem:[%s0 + $0x78] sm:$0xff]
  %v44 = vlaneseq
  %v45 = vshrl.u32 %v44, 7
  %v46 = vsub.s32 0, %v45
  %v47 = vrot.slane %v21, %v46
  %v49 = vsub.f32 %v27, %v47
  %v50 = vsub.f32 %v28, %v47
  %v51 = vsub.f32 %v29, %v47
  %v52 = vsub.f32 %v30, %v47
  %v53 = vsub.f32 %v31, %v47
  %v54 = vsub.f32 %v32, %v47
  %v55 = vsub.f32 %v33, %v47
  %v56 = vsub.f32 %v34, %v47
  %v57 = vsub.f32 %v35, %v47
  %v58 = vsub.f32 %v36, %v47
  %v59 = vsub.f32 %v37, %v47
  %v60 = vsub.f32 %v38, %v47
  %v61 = vsub.f32 %v39, %v47
  %v62 = vsub.f32 %v40, %v47
  %v63 = vsub.f32 %v41, %v47
  %v64 = vsub.f32 %v42, %v47
  %v65 = vadd.f32 %v26, 1e-05
  %v66 = vrsqrt.pop %v65
  %v68 = vlaneseq
  %v69 = vshrl.u32 %v68, 7
  %v70 = vsub.s32 0, %v69
  %v71 = vrot.slane %v66, %v70
  %v73 = vmul.f32 %v49, %v71
  %v74 = vmul.f32 %v50, %v71
  %v75 = vmul.f32 %v51, %v71
  %v76 = vmul.f32 %v52, %v71
  %v77 = vmul.f32 %v53, %v71
  %v78 = vmul.f32 %v54, %v71
  %v79 = vmul.f32 %v55, %v71
  %v80 = vmul.f32 %v56, %v71
  %v81 = vmul.f32 %v57, %v71
  %v82 = vmul.f32 %v58, %v71
  %v83 = vmul.f32 %v59, %v71
  %v84 = vmul.f32 %v60, %v71
  %v85 = vmul.f32 %v61, %v71
  %v86 = vmul.f32 %v62, %v71
  %v87 = vmul.f32 %v63, %v71
  %v88 = vmul.f32 %v64, %v71
  %v89 = vld [vmem:[%s3] sm:$0x1]
  %v91 = vlaneseq
  %v92 = vshrl.u32 %v91, 7
  %v93 = vsub.s32 0, %v92
  %v94 = vrot.slane %v89, %v93
  %v96 = vmul.f32 %v73, %v94
  %v97 = vmul.f32 %v74, %v94
  %v98 = vmul.f32 %v75, %v94
  %v99 = vmul.f32 %v76, %v94
  %v100 = vmul.f32 %v77, %v94
  %v101 = vmul.f32 %v78, %v94
  %v102 = vmul.f32 %v79, %v94
  %v103 = vmul.f32 %v80, %v94
  %v104 = vmul.f32 %v81, %v94
  %v105 = vmul.f32 %v82, %v94
  %v106 = vmul.f32 %v83, %v94
  %v107 = vmul.f32 %v84, %v94
  %v108 = vmul.f32 %v85, %v94
  %v109 = vmul.f32 %v86, %v94
  %v110 = vmul.f32 %v87, %v94
  %v111 = vmul.f32 %v88, %v94
  %v112 = vld [vmem:[%s4] sm:$0x1]
  %v114 = vlaneseq
  %v115 = vshrl.u32 %v114, 7
  %v116 = vsub.s32 0, %v115
  %v117 = vrot.slane %v112, %v116
  %v119 = vadd.f32 %v96, %v117
  %v120 = vadd.f32 %v97, %v117
  %v121 = vadd.f32 %v98, %v117
  %v122 = vadd.f32 %v99, %v117
  %v123 = vadd.f32 %v100, %v117
  %v124 = vadd.f32 %v101, %v117
  %v125 = vadd.f32 %v102, %v117
  %v126 = vadd.f32 %v103, %v117
  %v127 = vadd.f32 %v104, %v117
  %v128 = vadd.f32 %v105, %v117
  %v129 = vadd.f32 %v106, %v117
  %v130 = vadd.f32 %v107, %v117
  %v131 = vadd.f32 %v108, %v117
  %v132 = vadd.f32 %v109, %v117
  %v133 = vadd.f32 %v110, %v117
  %v134 = vadd.f32 %v111, %v117
  %v135 = vmax.f32 %v119, 0.0
  %v136 = vmax.f32 %v120, 0.0
  %v137 = vmax.f32 %v121, 0.0
  %v138 = vmax.f32 %v122, 0.0
  %v139 = vmax.f32 %v123, 0.0
  %v140 = vmax.f32 %v124, 0.0
  %v141 = vmax.f32 %v125, 0.0
  %v142 = vmax.f32 %v126, 0.0
  %v143 = vmax.f32 %v127, 0.0
  %v144 = vmax.f32 %v128, 0.0
  %v145 = vmax.f32 %v129, 0.0
  %v146 = vmax.f32 %v130, 0.0
  %v147 = vmax.f32 %v131, 0.0
  %v148 = vmax.f32 %v132, 0.0
  %v149 = vmax.f32 %v133, 0.0
  %v150 = vmax.f32 %v134, 0.0
  %v151 = vpack.c.bf16 %v136, %v135
  %v152 = vpack.c.bf16 %v138, %v137
  %v153 = vpack.c.bf16 %v140, %v139
  %v154 = vpack.c.bf16 %v142, %v141
  %v155 = vpack.c.bf16 %v144, %v143
  %v156 = vpack.c.bf16 %v146, %v145
  %v157 = vpack.c.bf16 %v148, %v147
  %v158 = vpack.c.bf16 %v150, %v149
  %v167 = vunpack.c.l.b16 %v151
  %v168 = vunpack.c.h.b16 %v151
  %v169 = vunpack.c.l.b16 %v152
  %v170 = vunpack.c.h.b16 %v152
  %v171 = vunpack.c.l.b16 %v153
  %v172 = vunpack.c.h.b16 %v153
  %v173 = vunpack.c.l.b16 %v154
  %v174 = vunpack.c.h.b16 %v154
  %v175 = vunpack.c.l.b16 %v155
  %v176 = vunpack.c.h.b16 %v155
  %v177 = vunpack.c.l.b16 %v156
  %v178 = vunpack.c.h.b16 %v156
  %v179 = vunpack.c.l.b16 %v157
  %v180 = vunpack.c.h.b16 %v157
  %v181 = vunpack.c.l.b16 %v158
  %v182 = vunpack.c.h.b16 %v158
  %v183 = vpack.c.b16 %v167, %v167
  %v184 = vpack.c.b16 %v168, %v168
  %v185 = vpack.c.b16 %v169, %v169
  %v186 = vpack.c.b16 %v170, %v170
  %v187 = vpack.c.b16 %v171, %v171
  %v188 = vpack.c.b16 %v172, %v172
  %v189 = vpack.c.b16 %v173, %v173
  %v190 = vpack.c.b16 %v174, %v174
  %v191 = vpack.c.b16 %v175, %v175
  %v192 = vpack.c.b16 %v176, %v176
  %v193 = vpack.c.b16 %v177, %v177
  %v194 = vpack.c.b16 %v178, %v178
  %v195 = vpack.c.b16 %v179, %v179
  %v196 = vpack.c.b16 %v180, %v180
  %v197 = vpack.c.b16 %v181, %v181
  %v198 = vpack.c.b16 %v182, %v182
  %215 = vst [vmem:[%s5] sm:$0xf] %v183
  %216 = vst [vmem:[%s5 + $0x4] sm:$0xf] %v184
  %217 = vst [vmem:[%s5 + $0x8] sm:$0xf] %v185
  %218 = vst [vmem:[%s5 + $0xc] sm:$0xf] %v186
  %219 = vst [vmem:[%s5 + $0x10] sm:$0xf] %v187
  %220 = vst [vmem:[%s5 + $0x14] sm:$0xf] %v188
  %221 = vst [vmem:[%s5 + $0x18] sm:$0xf] %v189
  %222 = vst [vmem:[%s5 + $0x1c] sm:$0xf] %v190
  %223 = vst [vmem:[%s5 + $0x20] sm:$0xf] %v191
  %224 = vst [vmem:[%s5 + $0x24] sm:$0xf] %v192
  %225 = vst [vmem:[%s5 + $0x28] sm:$0xf] %v193
  %226 = vst [vmem:[%s5 + $0x2c] sm:$0xf] %v194
  %227 = vst [vmem:[%s5 + $0x30] sm:$0xf] %v195
  %228 = vst [vmem:[%s5 + $0x34] sm:$0xf] %v196
  %229 = vst [vmem:[%s5 + $0x38] sm:$0xf] %v197
  %230 = vst [vmem:[%s5 + $0x3c] sm:$0xf] %v198
  // Predicated region
  $region22: #{_lambda_.26} parent=0 // pred_check
    _
  $region23: #{_lambda_.26} parent=0 // pred_check_branch
    %232 = sbr.rel (0) target = $region25
  $region24: #{_lambda_.26} parent=0 // pred_region
    _
  $region25: #{_lambda_.26} parent=0 // pred_fallthru
    _
  // Predicated region
  $region26: #{_lambda_.26} parent=0 // pred_check
    _
  $region27: #{_lambda_.26} parent=0 // pred_check_branch
    %234 = sbr.rel (0) target = $region29
  $region28: #{_lambda_.26} parent=0 // pred_region
    _
  $region29: #{_lambda_.26} parent=0 // pred_fallthru
    _

// kernel: _lambda_.25
$region0: #{_lambda_.25}
  #allocation0 [shape = 'u32[]', space=smem, size = 0x4, offset = 0x4, fixed_abs, tag = 'smem constant byte address 0x4 - core index']
  #allocation1 [shape = 'u32[144,128]{1,0:T(1,128)}', space=vmem, size = 0x12000, scoped, tag = 'internal scratch']
  %s0 = inlined_call_operand.vmem [shape: bf16[128,256], index: 0, kind: input, shape index: {}]
  %s1 = inlined_call_operand.vmem [shape: bf16[256,128], index: 1, kind: input, shape index: {}]
  %s2 = inlined_call_operand.vmem [shape: f32[1,128], index: 2, kind: input, shape index: {}]
  %s3 = inlined_call_operand.vmem [shape: f32[128,128], index: 3, kind: output, shape index: {0}]
  %s4 = inlined_call_operand.vmem [shape: f32[1,128], index: 4, kind: output, shape index: {1}]
  %s5 = inlined_call_operand.vmem [shape: f32[1,128], index: 5, kind: output, shape index: {2}]
  %6 = xla_tuple %s3, %s4, %s5
  %s7 = sld [smem:[#allocation0]]
  $region42: #{_lambda_.25} parent=0
    _
  %s9 = ssub.s32 1, %s7
  %s10 = scalar_select 0, %s9, %s7
  // Predicated region
  $region2: #{_lambda_.25} parent=0 // pred_check
    _
  $region3: #{_lambda_.25} parent=0 // pred_check_branch
    %12 = sbr.rel (0) target = $region5
  $region4: #{_lambda_.25} parent=0 // pred_region
    _
  $region5: #{_lambda_.25} parent=0 // pred_fallthru
    _
  // Predicated region
  $region6: #{_lambda_.25} parent=0 // pred_check
    _
  $region7: #{_lambda_.25} parent=0 // pred_check_branch
    %14 = sbr.rel (0) target = $region9
  $region8: #{_lambda_.25} parent=0 // pred_region
    _
  $region9: #{_lambda_.25} parent=0 // pred_fallthru
    _
  // Predicated region
  $region10: #{_lambda_.25} parent=0 // pred_check
    _
  $region11: #{_lambda_.25} parent=0 // pred_check_branch
    %16 = sbr.rel (0) target = $region13
  $region12: #{_lambda_.25} parent=0 // pred_region
    _
  $region13: #{_lambda_.25} parent=0 // pred_fallthru
    _
  %v18 = vld [vmem:[%s0] sm:$0xff]
  %v19 = vld [vmem:[%s0 + $0x8] sm:$0xff]
  %v20 = vld [vmem:[%s0 + $0x10] sm:$0xff]
  %v21 = vld [vmem:[%s0 + $0x18] sm:$0xff]
  %v22 = vld [vmem:[%s0 + $0x20] sm:$0xff]
  %v23 = vld [vmem:[%s0 + $0x28] sm:$0xff]
  %v24 = vld [vmem:[%s0 + $0x30] sm:$0xff]
  %v25 = vld [vmem:[%s0 + $0x38] sm:$0xff]
  %v26 = vld [vmem:[%s0 + $0x40] sm:$0xff]
  %v27 = vld [vmem:[%s0 + $0x48] sm:$0xff]
  %v28 = vld [vmem:[%s0 + $0x50] sm:$0xff]
  %v29 = vld [vmem:[%s0 + $0x58] sm:$0xff]
  %v30 = vld [vmem:[%s0 + $0x60] sm:$0xff]
  %v31 = vld [vmem:[%s0 + $0x68] sm:$0xff]
  %v32 = vld [vmem:[%s0 + $0x70] sm:$0xff]
  %v33 = vld [vmem:[%s0 + $0x78] sm:$0xff]
  %v34 = vld [vmem:[%s1] sm:$0xf]
  %v35 = vld [vmem:[%s1 + $0x4] sm:$0xf]
  %v36 = vld [vmem:[%s1 + $0x8] sm:$0xf]
  %v37 = vld [vmem:[%s1 + $0xc] sm:$0xf]
  %v38 = vld [vmem:[%s1 + $0x10] sm:$0xf]
  %v39 = vld [vmem:[%s1 + $0x14] sm:$0xf]
  %v40 = vld [vmem:[%s1 + $0x18] sm:$0xf]
  %v41 = vld [vmem:[%s1 + $0x1c] sm:$0xf]
  %v42 = vld [vmem:[%s1 + $0x20] sm:$0xf]
  %v43 = vld [vmem:[%s1 + $0x24] sm:$0xf]
  %v44 = vld [vmem:[%s1 + $0x28] sm:$0xf]
  %v45 = vld [vmem:[%s1 + $0x2c] sm:$0xf]
  %v46 = vld [vmem:[%s1 + $0x30] sm:$0xf]
  %v47 = vld [vmem:[%s1 + $0x34] sm:$0xf]
  %v48 = vld [vmem:[%s1 + $0x38] sm:$0xf]
  %v49 = vld [vmem:[%s1 + $0x3c] sm:$0xf]
  %v50 = vld [vmem:[%s1 + $0x40] sm:$0xf]
  %v51 = vld [vmem:[%s1 + $0x44] sm:$0xf]
  %v52 = vld [vmem:[%s1 + $0x48] sm:$0xf]
  %v53 = vld [vmem:[%s1 + $0x4c] sm:$0xf]
  %v54 = vld [vmem:[%s1 + $0x50] sm:$0xf]
  %v55 = vld [vmem:[%s1 + $0x54] sm:$0xf]
  %v56 = vld [vmem:[%s1 + $0x58] sm:$0xf]
  %v57 = vld [vmem:[%s1 + $0x5c] sm:$0xf]
  %v58 = vld [vmem:[%s1 + $0x60] sm:$0xf]
  %v59 = vld [vmem:[%s1 + $0x64] sm:$0xf]
  %v60 = vld [vmem:[%s1 + $0x68] sm:$0xf]
  %v61 = vld [vmem:[%s1 + $0x6c] sm:$0xf]
  %v62 = vld [vmem:[%s1 + $0x70] sm:$0xf]
  %v63 = vld [vmem:[%s1 + $0x74] sm:$0xf]
  %v64 = vld [vmem:[%s1 + $0x78] sm:$0xf]
  %v65 = vld [vmem:[%s1 + $0x7c] sm:$0xf]
  %v66 = vld [vmem:[%s2] sm:$0x1]
  %v68 = vlaneseq
  %v69 = vshrl.u32 %v68, 7
  %v70 = vsub.s32 0, %v69
  %v71 = vrot.slane %v66, %v70
  %v89 = vunpack.c.l.b16 %v18
  %v90 = vunpack.c.h.b16 %v18
  %v91 = vunpack.c.l.b16 %v19
  %v92 = vunpack.c.h.b16 %v19
  %v93 = vunpack.c.l.b16 %v20
  %v94 = vunpack.c.h.b16 %v20
  %v95 = vunpack.c.l.b16 %v21
  %v96 = vunpack.c.h.b16 %v21
  %v97 = vunpack.c.l.b16 %v22
  %v98 = vunpack.c.h.b16 %v22
  %v99 = vunpack.c.l.b16 %v23
  %v100 = vunpack.c.h.b16 %v23
  %v101 = vunpack.c.l.b16 %v24
  %v102 = vunpack.c.h.b16 %v24
  %v103 = vunpack.c.l.b16 %v25
  %v104 = vunpack.c.h.b16 %v25
  %v105 = vunpack.c.l.b16 %v26
  %v106 = vunpack.c.h.b16 %v26
  %v107 = vunpack.c.l.b16 %v27
  %v108 = vunpack.c.h.b16 %v27
  %v109 = vunpack.c.l.b16 %v28
  %v110 = vunpack.c.h.b16 %v28
  %v111 = vunpack.c.l.b16 %v29
  %v112 = vunpack.c.h.b16 %v29
  %v113 = vunpack.c.l.b16 %v30
  %v114 = vunpack.c.h.b16 %v30
  %v115 = vunpack.c.l.b16 %v31
  %v116 = vunpack.c.h.b16 %v31
  %v117 = vunpack.c.l.b16 %v32
  %v118 = vunpack.c.h.b16 %v32
  %v119 = vunpack.c.l.b16 %v33
  %v120 = vunpack.c.h.b16 %v33
  %v121 = vpack.c.b16 %v91, %v89
  %v122 = vpack.c.b16 %v92, %v90
  %v123 = vpack.c.b16 %v95, %v93
  %v124 = vpack.c.b16 %v96, %v94
  %v125 = vpack.c.b16 %v99, %v97
  %v126 = vpack.c.b16 %v100, %v98
  %v127 = vpack.c.b16 %v103, %v101
  %v128 = vpack.c.b16 %v104, %v102
  %v129 = vpack.c.b16 %v107, %v105
  %v130 = vpack.c.b16 %v108, %v106
  %v131 = vpack.c.b16 %v111, %v109
  %v132 = vpack.c.b16 %v112, %v110
  %v133 = vpack.c.b16 %v115, %v113
  %v134 = vpack.c.b16 %v116, %v114
  %v135 = vpack.c.b16 %v119, %v117
  %v136 = vpack.c.b16 %v120, %v118
  %v185 = vunpack.c.l.b16 %v34
  %v186 = vunpack.c.l.b16 %v35
  %v187 = vunpack.c.l.b16 %v36
  %v188 = vunpack.c.l.b16 %v37
  %v189 = vunpack.c.l.b16 %v38
  %v190 = vunpack.c.l.b16 %v39
  %v191 = vunpack.c.l.b16 %v40
  %v192 = vunpack.c.l.b16 %v41
  %v193 = vunpack.c.l.b16 %v42
  %v194 = vunpack.c.l.b16 %v43
  %v195 = vunpack.c.l.b16 %v44
  %v196 = vunpack.c.l.b16 %v45
  %v197 = vunpack.c.l.b16 %v46
  %v198 = vunpack.c.l.b16 %v47
  %v199 = vunpack.c.l.b16 %v48
  %v200 = vunpack.c.l.b16 %v49
  %v201 = vunpack.c.l.b16 %v50
  %v202 = vunpack.c.l.b16 %v51
  %v203 = vunpack.c.l.b16 %v52
  %v204 = vunpack.c.l.b16 %v53
  %v205 = vunpack.c.l.b16 %v54
  %v206 = vunpack.c.l.b16 %v55
  %v207 = vunpack.c.l.b16 %v56
  %v208 = vunpack.c.l.b16 %v57
  %v209 = vunpack.c.l.b16 %v58
  %v210 = vunpack.c.l.b16 %v59
  %v211 = vunpack.c.l.b16 %v60
  %v212 = vunpack.c.l.b16 %v61
  %v213 = vunpack.c.l.b16 %v62
  %v214 = vunpack.c.l.b16 %v63
  %v215 = vunpack.c.l.b16 %v64
  %v216 = vunpack.c.l.b16 %v65
  %v217 = vpack.c.b16 %v186, %v185
  %v218 = vpack.c.b16 %v188, %v187
  %v219 = vpack.c.b16 %v190, %v189
  %v220 = vpack.c.b16 %v192, %v191
  %v221 = vpack.c.b16 %v194, %v193
  %v222 = vpack.c.b16 %v196, %v195
  %v223 = vpack.c.b16 %v198, %v197
  %v224 = vpack.c.b16 %v200, %v199
  %v225 = vpack.c.b16 %v202, %v201
  %v226 = vpack.c.b16 %v204, %v203
  %v227 = vpack.c.b16 %v206, %v205
  %v228 = vpack.c.b16 %v208, %v207
  %v229 = vpack.c.b16 %v210, %v209
  %v230 = vpack.c.b16 %v212, %v211
  %v231 = vpack.c.b16 %v214, %v213
  %v232 = vpack.c.b16 %v216, %v215
  %249 = vmatprep.subr.bf16.mxu0 0
  %250 = vmatpush1.bf16.msra.mxu0 %v217
  %251 = vmatprep.subr.bf16.mxu0 0
  %252 = vmatpush1.bf16.msra.mxu0 %v218
  %253 = vmatprep.subr.bf16.mxu0 0
  %254 = vmatpush1.bf16.msra.mxu0 %v219
  %255 = vmatprep.subr.bf16.mxu0 0
  %256 = vmatpush1.bf16.msra.mxu0 %v220
  %257 = vmatprep.subr.bf16.mxu0 0
  %258 = vmatpush1.bf16.msra.mxu0 %v221
  %259 = vmatprep.subr.bf16.mxu0 0
  %260 = vmatpush1.bf16.msra.mxu0 %v222
  %261 = vmatprep.subr.bf16.mxu0 0
  %262 = vmatpush1.bf16.msra.mxu0 %v223
  %263 = vmatprep.subr.bf16.mxu0 0
  %264 = vmatpush1.bf16.msra.mxu0 %v224
  %265 = vmatprep.subr.bf16.mxu0 0
  %266 = vmatpush1.bf16.msra.mxu0 %v225
  %267 = vmatprep.subr.bf16.mxu0 0
  %268 = vmatpush1.bf16.msra.mxu0 %v226
  %269 = vmatprep.subr.bf16.mxu0 0
  %270 = vmatpush1.bf16.msra.mxu0 %v227
  %271 = vmatprep.subr.bf16.mxu0 0
  %272 = vmatpush1.bf16.msra.mxu0 %v228
  %273 = vmatprep.subr.bf16.mxu0 0
  %274 = vmatpush1.bf16.msra.mxu0 %v229
  %275 = vmatprep.subr.bf16.mxu0 0
  %276 = vmatpush1.bf16.msra.mxu0 %v230
  %277 = vmatprep.subr.bf16.mxu0 0
  %278 = vmatpush1.bf16.msra.mxu0 %v231
  %279 = vmatprep.subr.bf16.mxu0 0
  %280 = vmatpush1.bf16.msra.mxu0 %v232
  %281 = vmatprep.mubr.bf16.mxu0 %v122
  %282 = vmatmul.mubr.bf16.gmra.mrb[0].mxu0 %v121
  %v283 = vpop.f32.mrb[0].mxu0
  %v284 = vadd.f32 %v71, %v283
  %v285 = vpop.f32.mrb[0].mxu0
  %v286 = vpop.f32.mrb[0].mxu0
  %v287 = vadd.f32 %v71, %v286
  %v288 = vpop.f32.mrb[0].mxu0
  %289 = vmatprep.mubr.bf16.mxu0 %v124
  %290 = vmatmul.mubr.bf16.gmra.mrb[0].mxu0 %v123
  %v291 = vpop.f32.mrb[0].mxu0
  %v292 = vadd.f32 %v71, %v291
  %v293 = vpop.f32.mrb[0].mxu0
  %v294 = vpop.f32.mrb[0].mxu0
  %v295 = vadd.f32 %v71, %v294
  %v296 = vpop.f32.mrb[0].mxu0
  %297 = vmatprep.mubr.bf16.mxu0 %v126
  %298 = vmatmul.mubr.bf16.gmra.mrb[0].mxu0 %v125
  %v299 = vpop.f32.mrb[0].mxu0
  %v300 = vadd.f32 %v71, %v299
  %v301 = vpop.f32.mrb[0].mxu0
  %v302 = vpop.f32.mrb[0].mxu0
  %v303 = vadd.f32 %v71, %v302
  %v304 = vpop.f32.mrb[0].mxu0
  %305 = vmatprep.mubr.bf16.mxu0 %v128
  %306 = vmatmul.mubr.bf16.gmra.mrb[0].mxu0 %v127
  %v307 = vpop.f32.mrb[0].mxu0
  %v308 = vadd.f32 %v71, %v307
  %v309 = vpop.f32.mrb[0].mxu0
  %v310 = vpop.f32.mrb[0].mxu0
  %v311 = vadd.f32 %v71, %v310
  %v312 = vpop.f32.mrb[0].mxu0
  %313 = vmatprep.mubr.bf16.mxu0 %v130
  %314 = vmatmul.mubr.bf16.gmra.mrb[0].mxu0 %v129
  %v315 = vpop.f32.mrb[0].mxu0
  %v316 = vadd.f32 %v71, %v315
  %v317 = vpop.f32.mrb[0].mxu0
  %v318 = vpop.f32.mrb[0].mxu0
  %v319 = vadd.f32 %v71, %v318
  %v320 = vpop.f32.mrb[0].mxu0
  %321 = vmatprep.mubr.bf16.mxu0 %v132
  %322 = vmatmul.mubr.bf16.gmra.mrb[0].mxu0 %v131
  %v323 = vpop.f32.mrb[0].mxu0
  %v324 = vadd.f32 %v71, %v323
  %v325 = vpop.f32.mrb[0].mxu0
  %v326 = vpop.f32.mrb[0].mxu0
  %v327 = vadd.f32 %v71, %v326
  %v328 = vpop.f32.mrb[0].mxu0
  %329 = vmatprep.mubr.bf16.mxu0 %v134
  %330 = vmatmul.mubr.bf16.gmra.mrb[0].mxu0 %v133
  %v331 = vpop.f32.mrb[0].mxu0
  %v332 = vadd.f32 %v71, %v331
  %v333 = vpop.f32.mrb[0].mxu0
  %v334 = vpop.f32.mrb[0].mxu0
  %v335 = vadd.f32 %v71, %v334
  %v336 = vpop.f32.mrb[0].mxu0
  %337 = vmatprep.mubr.bf16.mxu0 %v136
  %338 = vmatmul.mubr.bf16.gmra.mrb[0].mxu0 %v135
  %v339 = vpop.f32.mrb[0].mxu0
  %v340 = vadd.f32 %v71, %v339
  %v341 = vpop.f32.mrb[0].mxu0
  %v342 = vpop.f32.mrb[0].mxu0
  %v343 = vadd.f32 %v71, %v342
  %v344 = vpop.f32.mrb[0].mxu0
  %345 = vdwg.mxu0
  %346 = vst [vmem:[%s3] sm:$0xff] %v284
  %347 = vst [vmem:[%s3 + $0x8] sm:$0xff] %v287
  %348 = vst [vmem:[%s3 + $0x10] sm:$0xff] %v292
  %349 = vst [vmem:[%s3 + $0x18] sm:$0xff] %v295
  %350 = vst [vmem:[%s3 + $0x20] sm:$0xff] %v300
  %351 = vst [vmem:[%s3 + $0x28] sm:$0xff] %v303
  %352 = vst [vmem:[%s3 + $0x30] sm:$0xff] %v308
  %353 = vst [vmem:[%s3 + $0x38] sm:$0xff] %v311
  %354 = vst [vmem:[%s3 + $0x40] sm:$0xff] %v316
  %355 = vst [vmem:[%s3 + $0x48] sm:$0xff] %v319
  %356 = vst [vmem:[%s3 + $0x50] sm:$0xff] %v324
  %357 = vst [vmem:[%s3 + $0x58] sm:$0xff] %v327
  %358 = vst [vmem:[%s3 + $0x60] sm:$0xff] %v332
  %359 = vst [vmem:[%s3 + $0x68] sm:$0xff] %v335
  %360 = vst [vmem:[%s3 + $0x70] sm:$0xff] %v340
  %361 = vst [vmem:[%s3 + $0x78] sm:$0xff] %v343
  %v362 = vlaneseq
  %v363 = vshrl.u32 %v362, 7
  %v364 = vadd.s32 %v363, 8
  %v365 = vadd.s32 %v363, 16
  %v366 = vadd.s32 %v363, 24
  %v367 = vadd.s32 %v363, 32
  %v368 = vadd.s32 %v363, 40
  %v369 = vadd.s32 %v363, 48
  %v370 = vadd.s32 %v363, 56
  %v371 = vadd.s32 %v363, 64
  %v372 = vadd.s32 %v363, 72
  %v373 = vadd.s32 %v363, 80
  %v374 = vadd.s32 %v363, 88
  %v375 = vadd.s32 %v363, 96
  %v376 = vadd.s32 %v363, 104
  %v377 = vadd.s32 %v363, 112
  %v378 = vadd.s32 %v363, 120
  %s379 = smul.u32 0, 128
  %v380 = vstv %s379
  %v381 = vadd.s32 %v363, %v380
  %v382 = vadd.s32 %v364, %v380
  %v383 = vadd.s32 %v365, %v380
  %v384 = vadd.s32 %v366, %v380
  %v385 = vadd.s32 %v367, %v380
  %v386 = vadd.s32 %v368, %v380
  %v387 = vadd.s32 %v369, %v380
  %v388 = vadd.s32 %v370, %v380
  %v389 = vadd.s32 %v371, %v380
  %v390 = vadd.s32 %v372, %v380
  %v391 = vadd.s32 %v373, %v380
  %v392 = vadd.s32 %v374, %v380
  %v393 = vadd.s32 %v375, %v380
  %v394 = vadd.s32 %v376, %v380
  %v395 = vadd.s32 %v377, %v380
  %v396 = vadd.s32 %v378, %v380
  %vm397 = vcmp.lt.s32.totalorder %v381, 128
  %vm398 = vcmp.lt.s32.totalorder %v382, 128
  %vm399 = vcmp.lt.s32.totalorder %v383, 128
  %vm400 = vcmp.lt.s32.totalorder %v384, 128
  %vm401 = vcmp.lt.s32.totalorder %v385, 128
  %vm402 = vcmp.lt.s32.totalorder %v386, 128
  %vm403 = vcmp.lt.s32.totalorder %v387, 128
  %vm404 = vcmp.lt.s32.totalorder %v388, 128
  %vm405 = vcmp.lt.s32.totalorder %v389, 128
  %vm406 = vcmp.lt.s32.totalorder %v390, 128
  %vm407 = vcmp.lt.s32.totalorder %v391, 128
  %vm408 = vcmp.lt.s32.totalorder %v392, 128
  %vm409 = vcmp.lt.s32.totalorder %v393, 128
  %vm410 = vcmp.lt.s32.totalorder %v394, 128
  %vm411 = vcmp.lt.s32.totalorder %v395, 128
  %vm412 = vcmp.lt.s32.totalorder %v396, 128
  %v413 = vsel %vm397, 1, 0
  %v414 = vsel %vm398, 1, 0
  %v415 = vsel %vm399, 1, 0
  %v416 = vsel %vm400, 1, 0
  %v417 = vsel %vm401, 1, 0
  %v418 = vsel %vm402, 1, 0
  %v419 = vsel %vm403, 1, 0
  %v420 = vsel %vm404, 1, 0
  %v421 = vsel %vm405, 1, 0
  %v422 = vsel %vm406, 1, 0
  %v423 = vsel %vm407, 1, 0
  %v424 = vsel %vm408, 1, 0
  %v425 = vsel %vm409, 1, 0
  %v426 = vsel %vm410, 1, 0
  %v427 = vsel %vm411, 1, 0
  %v428 = vsel %vm412, 1, 0
  %vm429 = vcmp.eq.s32.totalorder %v413, 1
  %vm430 = vcmp.eq.s32.totalorder %v414, 1
  %vm431 = vcmp.eq.s32.totalorder %v415, 1
  %vm432 = vcmp.eq.s32.totalorder %v416, 1
  %vm433 = vcmp.eq.s32.totalorder %v417, 1
  %vm434 = vcmp.eq.s32.totalorder %v418, 1
  %vm435 = vcmp.eq.s32.totalorder %v419, 1
  %vm436 = vcmp.eq.s32.totalorder %v420, 1
  %vm437 = vcmp.eq.s32.totalorder %v421, 1
  %vm438 = vcmp.eq.s32.totalorder %v422, 1
  %vm439 = vcmp.eq.s32.totalorder %v423, 1
  %vm440 = vcmp.eq.s32.totalorder %v424, 1
  %vm441 = vcmp.eq.s32.totalorder %v425, 1
  %vm442 = vcmp.eq.s32.totalorder %v426, 1
  %vm443 = vcmp.eq.s32.totalorder %v427, 1
  %vm444 = vcmp.eq.s32.totalorder %v428, 1
  %v445 = vsel %vm429, %v284, 0.0
  %v446 = vsel %vm430, %v287, 0.0
  %v447 = vsel %vm431, %v292, 0.0
  %v448 = vsel %vm432, %v295, 0.0
  %v449 = vsel %vm433, %v300, 0.0
  %v450 = vsel %vm434, %v303, 0.0
  %v451 = vsel %vm435, %v308, 0.0
  %v452 = vsel %vm436, %v311, 0.0
  %v453 = vsel %vm437, %v316, 0.0
  %v454 = vsel %vm438, %v319, 0.0
  %v455 = vsel %vm439, %v324, 0.0
  %v456 = vsel %vm440, %v327, 0.0
  %v457 = vsel %vm441, %v332, 0.0
  %v458 = vsel %vm442, %v335, 0.0
  %v459 = vsel %vm443, %v340, 0.0
  %v460 = vsel %vm444, %v343, 0.0
  %p461 = scmp.eq.s32.totalorder 0, 0
  // Predicated region
  $region14: #{_lambda_.25} parent=0 // pred_check
    %p462 = pneg %p461
  $region15: #{_lambda_.25} parent=0 // pred_check_branch
    %464 = sbr.rel (%p462) target = $region17
  $region16: #{_lambda_.25} parent=0 // pred_region
    %465 = vst [vmem:[%s4] sm:$0x1] 0.0
    %466 = vst [vmem:[%s5] sm:$0x1] 0.0
  $region17: #{_lambda_.25} parent=0 // pred_fallthru
    _
  %v467 = vld [vmem:[%s4] sm:$0x1]
  %v468 = vadd.f32 %v445, %v446
  %v469 = vadd.f32 %v468, %v447
  %v470 = vadd.f32 %v469, %v448
  %v471 = vadd.f32 %v470, %v449
  %v472 = vadd.f32 %v471, %v450
  %v473 = vadd.f32 %v472, %v451
  %v474 = vadd.f32 %v473, %v452
  %v475 = vadd.f32 %v474, %v453
  %v476 = vadd.f32 %v475, %v454
  %v477 = vadd.f32 %v476, %v455
  %v478 = vadd.f32 %v477, %v456
  %v479 = vadd.f32 %v478, %v457
  %v480 = vadd.f32 %v479, %v458
  %v481 = vadd.f32 %v480, %v459
  %v482 = vadd.f32 %v481, %v460
  %v483 = vrot.slane %v482, 4
  %v484 = vadd.f32 %v482, %v483
  %v485 = vrot.slane %v484, 2
  %v486 = vadd.f32 %v484, %v485
  %v487 = vrot.slane %v486, 1
  %v488 = vadd.f32 %v486, %v487
  %v489 = vadd.f32 %v467, %v488
  %490 = vst [vmem:[%s4] sm:$0x1] %v489
  %v491 = vld [vmem:[%s5] sm:$0x1]
  %v492 = vmul.f32 %v445, %v445
  %v493 = vmul.f32 %v446, %v446
  %v494 = vmul.f32 %v447, %v447
  %v495 = vmul.f32 %v448, %v448
  %v496 = vmul.f32 %v449, %v449
  %v497 = vmul.f32 %v450, %v450
  %v498 = vmul.f32 %v451, %v451
  %v499 = vmul.f32 %v452, %v452
  %v500 = vmul.f32 %v453, %v453
  %v501 = vmul.f32 %v454, %v454
  %v502 = vmul.f32 %v455, %v455
  %v503 = vmul.f32 %v456, %v456
  %v504 = vmul.f32 %v457, %v457
  %v505 = vmul.f32 %v458, %v458
  %v506 = vmul.f32 %v459, %v459
  %v507 = vmul.f32 %v460, %v460
  %v508 = vadd.f32 %v492, %v493
  %v509 = vadd.f32 %v508, %v494
  %v510 = vadd.f32 %v509, %v495
  %v511 = vadd.f32 %v510, %v496
  %v512 = vadd.f32 %v511, %v497
  %v513 = vadd.f32 %v512, %v498
  %v514 = vadd.f32 %v513, %v499
  %v515 = vadd.f32 %v514, %v500
  %v516 = vadd.f32 %v515, %v501
  %v517 = vadd.f32 %v516, %v502
  %v518 = vadd.f32 %v517, %v503
  %v519 = vadd.f32 %v518, %v504
  %v520 = vadd.f32 %v519, %v505
  %v521 = vadd.f32 %v520, %v506
  %v522 = vadd.f32 %v521, %v507
  %v523 = vrot.slane %v522, 4
  %v524 = vadd.f32 %v522, %v523
  %v525 = vrot.slane %v524, 2
  %v526 = vadd.f32 %v524, %v525
  %v527 = vrot.slane %v526, 1
  %v528 = vadd.f32 %v526, %v527
  %v529 = vadd.f32 %v491, %v528
  %530 = vst [vmem:[%s5] sm:$0x1] %v529
  // Predicated region
  $region18: #{_lambda_.25} parent=0 // pred_check
    _
  $region19: #{_lambda_.25} parent=0 // pred_check_branch
    %532 = sbr.rel (0) target = $region21
  $region20: #{_lambda_.25} parent=0 // pred_region
    _
  $region21: #{_lambda_.25} parent=0 // pred_fallthru
    _
  // Predicated region
  $region22: #{_lambda_.25} parent=0 // pred_check
    _
  $region23: #{_lambda_.25} parent=0 // pred_check_branch
    %534 = sbr.rel (0) target = $region25
  $region24: #{_lambda_.25} parent=0 // pred_region
    _
  $region25: #{_lambda_.25} parent=0 // pred_fallthru
    _
  // Predicated region
  $region26: #{_lambda_.25} parent=0 // pred_check
    _
  $region27: #{_lambda_.25} parent=0 // pred_check_branch
    %536 = sbr.rel (0) target = $region29
  $region28: #{_lambda_.25} parent=0 // pred_region
    _
  $region29: #{_lambda_.25} parent=0 // pred_fallthru
    _
  // Predicated region
  $region30: #{_lambda_.25} parent=0 // pred_check
    _
  $region31: #{_lambda_.25} parent=0 // pred_check_branch
    %538 = sbr.rel (0) target = $region33
  $region32: #{_lambda_.25} parent=0 // pred_region
    _
  $region33: #{_lambda_.25} parent=0 // pred_fallthru
    _
  // Predicated region
  $region34: #{_lambda_.25} parent=0 // pred_check
    _
  $region35: #{_lambda_.25} parent=0 // pred_check_branch
    %540 = sbr.rel (0) target = $region37
  $region36: #{_lambda_.25} parent=0 // pred_region
    _
  $region37: #{_lambda_.25} parent=0 // pred_fallthru
    _
  // Predicated region
  $region38: #{_lambda_.25} parent=0 // pred_check
    _
  $region39: #{_lambda_.25} parent=0 // pred_check_branch
    %542 = sbr.rel (0) target = $region41
  $region40: #{_lambda_.25} parent=0 // pred_region
    _
  $region41: #{_lambda_.25} parent=0 // pred_fallthru
    _

// kernel: _lambda_.27
$region0: #{_lambda_.27}
  #allocation0 [shape = 'u32[]', space=smem, size = 0x4, offset = 0x4, fixed_abs, tag = 'smem constant byte address 0x4 - core index']
  #allocation1 [shape = 'u32[144,128]{1,0:T(1,128)}', space=vmem, size = 0x12000, scoped, tag = 'internal scratch']
  %s0 = inlined_call_operand.vmem [shape: bf16[128,384], index: 0, kind: input, shape index: {}]
  %s1 = inlined_call_operand.vmem [shape: bf16[384,128], index: 1, kind: input, shape index: {}]
  %s2 = inlined_call_operand.vmem [shape: f32[1,128], index: 2, kind: input, shape index: {}]
  %s3 = inlined_call_operand.vmem [shape: f32[128,128], index: 3, kind: output, shape index: {0}]
  %s4 = inlined_call_operand.vmem [shape: f32[1,128], index: 4, kind: output, shape index: {1}]
  %s5 = inlined_call_operand.vmem [shape: f32[1,128], index: 5, kind: output, shape index: {2}]
  %6 = xla_tuple %s3, %s4, %s5
  %s7 = sld [smem:[#allocation0]]
  $region42: #{_lambda_.27} parent=0
    _
  %s9 = ssub.s32 1, %s7
  %s10 = scalar_select 0, %s9, %s7
  // Predicated region
  $region2: #{_lambda_.27} parent=0 // pred_check
    _
  $region3: #{_lambda_.27} parent=0 // pred_check_branch
    %12 = sbr.rel (0) target = $region5
  $region4: #{_lambda_.27} parent=0 // pred_region
    _
  $region5: #{_lambda_.27} parent=0 // pred_fallthru
    _
  // Predicated region
  $region6: #{_lambda_.27} parent=0 // pred_check
    _
  $region7: #{_lambda_.27} parent=0 // pred_check_branch
    %14 = sbr.rel (0) target = $region9
  $region8: #{_lambda_.27} parent=0 // pred_region
    _
  $region9: #{_lambda_.27} parent=0 // pred_fallthru
    _
  // Predicated region
  $region10: #{_lambda_.27} parent=0 // pred_check
    _
  $region11: #{_lambda_.27} parent=0 // pred_check_branch
    %16 = sbr.rel (0) target = $region13
  $region12: #{_lambda_.27} parent=0 // pred_region
    _
  $region13: #{_lambda_.27} parent=0 // pred_fallthru
    _
  %v18 = vld [vmem:[%s0] sm:$0xff]
  %v19 = vld [vmem:[%s0 + $0x8] sm:$0xf]
  %v20 = vld [vmem:[%s0 + $0xc] sm:$0xff]
  %v21 = vld [vmem:[%s0 + $0x14] sm:$0xf]
  %v22 = vld [vmem:[%s0 + $0x18] sm:$0xff]
  %v23 = vld [vmem:[%s0 + $0x20] sm:$0xf]
  %v24 = vld [vmem:[%s0 + $0x24] sm:$0xff]
  %v25 = vld [vmem:[%s0 + $0x2c] sm:$0xf]
  %v26 = vld [vmem:[%s0 + $0x30] sm:$0xff]
  %v27 = vld [vmem:[%s0 + $0x38] sm:$0xf]
  %v28 = vld [vmem:[%s0 + $0x3c] sm:$0xff]
  %v29 = vld [vmem:[%s0 + $0x44] sm:$0xf]
  %v30 = vld [vmem:[%s0 + $0x48] sm:$0xff]
  %v31 = vld [vmem:[%s0 + $0x50] sm:$0xf]
  %v32 = vld [vmem:[%s0 + $0x54] sm:$0xff]
  %v33 = vld [vmem:[%s0 + $0x5c] sm:$0xf]
  %v34 = vld [vmem:[%s0 + $0x60] sm:$0xff]
  %v35 = vld [vmem:[%s0 + $0x68] sm:$0xf]
  %v36 = vld [vmem:[%s0 + $0x6c] sm:$0xff]
  %v37 = vld [vmem:[%s0 + $0x74] sm:$0xf]
  %v38 = vld [vmem:[%s0 + $0x78] sm:$0xff]
  %v39 = vld [vmem:[%s0 + $0x80] sm:$0xf]
  %v40 = vld [vmem:[%s0 + $0x84] sm:$0xff]
  %v41 = vld [vmem:[%s0 + $0x8c] sm:$0xf]
  %v42 = vld [vmem:[%s0 + $0x90] sm:$0xff]
  %v43 = vld [vmem:[%s0 + $0x98] sm:$0xf]
  %v44 = vld [vmem:[%s0 + $0x9c] sm:$0xff]
  %v45 = vld [vmem:[%s0 + $0xa4] sm:$0xf]
  %v46 = vld [vmem:[%s0 + $0xa8] sm:$0xff]
  %v47 = vld [vmem:[%s0 + $0xb0] sm:$0xf]
  %v48 = vld [vmem:[%s0 + $0xb4] sm:$0xff]
  %v49 = vld [vmem:[%s0 + $0xbc] sm:$0xf]
  %v50 = vld [vmem:[%s1] sm:$0xf]
  %v51 = vld [vmem:[%s1 + $0x4] sm:$0xf]
  %v52 = vld [vmem:[%s1 + $0x8] sm:$0xf]
  %v53 = vld [vmem:[%s1 + $0xc] sm:$0xf]
  %v54 = vld [vmem:[%s1 + $0x10] sm:$0xf]
  %v55 = vld [vmem:[%s1 + $0x14] sm:$0xf]
  %v56 = vld [vmem:[%s1 + $0x18] sm:$0xf]
  %v57 = vld [vmem:[%s1 + $0x1c] sm:$0xf]
  %v58 = vld [vmem:[%s1 + $0x20] sm:$0xf]
  %v59 = vld [vmem:[%s1 + $0x24] sm:$0xf]
  %v60 = vld [vmem:[%s1 + $0x28] sm:$0xf]
  %v61 = vld [vmem:[%s1 + $0x2c] sm:$0xf]
  %v62 = vld [vmem:[%s1 + $0x30] sm:$0xf]
  %v63 = vld [vmem:[%s1 + $0x34] sm:$0xf]
  %v64 = vld [vmem:[%s1 + $0x38] sm:$0xf]
  %v65 = vld [vmem:[%s1 + $0x3c] sm:$0xf]
  %v66 = vld [vmem:[%s1 + $0x40] sm:$0xf]
  %v67 = vld [vmem:[%s1 + $0x44] sm:$0xf]
  %v68 = vld [vmem:[%s1 + $0x48] sm:$0xf]
  %v69 = vld [vmem:[%s1 + $0x4c] sm:$0xf]
  %v70 = vld [vmem:[%s1 + $0x50] sm:$0xf]
  %v71 = vld [vmem:[%s1 + $0x54] sm:$0xf]
  %v72 = vld [vmem:[%s1 + $0x58] sm:$0xf]
  %v73 = vld [vmem:[%s1 + $0x5c] sm:$0xf]
  %v74 = vld [vmem:[%s1 + $0x60] sm:$0xf]
  %v75 = vld [vmem:[%s1 + $0x64] sm:$0xf]
  %v76 = vld [vmem:[%s1 + $0x68] sm:$0xf]
  %v77 = vld [vmem:[%s1 + $0x6c] sm:$0xf]
  %v78 = vld [vmem:[%s1 + $0x70] sm:$0xf]
  %v79 = vld [vmem:[%s1 + $0x74] sm:$0xf]
  %v80 = vld [vmem:[%s1 + $0x78] sm:$0xf]
  %v81 = vld [vmem:[%s1 + $0x7c] sm:$0xf]
  %v82 = vld [vmem:[%s1 + $0x80] sm:$0xf]
  %v83 = vld [vmem:[%s1 + $0x84] sm:$0xf]
  %v84 = vld [vmem:[%s1 + $0x88] sm:$0xf]
  %v85 = vld [vmem:[%s1 + $0x8c] sm:$0xf]
  %v86 = vld [vmem:[%s1 + $0x90] sm:$0xf]
  %v87 = vld [vmem:[%s1 + $0x94] sm:$0xf]
  %v88 = vld [vmem:[%s1 + $0x98] sm:$0xf]
  %v89 = vld [vmem:[%s1 + $0x9c] sm:$0xf]
  %v90 = vld [vmem:[%s1 + $0xa0] sm:$0xf]
  %v91 = vld [vmem:[%s1 + $0xa4] sm:$0xf]
  %v92 = vld [vmem:[%s1 + $0xa8] sm:$0xf]
  %v93 = vld [vmem:[%s1 + $0xac] sm:$0xf]
  %v94 = vld [vmem:[%s1 + $0xb0] sm:$0xf]
  %v95 = vld [vmem:[%s1 + $0xb4] sm:$0xf]
  %v96 = vld [vmem:[%s1 + $0xb8] sm:$0xf]
  %v97 = vld [vmem:[%s1 + $0xbc] sm:$0xf]
  %v98 = vld [vmem:[%s2] sm:$0x1]
  %v100 = vlaneseq
  %v101 = vshrl.u32 %v100, 7
  %v102 = vsub.s32 0, %v101
  %v103 = vrot.slane %v98, %v102
  %v137 = vunpack.c.l.b16 %v18
  %v138 = vunpack.c.h.b16 %v18
  %v139 = vunpack.c.l.b16 %v19
  %v140 = vunpack.c.l.b16 %v20
  %v141 = vunpack.c.h.b16 %v20
  %v142 = vunpack.c.l.b16 %v21
  %v143 = vunpack.c.l.b16 %v22
  %v144 = vunpack.c.h.b16 %v22
  %v145 = vunpack.c.l.b16 %v23
  %v146 = vunpack.c.l.b16 %v24
  %v147 = vunpack.c.h.b16 %v24
  %v148 = vunpack.c.l.b16 %v25
  %v149 = vunpack.c.l.b16 %v26
  %v150 = vunpack.c.h.b16 %v26
  %v151 = vunpack.c.l.b16 %v27
  %v152 = vunpack.c.l.b16 %v28
  %v153 = vunpack.c.h.b16 %v28
  %v154 = vunpack.c.l.b16 %v29
  %v155 = vunpack.c.l.b16 %v30
  %v156 = vunpack.c.h.b16 %v30
  %v157 = vunpack.c.l.b16 %v31
  %v158 = vunpack.c.l.b16 %v32
  %v159 = vunpack.c.h.b16 %v32
  %v160 = vunpack.c.l.b16 %v33
  %v161 = vunpack.c.l.b16 %v34
  %v162 = vunpack.c.h.b16 %v34
  %v163 = vunpack.c.l.b16 %v35
  %v164 = vunpack.c.l.b16 %v36
  %v165 = vunpack.c.h.b16 %v36
  %v166 = vunpack.c.l.b16 %v37
  %v167 = vunpack.c.l.b16 %v38
  %v168 = vunpack.c.h.b16 %v38
  %v169 = vunpack.c.l.b16 %v39
  %v170 = vunpack.c.l.b16 %v40
  %v171 = vunpack.c.h.b16 %v40
  %v172 = vunpack.c.l.b16 %v41
  %v173 = vunpack.c.l.b16 %v42
  %v174 = vunpack.c.h.b16 %v42
  %v175 = vunpack.c.l.b16 %v43
  %v176 = vunpack.c.l.b16 %v44
  %v177 = vunpack.c.h.b16 %v44
  %v178 = vunpack.c.l.b16 %v45
  %v179 = vunpack.c.l.b16 %v46
  %v180 = vunpack.c.h.b16 %v46
  %v181 = vunpack.c.l.b16 %v47
  %v182 = vunpack.c.l.b16 %v48
  %v183 = vunpack.c.h.b16 %v48
  %v184 = vunpack.c.l.b16 %v49
  %v185 = vpack.c.b16 %v140, %v137
  %v186 = vpack.c.b16 %v141, %v138
  %v187 = vpack.c.b16 %v142, %v139
  %v188 = vpack.c.b16 %v146, %v143
  %v189 = vpack.c.b16 %v147, %v144
  %v190 = vpack.c.b16 %v148, %v145
  %v191 = vpack.c.b16 %v152, %v149
  %v192 = vpack.c.b16 %v153, %v150
  %v193 = vpack.c.b16 %v154, %v151
  %v194 = vpack.c.b16 %v158, %v155
  %v195 = vpack.c.b16 %v159, %v156
  %v196 = vpack.c.b16 %v160, %v157
  %v197 = vpack.c.b16 %v164, %v161
  %v198 = vpack.c.b16 %v165, %v162
  %v199 = vpack.c.b16 %v166, %v163
  %v200 = vpack.c.b16 %v170, %v167
  %v201 = vpack.c.b16 %v171, %v168
  %v202 = vpack.c.b16 %v172, %v169
  %v203 = vpack.c.b16 %v176, %v173
  %v204 = vpack.c.b16 %v177, %v174
  %v205 = vpack.c.b16 %v178, %v175
  %v206 = vpack.c.b16 %v182, %v179
  %v207 = vpack.c.b16 %v183, %v180
  %v208 = vpack.c.b16 %v184, %v181
  %v281 = vunpack.c.l.b16 %v50
  %v282 = vunpack.c.l.b16 %v51
  %v283 = vunpack.c.l.b16 %v52
  %v284 = vunpack.c.l.b16 %v53
  %v285 = vunpack.c.l.b16 %v54
  %v286 = vunpack.c.l.b16 %v55
  %v287 = vunpack.c.l.b16 %v56
  %v288 = vunpack.c.l.b16 %v57
  %v289 = vunpack.c.l.b16 %v58
  %v290 = vunpack.c.l.b16 %v59
  %v291 = vunpack.c.l.b16 %v60
  %v292 = vunpack.c.l.b16 %v61
  %v293 = vunpack.c.l.b16 %v62
  %v294 = vunpack.c.l.b16 %v63
  %v295 = vunpack.c.l.b16 %v64
  %v296 = vunpack.c.l.b16 %v65
  %v297 = vunpack.c.l.b16 %v66
  %v298 = vunpack.c.l.b16 %v67
  %v299 = vunpack.c.l.b16 %v68
  %v300 = vunpack.c.l.b16 %v69
  %v301 = vunpack.c.l.b16 %v70
  %v302 = vunpack.c.l.b16 %v71
  %v303 = vunpack.c.l.b16 %v72
  %v304 = vunpack.c.l.b16 %v73
  %v305 = vunpack.c.l.b16 %v74
  %v306 = vunpack.c.l.b16 %v75
  %v307 = vunpack.c.l.b16 %v76
  %v308 = vunpack.c.l.b16 %v77
  %v309 = vunpack.c.l.b16 %v78
  %v310 = vunpack.c.l.b16 %v79
  %v311 = vunpack.c.l.b16 %v80
  %v312 = vunpack.c.l.b16 %v81
  %v313 = vunpack.c.l.b16 %v82
  %v314 = vunpack.c.l.b16 %v83
  %v315 = vunpack.c.l.b16 %v84
  %v316 = vunpack.c.l.b16 %v85
  %v317 = vunpack.c.l.b16 %v86
  %v318 = vunpack.c.l.b16 %v87
  %v319 = vunpack.c.l.b16 %v88
  %v320 = vunpack.c.l.b16 %v89
  %v321 = vunpack.c.l.b16 %v90
  %v322 = vunpack.c.l.b16 %v91
  %v323 = vunpack.c.l.b16 %v92
  %v324 = vunpack.c.l.b16 %v93
  %v325 = vunpack.c.l.b16 %v94
  %v326 = vunpack.c.l.b16 %v95
  %v327 = vunpack.c.l.b16 %v96
  %v328 = vunpack.c.l.b16 %v97
  %v329 = vpack.c.b16 %v282, %v281
  %v330 = vpack.c.b16 %v284, %v283
  %v331 = vpack.c.b16 %v286, %v285
  %v332 = vpack.c.b16 %v288, %v287
  %v333 = vpack.c.b16 %v290, %v289
  %v334 = vpack.c.b16 %v292, %v291
  %v335 = vpack.c.b16 %v294, %v293
  %v336 = vpack.c.b16 %v296, %v295
  %v337 = vpack.c.b16 %v298, %v297
  %v338 = vpack.c.b16 %v300, %v299
  %v339 = vpack.c.b16 %v302, %v301
  %v340 = vpack.c.b16 %v304, %v303
  %v341 = vpack.c.b16 %v306, %v305
  %v342 = vpack.c.b16 %v308, %v307
  %v343 = vpack.c.b16 %v310, %v309
  %v344 = vpack.c.b16 %v312, %v311
  %v345 = vpack.c.b16 %v314, %v313
  %v346 = vpack.c.b16 %v316, %v315
  %v347 = vpack.c.b16 %v318, %v317
  %v348 = vpack.c.b16 %v320, %v319
  %v349 = vpack.c.b16 %v322, %v321
  %v350 = vpack.c.b16 %v324, %v323
  %v351 = vpack.c.b16 %v326, %v325
  %v352 = vpack.c.b16 %v328, %v327
  %377 = vmatprep.subr.bf16.mxu0 0
  %378 = vmatpush1.bf16.msra.mxu0 %v329
  %379 = vmatprep.subr.bf16.mxu0 0
  %380 = vmatpush1.bf16.msra.mxu0 %v330
  %381 = vmatprep.subr.bf16.mxu0 0
  %382 = vmatpush1.bf16.msra.mxu0 %v331
  %383 = vmatprep.subr.bf16.mxu0 0
  %384 = vmatpush1.bf16.msra.mxu0 %v332
  %385 = vmatprep.subr.bf16.mxu0 0
  %386 = vmatpush1.bf16.msra.mxu0 %v333
  %387 = vmatprep.subr.bf16.mxu0 0
  %388 = vmatpush1.bf16.msra.mxu0 %v334
  %389 = vmatprep.subr.bf16.mxu0 0
  %390 = vmatpush1.bf16.msra.mxu0 %v335
  %391 = vmatprep.subr.bf16.mxu0 0
  %392 = vmatpush1.bf16.msra.mxu0 %v336
  %393 = vmatprep.subr.bf16.mxu0 0
  %394 = vmatpush1.bf16.msra.mxu0 %v337
  %395 = vmatprep.subr.bf16.mxu0 0
  %396 = vmatpush1.bf16.msra.mxu0 %v338
  %397 = vmatprep.subr.bf16.mxu0 0
  %398 = vmatpush1.bf16.msra.mxu0 %v339
  %399 = vmatprep.subr.bf16.mxu0 0
  %400 = vmatpush1.bf16.msra.mxu0 %v340
  %401 = vmatprep.subr.bf16.mxu0 0
  %402 = vmatpush1.bf16.msra.mxu0 %v341
  %403 = vmatprep.subr.bf16.mxu0 0
  %404 = vmatpush1.bf16.msra.mxu0 %v342
  %405 = vmatprep.subr.bf16.mxu0 0
  %406 = vmatpush1.bf16.msra.mxu0 %v343
  %407 = vmatprep.subr.bf16.mxu0 0
  %408 = vmatpush1.bf16.msra.mxu0 %v344
  %409 = vmatprep.mubr.bf16.mxu0 %v186
  %410 = vmatmul.mubr.bf16.gmra.mrb[0].mxu0 %v185
  %v411 = vpop.f32.mrb[0].mxu0
  %v412 = vadd.f32 %v103, %v411
  %v413 = vpop.f32.mrb[0].mxu0
  %v414 = vpop.f32.mrb[0].mxu0
  %v415 = vadd.f32 %v103, %v414
  %v416 = vpop.f32.mrb[0].mxu0
  %417 = vmatprep.mubr.bf16.mxu0 %v189
  %418 = vmatmul.mubr.bf16.gmra.mrb[0].mxu0 %v188
  %v419 = vpop.f32.mrb[0].mxu0
  %v420 = vadd.f32 %v103, %v419
  %v421 = vpop.f32.mrb[0].mxu0
  %v422 = vpop.f32.mrb[0].mxu0
  %v423 = vadd.f32 %v103, %v422
  %v424 = vpop.f32.mrb[0].mxu0
  %425 = vmatprep.mubr.bf16.mxu0 %v192
  %426 = vmatmul.mubr.bf16.gmra.mrb[0].mxu0 %v191
  %v427 = vpop.f32.mrb[0].mxu0
  %v428 = vadd.f32 %v103, %v427
  %v429 = vpop.f32.mrb[0].mxu0
  %v430 = vpop.f32.mrb[0].mxu0
  %v431 = vadd.f32 %v103, %v430
  %v432 = vpop.f32.mrb[0].mxu0
  %433 = vmatprep.mubr.bf16.mxu0 %v195
  %434 = vmatmul.mubr.bf16.gmra.mrb[0].mxu0 %v194
  %v435 = vpop.f32.mrb[0].mxu0
  %v436 = vadd.f32 %v103, %v435
  %v437 = vpop.f32.mrb[0].mxu0
  %v438 = vpop.f32.mrb[0].mxu0
  %v439 = vadd.f32 %v103, %v438
  %v440 = vpop.f32.mrb[0].mxu0
  %441 = vmatprep.mubr.bf16.mxu0 %v198
  %442 = vmatmul.mubr.bf16.gmra.mrb[0].mxu0 %v197
  %v443 = vpop.f32.mrb[0].mxu0
  %v444 = vadd.f32 %v103, %v443
  %v445 = vpop.f32.mrb[0].mxu0
  %v446 = vpop.f32.mrb[0].mxu0
  %v447 = vadd.f32 %v103, %v446
  %v448 = vpop.f32.mrb[0].mxu0
  %449 = vmatprep.mubr.bf16.mxu0 %v201
  %450 = vmatmul.mubr.bf16.gmra.mrb[0].mxu0 %v200
  %v451 = vpop.f32.mrb[0].mxu0
  %v452 = vadd.f32 %v103, %v451
  %v453 = vpop.f32.mrb[0].mxu0
  %v454 = vpop.f32.mrb[0].mxu0
  %v455 = vadd.f32 %v103, %v454
  %v456 = vpop.f32.mrb[0].mxu0
  %457 = vmatprep.mubr.bf16.mxu0 %v204
  %458 = vmatmul.mubr.bf16.gmra.mrb[0].mxu0 %v203
  %v459 = vpop.f32.mrb[0].mxu0
  %v460 = vadd.f32 %v103, %v459
  %v461 = vpop.f32.mrb[0].mxu0
  %v462 = vpop.f32.mrb[0].mxu0
  %v463 = vadd.f32 %v103, %v462
  %v464 = vpop.f32.mrb[0].mxu0
  %465 = vmatprep.mubr.bf16.mxu0 %v207
  %466 = vmatmul.mubr.bf16.gmra.mrb[0].mxu0 %v206
  %v467 = vpop.f32.mrb[0].mxu0
  %v468 = vadd.f32 %v103, %v467
  %v469 = vpop.f32.mrb[0].mxu0
  %v470 = vpop.f32.mrb[0].mxu0
  %v471 = vadd.f32 %v103, %v470
  %v472 = vpop.f32.mrb[0].mxu0
  %473 = vdwg.mxu0
  %474 = vmatprep.subr.bf16.mxu0 0
  %475 = vmatpush1.bf16.msra.mxu0 %v345
  %476 = vmatprep.subr.bf16.mxu0 0
  %477 = vmatpush1.bf16.msra.mxu0 %v346
  %478 = vmatprep.subr.bf16.mxu0 0
  %479 = vmatpush1.bf16.msra.mxu0 %v347
  %480 = vmatprep.subr.bf16.mxu0 0
  %481 = vmatpush1.bf16.msra.mxu0 %v348
  %482 = vmatprep.subr.bf16.mxu0 0
  %483 = vmatpush1.bf16.msra.mxu0 %v349
  %484 = vmatprep.subr.bf16.mxu0 0
  %485 = vmatpush1.bf16.msra.mxu0 %v350
  %486 = vmatprep.subr.bf16.mxu0 0
  %487 = vmatpush1.bf16.msra.mxu0 %v351
  %488 = vmatprep.subr.bf16.mxu0 0
  %489 = vmatpush1.bf16.msra.mxu0 %v352
  %490 = vmatprep.subr.bf16.mxu0 0
  %491 = vmatpush1.bf16.msra.mxu0 0
  %492 = vmatprep.subr.bf16.mxu0 0
  %493 = vmatpush1.bf16.msra.mxu0 0
  %494 = vmatprep.subr.bf16.mxu0 0
  %495 = vmatpush1.bf16.msra.mxu0 0
  %496 = vmatprep.subr.bf16.mxu0 0
  %497 = vmatpush1.bf16.msra.mxu0 0
  %498 = vmatprep.subr.bf16.mxu0 0
  %499 = vmatpush1.bf16.msra.mxu0 0
  %500 = vmatprep.subr.bf16.mxu0 0
  %501 = vmatpush1.bf16.msra.mxu0 0
  %502 = vmatprep.subr.bf16.mxu0 0
  %503 = vmatpush1.bf16.msra.mxu0 0
  %504 = vmatprep.subr.bf16.mxu0 0
  %505 = vmatpush1.bf16.msra.mxu0 0
  %506 = vmatprep.mubr.bf16.mxu0 0
  %507 = vmatmul.mubr.bf16.gmra.mrb[0].mxu0 %v187
  %v508 = vpop.f32.mrb[0].mxu0
  %v509 = vadd.f32 %v412, %v508
  %v510 = vpop.f32.mrb[0].mxu0
  %v511 = vpop.f32.mrb[0].mxu0
  %v512 = vadd.f32 %v415, %v511
  %v513 = vpop.f32.mrb[0].mxu0
  %514 = vmatprep.mubr.bf16.mxu0 0
  %515 = vmatmul.mubr.bf16.gmra.mrb[0].mxu0 %v190
  %v516 = vpop.f32.mrb[0].mxu0
  %v517 = vadd.f32 %v420, %v516
  %v518 = vpop.f32.mrb[0].mxu0
  %v519 = vpop.f32.mrb[0].mxu0
  %v520 = vadd.f32 %v423, %v519
  %v521 = vpop.f32.mrb[0].mxu0
  %522 = vmatprep.mubr.bf16.mxu0 0
  %523 = vmatmul.mubr.bf16.gmra.mrb[0].mxu0 %v193
  %v524 = vpop.f32.mrb[0].mxu0
  %v525 = vadd.f32 %v428, %v524
  %v526 = vpop.f32.mrb[0].mxu0
  %v527 = vpop.f32.mrb[0].mxu0
  %v528 = vadd.f32 %v431, %v527
  %v529 = vpop.f32.mrb[0].mxu0
  %530 = vmatprep.mubr.bf16.mxu0 0
  %531 = vmatmul.mubr.bf16.gmra.mrb[0].mxu0 %v196
  %v532 = vpop.f32.mrb[0].mxu0
  %v533 = vadd.f32 %v436, %v532
  %v534 = vpop.f32.mrb[0].mxu0
  %v535 = vpop.f32.mrb[0].mxu0
  %v536 = vadd.f32 %v439, %v535
  %v537 = vpop.f32.mrb[0].mxu0
  %538 = vmatprep.mubr.bf16.mxu0 0
  %539 = vmatmul.mubr.bf16.gmra.mrb[0].mxu0 %v199
  %v540 = vpop.f32.mrb[0].mxu0
  %v541 = vadd.f32 %v444, %v540
  %v542 = vpop.f32.mrb[0].mxu0
  %v543 = vpop.f32.mrb[0].mxu0
  %v544 = vadd.f32 %v447, %v543
  %v545 = vpop.f32.mrb[0].mxu0
  %546 = vmatprep.mubr.bf16.mxu0 0
  %547 = vmatmul.mubr.bf16.gmra.mrb[0].mxu0 %v202
  %v548 = vpop.f32.mrb[0].mxu0
  %v549 = vadd.f32 %v452, %v548
  %v550 = vpop.f32.mrb[0].mxu0
  %v551 = vpop.f32.mrb[0].mxu0
  %v552 = vadd.f32 %v455, %v551
  %v553 = vpop.f32.mrb[0].mxu0
  %554 = vmatprep.mubr.bf16.mxu0 0
  %555 = vmatmul.mubr.bf16.gmra.mrb[0].mxu0 %v205
  %v556 = vpop.f32.mrb[0].mxu0
  %v557 = vadd.f32 %v460, %v556
  %v558 = vpop.f32.mrb[0].mxu0
  %v559 = vpop.f32.mrb[0].mxu0
  %v560 = vadd.f32 %v463, %v559
  %v561 = vpop.f32.mrb[0].mxu0
  %562 = vmatprep.mubr.bf16.mxu0 0
  %563 = vmatmul.mubr.bf16.gmra.mrb[0].mxu0 %v208
  %v564 = vpop.f32.mrb[0].mxu0
  %v565 = vadd.f32 %v468, %v564
  %v566 = vpop.f32.mrb[0].mxu0
  %v567 = vpop.f32.mrb[0].mxu0
  %v568 = vadd.f32 %v471, %v567
  %v569 = vpop.f32.mrb[0].mxu0
  %570 = vdwg.mxu0
  %571 = vst [vmem:[%s3] sm:$0xff] %v509
  %572 = vst [vmem:[%s3 + $0x8] sm:$0xff] %v512
  %573 = vst [vmem:[%s3 + $0x10] sm:$0xff] %v517
  %574 = vst [vmem:[%s3 + $0x18] sm:$0xff] %v520
  %575 = vst [vmem:[%s3 + $0x20] sm:$0xff] %v525
  %576 = vst [vmem:[%s3 + $0x28] sm:$0xff] %v528
  %577 = vst [vmem:[%s3 + $0x30] sm:$0xff] %v533
  %578 = vst [vmem:[%s3 + $0x38] sm:$0xff] %v536
  %579 = vst [vmem:[%s3 + $0x40] sm:$0xff] %v541
  %580 = vst [vmem:[%s3 + $0x48] sm:$0xff] %v544
  %581 = vst [vmem:[%s3 + $0x50] sm:$0xff] %v549
  %582 = vst [vmem:[%s3 + $0x58] sm:$0xff] %v552
  %583 = vst [vmem:[%s3 + $0x60] sm:$0xff] %v557
  %584 = vst [vmem:[%s3 + $0x68] sm:$0xff] %v560
  %585 = vst [vmem:[%s3 + $0x70] sm:$0xff] %v565
  %586 = vst [vmem:[%s3 + $0x78] sm:$0xff] %v568
  %v587 = vlaneseq
  %v588 = vshrl.u32 %v587, 7
  %v589 = vadd.s32 %v588, 8
  %v590 = vadd.s32 %v588, 16
  %v591 = vadd.s32 %v588, 24
  %v592 = vadd.s32 %v588, 32
  %v593 = vadd.s32 %v588, 40
  %v594 = vadd.s32 %v588, 48
  %v595 = vadd.s32 %v588, 56
  %v596 = vadd.s32 %v588, 64
  %v597 = vadd.s32 %v588, 72
  %v598 = vadd.s32 %v588, 80
  %v599 = vadd.s32 %v588, 88
  %v600 = vadd.s32 %v588, 96
  %v601 = vadd.s32 %v588, 104
  %v602 = vadd.s32 %v588, 112
  %v603 = vadd.s32 %v588, 120
  %s604 = smul.u32 0, 128
  %v605 = vstv %s604
  %v606 = vadd.s32 %v588, %v605
  %v607 = vadd.s32 %v589, %v605
  %v608 = vadd.s32 %v590, %v605
  %v609 = vadd.s32 %v591, %v605
  %v610 = vadd.s32 %v592, %v605
  %v611 = vadd.s32 %v593, %v605
  %v612 = vadd.s32 %v594, %v605
  %v613 = vadd.s32 %v595, %v605
  %v614 = vadd.s32 %v596, %v605
  %v615 = vadd.s32 %v597, %v605
  %v616 = vadd.s32 %v598, %v605
  %v617 = vadd.s32 %v599, %v605
  %v618 = vadd.s32 %v600, %v605
  %v619 = vadd.s32 %v601, %v605
  %v620 = vadd.s32 %v602, %v605
  %v621 = vadd.s32 %v603, %v605
  %vm622 = vcmp.lt.s32.totalorder %v606, 128
  %vm623 = vcmp.lt.s32.totalorder %v607, 128
  %vm624 = vcmp.lt.s32.totalorder %v608, 128
  %vm625 = vcmp.lt.s32.totalorder %v609, 128
  %vm626 = vcmp.lt.s32.totalorder %v610, 128
  %vm627 = vcmp.lt.s32.totalorder %v611, 128
  %vm628 = vcmp.lt.s32.totalorder %v612, 128
  %vm629 = vcmp.lt.s32.totalorder %v613, 128
  %vm630 = vcmp.lt.s32.totalorder %v614, 128
  %vm631 = vcmp.lt.s32.totalorder %v615, 128
  %vm632 = vcmp.lt.s32.totalorder %v616, 128
  %vm633 = vcmp.lt.s32.totalorder %v617, 128
  %vm634 = vcmp.lt.s32.totalorder %v618, 128
  %vm635 = vcmp.lt.s32.totalorder %v619, 128
  %vm636 = vcmp.lt.s32.totalorder %v620, 128
  %vm637 = vcmp.lt.s32.totalorder %v621, 128
  %v638 = vsel %vm622, 1, 0
  %v639 = vsel %vm623, 1, 0
  %v640 = vsel %vm624, 1, 0
  %v641 = vsel %vm625, 1, 0
  %v642 = vsel %vm626, 1, 0
  %v643 = vsel %vm627, 1, 0
  %v644 = vsel %vm628, 1, 0
  %v645 = vsel %vm629, 1, 0
  %v646 = vsel %vm630, 1, 0
  %v647 = vsel %vm631, 1, 0
  %v648 = vsel %vm632, 1, 0
  %v649 = vsel %vm633, 1, 0
  %v650 = vsel %vm634, 1, 0
  %v651 = vsel %vm635, 1, 0
  %v652 = vsel %vm636, 1, 0
  %v653 = vsel %vm637, 1, 0
  %vm654 = vcmp.eq.s32.totalorder %v638, 1
  %vm655 = vcmp.eq.s32.totalorder %v639, 1
  %vm656 = vcmp.eq.s32.totalorder %v640, 1
  %vm657 = vcmp.eq.s32.totalorder %v641, 1
  %vm658 = vcmp.eq.s32.totalorder %v642, 1
  %vm659 = vcmp.eq.s32.totalorder %v643, 1
  %vm660 = vcmp.eq.s32.totalorder %v644, 1
  %vm661 = vcmp.eq.s32.totalorder %v645, 1
  %vm662 = vcmp.eq.s32.totalorder %v646, 1
  %vm663 = vcmp.eq.s32.totalorder %v647, 1
  %vm664 = vcmp.eq.s32.totalorder %v648, 1
  %vm665 = vcmp.eq.s32.totalorder %v649, 1
  %vm666 = vcmp.eq.s32.totalorder %v650, 1
  %vm667 = vcmp.eq.s32.totalorder %v651, 1
  %vm668 = vcmp.eq.s32.totalorder %v652, 1
  %vm669 = vcmp.eq.s32.totalorder %v653, 1
  %v670 = vsel %vm654, %v509, 0.0
  %v671 = vsel %vm655, %v512, 0.0
  %v672 = vsel %vm656, %v517, 0.0
  %v673 = vsel %vm657, %v520, 0.0
  %v674 = vsel %vm658, %v525, 0.0
  %v675 = vsel %vm659, %v528, 0.0
  %v676 = vsel %vm660, %v533, 0.0
  %v677 = vsel %vm661, %v536, 0.0
  %v678 = vsel %vm662, %v541, 0.0
  %v679 = vsel %vm663, %v544, 0.0
  %v680 = vsel %vm664, %v549, 0.0
  %v681 = vsel %vm665, %v552, 0.0
  %v682 = vsel %vm666, %v557, 0.0
  %v683 = vsel %vm667, %v560, 0.0
  %v684 = vsel %vm668, %v565, 0.0
  %v685 = vsel %vm669, %v568, 0.0
  %p686 = scmp.eq.s32.totalorder 0, 0
  // Predicated region
  $region14: #{_lambda_.27} parent=0 // pred_check
    %p687 = pneg %p686
  $region15: #{_lambda_.27} parent=0 // pred_check_branch
    %689 = sbr.rel (%p687) target = $region17
  $region16: #{_lambda_.27} parent=0 // pred_region
    %690 = vst [vmem:[%s4] sm:$0x1] 0.0
    %691 = vst [vmem:[%s5] sm:$0x1] 0.0
  $region17: #{_lambda_.27} parent=0 // pred_fallthru
    _
  %v692 = vld [vmem:[%s4] sm:$0x1]
  %v693 = vadd.f32 %v670, %v671
  %v694 = vadd.f32 %v693, %v672
  %v695 = vadd.f32 %v694, %v673
  %v696 = vadd.f32 %v695, %v674
  %v697 = vadd.f32 %v696, %v675
  %v698 = vadd.f32 %v697, %v676
  %v699 = vadd.f32 %v698, %v677
  %v700 = vadd.f32 %v699, %v678
  %v701 = vadd.f32 %v700, %v679
  %v702 = vadd.f32 %v701, %v680
  %v703 = vadd.f32 %v702, %v681
  %v704 = vadd.f32 %v703, %v682
  %v705 = vadd.f32 %v704, %v683
  %v706 = vadd.f32 %v705, %v684
  %v707 = vadd.f32 %v706, %v685
  %v708 = vrot.slane %v707, 4
  %v709 = vadd.f32 %v707, %v708
  %v710 = vrot.slane %v709, 2
  %v711 = vadd.f32 %v709, %v710
  %v712 = vrot.slane %v711, 1
  %v713 = vadd.f32 %v711, %v712
  %v714 = vadd.f32 %v692, %v713
  %715 = vst [vmem:[%s4] sm:$0x1] %v714
  %v716 = vld [vmem:[%s5] sm:$0x1]
  %v717 = vmul.f32 %v670, %v670
  %v718 = vmul.f32 %v671, %v671
  %v719 = vmul.f32 %v672, %v672
  %v720 = vmul.f32 %v673, %v673
  %v721 = vmul.f32 %v674, %v674
  %v722 = vmul.f32 %v675, %v675
  %v723 = vmul.f32 %v676, %v676
  %v724 = vmul.f32 %v677, %v677
  %v725 = vmul.f32 %v678, %v678
  %v726 = vmul.f32 %v679, %v679
  %v727 = vmul.f32 %v680, %v680
  %v728 = vmul.f32 %v681, %v681
  %v729 = vmul.f32 %v682, %v682
  %v730 = vmul.f32 %v683, %v683
  %v731 = vmul.f32 %v684, %v684
  %v732 = vmul.f32 %v685, %v685
  %v733 = vadd.f32 %v717, %v718
  %v734 = vadd.f32 %v733, %v719
  %v735 = vadd.f32 %v734, %v720
  %v736 = vadd.f32 %v735, %v721
  %v737 = vadd.f32 %v736, %v722
  %v738 = vadd.f32 %v737, %v723
  %v739 = vadd.f32 %v738, %v724
  %v740 = vadd.f32 %v739, %v725
  %v741 = vadd.f32 %v740, %v726
  %v742 = vadd.f32 %v741, %v727
  %v743 = vadd.f32 %v742, %v728
  %v744 = vadd.f32 %v743, %v729
  %v745 = vadd.f32 %v744, %v730
  %v746 = vadd.f32 %v745, %v731
  %v747 = vadd.f32 %v746, %v732
  %v748 = vrot.slane %v747, 4
  %v749 = vadd.f32 %v747, %v748
  %v750 = vrot.slane %v749, 2
  %v751 = vadd.f32 %v749, %v750
  %v752 = vrot.slane %v751, 1
  %v753 = vadd.f32 %v751, %v752
  %v754 = vadd.f32 %v716, %v753
  %755 = vst [vmem:[%s5] sm:$0x1] %v754
  // Predicated region
  $region18: #{_lambda_.27} parent=0 // pred_check
    _
  $region19: #{_lambda_.27} parent=0 // pred_check_branch
    %757 = sbr.rel (0) target = $region21
  $region20: #{_lambda_.27} parent=0 // pred_region
    _
  $region21: #{_lambda_.27} parent=0 // pred_fallthru
    _
  // Predicated region
  $region22: #{_lambda_.27} parent=0 // pred_check
    _
  $region23: #{_lambda_.27} parent=0 // pred_check_branch
    %759 = sbr.rel (0) target = $region25
  $region24: #{_lambda_.27} parent=0 // pred_region
    _
  $region25: #{_lambda_.27} parent=0 // pred_fallthru
    _
  // Predicated region
  $region26: #{_lambda_.27} parent=0 // pred_check
    _
  $region27: #{_lambda_.27} parent=0 // pred_check_branch
    %761 = sbr.rel (0) target = $region29
  $region28: #{_lambda_.27} parent=0 // pred_region
    _
  $region29: #{_lambda_.27} parent=0 // pred_fallthru
    _
  // Predicated region
  $region30: #{_lambda_.27} parent=0 // pred_check
    _
  $region31: #{_lambda_.27} parent=0 // pred_check_branch
    %763 = sbr.rel (0) target = $region33
  $region32: #{_lambda_.27} parent=0 // pred_region
    _
  $region33: #{_lambda_.27} parent=0 // pred_fallthru
    _
  // Predicated region
  $region34: #{_lambda_.27} parent=0 // pred_check
    _
  $region35: #{_lambda_.27} parent=0 // pred_check_branch
    %765 = sbr.rel (0) target = $region37
  $region36: #{_lambda_.27} parent=0 // pred_region
    _
  $region37: #{_lambda_.27} parent=0 // pred_fallthru
    _
  // Predicated region
  $region38: #{_lambda_.27} parent=0 // pred_check
    _
  $region39: #{_lambda_.27} parent=0 // pred_check_branch
    %767 = sbr.rel (0) target = $region41
  $region40: #{_lambda_.27} parent=0 // pred_region
    _
  $region41: #{_lambda_.27} parent=0 // pred_fallthru
    _

// kernel: _lambda_.29
$region0: #{_lambda_.29}
  #allocation0 [shape = 'u32[]', space=smem, size = 0x4, offset = 0x4, fixed_abs, tag = 'smem constant byte address 0x4 - core index']
  #allocation1 [shape = 'u32[144,128]{1,0:T(1,128)}', space=vmem, size = 0x12000, scoped, tag = 'internal scratch']
  #allocation2 [shape = 'f32[1,1]{1,0:T(1,128)S(6)}', space=smem, size = 0x200, scoped, tag = 'scoped memory for _lambda_.29']
  %s0 = inlined_call_operand.vmem [shape: bf16[2,64,128], index: 0, kind: input, shape index: {}]
  %s1 = inlined_call_operand.vmem [shape: bf16[128,384], index: 1, kind: input, shape index: {}]
  %s2 = inlined_call_operand.vmem [shape: f32[1,384], index: 2, kind: input, shape index: {}]
  %s3 = inlined_call_operand.<no memory space> [shape: f32[1,1], index: 3, kind: input, shape index: {}]
  %s4 = inlined_call_operand.vmem [shape: bf16[2,64,128], index: 4, kind: output, shape index: {}]
  %s5 = sld [smem:[#allocation0]]
  $region49: #{_lambda_.29} parent=0
    _
  %s7 = ssub.s32 1, %s5
  %s8 = scalar_select 0, %s7, %s5
  %9 = sst [smem:[#allocation2]] %s3
  loop: start=0, step=1, limit=4
  $region2: #{_lambda_.29} parent=0 // loop_pre_header
    _
  $region3: #{_lambda_.29} parent=0 // loop_header
    %s11 = sphi 0, %s15
    %p12 = scmp.ge.s32.totalorder %s11, 4
    %s21 = sphi 0, %s23
    %s24 = sphi 0, %s21
    %s25 = sphi 0, %s24
    %s41 = sphi 0, %s25
    %s45 = sphi 0, %s45
    %s47 = sphi 0, %s45
    %s48 = sphi 0, %s47
    %s62 = sphi 0, %s48
    %s66 = sphi 0, %s66
    %s68 = sphi 0, %s66
    %s69 = sphi 0, %s68
    %s83 = sphi 0, %s69
    %s87 = sphi 0, %s87
    %s89 = sphi 0, %s87
    %s90 = sphi 0, %s89
    %s104 = sphi 0, %s90
    %s110 = sphi 0, %s112
    %s113 = sphi 0, %s110
    %s114 = sphi 0, %s113
    %s130 = sphi 0, %s114
  $region4: #{_lambda_.29} parent=0 // loop_header_branch
    %14 = sbr.rel (%p12) target = $region8
  $region5: #{_lambda_.29} parent=0 // loop_body
    %s16 = ssub.s32 %s11, 1
    %s17 = ssub.s32 %s11, 2
    %s18 = sadd.s32 %s11, 1
    %s19 = ssub.s32 %s11, %s18
    %p20 = scmp.eq.s32.totalorder %s19, 0
    %s22 = sadd.s32 %s21, 1
    %s23 = scalar_select %p20, %s21, %s22
    %p26 = pneg %p20
    %p27 = scmp.eq.s32.totalorder %s11, 1
    %p28 = por %p26, %p27
    %p29 = scmp.ne.s32.totalorder %s21, %s24
    %p30 = scmp.eq.s32.totalorder %s11, 0
    %p31 = por %p29, %p30
    %p32 = scmp.ne.s32.totalorder %s21, %s24
    %p33 = scmp.eq.s32.totalorder %s16, 1
    %p34 = por %p32, %p33
    %p35 = scmp.ne.s32.totalorder %s24, %s25
    %p36 = scmp.eq.s32.totalorder %s16, 0
    %p37 = por %p35, %p36
    %p38 = scmp.ne.s32.totalorder %s24, %s25
    %p39 = scmp.eq.s32.totalorder %s17, 1
    %p40 = por %p38, %p39
    %p42 = scmp.ne.s32.totalorder %s25, %s41
    %p43 = scmp.eq.s32.totalorder %s17, 0
    %p44 = por %p42, %p43
    %s46 = sadd.s32 %s45, 1
    %p49 = scmp.eq.s32.totalorder %s11, 1
    %p50 = scmp.ne.s32.totalorder %s45, %s47
    %p51 = scmp.eq.s32.totalorder %s11, 0
    %p52 = por %p50, %p51
    %p53 = scmp.ne.s32.totalorder %s45, %s47
    %p54 = scmp.eq.s32.totalorder %s16, 1
    %p55 = por %p53, %p54
    %p56 = scmp.ne.s32.totalorder %s47, %s48
    %p57 = scmp.eq.s32.totalorder %s16, 0
    %p58 = por %p56, %p57
    %p59 = scmp.ne.s32.totalorder %s47, %s48
    %p60 = scmp.eq.s32.totalorder %s17, 1
    %p61 = por %p59, %p60
    %p63 = scmp.ne.s32.totalorder %s48, %s62
    %p64 = scmp.eq.s32.totalorder %s17, 0
    %p65 = por %p63, %p64
    %s67 = sadd.s32 %s66, 1
    %p70 = scmp.eq.s32.totalorder %s11, 1
    %p71 = scmp.ne.s32.totalorder %s66, %s68
    %p72 = scmp.eq.s32.totalorder %s11, 0
    %p73 = por %p71, %p72
    %p74 = scmp.ne.s32.totalorder %s66, %s68
    %p75 = scmp.eq.s32.totalorder %s16, 1
    %p76 = por %p74, %p75
    %p77 = scmp.ne.s32.totalorder %s68, %s69
    %p78 = scmp.eq.s32.totalorder %s16, 0
    %p79 = por %p77, %p78
    %p80 = scmp.ne.s32.totalorder %s68, %s69
    %p81 = scmp.eq.s32.totalorder %s17, 1
    %p82 = por %p80, %p81
    %p84 = scmp.ne.s32.totalorder %s69, %s83
    %p85 = scmp.eq.s32.totalorder %s17, 0
    %p86 = por %p84, %p85
    %s88 = sadd.s32 %s87, 1
    %p91 = scmp.eq.s32.totalorder %s11, 1
    %p92 = scmp.ne.s32.totalorder %s87, %s89
    %p93 = scmp.eq.s32.totalorder %s11, 0
    %p94 = por %p92, %p93
    %p95 = scmp.ne.s32.totalorder %s87, %s89
    %p96 = scmp.eq.s32.totalorder %s16, 1
    %p97 = por %p95, %p96
    %p98 = scmp.ne.s32.totalorder %s89, %s90
    %p99 = scmp.eq.s32.totalorder %s16, 0
    %p100 = por %p98, %p99
    %p101 = scmp.ne.s32.totalorder %s89, %s90
    %p102 = scmp.eq.s32.totalorder %s17, 1
    %p103 = por %p101, %p102
    %p105 = scmp.ne.s32.totalorder %s90, %s104
    %p106 = scmp.eq.s32.totalorder %s17, 0
    %p107 = por %p105, %p106
    %s108 = ssub.s32 %s11, %s18
    %p109 = scmp.eq.s32.totalorder %s108, 0
    %s111 = sadd.s32 %s110, 1
    %s112 = scalar_select %p109, %s110, %s111
    %p115 = pneg %p109
    %p116 = scmp.eq.s32.totalorder %s11, 1
    %p117 = por %p115, %p116
    %p118 = scmp.ne.s32.totalorder %s110, %s113
    %p119 = scmp.eq.s32.totalorder %s11, 0
    %p120 = por %p118, %p119
    %p121 = scmp.ne.s32.totalorder %s110, %s113
    %p122 = scmp.eq.s32.totalorder %s16, 1
    %p123 = por %p121, %p122
    %p124 = scmp.ne.s32.totalorder %s113, %s114
    %p125 = scmp.eq.s32.totalorder %s16, 0
    %p126 = por %p124, %p125
    %p127 = scmp.ne.s32.totalorder %s113, %s114
    %p128 = scmp.eq.s32.totalorder %s17, 1
    %p129 = por %p127, %p128
    %p131 = scmp.ne.s32.totalorder %s114, %s130
    %p132 = scmp.eq.s32.totalorder %s17, 0
    %p133 = por %p131, %p132
    %p134 = scmp.le.s32.totalorder 1, %s11
    %p135 = scmp.lt.s32.totalorder %s11, 3
    %p136 = pnand %p134, %p135
    %p137 = pneg %p136
    // Predicated region
    $region9: #{_lambda_.29} parent=5 // pred_check
      _
    $region10: #{_lambda_.29} parent=5 // pred_check_branch
      %139 = sbr.rel (%p136) target = $region12
    $region11: #{_lambda_.29} parent=5 // pred_region
      %s140 = ssub.s32 %s11, 1
      // Predicated region
      $region13: #{_lambda_.29} parent=11 // pred_check
        %p141 = pneg %p58
      $region14: #{_lambda_.29} parent=11 // pred_check_branch
        %143 = sbr.rel (%p141) target = $region16
      $region15: #{_lambda_.29} parent=11 // pred_region
        _
      $region16: #{_lambda_.29} parent=11 // pred_fallthru
        _
      // Predicated region
      $region17: #{_lambda_.29} parent=11 // pred_check
        %p144 = pneg %p79
      $region18: #{_lambda_.29} parent=11 // pred_check_branch
        %146 = sbr.rel (%p144) target = $region20
      $region19: #{_lambda_.29} parent=11 // pred_region
        _
      $region20: #{_lambda_.29} parent=11 // pred_fallthru
        _
      // Predicated region
      $region21: #{_lambda_.29} parent=11 // pred_check
        %p147 = pneg %p100
      $region22: #{_lambda_.29} parent=11 // pred_check_branch
        %149 = sbr.rel (%p147) target = $region24
      $region23: #{_lambda_.29} parent=11 // pred_region
        _
      $region24: #{_lambda_.29} parent=11 // pred_fallthru
        _
    $region12: #{_lambda_.29} parent=5 // pred_fallthru
      _
    %p150 = scmp.lt.s32.totalorder %s11, 2
    // Predicated region
    $region25: #{_lambda_.29} parent=5 // pred_check
      %p151 = pneg %p150
    $region26: #{_lambda_.29} parent=5 // pred_check_branch
      %153 = sbr.rel (%p151) target = $region28
    $region27: #{_lambda_.29} parent=5 // pred_region
      // Predicated region
      $region29: #{_lambda_.29} parent=27 // pred_check
        %p154 = pneg %p31
      $region30: #{_lambda_.29} parent=27 // pred_check_branch
        %156 = sbr.rel (%p154) target = $region32
      $region31: #{_lambda_.29} parent=27 // pred_region
        %p157 = scmp.lt.s32.totalorder %s11, 1
        %s158 = scalar_select %p157, %s11, 1
        %s159 = smul.addr %s158, 8
        %s160 = smul.addr %s159, 4
        %s161 = scalar_lea.vmem %s0, %s160
      $region32: #{_lambda_.29} parent=27 // pred_fallthru
        _
    $region28: #{_lambda_.29} parent=5 // pred_fallthru
      _
    %p162 = scmp.le.s32.totalorder 1, %s11
    %p163 = scmp.lt.s32.totalorder %s11, 3
    %p164 = pnand %p162, %p163
    %p165 = pneg %p164
    // Predicated region
    $region33: #{_lambda_.29} parent=5 // pred_check
      _
    $region34: #{_lambda_.29} parent=5 // pred_check_branch
      %167 = sbr.rel (%p164) target = $region36
    $region35: #{_lambda_.29} parent=5 // pred_region
      %s168 = ssub.s32 %s11, 1
      %p169 = scmp.lt.s32.totalorder %s16, 1
      %s170 = scalar_select %p169, %s16, 1
      %s171 = smul.addr %s170, 8
      %s172 = smul.addr %s171, 4
      %s173 = scalar_lea.vmem %s0, %s172
      %p174 = pneg %p37
      %p175 = pneg %p34
      %p176 = pneg %p58
      %p177 = pneg %p55
      %p178 = pneg %p79
      %p179 = pneg %p76
      %p180 = pneg %p100
      %p181 = pneg %p97
      %p182 = pneg %p126
      %p183 = pneg %p123
      %p184 = scmp.lt.s32.totalorder %s16, 1
      %s185 = scalar_select %p184, %s16, 1
      %s186 = smul.addr %s185, 8
      %s187 = smul.addr %s186, 4
      %s188 = scalar_lea.vmem %s4, %s187
      %p189 = scmp.lt.s32.totalorder %s16, 1
      %s190 = scalar_select %p189, %s16, 1
      %s191 = smul.addr %s190, 8
      %s192 = smul.addr %s191, 4
      %s193 = scalar_lea.vmem %s0, %s192
      %p194 = scmp.lt.s32.totalorder %s16, 1
      %s195 = scalar_select %p194, %s16, 1
      %s196 = smul.addr %s195, 8
      %s197 = smul.addr %s196, 4
      %s198 = scalar_lea.vmem %s4, %s197
      %v200 = vld [vmem:[%s193] sm:$0xf]
      %v201 = vld [vmem:[%s193 + $0x4] sm:$0xf]
      %v202 = vld [vmem:[%s193 + $0x8] sm:$0xf]
      %v203 = vld [vmem:[%s193 + $0xc] sm:$0xf]
      %v204 = vld [vmem:[%s193 + $0x10] sm:$0xf]
      %v205 = vld [vmem:[%s193 + $0x14] sm:$0xf]
      %v206 = vld [vmem:[%s193 + $0x18] sm:$0xf]
      %v207 = vld [vmem:[%s193 + $0x1c] sm:$0xf]
      %v208 = vld [vmem:[%s1] sm:$0xff]
      %v209 = vld [vmem:[%s1 + $0x8] sm:$0xf]
      %v210 = vld [vmem:[%s1 + $0xc] sm:$0xff]
      %v211 = vld [vmem:[%s1 + $0x14] sm:$0xf]
      %v212 = vld [vmem:[%s1 + $0x18] sm:$0xff]
      %v213 = vld [vmem:[%s1 + $0x20] sm:$0xf]
      %v214 = vld [vmem:[%s1 + $0x24] sm:$0xff]
      %v215 = vld [vmem:[%s1 + $0x2c] sm:$0xf]
      %v216 = vld [vmem:[%s1 + $0x30] sm:$0xff]
      %v217 = vld [vmem:[%s1 + $0x38] sm:$0xf]
      %v218 = vld [vmem:[%s1 + $0x3c] sm:$0xff]
      %v219 = vld [vmem:[%s1 + $0x44] sm:$0xf]
      %v220 = vld [vmem:[%s1 + $0x48] sm:$0xff]
      %v221 = vld [vmem:[%s1 + $0x50] sm:$0xf]
      %v222 = vld [vmem:[%s1 + $0x54] sm:$0xff]
      %v223 = vld [vmem:[%s1 + $0x5c] sm:$0xf]
      %v224 = vld [vmem:[%s1 + $0x60] sm:$0xff]
      %v225 = vld [vmem:[%s1 + $0x68] sm:$0xf]
      %v226 = vld [vmem:[%s1 + $0x6c] sm:$0xff]
      %v227 = vld [vmem:[%s1 + $0x74] sm:$0xf]
      %v228 = vld [vmem:[%s1 + $0x78] sm:$0xff]
      %v229 = vld [vmem:[%s1 + $0x80] sm:$0xf]
      %v230 = vld [vmem:[%s1 + $0x84] sm:$0xff]
      %v231 = vld [vmem:[%s1 + $0x8c] sm:$0xf]
      %v232 = vld [vmem:[%s1 + $0x90] sm:$0xff]
      %v233 = vld [vmem:[%s1 + $0x98] sm:$0xf]
      %v234 = vld [vmem:[%s1 + $0x9c] sm:$0xff]
      %v235 = vld [vmem:[%s1 + $0xa4] sm:$0xf]
      %v236 = vld [vmem:[%s1 + $0xa8] sm:$0xff]
      %v237 = vld [vmem:[%s1 + $0xb0] sm:$0xf]
      %v238 = vld [vmem:[%s1 + $0xb4] sm:$0xff]
      %v239 = vld [vmem:[%s1 + $0xbc] sm:$0xf]
      %v240 = vld [vmem:[%s2] sm:$0x7]
      %v242 = vlaneseq
      %v243 = vshrl.u32 %v242, 7
      %v244 = vsub.s32 0, %v243
      %v245 = vrot.slane %v240, %v244
      %v246 = vlaneseq
      %v247 = vshrl.u32 %v246, 7
      %v248 = vsub.s32 1, %v247
      %v249 = vrot.slane %v240, %v248
      %v250 = vlaneseq
      %v251 = vshrl.u32 %v250, 7
      %v252 = vsub.s32 2, %v251
      %v253 = vrot.slane %v240, %v252
      %v265 = vunpack.c.l.b16 %v200
      %v266 = vunpack.c.l.b16 %v201
      %v267 = vunpack.c.l.b16 %v202
      %v268 = vunpack.c.l.b16 %v203
      %v269 = vunpack.c.l.b16 %v204
      %v270 = vunpack.c.l.b16 %v205
      %v271 = vunpack.c.l.b16 %v206
      %v272 = vunpack.c.l.b16 %v207
      %v273 = vpack.c.b16 %v266, %v265
      %v274 = vpack.c.b16 %v268, %v267
      %v275 = vpack.c.b16 %v270, %v269
      %v276 = vpack.c.b16 %v272, %v271
      %v313 = vunpack.c.l.b16 %v208
      %v314 = vunpack.c.h.b16 %v208
      %v315 = vunpack.c.l.b16 %v209
      %v316 = vunpack.c.l.b16 %v210
      %v317 = vunpack.c.h.b16 %v210
      %v318 = vunpack.c.l.b16 %v211
      %v319 = vunpack.c.l.b16 %v212
      %v320 = vunpack.c.h.b16 %v212
      %v321 = vunpack.c.l.b16 %v213
      %v322 = vunpack.c.l.b16 %v214
      %v323 = vunpack.c.h.b16 %v214
      %v324 = vunpack.c.l.b16 %v215
      %v325 = vunpack.c.l.b16 %v216
      %v326 = vunpack.c.h.b16 %v216
      %v327 = vunpack.c.l.b16 %v217
      %v328 = vunpack.c.l.b16 %v218
      %v329 = vunpack.c.h.b16 %v218
      %v330 = vunpack.c.l.b16 %v219
      %v331 = vunpack.c.l.b16 %v220
      %v332 = vunpack.c.h.b16 %v220
      %v333 = vunpack.c.l.b16 %v221
      %v334 = vunpack.c.l.b16 %v222
      %v335 = vunpack.c.h.b16 %v222
      %v336 = vunpack.c.l.b16 %v223
      %v337 = vunpack.c.l.b16 %v224
      %v338 = vunpack.c.h.b16 %v224
      %v339 = vunpack.c.l.b16 %v225
      %v340 = vunpack.c.l.b16 %v226
      %v341 = vunpack.c.h.b16 %v226
      %v342 = vunpack.c.l.b16 %v227
      %v343 = vunpack.c.l.b16 %v228
      %v344 = vunpack.c.h.b16 %v228
      %v345 = vunpack.c.l.b16 %v229
      %v346 = vunpack.c.l.b16 %v230
      %v347 = vunpack.c.h.b16 %v230
      %v348 = vunpack.c.l.b16 %v231
      %v349 = vunpack.c.l.b16 %v232
      %v350 = vunpack.c.h.b16 %v232
      %v351 = vunpack.c.l.b16 %v233
      %v352 = vunpack.c.l.b16 %v234
      %v353 = vunpack.c.h.b16 %v234
      %v354 = vunpack.c.l.b16 %v235
      %v355 = vunpack.c.l.b16 %v236
      %v356 = vunpack.c.h.b16 %v236
      %v357 = vunpack.c.l.b16 %v237
      %v358 = vunpack.c.l.b16 %v238
      %v359 = vunpack.c.h.b16 %v238
      %v360 = vunpack.c.l.b16 %v239
      %v361 = vpack.c.b16 %v316, %v313
      %v362 = vpack.c.b16 %v317, %v314
      %v363 = vpack.c.b16 %v318, %v315
      %v364 = vpack.c.b16 %v322, %v319
      %v365 = vpack.c.b16 %v323, %v320
      %v366 = vpack.c.b16 %v324, %v321
      %v367 = vpack.c.b16 %v328, %v325
      %v368 = vpack.c.b16 %v329, %v326
      %v369 = vpack.c.b16 %v330, %v327
      %v370 = vpack.c.b16 %v334, %v331
      %v371 = vpack.c.b16 %v335, %v332
      %v372 = vpack.c.b16 %v336, %v333
      %v373 = vpack.c.b16 %v340, %v337
      %v374 = vpack.c.b16 %v341, %v338
      %v375 = vpack.c.b16 %v342, %v339
      %v376 = vpack.c.b16 %v346, %v343
      %v377 = vpack.c.b16 %v347, %v344
      %v378 = vpack.c.b16 %v348, %v345
      %v379 = vpack.c.b16 %v352, %v349
      %v380 = vpack.c.b16 %v353, %v350
      %v381 = vpack.c.b16 %v354, %v351
      %v382 = vpack.c.b16 %v358, %v355
      %v383 = vpack.c.b16 %v359, %v356
      %v384 = vpack.c.b16 %v360, %v357
      %409 = vmatprep.subr.bf16.mxu0 %v362
      %410 = vmatpush1.bf16.msra.mxu0 %v361
      %411 = vmatprep.subr.bf16.mxu0 %v365
      %412 = vmatpush1.bf16.msra.mxu0 %v364
      %413 = vmatprep.subr.bf16.mxu0 %v368
      %414 = vmatpush1.bf16.msra.mxu0 %v367
      %415 = vmatprep.subr.bf16.mxu0 %v371
      %416 = vmatpush1.bf16.msra.mxu0 %v370
      %417 = vmatprep.subr.bf16.mxu0 %v374
      %418 = vmatpush1.bf16.msra.mxu0 %v373
      %419 = vmatprep.subr.bf16.mxu0 %v377
      %420 = vmatpush1.bf16.msra.mxu0 %v376
      %421 = vmatprep.subr.bf16.mxu0 %v380
      %422 = vmatpush1.bf16.msra.mxu0 %v379
      %423 = vmatprep.subr.bf16.mxu0 %v383
      %424 = vmatpush1.bf16.msra.mxu0 %v382
      %425 = vmatprep.subr.bf16.mxu0 0
      %426 = vmatpush1.bf16.msra.mxu0 0
      %427 = vmatprep.subr.bf16.mxu0 0
      %428 = vmatpush1.bf16.msra.mxu0 0
      %429 = vmatprep.subr.bf16.mxu0 0
      %430 = vmatpush1.bf16.msra.mxu0 0
      %431 = vmatprep.subr.bf16.mxu0 0
      %432 = vmatpush1.bf16.msra.mxu0 0
      %433 = vmatprep.subr.bf16.mxu0 0
      %434 = vmatpush1.bf16.msra.mxu0 0
      %435 = vmatprep.subr.bf16.mxu0 0
      %436 = vmatpush1.bf16.msra.mxu0 0
      %437 = vmatprep.subr.bf16.mxu0 0
      %438 = vmatpush1.bf16.msra.mxu0 0
      %439 = vmatprep.subr.bf16.mxu0 0
      %440 = vmatpush1.bf16.msra.mxu0 0
      %441 = vmatprep.mubr.bf16.mxu0 0
      %442 = vmatmul.mubr.bf16.gmra.mrb[0].mxu0 %v273
      %v443 = vpop.f32.mrb[0].mxu0
      %v444 = vadd.f32 %v245, %v443
      %v445 = vpop.f32.mrb[0].mxu0
      %v446 = vadd.f32 %v249, %v445
      %v447 = vpop.f32.mrb[0].mxu0
      %v448 = vadd.f32 %v245, %v447
      %v449 = vpop.f32.mrb[0].mxu0
      %v450 = vadd.f32 %v249, %v449
      %451 = vmatprep.mubr.bf16.mxu0 0
      %452 = vmatmul.mubr.bf16.gmra.mrb[0].mxu0 %v274
      %v453 = vpop.f32.mrb[0].mxu0
      %v454 = vadd.f32 %v245, %v453
      %v455 = vpop.f32.mrb[0].mxu0
      %v456 = vadd.f32 %v249, %v455
      %v457 = vpop.f32.mrb[0].mxu0
      %v458 = vadd.f32 %v245, %v457
      %v459 = vpop.f32.mrb[0].mxu0
      %v460 = vadd.f32 %v249, %v459
      %461 = vmatprep.mubr.bf16.mxu0 0
      %462 = vmatmul.mubr.bf16.gmra.mrb[0].mxu0 %v275
      %v463 = vpop.f32.mrb[0].mxu0
      %v464 = vadd.f32 %v245, %v463
      %v465 = vpop.f32.mrb[0].mxu0
      %v466 = vadd.f32 %v249, %v465
      %v467 = vpop.f32.mrb[0].mxu0
      %v468 = vadd.f32 %v245, %v467
      %v469 = vpop.f32.mrb[0].mxu0
      %v470 = vadd.f32 %v249, %v469
      %471 = vmatprep.mubr.bf16.mxu0 0
      %472 = vmatmul.mubr.bf16.gmra.mrb[0].mxu0 %v276
      %v473 = vpop.f32.mrb[0].mxu0
      %v474 = vadd.f32 %v245, %v473
      %v475 = vpop.f32.mrb[0].mxu0
      %v476 = vadd.f32 %v249, %v475
      %v477 = vpop.f32.mrb[0].mxu0
      %v478 = vadd.f32 %v245, %v477
      %v479 = vpop.f32.mrb[0].mxu0
      %v480 = vadd.f32 %v249, %v479
      %481 = vdwg.mxu0
      %482 = vmatprep.subr.bf16.mxu0 0
      %483 = vmatpush1.bf16.msra.mxu0 %v363
      %484 = vmatprep.subr.bf16.mxu0 0
      %485 = vmatpush1.bf16.msra.mxu0 %v366
      %486 = vmatprep.subr.bf16.mxu0 0
      %487 = vmatpush1.bf16.msra.mxu0 %v369
      %488 = vmatprep.subr.bf16.mxu0 0
      %489 = vmatpush1.bf16.msra.mxu0 %v372
      %490 = vmatprep.subr.bf16.mxu0 0
      %491 = vmatpush1.bf16.msra.mxu0 %v375
      %492 = vmatprep.subr.bf16.mxu0 0
      %493 = vmatpush1.bf16.msra.mxu0 %v378
      %494 = vmatprep.subr.bf16.mxu0 0
      %495 = vmatpush1.bf16.msra.mxu0 %v381
      %496 = vmatprep.subr.bf16.mxu0 0
      %497 = vmatpush1.bf16.msra.mxu0 %v384
      %498 = vmatprep.subr.bf16.mxu0 0
      %499 = vmatpush1.bf16.msra.mxu0 0
      %500 = vmatprep.subr.bf16.mxu0 0
      %501 = vmatpush1.bf16.msra.mxu0 0
      %502 = vmatprep.subr.bf16.mxu0 0
      %503 = vmatpush1.bf16.msra.mxu0 0
      %504 = vmatprep.subr.bf16.mxu0 0
      %505 = vmatpush1.bf16.msra.mxu0 0
      %506 = vmatprep.subr.bf16.mxu0 0
      %507 = vmatpush1.bf16.msra.mxu0 0
      %508 = vmatprep.subr.bf16.mxu0 0
      %509 = vmatpush1.bf16.msra.mxu0 0
      %510 = vmatprep.subr.bf16.mxu0 0
      %511 = vmatpush1.bf16.msra.mxu0 0
      %512 = vmatprep.subr.bf16.mxu0 0
      %513 = vmatpush1.bf16.msra.mxu0 0
      %514 = vmatprep.mubr.bf16.mxu0 0
      %515 = vmatmul.mubr.bf16.gmra.mrb[0].mxu0 %v273
      %v516 = vpop.f32.mrb[0].mxu0
      %v517 = vadd.f32 %v253, %v516
      %v518 = vpop.f32.mrb[0].mxu0
      %v519 = vpop.f32.mrb[0].mxu0
      %v520 = vadd.f32 %v253, %v519
      %v521 = vpop.f32.mrb[0].mxu0
      %522 = vmatprep.mubr.bf16.mxu0 0
      %523 = vmatmul.mubr.bf16.gmra.mrb[0].mxu0 %v274
      %v524 = vpop.f32.mrb[0].mxu0
      %v525 = vadd.f32 %v253, %v524
      %v526 = vpop.f32.mrb[0].mxu0
      %v527 = vpop.f32.mrb[0].mxu0
      %v528 = vadd.f32 %v253, %v527
      %v529 = vpop.f32.mrb[0].mxu0
      %530 = vmatprep.mubr.bf16.mxu0 0
      %531 = vmatmul.mubr.bf16.gmra.mrb[0].mxu0 %v275
      %v532 = vpop.f32.mrb[0].mxu0
      %v533 = vadd.f32 %v253, %v532
      %v534 = vpop.f32.mrb[0].mxu0
      %v535 = vpop.f32.mrb[0].mxu0
      %v536 = vadd.f32 %v253, %v535
      %v537 = vpop.f32.mrb[0].mxu0
      %538 = vmatprep.mubr.bf16.mxu0 0
      %539 = vmatmul.mubr.bf16.gmra.mrb[0].mxu0 %v276
      %v540 = vpop.f32.mrb[0].mxu0
      %v541 = vadd.f32 %v253, %v540
      %v542 = vpop.f32.mrb[0].mxu0
      %v543 = vpop.f32.mrb[0].mxu0
      %v544 = vadd.f32 %v253, %v543
      %v545 = vpop.f32.mrb[0].mxu0
      %546 = vdwg.mxu0
      %v547 = vpack.c.bf16 %v448, %v444
      %v548 = vpack.c.bf16 %v458, %v454
      %v549 = vpack.c.bf16 %v468, %v464
      %v550 = vpack.c.bf16 %v478, %v474
      %v551 = vpack.c.bf16 %v450, %v446
      %v552 = vpack.c.bf16 %v460, %v456
      %v553 = vpack.c.bf16 %v470, %v466
      %v554 = vpack.c.bf16 %v480, %v476
      %v555 = vpack.c.bf16 %v520, %v517
      %v556 = vpack.c.bf16 %v528, %v525
      %v557 = vpack.c.bf16 %v536, %v533
      %v558 = vpack.c.bf16 %v544, %v541
      %559 = vmatprep.subr.bf16.mxu0 0
      %560 = vmatpush1.bf16.xpose.msra.mxu0 %v551
      %561 = vmatprep.subr.bf16.mxu0 0
      %562 = vmatpush1.bf16.xpose.msra.mxu0 %v552
      %563 = vmatprep.subr.bf16.mxu0 0
      %564 = vmatpush1.bf16.xpose.msra.mxu0 %v553
      %565 = vmatprep.subr.bf16.mxu0 0
      %566 = vmatpush1.bf16.xpose.msra.mxu0 %v554
      %567 = vmatprep.subr.bf16.mxu0 0
      %568 = vmatpush1.bf16.xpose.msra.mxu0 0
      %569 = vmatprep.subr.bf16.mxu0 0
      %570 = vmatpush1.bf16.xpose.msra.mxu0 0
      %571 = vmatprep.subr.bf16.mxu0 0
      %572 = vmatpush1.bf16.xpose.msra.mxu0 0
      %573 = vmatprep.subr.bf16.mxu0 0
      %574 = vmatpush1.bf16.xpose.msra.mxu0 0
      %575 = vmatprep.subr.bf16.mxu0 0
      %576 = vmatpush1.bf16.xpose.msra.mxu0 0
      %577 = vmatprep.subr.bf16.mxu0 0
      %578 = vmatpush1.bf16.xpose.msra.mxu0 0
      %579 = vmatprep.subr.bf16.mxu0 0
      %580 = vmatpush1.bf16.xpose.msra.mxu0 0
      %581 = vmatprep.subr.bf16.mxu0 0
      %582 = vmatpush1.bf16.xpose.msra.mxu0 0
      %583 = vmatprep.subr.bf16.mxu0 0
      %584 = vmatpush1.bf16.xpose.msra.mxu0 0
      %585 = vmatprep.subr.bf16.mxu0 0
      %586 = vmatpush1.bf16.xpose.msra.mxu0 0
      %587 = vmatprep.subr.bf16.mxu0 0
      %588 = vmatpush1.bf16.xpose.msra.mxu0 0
      %589 = vmatprep.subr.bf16.mxu0 0
      %590 = vmatpush1.bf16.xpose.msra.mxu0 0
      %591 = vmatprep.mubr.bf16.mxu0 0
      %592 = vmatmul.mubr.bf16.gmra.mrb[0].mxu0 %v547
      %v593 = vpop.f32.mrb[0].mxu0
      %v594 = vadd.f32 0.0, %v593
      %v595 = vpop.f32.mrb[0].mxu0
      %v596 = vpop.f32.mrb[0].mxu0
      %v597 = vadd.f32 0.0, %v596
      %v598 = vpop.f32.mrb[0].mxu0
      %599 = vmatprep.mubr.bf16.mxu0 0
      %600 = vmatmul.mubr.bf16.gmra.mrb[0].mxu0 %v548
      %v601 = vpop.f32.mrb[0].mxu0
      %v602 = vadd.f32 0.0, %v601
      %v603 = vpop.f32.mrb[0].mxu0
      %v604 = vpop.f32.mrb[0].mxu0
      %v605 = vadd.f32 0.0, %v604
      %v606 = vpop.f32.mrb[0].mxu0
      %607 = vmatprep.mubr.bf16.mxu0 0
      %608 = vmatmul.mubr.bf16.gmra.mrb[0].mxu0 %v549
      %v609 = vpop.f32.mrb[0].mxu0
      %v610 = vadd.f32 0.0, %v609
      %v611 = vpop.f32.mrb[0].mxu0
      %v612 = vpop.f32.mrb[0].mxu0
      %v613 = vadd.f32 0.0, %v612
      %v614 = vpop.f32.mrb[0].mxu0
      %615 = vmatprep.mubr.bf16.mxu0 0
      %616 = vmatmul.mubr.bf16.gmra.mrb[0].mxu0 %v550
      %v617 = vpop.f32.mrb[0].mxu0
      %v618 = vadd.f32 0.0, %v617
      %v619 = vpop.f32.mrb[0].mxu0
      %v620 = vpop.f32.mrb[0].mxu0
      %v621 = vadd.f32 0.0, %v620
      %v622 = vpop.f32.mrb[0].mxu0
      %623 = vdwg.mxu0
      %vm624 = vcmask 523264
      %v625 = vsel %vm624, %v594, -inf
      %626 = vmax.xlane.f32.xlu0 %v625
      %v627 = vpop.xlane.xlu0 %626
      %v628 = vsel %vm624, %v597, -inf
      %629 = vmax.xlane.f32.xlu0 %v628
      %v630 = vpop.xlane.xlu0 %629
      %v631 = vsel %vm624, %v602, -inf
      %632 = vmax.xlane.f32.xlu0 %v631
      %v633 = vpop.xlane.xlu0 %632
      %v634 = vsel %vm624, %v605, -inf
      %635 = vmax.xlane.f32.xlu0 %v634
      %v636 = vpop.xlane.xlu0 %635
      %v637 = vsel %vm624, %v610, -inf
      %638 = vmax.xlane.f32.xlu0 %v637
      %v639 = vpop.xlane.xlu0 %638
      %v640 = vsel %vm624, %v613, -inf
      %641 = vmax.xlane.f32.xlu0 %v640
      %v642 = vpop.xlane.xlu0 %641
      %v643 = vsel %vm624, %v618, -inf
      %644 = vmax.xlane.f32.xlu0 %v643
      %v645 = vpop.xlane.xlu0 %644
      %v646 = vsel %vm624, %v621, -inf
      %647 = vmax.xlane.f32.xlu0 %v646
      %v648 = vpop.xlane.xlu0 %647
      %v649 = vsub.f32 %v594, %v627
      %v650 = vsub.f32 %v597, %v630
      %v651 = vsub.f32 %v602, %v633
      %v652 = vsub.f32 %v605, %v636
      %v653 = vsub.f32 %v610, %v639
      %v654 = vsub.f32 %v613, %v642
      %v655 = vsub.f32 %v618, %v645
      %v656 = vsub.f32 %v621, %v648
      %v657 = vmul.f32 %v649, 1.442695
      %v658 = vpow.pop %v657
      %v659 = vmul.f32 %v650, 1.442695
      %v660 = vpow.pop %v659
      %v661 = vmul.f32 %v651, 1.442695
      %v662 = vpow.pop %v661
      %v663 = vmul.f32 %v652, 1.442695
      %v664 = vpow.pop %v663
      %v665 = vmul.f32 %v653, 1.442695
      %v666 = vpow.pop %v665
      %v667 = vmul.f32 %v654, 1.442695
      %v668 = vpow.pop %v667
      %v669 = vmul.f32 %v655, 1.442695
      %v670 = vpow.pop %v669
      %v671 = vmul.f32 %v656, 1.442695
      %v672 = vpow.pop %v671
      %v673 = vsel %vm624, %v658, 0.0
      %674 = vadd.xlane.f32.xlu0 %v673
      %v675 = vpop.xlane.xlu0 %674
      %v676 = vsel %vm624, %v660, 0.0
      %677 = vadd.xlane.f32.xlu0 %v676
      %v678 = vpop.xlane.xlu0 %677
      %v679 = vsel %vm624, %v662, 0.0
      %680 = vadd.xlane.f32.xlu0 %v679
      %v681 = vpop.xlane.xlu0 %680
      %v682 = vsel %vm624, %v664, 0.0
      %683 = vadd.xlane.f32.xlu0 %v682
      %v684 = vpop.xlane.xlu0 %683
      %v685 = vsel %vm624, %v666, 0.0
      %686 = vadd.xlane.f32.xlu0 %v685
      %v687 = vpop.xlane.xlu0 %686
      %v688 = vsel %vm624, %v668, 0.0
      %689 = vadd.xlane.f32.xlu0 %v688
      %v690 = vpop.xlane.xlu0 %689
      %v691 = vsel %vm624, %v670, 0.0
      %692 = vadd.xlane.f32.xlu0 %v691
      %v693 = vpop.xlane.xlu0 %692
      %v694 = vsel %vm624, %v672, 0.0
      %695 = vadd.xlane.f32.xlu0 %v694
      %v696 = vpop.xlane.xlu0 %695
      %v697 = vrcp.pop %v675
      %v698 = vrcp.pop %v678
      %v699 = vrcp.pop %v681
      %v700 = vrcp.pop %v684
      %v701 = vrcp.pop %v687
      %v702 = vrcp.pop %v690
      %v703 = vrcp.pop %v693
      %v704 = vrcp.pop %v696
      %v705 = vmul.f32 %v658, %v697
      %v706 = vmul.f32 %v660, %v698
      %v707 = vmul.f32 %v662, %v699
      %v708 = vmul.f32 %v664, %v700
      %v709 = vmul.f32 %v666, %v701
      %v710 = vmul.f32 %v668, %v702
      %v711 = vmul.f32 %v670, %v703
      %v712 = vmul.f32 %v672, %v704
      %v713 = vpack.c.bf16 %v706, %v705
      %v714 = vpack.c.bf16 %v708, %v707
      %v715 = vpack.c.bf16 %v710, %v709
      %v716 = vpack.c.bf16 %v712, %v711
      %v718 = vsel %vm624, %v713, 0
      %v721 = vsel %vm624, %v714, 0
      %v724 = vsel %vm624, %v715, 0
      %v727 = vsel %vm624, %v716, 0
      %729 = vmatprep.subr.bf16.mxu0 0
      %730 = vmatpush1.bf16.msra.mxu0 %v555
      %731 = vmatprep.subr.bf16.mxu0 0
      %732 = vmatpush1.bf16.msra.mxu0 %v556
      %733 = vmatprep.subr.bf16.mxu0 0
      %734 = vmatpush1.bf16.msra.mxu0 %v557
      %735 = vmatprep.subr.bf16.mxu0 0
      %736 = vmatpush1.bf16.msra.mxu0 %v558
      %737 = vmatprep.subr.bf16.mxu0 0
      %738 = vmatpush1.bf16.msra.mxu0 0
      %739 = vmatprep.subr.bf16.mxu0 0
      %740 = vmatpush1.bf16.msra.mxu0 0
      %741 = vmatprep.subr.bf16.mxu0 0
      %742 = vmatpush1.bf16.msra.mxu0 0
      %743 = vmatprep.subr.bf16.mxu0 0
      %744 = vmatpush1.bf16.msra.mxu0 0
      %745 = vmatprep.subr.bf16.mxu0 0
      %746 = vmatpush1.bf16.msra.mxu0 0
      %747 = vmatprep.subr.bf16.mxu0 0
      %748 = vmatpush1.bf16.msra.mxu0 0
      %749 = vmatprep.subr.bf16.mxu0 0
      %750 = vmatpush1.bf16.msra.mxu0 0
      %751 = vmatprep.subr.bf16.mxu0 0
      %752 = vmatpush1.bf16.msra.mxu0 0
      %753 = vmatprep.subr.bf16.mxu0 0
      %754 = vmatpush1.bf16.msra.mxu0 0
      %755 = vmatprep.subr.bf16.mxu0 0
      %756 = vmatpush1.bf16.msra.mxu0 0
      %757 = vmatprep.subr.bf16.mxu0 0
      %758 = vmatpush1.bf16.msra.mxu0 0
      %759 = vmatprep.subr.bf16.mxu0 0
      %760 = vmatpush1.bf16.msra.mxu0 0
      %761 = vmatprep.mubr.bf16.mxu0 0
      %762 = vmatmul.mubr.bf16.gmra.mrb[0].mxu0 %v718
      %v763 = vpop.f32.mrb[0].mxu0
      %v764 = vadd.f32 0.0, %v763
      %v765 = vpop.f32.mrb[0].mxu0
      %v766 = vpop.f32.mrb[0].mxu0
      %v767 = vadd.f32 0.0, %v766
      %v768 = vpop.f32.mrb[0].mxu0
      %769 = vmatprep.mubr.bf16.mxu0 0
      %770 = vmatmul.mubr.bf16.gmra.mrb[0].mxu0 %v721
      %v771 = vpop.f32.mrb[0].mxu0
      %v772 = vadd.f32 0.0, %v771
      %v773 = vpop.f32.mrb[0].mxu0
      %v774 = vpop.f32.mrb[0].mxu0
      %v775 = vadd.f32 0.0, %v774
      %v776 = vpop.f32.mrb[0].mxu0
      %777 = vmatprep.mubr.bf16.mxu0 0
      %778 = vmatmul.mubr.bf16.gmra.mrb[0].mxu0 %v724
      %v779 = vpop.f32.mrb[0].mxu0
      %v780 = vadd.f32 0.0, %v779
      %v781 = vpop.f32.mrb[0].mxu0
      %v782 = vpop.f32.mrb[0].mxu0
      %v783 = vadd.f32 0.0, %v782
      %v784 = vpop.f32.mrb[0].mxu0
      %785 = vmatprep.mubr.bf16.mxu0 0
      %786 = vmatmul.mubr.bf16.gmra.mrb[0].mxu0 %v727
      %v787 = vpop.f32.mrb[0].mxu0
      %v788 = vadd.f32 0.0, %v787
      %v789 = vpop.f32.mrb[0].mxu0
      %v790 = vpop.f32.mrb[0].mxu0
      %v791 = vadd.f32 0.0, %v790
      %v792 = vpop.f32.mrb[0].mxu0
      %793 = vdwg.mxu0
      %s794 = sld [smem:[#allocation2]]
      %v795 = vstv %s794
      %v796 = vmul.f32 %v795, %v764
      %v797 = vmul.f32 %v795, %v767
      %v798 = vmul.f32 %v795, %v772
      %v799 = vmul.f32 %v795, %v775
      %v800 = vmul.f32 %v795, %v780
      %v801 = vmul.f32 %v795, %v783
      %v802 = vmul.f32 %v795, %v788
      %v803 = vmul.f32 %v795, %v791
      %v804 = vunpack.c.l.bf16 %v200
      %v805 = vunpack.c.l.bf16 %v201
      %v806 = vunpack.c.l.bf16 %v202
      %v807 = vunpack.c.l.bf16 %v203
      %v808 = vunpack.c.l.bf16 %v204
      %v809 = vunpack.c.l.bf16 %v205
      %v810 = vunpack.c.l.bf16 %v206
      %v811 = vunpack.c.l.bf16 %v207
      %v812 = vadd.f32 %v796, %v804
      %v813 = vadd.f32 %v797, %v805
      %v814 = vadd.f32 %v798, %v806
      %v815 = vadd.f32 %v799, %v807
      %v816 = vadd.f32 %v800, %v808
      %v817 = vadd.f32 %v801, %v809
      %v818 = vadd.f32 %v802, %v810
      %v819 = vadd.f32 %v803, %v811
      %v820 = vpack.c.bf16 %v813, %v812
      %v821 = vpack.c.bf16 %v815, %v814
      %v822 = vpack.c.bf16 %v817, %v816
      %v823 = vpack.c.bf16 %v819, %v818
      %v828 = vunpack.c.l.b16 %v820
      %v829 = vunpack.c.h.b16 %v820
      %v830 = vunpack.c.l.b16 %v821
      %v831 = vunpack.c.h.b16 %v821
      %v832 = vunpack.c.l.b16 %v822
      %v833 = vunpack.c.h.b16 %v822
      %v834 = vunpack.c.l.b16 %v823
      %v835 = vunpack.c.h.b16 %v823
      %v836 = vpack.c.b16 %v828, %v828
      %v837 = vpack.c.b16 %v829, %v829
      %v838 = vpack.c.b16 %v830, %v830
      %v839 = vpack.c.b16 %v831, %v831
      %v840 = vpack.c.b16 %v832, %v832
      %v841 = vpack.c.b16 %v833, %v833
      %v842 = vpack.c.b16 %v834, %v834
      %v843 = vpack.c.b16 %v835, %v835
      %852 = vst [vmem:[%s198] sm:$0xf] %v836
      %853 = vst [vmem:[%s198 + $0x4] sm:$0xf] %v837
      %854 = vst [vmem:[%s198 + $0x8] sm:$0xf] %v838
      %855 = vst [vmem:[%s198 + $0xc] sm:$0xf] %v839
      %856 = vst [vmem:[%s198 + $0x10] sm:$0xf] %v840
      %857 = vst [vmem:[%s198 + $0x14] sm:$0xf] %v841
      %858 = vst [vmem:[%s198 + $0x18] sm:$0xf] %v842
      %859 = vst [vmem:[%s198 + $0x1c] sm:$0xf] %v843
      %p860 = scmp.lt.s32.totalorder %s16, 1
      %s861 = scalar_select %p860, %s16, 1
      %s862 = smul.addr %s861, 8
      %s863 = smul.addr %s862, 4
      %s864 = scalar_lea.vmem %s4, %s863
      // Predicated region
      $region37: #{_lambda_.29} parent=35 // pred_check
        %p865 = pneg %p123
      $region38: #{_lambda_.29} parent=35 // pred_check_branch
        %867 = sbr.rel (%p865) target = $region40
      $region39: #{_lambda_.29} parent=35 // pred_region
        _
      $region40: #{_lambda_.29} parent=35 // pred_fallthru
        _
    $region36: #{_lambda_.29} parent=5 // pred_fallthru
      _
    %p868 = scmp.le.s32.totalorder 2, %s11
    // Predicated region
    $region41: #{_lambda_.29} parent=5 // pred_check
      %p869 = pneg %p868
    $region42: #{_lambda_.29} parent=5 // pred_check_branch
      %871 = sbr.rel (%p869) target = $region44
    $region43: #{_lambda_.29} parent=5 // pred_region
      %s872 = ssub.s32 %s11, 2
      // Predicated region
      $region45: #{_lambda_.29} parent=43 // pred_check
        %p873 = pneg %p129
      $region46: #{_lambda_.29} parent=43 // pred_check_branch
        %875 = sbr.rel (%p873) target = $region48
      $region47: #{_lambda_.29} parent=43 // pred_region
        %p876 = scmp.lt.s32.totalorder %s17, 1
        %s877 = scalar_select %p876, %s17, 1
        %s878 = smul.addr %s877, 8
        %s879 = smul.addr %s878, 4
        %s880 = scalar_lea.vmem %s4, %s879
      $region48: #{_lambda_.29} parent=43 // pred_fallthru
        _
    $region44: #{_lambda_.29} parent=5 // pred_fallthru
      _
  $region6: #{_lambda_.29} parent=0 // loop_footer
    %s15 = sadd.s32 1, %s11
  $region7: #{_lambda_.29} parent=0 // loop_footer_branch
    %10 = sbr.rel target = $region3
  $region8: #{_lambda_.29} parent=0 // loop_exit
    _

// kernel: _lambda_.31
$region0: #{_lambda_.31}
  #allocation0 [shape = 'u32[]', space=smem, size = 0x4, offset = 0x4, fixed_abs, tag = 'smem constant byte address 0x4 - core index']
  #allocation1 [shape = 'u32[144,128]{1,0:T(1,128)}', space=vmem, size = 0x12000, scoped, tag = 'internal scratch']
  %s0 = inlined_call_operand.vmem [shape: f32[32,128], index: 0, kind: input, shape index: {}]
  %s1 = inlined_call_operand.vmem [shape: f32[1,128], index: 1, kind: input, shape index: {}]
  %s2 = inlined_call_operand.vmem [shape: f32[1,128], index: 2, kind: input, shape index: {}]
  %s3 = inlined_call_operand.vmem [shape: f32[1,128], index: 3, kind: input, shape index: {}]
  %s4 = inlined_call_operand.vmem [shape: f32[1,128], index: 4, kind: input, shape index: {}]
  %s5 = inlined_call_operand.vmem [shape: bf16[32,128], index: 5, kind: output, shape index: {}]
  %s6 = sld [smem:[#allocation0]]
  $region30: #{_lambda_.31} parent=0
    _
  %s8 = ssub.s32 1, %s6
  %s9 = scalar_select 0, %s8, %s6
  // Predicated region
  $region2: #{_lambda_.31} parent=0 // pred_check
    _
  $region3: #{_lambda_.31} parent=0 // pred_check_branch
    %11 = sbr.rel (0) target = $region5
  $region4: #{_lambda_.31} parent=0 // pred_region
    _
  $region5: #{_lambda_.31} parent=0 // pred_fallthru
    _
  // Predicated region
  $region6: #{_lambda_.31} parent=0 // pred_check
    _
  $region7: #{_lambda_.31} parent=0 // pred_check_branch
    %13 = sbr.rel (0) target = $region9
  $region8: #{_lambda_.31} parent=0 // pred_region
    _
  $region9: #{_lambda_.31} parent=0 // pred_fallthru
    _
  // Predicated region
  $region10: #{_lambda_.31} parent=0 // pred_check
    _
  $region11: #{_lambda_.31} parent=0 // pred_check_branch
    %15 = sbr.rel (0) target = $region13
  $region12: #{_lambda_.31} parent=0 // pred_region
    _
  $region13: #{_lambda_.31} parent=0 // pred_fallthru
    _
  // Predicated region
  $region14: #{_lambda_.31} parent=0 // pred_check
    _
  $region15: #{_lambda_.31} parent=0 // pred_check_branch
    %17 = sbr.rel (0) target = $region17
  $region16: #{_lambda_.31} parent=0 // pred_region
    _
  $region17: #{_lambda_.31} parent=0 // pred_fallthru
    _
  // Predicated region
  $region18: #{_lambda_.31} parent=0 // pred_check
    _
  $region19: #{_lambda_.31} parent=0 // pred_check_branch
    %19 = sbr.rel (0) target = $region21
  $region20: #{_lambda_.31} parent=0 // pred_region
    _
  $region21: #{_lambda_.31} parent=0 // pred_fallthru
    _
  %v20 = vld [vmem:[%s1] sm:$0x1]
  %v21 = vmul.f32 %v20, 0.03125
  %v22 = vld [vmem:[%s2] sm:$0x1]
  %v23 = vmul.f32 %v22, 0.03125
  %v24 = vmul.f32 %v21, %v21
  %v25 = vsub.f32 %v23, %v24
  %v26 = vmax.f32 %v25, 0.0
  %v27 = vld [vmem:[%s0] sm:$0xff]
  %v28 = vld [vmem:[%s0 + $0x8] sm:$0xff]
  %v29 = vld [vmem:[%s0 + $0x10] sm:$0xff]
  %v30 = vld [vmem:[%s0 + $0x18] sm:$0xff]
  %v32 = vlaneseq
  %v33 = vshrl.u32 %v32, 7
  %v34 = vsub.s32 0, %v33
  %v35 = vrot.slane %v21, %v34
  %v37 = vsub.f32 %v27, %v35
  %v38 = vsub.f32 %v28, %v35
  %v39 = vsub.f32 %v29, %v35
  %v40 = vsub.f32 %v30, %v35
  %v41 = vadd.f32 %v26, 1e-05
  %v42 = vrsqrt.pop %v41
  %v44 = vlaneseq
  %v45 = vshrl.u32 %v44, 7
  %v46 = vsub.s32 0, %v45
  %v47 = vrot.slane %v42, %v46
  %v49 = vmul.f32 %v37, %v47
  %v50 = vmul.f32 %v38, %v47
  %v51 = vmul.f32 %v39, %v47
  %v52 = vmul.f32 %v40, %v47
  %v53 = vld [vmem:[%s3] sm:$0x1]
  %v55 = vlaneseq
  %v56 = vshrl.u32 %v55, 7
  %v57 = vsub.s32 0, %v56
  %v58 = vrot.slane %v53, %v57
  %v60 = vmul.f32 %v49, %v58
  %v61 = vmul.f32 %v50, %v58
  %v62 = vmul.f32 %v51, %v58
  %v63 = vmul.f32 %v52, %v58
  %v64 = vld [vmem:[%s4] sm:$0x1]
  %v66 = vlaneseq
  %v67 = vshrl.u32 %v66, 7
  %v68 = vsub.s32 0, %v67
  %v69 = vrot.slane %v64, %v68
  %v71 = vadd.f32 %v60, %v69
  %v72 = vadd.f32 %v61, %v69
  %v73 = vadd.f32 %v62, %v69
  %v74 = vadd.f32 %v63, %v69
  %v75 = vmax.f32 %v71, 0.0
  %v76 = vmax.f32 %v72, 0.0
  %v77 = vmax.f32 %v73, 0.0
  %v78 = vmax.f32 %v74, 0.0
  %v79 = vpack.c.bf16 %v76, %v75
  %v80 = vpack.c.bf16 %v78, %v77
  %v83 = vunpack.c.l.b16 %v79
  %v84 = vunpack.c.h.b16 %v79
  %v85 = vunpack.c.l.b16 %v80
  %v86 = vunpack.c.h.b16 %v80
  %v87 = vpack.c.b16 %v83, %v83
  %v88 = vpack.c.b16 %v84, %v84
  %v89 = vpack.c.b16 %v85, %v85
  %v90 = vpack.c.b16 %v86, %v86
  %95 = vst [vmem:[%s5] sm:$0xf] %v87
  %96 = vst [vmem:[%s5 + $0x4] sm:$0xf] %v88
  %97 = vst [vmem:[%s5 + $0x8] sm:$0xf] %v89
  %98 = vst [vmem:[%s5 + $0xc] sm:$0xf] %v90
  // Predicated region
  $region22: #{_lambda_.31} parent=0 // pred_check
    _
  $region23: #{_lambda_.31} parent=0 // pred_check_branch
    %100 = sbr.rel (0) target = $region25
  $region24: #{_lambda_.31} parent=0 // pred_region
    _
  $region25: #{_lambda_.31} parent=0 // pred_fallthru
    _
  // Predicated region
  $region26: #{_lambda_.31} parent=0 // pred_check
    _
  $region27: #{_lambda_.31} parent=0 // pred_check_branch
    %102 = sbr.rel (0) target = $region29
  $region28: #{_lambda_.31} parent=0 // pred_region
    _
  $region29: #{_lambda_.31} parent=0 // pred_fallthru
    _

// kernel: _lambda_.30
$region0: #{_lambda_.30}
  #allocation0 [shape = 'u32[]', space=smem, size = 0x4, offset = 0x4, fixed_abs, tag = 'smem constant byte address 0x4 - core index']
  #allocation1 [shape = 'u32[144,128]{1,0:T(1,128)}', space=vmem, size = 0x12000, scoped, tag = 'internal scratch']
  %s0 = inlined_call_operand.vmem [shape: bf16[32,384], index: 0, kind: input, shape index: {}]
  %s1 = inlined_call_operand.vmem [shape: bf16[384,128], index: 1, kind: input, shape index: {}]
  %s2 = inlined_call_operand.vmem [shape: f32[1,128], index: 2, kind: input, shape index: {}]
  %s3 = inlined_call_operand.vmem [shape: f32[32,128], index: 3, kind: output, shape index: {0}]
  %s4 = inlined_call_operand.vmem [shape: f32[1,128], index: 4, kind: output, shape index: {1}]
  %s5 = inlined_call_operand.vmem [shape: f32[1,128], index: 5, kind: output, shape index: {2}]
  %6 = xla_tuple %s3, %s4, %s5
  %s7 = sld [smem:[#allocation0]]
  $region42: #{_lambda_.30} parent=0
    _
  %s9 = ssub.s32 1, %s7
  %s10 = scalar_select 0, %s9, %s7
  // Predicated region
  $region2: #{_lambda_.30} parent=0 // pred_check
    _
  $region3: #{_lambda_.30} parent=0 // pred_check_branch
    %12 = sbr.rel (0) target = $region5
  $region4: #{_lambda_.30} parent=0 // pred_region
    _
  $region5: #{_lambda_.30} parent=0 // pred_fallthru
    _
  // Predicated region
  $region6: #{_lambda_.30} parent=0 // pred_check
    _
  $region7: #{_lambda_.30} parent=0 // pred_check_branch
    %14 = sbr.rel (0) target = $region9
  $region8: #{_lambda_.30} parent=0 // pred_region
    _
  $region9: #{_lambda_.30} parent=0 // pred_fallthru
    _
  // Predicated region
  $region10: #{_lambda_.30} parent=0 // pred_check
    _
  $region11: #{_lambda_.30} parent=0 // pred_check_branch
    %16 = sbr.rel (0) target = $region13
  $region12: #{_lambda_.30} parent=0 // pred_region
    _
  $region13: #{_lambda_.30} parent=0 // pred_fallthru
    _
  %v18 = vld [vmem:[%s0] sm:$0xff]
  %v19 = vld [vmem:[%s0 + $0x8] sm:$0xf]
  %v20 = vld [vmem:[%s0 + $0xc] sm:$0xff]
  %v21 = vld [vmem:[%s0 + $0x14] sm:$0xf]
  %v22 = vld [vmem:[%s0 + $0x18] sm:$0xff]
  %v23 = vld [vmem:[%s0 + $0x20] sm:$0xf]
  %v24 = vld [vmem:[%s0 + $0x24] sm:$0xff]
  %v25 = vld [vmem:[%s0 + $0x2c] sm:$0xf]
  %v26 = vld [vmem:[%s1] sm:$0xf]
  %v27 = vld [vmem:[%s1 + $0x4] sm:$0xf]
  %v28 = vld [vmem:[%s1 + $0x8] sm:$0xf]
  %v29 = vld [vmem:[%s1 + $0xc] sm:$0xf]
  %v30 = vld [vmem:[%s1 + $0x10] sm:$0xf]
  %v31 = vld [vmem:[%s1 + $0x14] sm:$0xf]
  %v32 = vld [vmem:[%s1 + $0x18] sm:$0xf]
  %v33 = vld [vmem:[%s1 + $0x1c] sm:$0xf]
  %v34 = vld [vmem:[%s1 + $0x20] sm:$0xf]
  %v35 = vld [vmem:[%s1 + $0x24] sm:$0xf]
  %v36 = vld [vmem:[%s1 + $0x28] sm:$0xf]
  %v37 = vld [vmem:[%s1 + $0x2c] sm:$0xf]
  %v38 = vld [vmem:[%s1 + $0x30] sm:$0xf]
  %v39 = vld [vmem:[%s1 + $0x34] sm:$0xf]
  %v40 = vld [vmem:[%s1 + $0x38] sm:$0xf]
  %v41 = vld [vmem:[%s1 + $0x3c] sm:$0xf]
  %v42 = vld [vmem:[%s1 + $0x40] sm:$0xf]
  %v43 = vld [vmem:[%s1 + $0x44] sm:$0xf]
  %v44 = vld [vmem:[%s1 + $0x48] sm:$0xf]
  %v45 = vld [vmem:[%s1 + $0x4c] sm:$0xf]
  %v46 = vld [vmem:[%s1 + $0x50] sm:$0xf]
  %v47 = vld [vmem:[%s1 + $0x54] sm:$0xf]
  %v48 = vld [vmem:[%s1 + $0x58] sm:$0xf]
  %v49 = vld [vmem:[%s1 + $0x5c] sm:$0xf]
  %v50 = vld [vmem:[%s1 + $0x60] sm:$0xf]
  %v51 = vld [vmem:[%s1 + $0x64] sm:$0xf]
  %v52 = vld [vmem:[%s1 + $0x68] sm:$0xf]
  %v53 = vld [vmem:[%s1 + $0x6c] sm:$0xf]
  %v54 = vld [vmem:[%s1 + $0x70] sm:$0xf]
  %v55 = vld [vmem:[%s1 + $0x74] sm:$0xf]
  %v56 = vld [vmem:[%s1 + $0x78] sm:$0xf]
  %v57 = vld [vmem:[%s1 + $0x7c] sm:$0xf]
  %v58 = vld [vmem:[%s1 + $0x80] sm:$0xf]
  %v59 = vld [vmem:[%s1 + $0x84] sm:$0xf]
  %v60 = vld [vmem:[%s1 + $0x88] sm:$0xf]
  %v61 = vld [vmem:[%s1 + $0x8c] sm:$0xf]
  %v62 = vld [vmem:[%s1 + $0x90] sm:$0xf]
  %v63 = vld [vmem:[%s1 + $0x94] sm:$0xf]
  %v64 = vld [vmem:[%s1 + $0x98] sm:$0xf]
  %v65 = vld [vmem:[%s1 + $0x9c] sm:$0xf]
  %v66 = vld [vmem:[%s1 + $0xa0] sm:$0xf]
  %v67 = vld [vmem:[%s1 + $0xa4] sm:$0xf]
  %v68 = vld [vmem:[%s1 + $0xa8] sm:$0xf]
  %v69 = vld [vmem:[%s1 + $0xac] sm:$0xf]
  %v70 = vld [vmem:[%s1 + $0xb0] sm:$0xf]
  %v71 = vld [vmem:[%s1 + $0xb4] sm:$0xf]
  %v72 = vld [vmem:[%s1 + $0xb8] sm:$0xf]
  %v73 = vld [vmem:[%s1 + $0xbc] sm:$0xf]
  %v74 = vld [vmem:[%s2] sm:$0x1]
  %v76 = vlaneseq
  %v77 = vshrl.u32 %v76, 7
  %v78 = vsub.s32 0, %v77
  %v79 = vrot.slane %v74, %v78
  %v89 = vunpack.c.l.b16 %v18
  %v90 = vunpack.c.h.b16 %v18
  %v91 = vunpack.c.l.b16 %v19
  %v92 = vunpack.c.l.b16 %v20
  %v93 = vunpack.c.h.b16 %v20
  %v94 = vunpack.c.l.b16 %v21
  %v95 = vunpack.c.l.b16 %v22
  %v96 = vunpack.c.h.b16 %v22
  %v97 = vunpack.c.l.b16 %v23
  %v98 = vunpack.c.l.b16 %v24
  %v99 = vunpack.c.h.b16 %v24
  %v100 = vunpack.c.l.b16 %v25
  %v101 = vpack.c.b16 %v92, %v89
  %v102 = vpack.c.b16 %v93, %v90
  %v103 = vpack.c.b16 %v94, %v91
  %v104 = vpack.c.b16 %v98, %v95
  %v105 = vpack.c.b16 %v99, %v96
  %v106 = vpack.c.b16 %v100, %v97
  %v161 = vunpack.c.l.b16 %v26
  %v162 = vunpack.c.l.b16 %v27
  %v163 = vunpack.c.l.b16 %v28
  %v164 = vunpack.c.l.b16 %v29
  %v165 = vunpack.c.l.b16 %v30
  %v166 = vunpack.c.l.b16 %v31
  %v167 = vunpack.c.l.b16 %v32
  %v168 = vunpack.c.l.b16 %v33
  %v169 = vunpack.c.l.b16 %v34
  %v170 = vunpack.c.l.b16 %v35
  %v171 = vunpack.c.l.b16 %v36
  %v172 = vunpack.c.l.b16 %v37
  %v173 = vunpack.c.l.b16 %v38
  %v174 = vunpack.c.l.b16 %v39
  %v175 = vunpack.c.l.b16 %v40
  %v176 = vunpack.c.l.b16 %v41
  %v177 = vunpack.c.l.b16 %v42
  %v178 = vunpack.c.l.b16 %v43
  %v179 = vunpack.c.l.b16 %v44
  %v180 = vunpack.c.l.b16 %v45
  %v181 = vunpack.c.l.b16 %v46
  %v182 = vunpack.c.l.b16 %v47
  %v183 = vunpack.c.l.b16 %v48
  %v184 = vunpack.c.l.b16 %v49
  %v185 = vunpack.c.l.b16 %v50
  %v186 = vunpack.c.l.b16 %v51
  %v187 = vunpack.c.l.b16 %v52
  %v188 = vunpack.c.l.b16 %v53
  %v189 = vunpack.c.l.b16 %v54
  %v190 = vunpack.c.l.b16 %v55
  %v191 = vunpack.c.l.b16 %v56
  %v192 = vunpack.c.l.b16 %v57
  %v193 = vunpack.c.l.b16 %v58
  %v194 = vunpack.c.l.b16 %v59
  %v195 = vunpack.c.l.b16 %v60
  %v196 = vunpack.c.l.b16 %v61
  %v197 = vunpack.c.l.b16 %v62
  %v198 = vunpack.c.l.b16 %v63
  %v199 = vunpack.c.l.b16 %v64
  %v200 = vunpack.c.l.b16 %v65
  %v201 = vunpack.c.l.b16 %v66
  %v202 = vunpack.c.l.b16 %v67
  %v203 = vunpack.c.l.b16 %v68
  %v204 = vunpack.c.l.b16 %v69
  %v205 = vunpack.c.l.b16 %v70
  %v206 = vunpack.c.l.b16 %v71
  %v207 = vunpack.c.l.b16 %v72
  %v208 = vunpack.c.l.b16 %v73
  %v209 = vpack.c.b16 %v162, %v161
  %v210 = vpack.c.b16 %v164, %v163
  %v211 = vpack.c.b16 %v166, %v165
  %v212 = vpack.c.b16 %v168, %v167
  %v213 = vpack.c.b16 %v170, %v169
  %v214 = vpack.c.b16 %v172, %v171
  %v215 = vpack.c.b16 %v174, %v173
  %v216 = vpack.c.b16 %v176, %v175
  %v217 = vpack.c.b16 %v178, %v177
  %v218 = vpack.c.b16 %v180, %v179
  %v219 = vpack.c.b16 %v182, %v181
  %v220 = vpack.c.b16 %v184, %v183
  %v221 = vpack.c.b16 %v186, %v185
  %v222 = vpack.c.b16 %v188, %v187
  %v223 = vpack.c.b16 %v190, %v189
  %v224 = vpack.c.b16 %v192, %v191
  %v225 = vpack.c.b16 %v194, %v193
  %v226 = vpack.c.b16 %v196, %v195
  %v227 = vpack.c.b16 %v198, %v197
  %v228 = vpack.c.b16 %v200, %v199
  %v229 = vpack.c.b16 %v202, %v201
  %v230 = vpack.c.b16 %v204, %v203
  %v231 = vpack.c.b16 %v206, %v205
  %v232 = vpack.c.b16 %v208, %v207
  %257 = vmatprep.subr.bf16.mxu0 0
  %258 = vmatpush1.bf16.msra.mxu0 %v209
  %259 = vmatprep.subr.bf16.mxu0 0
  %260 = vmatpush1.bf16.msra.mxu0 %v210
  %261 = vmatprep.subr.bf16.mxu0 0
  %262 = vmatpush1.bf16.msra.mxu0 %v211
  %263 = vmatprep.subr.bf16.mxu0 0
  %264 = vmatpush1.bf16.msra.mxu0 %v212
  %265 = vmatprep.subr.bf16.mxu0 0
  %266 = vmatpush1.bf16.msra.mxu0 %v213
  %267 = vmatprep.subr.bf16.mxu0 0
  %268 = vmatpush1.bf16.msra.mxu0 %v214
  %269 = vmatprep.subr.bf16.mxu0 0
  %270 = vmatpush1.bf16.msra.mxu0 %v215
  %271 = vmatprep.subr.bf16.mxu0 0
  %272 = vmatpush1.bf16.msra.mxu0 %v216
  %273 = vmatprep.subr.bf16.mxu0 0
  %274 = vmatpush1.bf16.msra.mxu0 %v217
  %275 = vmatprep.subr.bf16.mxu0 0
  %276 = vmatpush1.bf16.msra.mxu0 %v218
  %277 = vmatprep.subr.bf16.mxu0 0
  %278 = vmatpush1.bf16.msra.mxu0 %v219
  %279 = vmatprep.subr.bf16.mxu0 0
  %280 = vmatpush1.bf16.msra.mxu0 %v220
  %281 = vmatprep.subr.bf16.mxu0 0
  %282 = vmatpush1.bf16.msra.mxu0 %v221
  %283 = vmatprep.subr.bf16.mxu0 0
  %284 = vmatpush1.bf16.msra.mxu0 %v222
  %285 = vmatprep.subr.bf16.mxu0 0
  %286 = vmatpush1.bf16.msra.mxu0 %v223
  %287 = vmatprep.subr.bf16.mxu0 0
  %288 = vmatpush1.bf16.msra.mxu0 %v224
  %289 = vmatprep.mubr.bf16.mxu0 %v102
  %290 = vmatmul.mubr.bf16.gmra.mrb[0].mxu0 %v101
  %v291 = vpop.f32.mrb[0].mxu0
  %v292 = vadd.f32 %v79, %v291
  %v293 = vpop.f32.mrb[0].mxu0
  %v294 = vpop.f32.mrb[0].mxu0
  %v295 = vadd.f32 %v79, %v294
  %v296 = vpop.f32.mrb[0].mxu0
  %297 = vmatprep.mubr.bf16.mxu0 %v105
  %298 = vmatmul.mubr.bf16.gmra.mrb[0].mxu0 %v104
  %v299 = vpop.f32.mrb[0].mxu0
  %v300 = vadd.f32 %v79, %v299
  %v301 = vpop.f32.mrb[0].mxu0
  %v302 = vpop.f32.mrb[0].mxu0
  %v303 = vadd.f32 %v79, %v302
  %v304 = vpop.f32.mrb[0].mxu0
  %305 = vdwg.mxu0
  %306 = vmatprep.subr.bf16.mxu0 0
  %307 = vmatpush1.bf16.msra.mxu0 %v225
  %308 = vmatprep.subr.bf16.mxu0 0
  %309 = vmatpush1.bf16.msra.mxu0 %v226
  %310 = vmatprep.subr.bf16.mxu0 0
  %311 = vmatpush1.bf16.msra.mxu0 %v227
  %312 = vmatprep.subr.bf16.mxu0 0
  %313 = vmatpush1.bf16.msra.mxu0 %v228
  %314 = vmatprep.subr.bf16.mxu0 0
  %315 = vmatpush1.bf16.msra.mxu0 %v229
  %316 = vmatprep.subr.bf16.mxu0 0
  %317 = vmatpush1.bf16.msra.mxu0 %v230
  %318 = vmatprep.subr.bf16.mxu0 0
  %319 = vmatpush1.bf16.msra.mxu0 %v231
  %320 = vmatprep.subr.bf16.mxu0 0
  %321 = vmatpush1.bf16.msra.mxu0 %v232
  %322 = vmatprep.subr.bf16.mxu0 0
  %323 = vmatpush1.bf16.msra.mxu0 0
  %324 = vmatprep.subr.bf16.mxu0 0
  %325 = vmatpush1.bf16.msra.mxu0 0
  %326 = vmatprep.subr.bf16.mxu0 0
  %327 = vmatpush1.bf16.msra.mxu0 0
  %328 = vmatprep.subr.bf16.mxu0 0
  %329 = vmatpush1.bf16.msra.mxu0 0
  %330 = vmatprep.subr.bf16.mxu0 0
  %331 = vmatpush1.bf16.msra.mxu0 0
  %332 = vmatprep.subr.bf16.mxu0 0
  %333 = vmatpush1.bf16.msra.mxu0 0
  %334 = vmatprep.subr.bf16.mxu0 0
  %335 = vmatpush1.bf16.msra.mxu0 0
  %336 = vmatprep.subr.bf16.mxu0 0
  %337 = vmatpush1.bf16.msra.mxu0 0
  %338 = vmatprep.mubr.bf16.mxu0 0
  %339 = vmatmul.mubr.bf16.gmra.mrb[0].mxu0 %v103
  %v340 = vpop.f32.mrb[0].mxu0
  %v341 = vadd.f32 %v292, %v340
  %v342 = vpop.f32.mrb[0].mxu0
  %v343 = vpop.f32.mrb[0].mxu0
  %v344 = vadd.f32 %v295, %v343
  %v345 = vpop.f32.mrb[0].mxu0
  %346 = vmatprep.mubr.bf16.mxu0 0
  %347 = vmatmul.mubr.bf16.gmra.mrb[0].mxu0 %v106
  %v348 = vpop.f32.mrb[0].mxu0
  %v349 = vadd.f32 %v300, %v348
  %v350 = vpop.f32.mrb[0].mxu0
  %v351 = vpop.f32.mrb[0].mxu0
  %v352 = vadd.f32 %v303, %v351
  %v353 = vpop.f32.mrb[0].mxu0
  %354 = vdwg.mxu0
  %355 = vst [vmem:[%s3] sm:$0xff] %v341
  %356 = vst [vmem:[%s3 + $0x8] sm:$0xff] %v344
  %357 = vst [vmem:[%s3 + $0x10] sm:$0xff] %v349
  %358 = vst [vmem:[%s3 + $0x18] sm:$0xff] %v352
  %v359 = vlaneseq
  %v360 = vshrl.u32 %v359, 7
  %v361 = vadd.s32 %v360, 8
  %v362 = vadd.s32 %v360, 16
  %v363 = vadd.s32 %v360, 24
  %s364 = smul.u32 0, 32
  %v365 = vstv %s364
  %v366 = vadd.s32 %v360, %v365
  %v367 = vadd.s32 %v361, %v365
  %v368 = vadd.s32 %v362, %v365
  %v369 = vadd.s32 %v363, %v365
  %vm370 = vcmp.lt.s32.totalorder %v366, 32
  %vm371 = vcmp.lt.s32.totalorder %v367, 32
  %vm372 = vcmp.lt.s32.totalorder %v368, 32
  %vm373 = vcmp.lt.s32.totalorder %v369, 32
  %v374 = vsel %vm370, 1, 0
  %v375 = vsel %vm371, 1, 0
  %v376 = vsel %vm372, 1, 0
  %v377 = vsel %vm373, 1, 0
  %vm378 = vcmp.eq.s32.totalorder %v374, 1
  %vm379 = vcmp.eq.s32.totalorder %v375, 1
  %vm380 = vcmp.eq.s32.totalorder %v376, 1
  %vm381 = vcmp.eq.s32.totalorder %v377, 1
  %v382 = vsel %vm378, %v341, 0.0
  %v383 = vsel %vm379, %v344, 0.0
  %v384 = vsel %vm380, %v349, 0.0
  %v385 = vsel %vm381, %v352, 0.0
  %p386 = scmp.eq.s32.totalorder 0, 0
  // Predicated region
  $region14: #{_lambda_.30} parent=0 // pred_check
    %p387 = pneg %p386
  $region15: #{_lambda_.30} parent=0 // pred_check_branch
    %389 = sbr.rel (%p387) target = $region17
  $region16: #{_lambda_.30} parent=0 // pred_region
    %390 = vst [vmem:[%s4] sm:$0x1] 0.0
    %391 = vst [vmem:[%s5] sm:$0x1] 0.0
  $region17: #{_lambda_.30} parent=0 // pred_fallthru
    _
  %v392 = vld [vmem:[%s4] sm:$0x1]
  %v393 = vadd.f32 %v382, %v383
  %v394 = vadd.f32 %v393, %v384
  %v395 = vadd.f32 %v394, %v385
  %v396 = vrot.slane %v395, 4
  %v397 = vadd.f32 %v395, %v396
  %v398 = vrot.slane %v397, 2
  %v399 = vadd.f32 %v397, %v398
  %v400 = vrot.slane %v399, 1
  %v401 = vadd.f32 %v399, %v400
  %v402 = vadd.f32 %v392, %v401
  %403 = vst [vmem:[%s4] sm:$0x1] %v402
  %v404 = vld [vmem:[%s5] sm:$0x1]
  %v405 = vmul.f32 %v382, %v382
  %v406 = vmul.f32 %v383, %v383
  %v407 = vmul.f32 %v384, %v384
  %v408 = vmul.f32 %v385, %v385
  %v409 = vadd.f32 %v405, %v406
  %v410 = vadd.f32 %v409, %v407
  %v411 = vadd.f32 %v410, %v408
  %v412 = vrot.slane %v411, 4
  %v413 = vadd.f32 %v411, %v412
  %v414 = vrot.slane %v413, 2
  %v415 = vadd.f32 %v413, %v414
  %v416 = vrot.slane %v415, 1
  %v417 = vadd.f32 %v415, %v416
  %v418 = vadd.f32 %v404, %v417
  %419 = vst [vmem:[%s5] sm:$0x1] %v418
  // Predicated region
  $region18: #{_lambda_.30} parent=0 // pred_check
    _
  $region19: #{_lambda_.30} parent=0 // pred_check_branch
    %421 = sbr.rel (0) target = $region21
  $region20: #{_lambda_.30} parent=0 // pred_region
    _
  $region21: #{_lambda_.30} parent=0 // pred_fallthru
    _
  // Predicated region
  $region22: #{_lambda_.30} parent=0 // pred_check
    _
  $region23: #{_lambda_.30} parent=0 // pred_check_branch
    %423 = sbr.rel (0) target = $region25
  $region24: #{_lambda_.30} parent=0 // pred_region
    _
  $region25: #{_lambda_.30} parent=0 // pred_fallthru
    _
  // Predicated region
  $region26: #{_lambda_.30} parent=0 // pred_check
    _
  $region27: #{_lambda_.30} parent=0 // pred_check_branch
    %425 = sbr.rel (0) target = $region29
  $region28: #{_lambda_.30} parent=0 // pred_region
    _
  $region29: #{_lambda_.30} parent=0 // pred_fallthru
    _
  // Predicated region
  $region30: #{_lambda_.30} parent=0 // pred_check
    _
  $region31: #{_lambda_.30} parent=0 // pred_check_branch
    %427 = sbr.rel (0) target = $region33
  $region32: #{_lambda_.30} parent=0 // pred_region
    _
  $region33: #{_lambda_.30} parent=0 // pred_fallthru
    _
  // Predicated region
  $region34: #{_lambda_.30} parent=0 // pred_check
    _
  $region35: #{_lambda_.30} parent=0 // pred_check_branch
    %429 = sbr.rel (0) target = $region37
  $region36: #{_lambda_.30} parent=0 // pred_region
    _
  $region37: #{_lambda_.30} parent=0 // pred_fallthru
    _
  // Predicated region
  $region38: #{_lambda_.30} parent=0 // pred_check
    _
  $region39: #{_lambda_.30} parent=0 // pred_check_branch
    %431 = sbr.rel (0) target = $region41
  $region40: #{_lambda_.30} parent=0 // pred_region
    _
  $region41: #{_lambda_.30} parent=0 // pred_fallthru
    _

// kernel: tile.13
$region0: #{tile.13}
  #allocation0 [shape = 's32[1]{0}', space=sflag, size = 0x4, scoped, tag = 'scoped memory for tile.13']
  %s0 = inlined_call_operand.vmem [shape: f32[32], index: 0, kind: input, shape index: {}]
  %s1 = inlined_call_operand.vmem [shape: f32[4,32], index: 1, kind: output, shape index: {}]
  // Predicated region
  $region2: #{tile.13} parent=0 // pred_check
    _
  $region3: #{tile.13} parent=0 // pred_check_branch
    %3 = sbr.rel (0) target = $region5
  $region4: #{tile.13} parent=0 // pred_region
    _
  $region5: #{tile.13} parent=0 // pred_fallthru
    _
  %v4 = vld [vmem:[%s0] ss:$0 sm:$0xff]
  %5 = vst [vmem:[%s1] sm:$0xf] %v4

// kernel: _lambda_.32
$region0: #{_lambda_.32}
  #allocation0 [shape = 'u32[]', space=smem, size = 0x4, offset = 0x4, fixed_abs, tag = 'smem constant byte address 0x4 - core index']
  #allocation1 [shape = 'u32[144,128]{1,0:T(1,128)}', space=vmem, size = 0x12000, scoped, tag = 'internal scratch']
  %s0 = inlined_call_operand.vmem [shape: bf16[32,640], index: 0, kind: input, shape index: {}]
  %s1 = inlined_call_operand.vmem [shape: bf16[640,128], index: 1, kind: input, shape index: {}]
  %s2 = inlined_call_operand.vmem [shape: f32[1,128], index: 2, kind: input, shape index: {}]
  %s3 = inlined_call_operand.vmem [shape: f32[32,128], index: 3, kind: output, shape index: {0}]
  %s4 = inlined_call_operand.vmem [shape: f32[1,128], index: 4, kind: output, shape index: {1}]
  %s5 = inlined_call_operand.vmem [shape: f32[1,128], index: 5, kind: output, shape index: {2}]
  %6 = xla_tuple %s3, %s4, %s5
  %s7 = sld [smem:[#allocation0]]
  $region42: #{_lambda_.32} parent=0
    _
  %s9 = ssub.s32 1, %s7
  %s10 = scalar_select 0, %s9, %s7
  // Predicated region
  $region2: #{_lambda_.32} parent=0 // pred_check
    _
  $region3: #{_lambda_.32} parent=0 // pred_check_branch
    %12 = sbr.rel (0) target = $region5
  $region4: #{_lambda_.32} parent=0 // pred_region
    _
  $region5: #{_lambda_.32} parent=0 // pred_fallthru
    _
  // Predicated region
  $region6: #{_lambda_.32} parent=0 // pred_check
    _
  $region7: #{_lambda_.32} parent=0 // pred_check_branch
    %14 = sbr.rel (0) target = $region9
  $region8: #{_lambda_.32} parent=0 // pred_region
    _
  $region9: #{_lambda_.32} parent=0 // pred_fallthru
    _
  // Predicated region
  $region10: #{_lambda_.32} parent=0 // pred_check
    _
  $region11: #{_lambda_.32} parent=0 // pred_check_branch
    %16 = sbr.rel (0) target = $region13
  $region12: #{_lambda_.32} parent=0 // pred_region
    _
  $region13: #{_lambda_.32} parent=0 // pred_fallthru
    _
  %v18 = vld [vmem:[%s0] sm:$0xff]
  %v19 = vld [vmem:[%s0 + $0x8] sm:$0xff]
  %v20 = vld [vmem:[%s0 + $0x10] sm:$0xf]
  %v21 = vld [vmem:[%s0 + $0x14] sm:$0xff]
  %v22 = vld [vmem:[%s0 + $0x1c] sm:$0xff]
  %v23 = vld [vmem:[%s0 + $0x24] sm:$0xf]
  %v24 = vld [vmem:[%s0 + $0x28] sm:$0xff]
  %v25 = vld [vmem:[%s0 + $0x30] sm:$0xff]
  %v26 = vld [vmem:[%s0 + $0x38] sm:$0xf]
  %v27 = vld [vmem:[%s0 + $0x3c] sm:$0xff]
  %v28 = vld [vmem:[%s0 + $0x44] sm:$0xff]
  %v29 = vld [vmem:[%s0 + $0x4c] sm:$0xf]
  %v30 = vld [vmem:[%s1] sm:$0xf]
  %v31 = vld [vmem:[%s1 + $0x4] sm:$0xf]
  %v32 = vld [vmem:[%s1 + $0x8] sm:$0xf]
  %v33 = vld [vmem:[%s1 + $0xc] sm:$0xf]
  %v34 = vld [vmem:[%s1 + $0x10] sm:$0xf]
  %v35 = vld [vmem:[%s1 + $0x14] sm:$0xf]
  %v36 = vld [vmem:[%s1 + $0x18] sm:$0xf]
  %v37 = vld [vmem:[%s1 + $0x1c] sm:$0xf]
  %v38 = vld [vmem:[%s1 + $0x20] sm:$0xf]
  %v39 = vld [vmem:[%s1 + $0x24] sm:$0xf]
  %v40 = vld [vmem:[%s1 + $0x28] sm:$0xf]
  %v41 = vld [vmem:[%s1 + $0x2c] sm:$0xf]
  %v42 = vld [vmem:[%s1 + $0x30] sm:$0xf]
  %v43 = vld [vmem:[%s1 + $0x34] sm:$0xf]
  %v44 = vld [vmem:[%s1 + $0x38] sm:$0xf]
  %v45 = vld [vmem:[%s1 + $0x3c] sm:$0xf]
  %v46 = vld [vmem:[%s1 + $0x40] sm:$0xf]
  %v47 = vld [vmem:[%s1 + $0x44] sm:$0xf]
  %v48 = vld [vmem:[%s1 + $0x48] sm:$0xf]
  %v49 = vld [vmem:[%s1 + $0x4c] sm:$0xf]
  %v50 = vld [vmem:[%s1 + $0x50] sm:$0xf]
  %v51 = vld [vmem:[%s1 + $0x54] sm:$0xf]
  %v52 = vld [vmem:[%s1 + $0x58] sm:$0xf]
  %v53 = vld [vmem:[%s1 + $0x5c] sm:$0xf]
  %v54 = vld [vmem:[%s1 + $0x60] sm:$0xf]
  %v55 = vld [vmem:[%s1 + $0x64] sm:$0xf]
  %v56 = vld [vmem:[%s1 + $0x68] sm:$0xf]
  %v57 = vld [vmem:[%s1 + $0x6c] sm:$0xf]
  %v58 = vld [vmem:[%s1 + $0x70] sm:$0xf]
  %v59 = vld [vmem:[%s1 + $0x74] sm:$0xf]
  %v60 = vld [vmem:[%s1 + $0x78] sm:$0xf]
  %v61 = vld [vmem:[%s1 + $0x7c] sm:$0xf]
  %v62 = vld [vmem:[%s1 + $0x80] sm:$0xf]
  %v63 = vld [vmem:[%s1 + $0x84] sm:$0xf]
  %v64 = vld [vmem:[%s1 + $0x88] sm:$0xf]
  %v65 = vld [vmem:[%s1 + $0x8c] sm:$0xf]
  %v66 = vld [vmem:[%s1 + $0x90] sm:$0xf]
  %v67 = vld [vmem:[%s1 + $0x94] sm:$0xf]
  %v68 = vld [vmem:[%s1 + $0x98] sm:$0xf]
  %v69 = vld [vmem:[%s1 + $0x9c] sm:$0xf]
  %v70 = vld [vmem:[%s1 + $0xa0] sm:$0xf]
  %v71 = vld [vmem:[%s1 + $0xa4] sm:$0xf]
  %v72 = vld [vmem:[%s1 + $0xa8] sm:$0xf]
  %v73 = vld [vmem:[%s1 + $0xac] sm:$0xf]
  %v74 = vld [vmem:[%s1 + $0xb0] sm:$0xf]
  %v75 = vld [vmem:[%s1 + $0xb4] sm:$0xf]
  %v76 = vld [vmem:[%s1 + $0xb8] sm:$0xf]
  %v77 = vld [vmem:[%s1 + $0xbc] sm:$0xf]
  %v78 = vld [vmem:[%s1 + $0xc0] sm:$0xf]
  %v79 = vld [vmem:[%s1 + $0xc4] sm:$0xf]
  %v80 = vld [vmem:[%s1 + $0xc8] sm:$0xf]
  %v81 = vld [vmem:[%s1 + $0xcc] sm:$0xf]
  %v82 = vld [vmem:[%s1 + $0xd0] sm:$0xf]
  %v83 = vld [vmem:[%s1 + $0xd4] sm:$0xf]
  %v84 = vld [vmem:[%s1 + $0xd8] sm:$0xf]
  %v85 = vld [vmem:[%s1 + $0xdc] sm:$0xf]
  %v86 = vld [vmem:[%s1 + $0xe0] sm:$0xf]
  %v87 = vld [vmem:[%s1 + $0xe4] sm:$0xf]
  %v88 = vld [vmem:[%s1 + $0xe8] sm:$0xf]
  %v89 = vld [vmem:[%s1 + $0xec] sm:$0xf]
  %v90 = vld [vmem:[%s1 + $0xf0] sm:$0xf]
  %v91 = vld [vmem:[%s1 + $0xf4] sm:$0xf]
  %v92 = vld [vmem:[%s1 + $0xf8] sm:$0xf]
  %v93 = vld [vmem:[%s1 + $0xfc] sm:$0xf]
  %v94 = vld [vmem:[%s1 + $0x100] sm:$0xf]
  %v95 = vld [vmem:[%s1 + $0x104] sm:$0xf]
  %v96 = vld [vmem:[%s1 + $0x108] sm:$0xf]
  %v97 = vld [vmem:[%s1 + $0x10c] sm:$0xf]
  %v98 = vld [vmem:[%s1 + $0x110] sm:$0xf]
  %v99 = vld [vmem:[%s1 + $0x114] sm:$0xf]
  %v100 = vld [vmem:[%s1 + $0x118] sm:$0xf]
  %v101 = vld [vmem:[%s1 + $0x11c] sm:$0xf]
  %v102 = vld [vmem:[%s1 + $0x120] sm:$0xf]
  %v103 = vld [vmem:[%s1 + $0x124] sm:$0xf]
  %v104 = vld [vmem:[%s1 + $0x128] sm:$0xf]
  %v105 = vld [vmem:[%s1 + $0x12c] sm:$0xf]
  %v106 = vld [vmem:[%s1 + $0x130] sm:$0xf]
  %v107 = vld [vmem:[%s1 + $0x134] sm:$0xf]
  %v108 = vld [vmem:[%s1 + $0x138] sm:$0xf]
  %v109 = vld [vmem:[%s1 + $0x13c] sm:$0xf]
  %v110 = vld [vmem:[%s2] sm:$0x1]
  %v112 = vlaneseq
  %v113 = vshrl.u32 %v112, 7
  %v114 = vsub.s32 0, %v113
  %v115 = vrot.slane %v110, %v114
  %v129 = vunpack.c.l.b16 %v18
  %v130 = vunpack.c.h.b16 %v18
  %v131 = vunpack.c.l.b16 %v19
  %v132 = vunpack.c.h.b16 %v19
  %v133 = vunpack.c.l.b16 %v20
  %v134 = vunpack.c.l.b16 %v21
  %v135 = vunpack.c.h.b16 %v21
  %v136 = vunpack.c.l.b16 %v22
  %v137 = vunpack.c.h.b16 %v22
  %v138 = vunpack.c.l.b16 %v23
  %v139 = vunpack.c.l.b16 %v24
  %v140 = vunpack.c.h.b16 %v24
  %v141 = vunpack.c.l.b16 %v25
  %v142 = vunpack.c.h.b16 %v25
  %v143 = vunpack.c.l.b16 %v26
  %v144 = vunpack.c.l.b16 %v27
  %v145 = vunpack.c.h.b16 %v27
  %v146 = vunpack.c.l.b16 %v28
  %v147 = vunpack.c.h.b16 %v28
  %v148 = vunpack.c.l.b16 %v29
  %v149 = vpack.c.b16 %v134, %v129
  %v150 = vpack.c.b16 %v135, %v130
  %v151 = vpack.c.b16 %v136, %v131
  %v152 = vpack.c.b16 %v137, %v132
  %v153 = vpack.c.b16 %v138, %v133
  %v154 = vpack.c.b16 %v144, %v139
  %v155 = vpack.c.b16 %v145, %v140
  %v156 = vpack.c.b16 %v146, %v141
  %v157 = vpack.c.b16 %v147, %v142
  %v158 = vpack.c.b16 %v148, %v143
  %v249 = vunpack.c.l.b16 %v30
  %v250 = vunpack.c.l.b16 %v31
  %v251 = vunpack.c.l.b16 %v32
  %v252 = vunpack.c.l.b16 %v33
  %v253 = vunpack.c.l.b16 %v34
  %v254 = vunpack.c.l.b16 %v35
  %v255 = vunpack.c.l.b16 %v36
  %v256 = vunpack.c.l.b16 %v37
  %v257 = vunpack.c.l.b16 %v38
  %v258 = vunpack.c.l.b16 %v39
  %v259 = vunpack.c.l.b16 %v40
  %v260 = vunpack.c.l.b16 %v41
  %v261 = vunpack.c.l.b16 %v42
  %v262 = vunpack.c.l.b16 %v43
  %v263 = vunpack.c.l.b16 %v44
  %v264 = vunpack.c.l.b16 %v45
  %v265 = vunpack.c.l.b16 %v46
  %v266 = vunpack.c.l.b16 %v47
  %v267 = vunpack.c.l.b16 %v48
  %v268 = vunpack.c.l.b16 %v49
  %v269 = vunpack.c.l.b16 %v50
  %v270 = vunpack.c.l.b16 %v51
  %v271 = vunpack.c.l.b16 %v52
  %v272 = vunpack.c.l.b16 %v53
  %v273 = vunpack.c.l.b16 %v54
  %v274 = vunpack.c.l.b16 %v55
  %v275 = vunpack.c.l.b16 %v56
  %v276 = vunpack.c.l.b16 %v57
  %v277 = vunpack.c.l.b16 %v58
  %v278 = vunpack.c.l.b16 %v59
  %v279 = vunpack.c.l.b16 %v60
  %v280 = vunpack.c.l.b16 %v61
  %v281 = vunpack.c.l.b16 %v62
  %v282 = vunpack.c.l.b16 %v63
  %v283 = vunpack.c.l.b16 %v64
  %v284 = vunpack.c.l.b16 %v65
  %v285 = vunpack.c.l.b16 %v66
  %v286 = vunpack.c.l.b16 %v67
  %v287 = vunpack.c.l.b16 %v68
  %v288 = vunpack.c.l.b16 %v69
  %v289 = vunpack.c.l.b16 %v70
  %v290 = vunpack.c.l.b16 %v71
  %v291 = vunpack.c.l.b16 %v72
  %v292 = vunpack.c.l.b16 %v73
  %v293 = vunpack.c.l.b16 %v74
  %v294 = vunpack.c.l.b16 %v75
  %v295 = vunpack.c.l.b16 %v76
  %v296 = vunpack.c.l.b16 %v77
  %v297 = vunpack.c.l.b16 %v78
  %v298 = vunpack.c.l.b16 %v79
  %v299 = vunpack.c.l.b16 %v80
  %v300 = vunpack.c.l.b16 %v81
  %v301 = vunpack.c.l.b16 %v82
  %v302 = vunpack.c.l.b16 %v83
  %v303 = vunpack.c.l.b16 %v84
  %v304 = vunpack.c.l.b16 %v85
  %v305 = vunpack.c.l.b16 %v86
  %v306 = vunpack.c.l.b16 %v87
  %v307 = vunpack.c.l.b16 %v88
  %v308 = vunpack.c.l.b16 %v89
  %v309 = vunpack.c.l.b16 %v90
  %v310 = vunpack.c.l.b16 %v91
  %v311 = vunpack.c.l.b16 %v92
  %v312 = vunpack.c.l.b16 %v93
  %v313 = vunpack.c.l.b16 %v94
  %v314 = vunpack.c.l.b16 %v95
  %v315 = vunpack.c.l.b16 %v96
  %v316 = vunpack.c.l.b16 %v97
  %v317 = vunpack.c.l.b16 %v98
  %v318 = vunpack.c.l.b16 %v99
  %v319 = vunpack.c.l.b16 %v100
  %v320 = vunpack.c.l.b16 %v101
  %v321 = vunpack.c.l.b16 %v102
  %v322 = vunpack.c.l.b16 %v103
  %v323 = vunpack.c.l.b16 %v104
  %v324 = vunpack.c.l.b16 %v105
  %v325 = vunpack.c.l.b16 %v106
  %v326 = vunpack.c.l.b16 %v107
  %v327 = vunpack.c.l.b16 %v108
  %v328 = vunpack.c.l.b16 %v109
  %v329 = vpack.c.b16 %v250, %v249
  %v330 = vpack.c.b16 %v252, %v251
  %v331 = vpack.c.b16 %v254, %v253
  %v332 = vpack.c.b16 %v256, %v255
  %v333 = vpack.c.b16 %v258, %v257
  %v334 = vpack.c.b16 %v260, %v259
  %v335 = vpack.c.b16 %v262, %v261
  %v336 = vpack.c.b16 %v264, %v263
  %v337 = vpack.c.b16 %v266, %v265
  %v338 = vpack.c.b16 %v268, %v267
  %v339 = vpack.c.b16 %v270, %v269
  %v340 = vpack.c.b16 %v272, %v271
  %v341 = vpack.c.b16 %v274, %v273
  %v342 = vpack.c.b16 %v276, %v275
  %v343 = vpack.c.b16 %v278, %v277
  %v344 = vpack.c.b16 %v280, %v279
  %v345 = vpack.c.b16 %v282, %v281
  %v346 = vpack.c.b16 %v284, %v283
  %v347 = vpack.c.b16 %v286, %v285
  %v348 = vpack.c.b16 %v288, %v287
  %v349 = vpack.c.b16 %v290, %v289
  %v350 = vpack.c.b16 %v292, %v291
  %v351 = vpack.c.b16 %v294, %v293
  %v352 = vpack.c.b16 %v296, %v295
  %v353 = vpack.c.b16 %v298, %v297
  %v354 = vpack.c.b16 %v300, %v299
  %v355 = vpack.c.b16 %v302, %v301
  %v356 = vpack.c.b16 %v304, %v303
  %v357 = vpack.c.b16 %v306, %v305
  %v358 = vpack.c.b16 %v308, %v307
  %v359 = vpack.c.b16 %v310, %v309
  %v360 = vpack.c.b16 %v312, %v311
  %v361 = vpack.c.b16 %v314, %v313
  %v362 = vpack.c.b16 %v316, %v315
  %v363 = vpack.c.b16 %v318, %v317
  %v364 = vpack.c.b16 %v320, %v319
  %v365 = vpack.c.b16 %v322, %v321
  %v366 = vpack.c.b16 %v324, %v323
  %v367 = vpack.c.b16 %v326, %v325
  %v368 = vpack.c.b16 %v328, %v327
  %409 = vmatprep.subr.bf16.mxu0 0
  %410 = vmatpush1.bf16.msra.mxu0 %v329
  %411 = vmatprep.subr.bf16.mxu0 0
  %412 = vmatpush1.bf16.msra.mxu0 %v330
  %413 = vmatprep.subr.bf16.mxu0 0
  %414 = vmatpush1.bf16.msra.mxu0 %v331
  %415 = vmatprep.subr.bf16.mxu0 0
  %416 = vmatpush1.bf16.msra.mxu0 %v332
  %417 = vmatprep.subr.bf16.mxu0 0
  %418 = vmatpush1.bf16.msra.mxu0 %v333
  %419 = vmatprep.subr.bf16.mxu0 0
  %420 = vmatpush1.bf16.msra.mxu0 %v334
  %421 = vmatprep.subr.bf16.mxu0 0
  %422 = vmatpush1.bf16.msra.mxu0 %v335
  %423 = vmatprep.subr.bf16.mxu0 0
  %424 = vmatpush1.bf16.msra.mxu0 %v336
  %425 = vmatprep.subr.bf16.mxu0 0
  %426 = vmatpush1.bf16.msra.mxu0 %v337
  %427 = vmatprep.subr.bf16.mxu0 0
  %428 = vmatpush1.bf16.msra.mxu0 %v338
  %429 = vmatprep.subr.bf16.mxu0 0
  %430 = vmatpush1.bf16.msra.mxu0 %v339
  %431 = vmatprep.subr.bf16.mxu0 0
  %432 = vmatpush1.bf16.msra.mxu0 %v340
  %433 = vmatprep.subr.bf16.mxu0 0
  %434 = vmatpush1.bf16.msra.mxu0 %v341
  %435 = vmatprep.subr.bf16.mxu0 0
  %436 = vmatpush1.bf16.msra.mxu0 %v342
  %437 = vmatprep.subr.bf16.mxu0 0
  %438 = vmatpush1.bf16.msra.mxu0 %v343
  %439 = vmatprep.subr.bf16.mxu0 0
  %440 = vmatpush1.bf16.msra.mxu0 %v344
  %441 = vmatprep.mubr.bf16.mxu0 %v150
  %442 = vmatmul.mubr.bf16.gmra.mrb[0].mxu0 %v149
  %v443 = vpop.f32.mrb[0].mxu0
  %v444 = vadd.f32 %v115, %v443
  %v445 = vpop.f32.mrb[0].mxu0
  %v446 = vpop.f32.mrb[0].mxu0
  %v447 = vadd.f32 %v115, %v446
  %v448 = vpop.f32.mrb[0].mxu0
  %449 = vmatprep.mubr.bf16.mxu0 %v155
  %450 = vmatmul.mubr.bf16.gmra.mrb[0].mxu0 %v154
  %v451 = vpop.f32.mrb[0].mxu0
  %v452 = vadd.f32 %v115, %v451
  %v453 = vpop.f32.mrb[0].mxu0
  %v454 = vpop.f32.mrb[0].mxu0
  %v455 = vadd.f32 %v115, %v454
  %v456 = vpop.f32.mrb[0].mxu0
  %457 = vdwg.mxu0
  %458 = vmatprep.subr.bf16.mxu0 0
  %459 = vmatpush1.bf16.msra.mxu0 %v345
  %460 = vmatprep.subr.bf16.mxu0 0
  %461 = vmatpush1.bf16.msra.mxu0 %v346
  %462 = vmatprep.subr.bf16.mxu0 0
  %463 = vmatpush1.bf16.msra.mxu0 %v347
  %464 = vmatprep.subr.bf16.mxu0 0
  %465 = vmatpush1.bf16.msra.mxu0 %v348
  %466 = vmatprep.subr.bf16.mxu0 0
  %467 = vmatpush1.bf16.msra.mxu0 %v349
  %468 = vmatprep.subr.bf16.mxu0 0
  %469 = vmatpush1.bf16.msra.mxu0 %v350
  %470 = vmatprep.subr.bf16.mxu0 0
  %471 = vmatpush1.bf16.msra.mxu0 %v351
  %472 = vmatprep.subr.bf16.mxu0 0
  %473 = vmatpush1.bf16.msra.mxu0 %v352
  %474 = vmatprep.subr.bf16.mxu0 0
  %475 = vmatpush1.bf16.msra.mxu0 %v353
  %476 = vmatprep.subr.bf16.mxu0 0
  %477 = vmatpush1.bf16.msra.mxu0 %v354
  %478 = vmatprep.subr.bf16.mxu0 0
  %479 = vmatpush1.bf16.msra.mxu0 %v355
  %480 = vmatprep.subr.bf16.mxu0 0
  %481 = vmatpush1.bf16.msra.mxu0 %v356
  %482 = vmatprep.subr.bf16.mxu0 0
  %483 = vmatpush1.bf16.msra.mxu0 %v357
  %484 = vmatprep.subr.bf16.mxu0 0
  %485 = vmatpush1.bf16.msra.mxu0 %v358
  %486 = vmatprep.subr.bf16.mxu0 0
  %487 = vmatpush1.bf16.msra.mxu0 %v359
  %488 = vmatprep.subr.bf16.mxu0 0
  %489 = vmatpush1.bf16.msra.mxu0 %v360
  %490 = vmatprep.mubr.bf16.mxu0 %v152
  %491 = vmatmul.mubr.bf16.gmra.mrb[0].mxu0 %v151
  %v492 = vpop.f32.mrb[0].mxu0
  %v493 = vadd.f32 %v444, %v492
  %v494 = vpop.f32.mrb[0].mxu0
  %v495 = vpop.f32.mrb[0].mxu0
  %v496 = vadd.f32 %v447, %v495
  %v497 = vpop.f32.mrb[0].mxu0
  %498 = vmatprep.mubr.bf16.mxu0 %v157
  %499 = vmatmul.mubr.bf16.gmra.mrb[0].mxu0 %v156
  %v500 = vpop.f32.mrb[0].mxu0
  %v501 = vadd.f32 %v452, %v500
  %v502 = vpop.f32.mrb[0].mxu0
  %v503 = vpop.f32.mrb[0].mxu0
  %v504 = vadd.f32 %v455, %v503
  %v505 = vpop.f32.mrb[0].mxu0
  %506 = vdwg.mxu0
  %507 = vmatprep.subr.bf16.mxu0 0
  %508 = vmatpush1.bf16.msra.mxu0 %v361
  %509 = vmatprep.subr.bf16.mxu0 0
  %510 = vmatpush1.bf16.msra.mxu0 %v362
  %511 = vmatprep.subr.bf16.mxu0 0
  %512 = vmatpush1.bf16.msra.mxu0 %v363
  %513 = vmatprep.subr.bf16.mxu0 0
  %514 = vmatpush1.bf16.msra.mxu0 %v364
  %515 = vmatprep.subr.bf16.mxu0 0
  %516 = vmatpush1.bf16.msra.mxu0 %v365
  %517 = vmatprep.subr.bf16.mxu0 0
  %518 = vmatpush1.bf16.msra.mxu0 %v366
  %519 = vmatprep.subr.bf16.mxu0 0
  %520 = vmatpush1.bf16.msra.mxu0 %v367
  %521 = vmatprep.subr.bf16.mxu0 0
  %522 = vmatpush1.bf16.msra.mxu0 %v368
  %523 = vmatprep.subr.bf16.mxu0 0
  %524 = vmatpush1.bf16.msra.mxu0 0
  %525 = vmatprep.subr.bf16.mxu0 0
  %526 = vmatpush1.bf16.msra.mxu0 0
  %527 = vmatprep.subr.bf16.mxu0 0
  %528 = vmatpush1.bf16.msra.mxu0 0
  %529 = vmatprep.subr.bf16.mxu0 0
  %530 = vmatpush1.bf16.msra.mxu0 0
  %531 = vmatprep.subr.bf16.mxu0 0
  %532 = vmatpush1.bf16.msra.mxu0 0
  %533 = vmatprep.subr.bf16.mxu0 0
  %534 = vmatpush1.bf16.msra.mxu0 0
  %535 = vmatprep.subr.bf16.mxu0 0
  %536 = vmatpush1.bf16.msra.mxu0 0
  %537 = vmatprep.subr.bf16.mxu0 0
  %538 = vmatpush1.bf16.msra.mxu0 0
  %539 = vmatprep.mubr.bf16.mxu0 0
  %540 = vmatmul.mubr.bf16.gmra.mrb[0].mxu0 %v153
  %v541 = vpop.f32.mrb[0].mxu0
  %v542 = vadd.f32 %v493, %v541
  %v543 = vpop.f32.mrb[0].mxu0
  %v544 = vpop.f32.mrb[0].mxu0
  %v545 = vadd.f32 %v496, %v544
  %v546 = vpop.f32.mrb[0].mxu0
  %547 = vmatprep.mubr.bf16.mxu0 0
  %548 = vmatmul.mubr.bf16.gmra.mrb[0].mxu0 %v158
  %v549 = vpop.f32.mrb[0].mxu0
  %v550 = vadd.f32 %v501, %v549
  %v551 = vpop.f32.mrb[0].mxu0
  %v552 = vpop.f32.mrb[0].mxu0
  %v553 = vadd.f32 %v504, %v552
  %v554 = vpop.f32.mrb[0].mxu0
  %555 = vdwg.mxu0
  %556 = vst [vmem:[%s3] sm:$0xff] %v542
  %557 = vst [vmem:[%s3 + $0x8] sm:$0xff] %v545
  %558 = vst [vmem:[%s3 + $0x10] sm:$0xff] %v550
  %559 = vst [vmem:[%s3 + $0x18] sm:$0xff] %v553
  %v560 = vlaneseq
  %v561 = vshrl.u32 %v560, 7
  %v562 = vadd.s32 %v561, 8
  %v563 = vadd.s32 %v561, 16
  %v564 = vadd.s32 %v561, 24
  %s565 = smul.u32 0, 32
  %v566 = vstv %s565
  %v567 = vadd.s32 %v561, %v566
  %v568 = vadd.s32 %v562, %v566
  %v569 = vadd.s32 %v563, %v566
  %v570 = vadd.s32 %v564, %v566
  %vm571 = vcmp.lt.s32.totalorder %v567, 32
  %vm572 = vcmp.lt.s32.totalorder %v568, 32
  %vm573 = vcmp.lt.s32.totalorder %v569, 32
  %vm574 = vcmp.lt.s32.totalorder %v570, 32
  %v575 = vsel %vm571, 1, 0
  %v576 = vsel %vm572, 1, 0
  %v577 = vsel %vm573, 1, 0
  %v578 = vsel %vm574, 1, 0
  %vm579 = vcmp.eq.s32.totalorder %v575, 1
  %vm580 = vcmp.eq.s32.totalorder %v576, 1
  %vm581 = vcmp.eq.s32.totalorder %v577, 1
  %vm582 = vcmp.eq.s32.totalorder %v578, 1
  %v583 = vsel %vm579, %v542, 0.0
  %v584 = vsel %vm580, %v545, 0.0
  %v585 = vsel %vm581, %v550, 0.0
  %v586 = vsel %vm582, %v553, 0.0
  %p587 = scmp.eq.s32.totalorder 0, 0
  // Predicated region
  $region14: #{_lambda_.32} parent=0 // pred_check
    %p588 = pneg %p587
  $region15: #{_lambda_.32} parent=0 // pred_check_branch
    %590 = sbr.rel (%p588) target = $region17
  $region16: #{_lambda_.32} parent=0 // pred_region
    %591 = vst [vmem:[%s4] sm:$0x1] 0.0
    %592 = vst [vmem:[%s5] sm:$0x1] 0.0
  $region17: #{_lambda_.32} parent=0 // pred_fallthru
    _
  %v593 = vld [vmem:[%s4] sm:$0x1]
  %v594 = vadd.f32 %v583, %v584
  %v595 = vadd.f32 %v594, %v585
  %v596 = vadd.f32 %v595, %v586
  %v597 = vrot.slane %v596, 4
  %v598 = vadd.f32 %v596, %v597
  %v599 = vrot.slane %v598, 2
  %v600 = vadd.f32 %v598, %v599
  %v601 = vrot.slane %v600, 1
  %v602 = vadd.f32 %v600, %v601
  %v603 = vadd.f32 %v593, %v602
  %604 = vst [vmem:[%s4] sm:$0x1] %v603
  %v605 = vld [vmem:[%s5] sm:$0x1]
  %v606 = vmul.f32 %v583, %v583
  %v607 = vmul.f32 %v584, %v584
  %v608 = vmul.f32 %v585, %v585
  %v609 = vmul.f32 %v586, %v586
  %v610 = vadd.f32 %v606, %v607
  %v611 = vadd.f32 %v610, %v608
  %v612 = vadd.f32 %v611, %v609
  %v613 = vrot.slane %v612, 4
  %v614 = vadd.f32 %v612, %v613
  %v615 = vrot.slane %v614, 2
  %v616 = vadd.f32 %v614, %v615
  %v617 = vrot.slane %v616, 1
  %v618 = vadd.f32 %v616, %v617
  %v619 = vadd.f32 %v605, %v618
  %620 = vst [vmem:[%s5] sm:$0x1] %v619
  // Predicated region
  $region18: #{_lambda_.32} parent=0 // pred_check
    _
  $region19: #{_lambda_.32} parent=0 // pred_check_branch
    %622 = sbr.rel (0) target = $region21
  $region20: #{_lambda_.32} parent=0 // pred_region
    _
  $region21: #{_lambda_.32} parent=0 // pred_fallthru
    _
  // Predicated region
  $region22: #{_lambda_.32} parent=0 // pred_check
    _
  $region23: #{_lambda_.32} parent=0 // pred_check_branch
    %624 = sbr.rel (0) target = $region25
  $region24: #{_lambda_.32} parent=0 // pred_region
    _
  $region25: #{_lambda_.32} parent=0 // pred_fallthru
    _
  // Predicated region
  $region26: #{_lambda_.32} parent=0 // pred_check
    _
  $region27: #{_lambda_.32} parent=0 // pred_check_branch
    %626 = sbr.rel (0) target = $region29
  $region28: #{_lambda_.32} parent=0 // pred_region
    _
  $region29: #{_lambda_.32} parent=0 // pred_fallthru
    _
  // Predicated region
  $region30: #{_lambda_.32} parent=0 // pred_check
    _
  $region31: #{_lambda_.32} parent=0 // pred_check_branch
    %628 = sbr.rel (0) target = $region33
  $region32: #{_lambda_.32} parent=0 // pred_region
    _
  $region33: #{_lambda_.32} parent=0 // pred_fallthru
    _
  // Predicated region
  $region34: #{_lambda_.32} parent=0 // pred_check
    _
  $region35: #{_lambda_.32} parent=0 // pred_check_branch
    %630 = sbr.rel (0) target = $region37
  $region36: #{_lambda_.32} parent=0 // pred_region
    _
  $region37: #{_lambda_.32} parent=0 // pred_fallthru
    _
  // Predicated region
  $region38: #{_lambda_.32} parent=0 // pred_check
    _
  $region39: #{_lambda_.32} parent=0 // pred_check_branch
    %632 = sbr.rel (0) target = $region41
  $region40: #{_lambda_.32} parent=0 // pred_region
    _
  $region41: #{_lambda_.32} parent=0 // pred_fallthru
    _

// kernel: _lambda_.34
$region0: #{_lambda_.34}
  #allocation0 [shape = 'u32[]', space=smem, size = 0x4, offset = 0x4, fixed_abs, tag = 'smem constant byte address 0x4 - core index']
  #allocation1 [shape = 'u32[144,128]{1,0:T(1,128)}', space=vmem, size = 0x12000, scoped, tag = 'internal scratch']
  #allocation2 [shape = 'f32[1,1]{1,0:T(1,128)S(6)}', space=smem, size = 0x200, scoped, tag = 'scoped memory for _lambda_.34']
  %s0 = inlined_call_operand.vmem [shape: bf16[2,16,128], index: 0, kind: input, shape index: {}]
  %s1 = inlined_call_operand.vmem [shape: bf16[128,384], index: 1, kind: input, shape index: {}]
  %s2 = inlined_call_operand.vmem [shape: f32[1,384], index: 2, kind: input, shape index: {}]
  %s3 = inlined_call_operand.<no memory space> [shape: f32[1,1], index: 3, kind: input, shape index: {}]
  %s4 = inlined_call_operand.vmem [shape: bf16[2,16,128], index: 4, kind: output, shape index: {}]
  %s5 = sld [smem:[#allocation0]]
  $region49: #{_lambda_.34} parent=0
    _
  %s7 = ssub.s32 1, %s5
  %s8 = scalar_select 0, %s7, %s5
  %9 = sst [smem:[#allocation2]] %s3
  loop: start=0, step=1, limit=4
  $region2: #{_lambda_.34} parent=0 // loop_pre_header
    _
  $region3: #{_lambda_.34} parent=0 // loop_header
    %s11 = sphi 0, %s15
    %p12 = scmp.ge.s32.totalorder %s11, 4
    %s21 = sphi 0, %s23
    %s24 = sphi 0, %s21
    %s25 = sphi 0, %s24
    %s41 = sphi 0, %s25
    %s45 = sphi 0, %s45
    %s47 = sphi 0, %s45
    %s48 = sphi 0, %s47
    %s62 = sphi 0, %s48
    %s66 = sphi 0, %s66
    %s68 = sphi 0, %s66
    %s69 = sphi 0, %s68
    %s83 = sphi 0, %s69
    %s87 = sphi 0, %s87
    %s89 = sphi 0, %s87
    %s90 = sphi 0, %s89
    %s104 = sphi 0, %s90
    %s110 = sphi 0, %s112
    %s113 = sphi 0, %s110
    %s114 = sphi 0, %s113
    %s130 = sphi 0, %s114
  $region4: #{_lambda_.34} parent=0 // loop_header_branch
    %14 = sbr.rel (%p12) target = $region8
  $region5: #{_lambda_.34} parent=0 // loop_body
    %s16 = ssub.s32 %s11, 1
    %s17 = ssub.s32 %s11, 2
    %s18 = sadd.s32 %s11, 1
    %s19 = ssub.s32 %s11, %s18
    %p20 = scmp.eq.s32.totalorder %s19, 0
    %s22 = sadd.s32 %s21, 1
    %s23 = scalar_select %p20, %s21, %s22
    %p26 = pneg %p20
    %p27 = scmp.eq.s32.totalorder %s11, 1
    %p28 = por %p26, %p27
    %p29 = scmp.ne.s32.totalorder %s21, %s24
    %p30 = scmp.eq.s32.totalorder %s11, 0
    %p31 = por %p29, %p30
    %p32 = scmp.ne.s32.totalorder %s21, %s24
    %p33 = scmp.eq.s32.totalorder %s16, 1
    %p34 = por %p32, %p33
    %p35 = scmp.ne.s32.totalorder %s24, %s25
    %p36 = scmp.eq.s32.totalorder %s16, 0
    %p37 = por %p35, %p36
    %p38 = scmp.ne.s32.totalorder %s24, %s25
    %p39 = scmp.eq.s32.totalorder %s17, 1
    %p40 = por %p38, %p39
    %p42 = scmp.ne.s32.totalorder %s25, %s41
    %p43 = scmp.eq.s32.totalorder %s17, 0
    %p44 = por %p42, %p43
    %s46 = sadd.s32 %s45, 1
    %p49 = scmp.eq.s32.totalorder %s11, 1
    %p50 = scmp.ne.s32.totalorder %s45, %s47
    %p51 = scmp.eq.s32.totalorder %s11, 0
    %p52 = por %p50, %p51
    %p53 = scmp.ne.s32.totalorder %s45, %s47
    %p54 = scmp.eq.s32.totalorder %s16, 1
    %p55 = por %p53, %p54
    %p56 = scmp.ne.s32.totalorder %s47, %s48
    %p57 = scmp.eq.s32.totalorder %s16, 0
    %p58 = por %p56, %p57
    %p59 = scmp.ne.s32.totalorder %s47, %s48
    %p60 = scmp.eq.s32.totalorder %s17, 1
    %p61 = por %p59, %p60
    %p63 = scmp.ne.s32.totalorder %s48, %s62
    %p64 = scmp.eq.s32.totalorder %s17, 0
    %p65 = por %p63, %p64
    %s67 = sadd.s32 %s66, 1
    %p70 = scmp.eq.s32.totalorder %s11, 1
    %p71 = scmp.ne.s32.totalorder %s66, %s68
    %p72 = scmp.eq.s32.totalorder %s11, 0
    %p73 = por %p71, %p72
    %p74 = scmp.ne.s32.totalorder %s66, %s68
    %p75 = scmp.eq.s32.totalorder %s16, 1
    %p76 = por %p74, %p75
    %p77 = scmp.ne.s32.totalorder %s68, %s69
    %p78 = scmp.eq.s32.totalorder %s16, 0
    %p79 = por %p77, %p78
    %p80 = scmp.ne.s32.totalorder %s68, %s69
    %p81 = scmp.eq.s32.totalorder %s17, 1
    %p82 = por %p80, %p81
    %p84 = scmp.ne.s32.totalorder %s69, %s83
    %p85 = scmp.eq.s32.totalorder %s17, 0
    %p86 = por %p84, %p85
    %s88 = sadd.s32 %s87, 1
    %p91 = scmp.eq.s32.totalorder %s11, 1
    %p92 = scmp.ne.s32.totalorder %s87, %s89
    %p93 = scmp.eq.s32.totalorder %s11, 0
    %p94 = por %p92, %p93
    %p95 = scmp.ne.s32.totalorder %s87, %s89
    %p96 = scmp.eq.s32.totalorder %s16, 1
    %p97 = por %p95, %p96
    %p98 = scmp.ne.s32.totalorder %s89, %s90
    %p99 = scmp.eq.s32.totalorder %s16, 0
    %p100 = por %p98, %p99
    %p101 = scmp.ne.s32.totalorder %s89, %s90
    %p102 = scmp.eq.s32.totalorder %s17, 1
    %p103 = por %p101, %p102
    %p105 = scmp.ne.s32.totalorder %s90, %s104
    %p106 = scmp.eq.s32.totalorder %s17, 0
    %p107 = por %p105, %p106
    %s108 = ssub.s32 %s11, %s18
    %p109 = scmp.eq.s32.totalorder %s108, 0
    %s111 = sadd.s32 %s110, 1
    %s112 = scalar_select %p109, %s110, %s111
    %p115 = pneg %p109
    %p116 = scmp.eq.s32.totalorder %s11, 1
    %p117 = por %p115, %p116
    %p118 = scmp.ne.s32.totalorder %s110, %s113
    %p119 = scmp.eq.s32.totalorder %s11, 0
    %p120 = por %p118, %p119
    %p121 = scmp.ne.s32.totalorder %s110, %s113
    %p122 = scmp.eq.s32.totalorder %s16, 1
    %p123 = por %p121, %p122
    %p124 = scmp.ne.s32.totalorder %s113, %s114
    %p125 = scmp.eq.s32.totalorder %s16, 0
    %p126 = por %p124, %p125
    %p127 = scmp.ne.s32.totalorder %s113, %s114
    %p128 = scmp.eq.s32.totalorder %s17, 1
    %p129 = por %p127, %p128
    %p131 = scmp.ne.s32.totalorder %s114, %s130
    %p132 = scmp.eq.s32.totalorder %s17, 0
    %p133 = por %p131, %p132
    %p134 = scmp.le.s32.totalorder 1, %s11
    %p135 = scmp.lt.s32.totalorder %s11, 3
    %p136 = pnand %p134, %p135
    %p137 = pneg %p136
    // Predicated region
    $region9: #{_lambda_.34} parent=5 // pred_check
      _
    $region10: #{_lambda_.34} parent=5 // pred_check_branch
      %139 = sbr.rel (%p136) target = $region12
    $region11: #{_lambda_.34} parent=5 // pred_region
      %s140 = ssub.s32 %s11, 1
      // Predicated region
      $region13: #{_lambda_.34} parent=11 // pred_check
        %p141 = pneg %p58
      $region14: #{_lambda_.34} parent=11 // pred_check_branch
        %143 = sbr.rel (%p141) target = $region16
      $region15: #{_lambda_.34} parent=11 // pred_region
        _
      $region16: #{_lambda_.34} parent=11 // pred_fallthru
        _
      // Predicated region
      $region17: #{_lambda_.34} parent=11 // pred_check
        %p144 = pneg %p79
      $region18: #{_lambda_.34} parent=11 // pred_check_branch
        %146 = sbr.rel (%p144) target = $region20
      $region19: #{_lambda_.34} parent=11 // pred_region
        _
      $region20: #{_lambda_.34} parent=11 // pred_fallthru
        _
      // Predicated region
      $region21: #{_lambda_.34} parent=11 // pred_check
        %p147 = pneg %p100
      $region22: #{_lambda_.34} parent=11 // pred_check_branch
        %149 = sbr.rel (%p147) target = $region24
      $region23: #{_lambda_.34} parent=11 // pred_region
        _
      $region24: #{_lambda_.34} parent=11 // pred_fallthru
        _
    $region12: #{_lambda_.34} parent=5 // pred_fallthru
      _
    %p150 = scmp.lt.s32.totalorder %s11, 2
    // Predicated region
    $region25: #{_lambda_.34} parent=5 // pred_check
      %p151 = pneg %p150
    $region26: #{_lambda_.34} parent=5 // pred_check_branch
      %153 = sbr.rel (%p151) target = $region28
    $region27: #{_lambda_.34} parent=5 // pred_region
      // Predicated region
      $region29: #{_lambda_.34} parent=27 // pred_check
        %p154 = pneg %p31
      $region30: #{_lambda_.34} parent=27 // pred_check_branch
        %156 = sbr.rel (%p154) target = $region32
      $region31: #{_lambda_.34} parent=27 // pred_region
        %p157 = scmp.lt.s32.totalorder %s11, 1
        %s158 = scalar_select %p157, %s11, 1
        %s159 = smul.addr %s158, 2
        %s160 = smul.addr %s159, 4
        %s161 = scalar_lea.vmem %s0, %s160
      $region32: #{_lambda_.34} parent=27 // pred_fallthru
        _
    $region28: #{_lambda_.34} parent=5 // pred_fallthru
      _
    %p162 = scmp.le.s32.totalorder 1, %s11
    %p163 = scmp.lt.s32.totalorder %s11, 3
    %p164 = pnand %p162, %p163
    %p165 = pneg %p164
    // Predicated region
    $region33: #{_lambda_.34} parent=5 // pred_check
      _
    $region34: #{_lambda_.34} parent=5 // pred_check_branch
      %167 = sbr.rel (%p164) target = $region36
    $region35: #{_lambda_.34} parent=5 // pred_region
      %s168 = ssub.s32 %s11, 1
      %p169 = scmp.lt.s32.totalorder %s16, 1
      %s170 = scalar_select %p169, %s16, 1
      %s171 = smul.addr %s170, 2
      %s172 = smul.addr %s171, 4
      %s173 = scalar_lea.vmem %s0, %s172
      %p174 = pneg %p37
      %p175 = pneg %p34
      %p176 = pneg %p58
      %p177 = pneg %p55
      %p178 = pneg %p79
      %p179 = pneg %p76
      %p180 = pneg %p100
      %p181 = pneg %p97
      %p182 = pneg %p126
      %p183 = pneg %p123
      %p184 = scmp.lt.s32.totalorder %s16, 1
      %s185 = scalar_select %p184, %s16, 1
      %s186 = smul.addr %s185, 2
      %s187 = smul.addr %s186, 4
      %s188 = scalar_lea.vmem %s4, %s187
      %p189 = scmp.lt.s32.totalorder %s16, 1
      %s190 = scalar_select %p189, %s16, 1
      %s191 = smul.addr %s190, 2
      %s192 = smul.addr %s191, 4
      %s193 = scalar_lea.vmem %s0, %s192
      %p194 = scmp.lt.s32.totalorder %s16, 1
      %s195 = scalar_select %p194, %s16, 1
      %s196 = smul.addr %s195, 2
      %s197 = smul.addr %s196, 4
      %s198 = scalar_lea.vmem %s4, %s197
      %v200 = vld [vmem:[%s193] sm:$0xf]
      %v201 = vld [vmem:[%s193 + $0x4] sm:$0xf]
      %v202 = vld [vmem:[%s1] sm:$0xff]
      %v203 = vld [vmem:[%s1 + $0x8] sm:$0xf]
      %v204 = vld [vmem:[%s1 + $0xc] sm:$0xff]
      %v205 = vld [vmem:[%s1 + $0x14] sm:$0xf]
      %v206 = vld [vmem:[%s1 + $0x18] sm:$0xff]
      %v207 = vld [vmem:[%s1 + $0x20] sm:$0xf]
      %v208 = vld [vmem:[%s1 + $0x24] sm:$0xff]
      %v209 = vld [vmem:[%s1 + $0x2c] sm:$0xf]
      %v210 = vld [vmem:[%s1 + $0x30] sm:$0xff]
      %v211 = vld [vmem:[%s1 + $0x38] sm:$0xf]
      %v212 = vld [vmem:[%s1 + $0x3c] sm:$0xff]
      %v213 = vld [vmem:[%s1 + $0x44] sm:$0xf]
      %v214 = vld [vmem:[%s1 + $0x48] sm:$0xff]
      %v215 = vld [vmem:[%s1 + $0x50] sm:$0xf]
      %v216 = vld [vmem:[%s1 + $0x54] sm:$0xff]
      %v217 = vld [vmem:[%s1 + $0x5c] sm:$0xf]
      %v218 = vld [vmem:[%s1 + $0x60] sm:$0xff]
      %v219 = vld [vmem:[%s1 + $0x68] sm:$0xf]
      %v220 = vld [vmem:[%s1 + $0x6c] sm:$0xff]
      %v221 = vld [vmem:[%s1 + $0x74] sm:$0xf]
      %v222 = vld [vmem:[%s1 + $0x78] sm:$0xff]
      %v223 = vld [vmem:[%s1 + $0x80] sm:$0xf]
      %v224 = vld [vmem:[%s1 + $0x84] sm:$0xff]
      %v225 = vld [vmem:[%s1 + $0x8c] sm:$0xf]
      %v226 = vld [vmem:[%s1 + $0x90] sm:$0xff]
      %v227 = vld [vmem:[%s1 + $0x98] sm:$0xf]
      %v228 = vld [vmem:[%s1 + $0x9c] sm:$0xff]
      %v229 = vld [vmem:[%s1 + $0xa4] sm:$0xf]
      %v230 = vld [vmem:[%s1 + $0xa8] sm:$0xff]
      %v231 = vld [vmem:[%s1 + $0xb0] sm:$0xf]
      %v232 = vld [vmem:[%s1 + $0xb4] sm:$0xff]
      %v233 = vld [vmem:[%s1 + $0xbc] sm:$0xf]
      %v234 = vld [vmem:[%s2] sm:$0x7]
      %v236 = vlaneseq
      %v237 = vshrl.u32 %v236, 7
      %v238 = vsub.s32 0, %v237
      %v239 = vrot.slane %v234, %v238
      %v240 = vlaneseq
      %v241 = vshrl.u32 %v240, 7
      %v242 = vsub.s32 1, %v241
      %v243 = vrot.slane %v234, %v242
      %v244 = vlaneseq
      %v245 = vshrl.u32 %v244, 7
      %v246 = vsub.s32 2, %v245
      %v247 = vrot.slane %v234, %v246
      %v253 = vunpack.c.l.b16 %v200
      %v254 = vunpack.c.l.b16 %v201
      %v255 = vpack.c.b16 %v254, %v253
      %v289 = vunpack.c.l.b16 %v202
      %v290 = vunpack.c.h.b16 %v202
      %v291 = vunpack.c.l.b16 %v203
      %v292 = vunpack.c.l.b16 %v204
      %v293 = vunpack.c.h.b16 %v204
      %v294 = vunpack.c.l.b16 %v205
      %v295 = vunpack.c.l.b16 %v206
      %v296 = vunpack.c.h.b16 %v206
      %v297 = vunpack.c.l.b16 %v207
      %v298 = vunpack.c.l.b16 %v208
      %v299 = vunpack.c.h.b16 %v208
      %v300 = vunpack.c.l.b16 %v209
      %v301 = vunpack.c.l.b16 %v210
      %v302 = vunpack.c.h.b16 %v210
      %v303 = vunpack.c.l.b16 %v211
      %v304 = vunpack.c.l.b16 %v212
      %v305 = vunpack.c.h.b16 %v212
      %v306 = vunpack.c.l.b16 %v213
      %v307 = vunpack.c.l.b16 %v214
      %v308 = vunpack.c.h.b16 %v214
      %v309 = vunpack.c.l.b16 %v215
      %v310 = vunpack.c.l.b16 %v216
      %v311 = vunpack.c.h.b16 %v216
      %v312 = vunpack.c.l.b16 %v217
      %v313 = vunpack.c.l.b16 %v218
      %v314 = vunpack.c.h.b16 %v218
      %v315 = vunpack.c.l.b16 %v219
      %v316 = vunpack.c.l.b16 %v220
      %v317 = vunpack.c.h.b16 %v220
      %v318 = vunpack.c.l.b16 %v221
      %v319 = vunpack.c.l.b16 %v222
      %v320 = vunpack.c.h.b16 %v222
      %v321 = vunpack.c.l.b16 %v223
      %v322 = vunpack.c.l.b16 %v224
      %v323 = vunpack.c.h.b16 %v224
      %v324 = vunpack.c.l.b16 %v225
      %v325 = vunpack.c.l.b16 %v226
      %v326 = vunpack.c.h.b16 %v226
      %v327 = vunpack.c.l.b16 %v227
      %v328 = vunpack.c.l.b16 %v228
      %v329 = vunpack.c.h.b16 %v228
      %v330 = vunpack.c.l.b16 %v229
      %v331 = vunpack.c.l.b16 %v230
      %v332 = vunpack.c.h.b16 %v230
      %v333 = vunpack.c.l.b16 %v231
      %v334 = vunpack.c.l.b16 %v232
      %v335 = vunpack.c.h.b16 %v232
      %v336 = vunpack.c.l.b16 %v233
      %v337 = vpack.c.b16 %v292, %v289
      %v338 = vpack.c.b16 %v293, %v290
      %v339 = vpack.c.b16 %v294, %v291
      %v340 = vpack.c.b16 %v298, %v295
      %v341 = vpack.c.b16 %v299, %v296
      %v342 = vpack.c.b16 %v300, %v297
      %v343 = vpack.c.b16 %v304, %v301
      %v344 = vpack.c.b16 %v305, %v302
      %v345 = vpack.c.b16 %v306, %v303
      %v346 = vpack.c.b16 %v310, %v307
      %v347 = vpack.c.b16 %v311, %v308
      %v348 = vpack.c.b16 %v312, %v309
      %v349 = vpack.c.b16 %v316, %v313
      %v350 = vpack.c.b16 %v317, %v314
      %v351 = vpack.c.b16 %v318, %v315
      %v352 = vpack.c.b16 %v322, %v319
      %v353 = vpack.c.b16 %v323, %v320
      %v354 = vpack.c.b16 %v324, %v321
      %v355 = vpack.c.b16 %v328, %v325
      %v356 = vpack.c.b16 %v329, %v326
      %v357 = vpack.c.b16 %v330, %v327
      %v358 = vpack.c.b16 %v334, %v331
      %v359 = vpack.c.b16 %v335, %v332
      %v360 = vpack.c.b16 %v336, %v333
      %385 = vmatprep.subr.bf16.mxu0 %v338
      %386 = vmatpush1.bf16.msra.mxu0 %v337
      %387 = vmatprep.subr.bf16.mxu0 %v341
      %388 = vmatpush1.bf16.msra.mxu0 %v340
      %389 = vmatprep.subr.bf16.mxu0 %v344
      %390 = vmatpush1.bf16.msra.mxu0 %v343
      %391 = vmatprep.subr.bf16.mxu0 %v347
      %392 = vmatpush1.bf16.msra.mxu0 %v346
      %393 = vmatprep.subr.bf16.mxu0 %v350
      %394 = vmatpush1.bf16.msra.mxu0 %v349
      %395 = vmatprep.subr.bf16.mxu0 %v353
      %396 = vmatpush1.bf16.msra.mxu0 %v352
      %397 = vmatprep.subr.bf16.mxu0 %v356
      %398 = vmatpush1.bf16.msra.mxu0 %v355
      %399 = vmatprep.subr.bf16.mxu0 %v359
      %400 = vmatpush1.bf16.msra.mxu0 %v358
      %401 = vmatprep.subr.bf16.mxu0 0
      %402 = vmatpush1.bf16.msra.mxu0 0
      %403 = vmatprep.subr.bf16.mxu0 0
      %404 = vmatpush1.bf16.msra.mxu0 0
      %405 = vmatprep.subr.bf16.mxu0 0
      %406 = vmatpush1.bf16.msra.mxu0 0
      %407 = vmatprep.subr.bf16.mxu0 0
      %408 = vmatpush1.bf16.msra.mxu0 0
      %409 = vmatprep.subr.bf16.mxu0 0
      %410 = vmatpush1.bf16.msra.mxu0 0
      %411 = vmatprep.subr.bf16.mxu0 0
      %412 = vmatpush1.bf16.msra.mxu0 0
      %413 = vmatprep.subr.bf16.mxu0 0
      %414 = vmatpush1.bf16.msra.mxu0 0
      %415 = vmatprep.subr.bf16.mxu0 0
      %416 = vmatpush1.bf16.msra.mxu0 0
      %417 = vmatprep.mubr.bf16.mxu0 0
      %418 = vmatmul.mubr.bf16.gmra.mrb[0].mxu0 %v255
      %v419 = vpop.f32.mrb[0].mxu0
      %v420 = vadd.f32 %v239, %v419
      %v421 = vpop.f32.mrb[0].mxu0
      %v422 = vadd.f32 %v243, %v421
      %v423 = vpop.f32.mrb[0].mxu0
      %v424 = vadd.f32 %v239, %v423
      %v425 = vpop.f32.mrb[0].mxu0
      %v426 = vadd.f32 %v243, %v425
      %427 = vdwg.mxu0
      %428 = vmatprep.subr.bf16.mxu0 0
      %429 = vmatpush1.bf16.msra.mxu0 %v339
      %430 = vmatprep.subr.bf16.mxu0 0
      %431 = vmatpush1.bf16.msra.mxu0 %v342
      %432 = vmatprep.subr.bf16.mxu0 0
      %433 = vmatpush1.bf16.msra.mxu0 %v345
      %434 = vmatprep.subr.bf16.mxu0 0
      %435 = vmatpush1.bf16.msra.mxu0 %v348
      %436 = vmatprep.subr.bf16.mxu0 0
      %437 = vmatpush1.bf16.msra.mxu0 %v351
      %438 = vmatprep.subr.bf16.mxu0 0
      %439 = vmatpush1.bf16.msra.mxu0 %v354
      %440 = vmatprep.subr.bf16.mxu0 0
      %441 = vmatpush1.bf16.msra.mxu0 %v357
      %442 = vmatprep.subr.bf16.mxu0 0
      %443 = vmatpush1.bf16.msra.mxu0 %v360
      %444 = vmatprep.subr.bf16.mxu0 0
      %445 = vmatpush1.bf16.msra.mxu0 0
      %446 = vmatprep.subr.bf16.mxu0 0
      %447 = vmatpush1.bf16.msra.mxu0 0
      %448 = vmatprep.subr.bf16.mxu0 0
      %449 = vmatpush1.bf16.msra.mxu0 0
      %450 = vmatprep.subr.bf16.mxu0 0
      %451 = vmatpush1.bf16.msra.mxu0 0
      %452 = vmatprep.subr.bf16.mxu0 0
      %453 = vmatpush1.bf16.msra.mxu0 0
      %454 = vmatprep.subr.bf16.mxu0 0
      %455 = vmatpush1.bf16.msra.mxu0 0
      %456 = vmatprep.subr.bf16.mxu0 0
      %457 = vmatpush1.bf16.msra.mxu0 0
      %458 = vmatprep.subr.bf16.mxu0 0
      %459 = vmatpush1.bf16.msra.mxu0 0
      %460 = vmatprep.mubr.bf16.mxu0 0
      %461 = vmatmul.mubr.bf16.gmra.mrb[0].mxu0 %v255
      %v462 = vpop.f32.mrb[0].mxu0
      %v463 = vadd.f32 %v247, %v462
      %v464 = vpop.f32.mrb[0].mxu0
      %v465 = vpop.f32.mrb[0].mxu0
      %v466 = vadd.f32 %v247, %v465
      %v467 = vpop.f32.mrb[0].mxu0
      %468 = vdwg.mxu0
      %v469 = vpack.c.bf16 %v424, %v420
      %v470 = vpack.c.bf16 %v426, %v422
      %v471 = vpack.c.bf16 %v466, %v463
      %472 = vmatprep.subr.bf16.mxu0 0
      %473 = vmatpush1.bf16.xpose.msra.mxu0 %v470
      %474 = vmatprep.subr.bf16.mxu0 0
      %475 = vmatpush1.bf16.xpose.msra.mxu0 0
      %476 = vmatprep.subr.bf16.mxu0 0
      %477 = vmatpush1.bf16.xpose.msra.mxu0 0
      %478 = vmatprep.subr.bf16.mxu0 0
      %479 = vmatpush1.bf16.xpose.msra.mxu0 0
      %480 = vmatprep.subr.bf16.mxu0 0
      %481 = vmatpush1.bf16.xpose.msra.mxu0 0
      %482 = vmatprep.subr.bf16.mxu0 0
      %483 = vmatpush1.bf16.xpose.msra.mxu0 0
      %484 = vmatprep.subr.bf16.mxu0 0
      %485 = vmatpush1.bf16.xpose.msra.mxu0 0
      %486 = vmatprep.subr.bf16.mxu0 0
      %487 = vmatpush1.bf16.xpose.msra.mxu0 0
      %488 = vmatprep.subr.bf16.mxu0 0
      %489 = vmatpush1.bf16.xpose.msra.mxu0 0
      %490 = vmatprep.subr.bf16.mxu0 0
      %491 = vmatpush1.bf16.xpose.msra.mxu0 0
      %492 = vmatprep.subr.bf16.mxu0 0
      %493 = vmatpush1.bf16.xpose.msra.mxu0 0
      %494 = vmatprep.subr.bf16.mxu0 0
      %495 = vmatpush1.bf16.xpose.msra.mxu0 0
      %496 = vmatprep.subr.bf16.mxu0 0
      %497 = vmatpush1.bf16.xpose.msra.mxu0 0
      %498 = vmatprep.subr.bf16.mxu0 0
      %499 = vmatpush1.bf16.xpose.msra.mxu0 0
      %500 = vmatprep.subr.bf16.mxu0 0
      %501 = vmatpush1.bf16.xpose.msra.mxu0 0
      %502 = vmatprep.subr.bf16.mxu0 0
      %503 = vmatpush1.bf16.xpose.msra.mxu0 0
      %504 = vmatprep.mubr.bf16.mxu0 0
      %505 = vmatmul.mubr.bf16.gmra.mrb[0].mxu0 %v469
      %v506 = vpop.f32.mrb[0].mxu0
      %v507 = vadd.f32 0.0, %v506
      %v508 = vpop.f32.mrb[0].mxu0
      %v509 = vpop.f32.mrb[0].mxu0
      %v510 = vadd.f32 0.0, %v509
      %v511 = vpop.f32.mrb[0].mxu0
      %512 = vdwg.mxu0
      %vm513 = vcmask 130048
      %v514 = vsel %vm513, %v507, -inf
      %515 = vmax.xlane.f32.xlu0 %v514
      %v516 = vpop.xlane.xlu0 %515
      %v517 = vsel %vm513, %v510, -inf
      %518 = vmax.xlane.f32.xlu0 %v517
      %v519 = vpop.xlane.xlu0 %518
      %v520 = vsub.f32 %v507, %v516
      %v521 = vsub.f32 %v510, %v519
      %v522 = vmul.f32 %v520, 1.442695
      %v523 = vpow.pop %v522
      %v524 = vmul.f32 %v521, 1.442695
      %v525 = vpow.pop %v524
      %v526 = vsel %vm513, %v523, 0.0
      %527 = vadd.xlane.f32.xlu0 %v526
      %v528 = vpop.xlane.xlu0 %527
      %v529 = vsel %vm513, %v525, 0.0
      %530 = vadd.xlane.f32.xlu0 %v529
      %v531 = vpop.xlane.xlu0 %530
      %v532 = vrcp.pop %v528
      %v533 = vrcp.pop %v531
      %v534 = vmul.f32 %v523, %v532
      %v535 = vmul.f32 %v525, %v533
      %v536 = vpack.c.bf16 %v535, %v534
      %v538 = vsel %vm513, %v536, 0
      %540 = vmatprep.subr.bf16.mxu0 0
      %541 = vmatpush1.bf16.msra.mxu0 %v471
      %542 = vmatprep.subr.bf16.mxu0 0
      %543 = vmatpush1.bf16.msra.mxu0 0
      %544 = vmatprep.subr.bf16.mxu0 0
      %545 = vmatpush1.bf16.msra.mxu0 0
      %546 = vmatprep.subr.bf16.mxu0 0
      %547 = vmatpush1.bf16.msra.mxu0 0
      %548 = vmatprep.subr.bf16.mxu0 0
      %549 = vmatpush1.bf16.msra.mxu0 0
      %550 = vmatprep.subr.bf16.mxu0 0
      %551 = vmatpush1.bf16.msra.mxu0 0
      %552 = vmatprep.subr.bf16.mxu0 0
      %553 = vmatpush1.bf16.msra.mxu0 0
      %554 = vmatprep.subr.bf16.mxu0 0
      %555 = vmatpush1.bf16.msra.mxu0 0
      %556 = vmatprep.subr.bf16.mxu0 0
      %557 = vmatpush1.bf16.msra.mxu0 0
      %558 = vmatprep.subr.bf16.mxu0 0
      %559 = vmatpush1.bf16.msra.mxu0 0
      %560 = vmatprep.subr.bf16.mxu0 0
      %561 = vmatpush1.bf16.msra.mxu0 0
      %562 = vmatprep.subr.bf16.mxu0 0
      %563 = vmatpush1.bf16.msra.mxu0 0
      %564 = vmatprep.subr.bf16.mxu0 0
      %565 = vmatpush1.bf16.msra.mxu0 0
      %566 = vmatprep.subr.bf16.mxu0 0
      %567 = vmatpush1.bf16.msra.mxu0 0
      %568 = vmatprep.subr.bf16.mxu0 0
      %569 = vmatpush1.bf16.msra.mxu0 0
      %570 = vmatprep.subr.bf16.mxu0 0
      %571 = vmatpush1.bf16.msra.mxu0 0
      %572 = vmatprep.mubr.bf16.mxu0 0
      %573 = vmatmul.mubr.bf16.gmra.mrb[0].mxu0 %v538
      %v574 = vpop.f32.mrb[0].mxu0
      %v575 = vadd.f32 0.0, %v574
      %v576 = vpop.f32.mrb[0].mxu0
      %v577 = vpop.f32.mrb[0].mxu0
      %v578 = vadd.f32 0.0, %v577
      %v579 = vpop.f32.mrb[0].mxu0
      %580 = vdwg.mxu0
      %s581 = sld [smem:[#allocation2]]
      %v582 = vstv %s581
      %v583 = vmul.f32 %v582, %v575
      %v584 = vmul.f32 %v582, %v578
      %v585 = vunpack.c.l.bf16 %v200
      %v586 = vunpack.c.l.bf16 %v201
      %v587 = vadd.f32 %v583, %v585
      %v588 = vadd.f32 %v584, %v586
      %v589 = vpack.c.bf16 %v588, %v587
      %v591 = vunpack.c.l.b16 %v589
      %v592 = vunpack.c.h.b16 %v589
      %v593 = vpack.c.b16 %v591, %v591
      %v594 = vpack.c.b16 %v592, %v592
      %597 = vst [vmem:[%s198] sm:$0xf] %v593
      %598 = vst [vmem:[%s198 + $0x4] sm:$0xf] %v594
      %p599 = scmp.lt.s32.totalorder %s16, 1
      %s600 = scalar_select %p599, %s16, 1
      %s601 = smul.addr %s600, 2
      %s602 = smul.addr %s601, 4
      %s603 = scalar_lea.vmem %s4, %s602
      // Predicated region
      $region37: #{_lambda_.34} parent=35 // pred_check
        %p604 = pneg %p123
      $region38: #{_lambda_.34} parent=35 // pred_check_branch
        %606 = sbr.rel (%p604) target = $region40
      $region39: #{_lambda_.34} parent=35 // pred_region
        _
      $region40: #{_lambda_.34} parent=35 // pred_fallthru
        _
    $region36: #{_lambda_.34} parent=5 // pred_fallthru
      _
    %p607 = scmp.le.s32.totalorder 2, %s11
    // Predicated region
    $region41: #{_lambda_.34} parent=5 // pred_check
      %p608 = pneg %p607
    $region42: #{_lambda_.34} parent=5 // pred_check_branch
      %610 = sbr.rel (%p608) target = $region44
    $region43: #{_lambda_.34} parent=5 // pred_region
      %s611 = ssub.s32 %s11, 2
      // Predicated region
      $region45: #{_lambda_.34} parent=43 // pred_check
        %p612 = pneg %p129
      $region46: #{_lambda_.34} parent=43 // pred_check_branch
        %614 = sbr.rel (%p612) target = $region48
      $region47: #{_lambda_.34} parent=43 // pred_region
        %p615 = scmp.lt.s32.totalorder %s17, 1
        %s616 = scalar_select %p615, %s17, 1
        %s617 = smul.addr %s616, 2
        %s618 = smul.addr %s617, 4
        %s619 = scalar_lea.vmem %s4, %s618
      $region48: #{_lambda_.34} parent=43 // pred_fallthru
        _
    $region44: #{_lambda_.34} parent=5 // pred_fallthru
      _
  $region6: #{_lambda_.34} parent=0 // loop_footer
    %s15 = sadd.s32 1, %s11
  $region7: #{_lambda_.34} parent=0 // loop_footer_branch
    %10 = sbr.rel target = $region3
  $region8: #{_lambda_.34} parent=0 // loop_exit
    _

// kernel: _lambda_.35
$region0: #{_lambda_.35}
  #allocation0 [shape = 'u32[]', space=smem, size = 0x4, offset = 0x4, fixed_abs, tag = 'smem constant byte address 0x4 - core index']
  #allocation1 [shape = 'u32[144,128]{1,0:T(1,128)}', space=vmem, size = 0x12000, scoped, tag = 'internal scratch']
  %s0 = inlined_call_operand.vmem [shape: bf16[32,128], index: 0, kind: input, shape index: {}]
  %s1 = inlined_call_operand.vmem [shape: bf16[128,128], index: 1, kind: input, shape index: {}]
  %s2 = inlined_call_operand.vmem [shape: f32[1,128], index: 2, kind: input, shape index: {}]
  %s3 = inlined_call_operand.vmem [shape: bf16[32,128], index: 3, kind: output, shape index: {}]
  %s4 = sld [smem:[#allocation0]]
  $region22: #{_lambda_.35} parent=0
    _
  %s6 = ssub.s32 1, %s4
  %s7 = scalar_select 0, %s6, %s4
  // Predicated region
  $region2: #{_lambda_.35} parent=0 // pred_check
    _
  $region3: #{_lambda_.35} parent=0 // pred_check_branch
    %9 = sbr.rel (0) target = $region5
  $region4: #{_lambda_.35} parent=0 // pred_region
    _
  $region5: #{_lambda_.35} parent=0 // pred_fallthru
    _
  // Predicated region
  $region6: #{_lambda_.35} parent=0 // pred_check
    _
  $region7: #{_lambda_.35} parent=0 // pred_check_branch
    %11 = sbr.rel (0) target = $region9
  $region8: #{_lambda_.35} parent=0 // pred_region
    _
  $region9: #{_lambda_.35} parent=0 // pred_fallthru
    _
  // Predicated region
  $region10: #{_lambda_.35} parent=0 // pred_check
    _
  $region11: #{_lambda_.35} parent=0 // pred_check_branch
    %13 = sbr.rel (0) target = $region13
  $region12: #{_lambda_.35} parent=0 // pred_region
    _
  $region13: #{_lambda_.35} parent=0 // pred_fallthru
    _
  %v15 = vld [vmem:[%s0] sm:$0xf]
  %v16 = vld [vmem:[%s0 + $0x4] sm:$0xf]
  %v17 = vld [vmem:[%s0 + $0x8] sm:$0xf]
  %v18 = vld [vmem:[%s0 + $0xc] sm:$0xf]
  %v19 = vld [vmem:[%s1] sm:$0xf]
  %v20 = vld [vmem:[%s1 + $0x4] sm:$0xf]
  %v21 = vld [vmem:[%s1 + $0x8] sm:$0xf]
  %v22 = vld [vmem:[%s1 + $0xc] sm:$0xf]
  %v23 = vld [vmem:[%s1 + $0x10] sm:$0xf]
  %v24 = vld [vmem:[%s1 + $0x14] sm:$0xf]
  %v25 = vld [vmem:[%s1 + $0x18] sm:$0xf]
  %v26 = vld [vmem:[%s1 + $0x1c] sm:$0xf]
  %v27 = vld [vmem:[%s1 + $0x20] sm:$0xf]
  %v28 = vld [vmem:[%s1 + $0x24] sm:$0xf]
  %v29 = vld [vmem:[%s1 + $0x28] sm:$0xf]
  %v30 = vld [vmem:[%s1 + $0x2c] sm:$0xf]
  %v31 = vld [vmem:[%s1 + $0x30] sm:$0xf]
  %v32 = vld [vmem:[%s1 + $0x34] sm:$0xf]
  %v33 = vld [vmem:[%s1 + $0x38] sm:$0xf]
  %v34 = vld [vmem:[%s1 + $0x3c] sm:$0xf]
  %v35 = vld [vmem:[%s2] sm:$0x1]
  %v37 = vlaneseq
  %v38 = vshrl.u32 %v37, 7
  %v39 = vsub.s32 0, %v38
  %v40 = vrot.slane %v35, %v39
  %v46 = vunpack.c.l.b16 %v15
  %v47 = vunpack.c.l.b16 %v16
  %v48 = vunpack.c.l.b16 %v17
  %v49 = vunpack.c.l.b16 %v18
  %v50 = vpack.c.b16 %v47, %v46
  %v51 = vpack.c.b16 %v49, %v48
  %v70 = vunpack.c.l.b16 %v19
  %v71 = vunpack.c.l.b16 %v20
  %v72 = vunpack.c.l.b16 %v21
  %v73 = vunpack.c.l.b16 %v22
  %v74 = vunpack.c.l.b16 %v23
  %v75 = vunpack.c.l.b16 %v24
  %v76 = vunpack.c.l.b16 %v25
  %v77 = vunpack.c.l.b16 %v26
  %v78 = vunpack.c.l.b16 %v27
  %v79 = vunpack.c.l.b16 %v28
  %v80 = vunpack.c.l.b16 %v29
  %v81 = vunpack.c.l.b16 %v30
  %v82 = vunpack.c.l.b16 %v31
  %v83 = vunpack.c.l.b16 %v32
  %v84 = vunpack.c.l.b16 %v33
  %v85 = vunpack.c.l.b16 %v34
  %v86 = vpack.c.b16 %v71, %v70
  %v87 = vpack.c.b16 %v73, %v72
  %v88 = vpack.c.b16 %v75, %v74
  %v89 = vpack.c.b16 %v77, %v76
  %v90 = vpack.c.b16 %v79, %v78
  %v91 = vpack.c.b16 %v81, %v80
  %v92 = vpack.c.b16 %v83, %v82
  %v93 = vpack.c.b16 %v85, %v84
  %102 = vmatprep.subr.bf16.mxu0 0
  %103 = vmatpush1.bf16.msra.mxu0 %v86
  %104 = vmatprep.subr.bf16.mxu0 0
  %105 = vmatpush1.bf16.msra.mxu0 %v87
  %106 = vmatprep.subr.bf16.mxu0 0
  %107 = vmatpush1.bf16.msra.mxu0 %v88
  %108 = vmatprep.subr.bf16.mxu0 0
  %109 = vmatpush1.bf16.msra.mxu0 %v89
  %110 = vmatprep.subr.bf16.mxu0 0
  %111 = vmatpush1.bf16.msra.mxu0 %v90
  %112 = vmatprep.subr.bf16.mxu0 0
  %113 = vmatpush1.bf16.msra.mxu0 %v91
  %114 = vmatprep.subr.bf16.mxu0 0
  %115 = vmatpush1.bf16.msra.mxu0 %v92
  %116 = vmatprep.subr.bf16.mxu0 0
  %117 = vmatpush1.bf16.msra.mxu0 %v93
  %118 = vmatprep.subr.bf16.mxu0 0
  %119 = vmatpush1.bf16.msra.mxu0 0
  %120 = vmatprep.subr.bf16.mxu0 0
  %121 = vmatpush1.bf16.msra.mxu0 0
  %122 = vmatprep.subr.bf16.mxu0 0
  %123 = vmatpush1.bf16.msra.mxu0 0
  %124 = vmatprep.subr.bf16.mxu0 0
  %125 = vmatpush1.bf16.msra.mxu0 0
  %126 = vmatprep.subr.bf16.mxu0 0
  %127 = vmatpush1.bf16.msra.mxu0 0
  %128 = vmatprep.subr.bf16.mxu0 0
  %129 = vmatpush1.bf16.msra.mxu0 0
  %130 = vmatprep.subr.bf16.mxu0 0
  %131 = vmatpush1.bf16.msra.mxu0 0
  %132 = vmatprep.subr.bf16.mxu0 0
  %133 = vmatpush1.bf16.msra.mxu0 0
  %134 = vmatprep.mubr.bf16.mxu0 0
  %135 = vmatmul.mubr.bf16.gmra.mrb[0].mxu0 %v50
  %v136 = vpop.f32.mrb[0].mxu0
  %v137 = vadd.f32 %v40, %v136
  %v138 = vpop.f32.mrb[0].mxu0
  %v139 = vpop.f32.mrb[0].mxu0
  %v140 = vadd.f32 %v40, %v139
  %v141 = vpop.f32.mrb[0].mxu0
  %142 = vmatprep.mubr.bf16.mxu0 0
  %143 = vmatmul.mubr.bf16.gmra.mrb[0].mxu0 %v51
  %v144 = vpop.f32.mrb[0].mxu0
  %v145 = vadd.f32 %v40, %v144
  %v146 = vpop.f32.mrb[0].mxu0
  %v147 = vpop.f32.mrb[0].mxu0
  %v148 = vadd.f32 %v40, %v147
  %v149 = vpop.f32.mrb[0].mxu0
  %150 = vdwg.mxu0
  %v151 = vpack.c.bf16 %v140, %v137
  %v152 = vpack.c.bf16 %v148, %v145
  %v155 = vunpack.c.l.b16 %v151
  %v156 = vunpack.c.h.b16 %v151
  %v157 = vunpack.c.l.b16 %v152
  %v158 = vunpack.c.h.b16 %v152
  %v159 = vpack.c.b16 %v155, %v155
  %v160 = vpack.c.b16 %v156, %v156
  %v161 = vpack.c.b16 %v157, %v157
  %v162 = vpack.c.b16 %v158, %v158
  %167 = vst [vmem:[%s3] sm:$0xf] %v159
  %168 = vst [vmem:[%s3 + $0x4] sm:$0xf] %v160
  %169 = vst [vmem:[%s3 + $0x8] sm:$0xf] %v161
  %170 = vst [vmem:[%s3 + $0xc] sm:$0xf] %v162
  // Predicated region
  $region14: #{_lambda_.35} parent=0 // pred_check
    _
  $region15: #{_lambda_.35} parent=0 // pred_check_branch
    %172 = sbr.rel (0) target = $region17
  $region16: #{_lambda_.35} parent=0 // pred_region
    _
  $region17: #{_lambda_.35} parent=0 // pred_fallthru
    _
  // Predicated region
  $region18: #{_lambda_.35} parent=0 // pred_check
    _
  $region19: #{_lambda_.35} parent=0 // pred_check_branch
    %174 = sbr.rel (0) target = $region21
  $region20: #{_lambda_.35} parent=0 // pred_region
    _
  $region21: #{_lambda_.35} parent=0 // pred_fallthru
    _

// kernel: tile.18
$region0: #{tile.18}
  #allocation0 [shape = 's32[1]{0}', space=sflag, size = 0x4, scoped, tag = 'scoped memory for tile.18']
  %s0 = inlined_call_operand.vmem [shape: f32[16], index: 0, kind: input, shape index: {}]
  %s1 = inlined_call_operand.vmem [shape: f32[4,16], index: 1, kind: output, shape index: {}]
  // Predicated region
  $region2: #{tile.18} parent=0 // pred_check
    _
  $region3: #{tile.18} parent=0 // pred_check_branch
    %3 = sbr.rel (0) target = $region5
  $region4: #{tile.18} parent=0 // pred_region
    _
  $region5: #{tile.18} parent=0 // pred_fallthru
    _
  %v4 = vld [vmem:[%s0] ss:$0 sm:$0xff]
  %5 = vst [vmem:[%s1] sm:$0xf] %v4

// kernel: tile.19
$region0: #{tile.19}
  %s0 = inlined_call_operand.vmem [shape: f32[4,16], index: 0, kind: input, shape index: {}]
  %s1 = inlined_call_operand.vmem [shape: f32[64], index: 1, kind: output, shape index: {}]
  $region1: #{tile.19} parent=0
    #allocation0 [shape = 'u8[4096]{0}', space=vmem, size = 0x1000, scoped, tag = 'scoped mem for output reshape']
    #allocation1 [shape = 'u8[4096]{0}', space=vmem, size = 0x1000, scoped, tag = 'scoped mem for input reshape']
    %s3 = sshllo.u32 0, 4
    %v4 = vld [vmem:[%s0] sm:%s3]
    %5 = vst [vmem:[#allocation1] sm:%s3] %v4
    %v6 = vld [vmem:[#allocation1] sm:$0x1]
    %vm7 = vcmask 130048
    %8 = vst.msk [vmem:[#allocation0] sm:$0x1] %vm7, %v6
    %s9 = scalar_lea.vmem [#allocation1], 3
    %v10 = vld [vmem:[%s9] sm:$0x1]
    %11 = vrot.lane.b32.xlu0 %v10, 48
    %v12 = vpop.permute.xlu0 %11
    %vm13 = vcmask 523648
    %14 = vst.msk [vmem:[#allocation0] sm:$0x1] %vm13, %v12
    %s15 = scalar_lea.vmem [#allocation1], 2
    %v16 = vld [vmem:[%s15] sm:$0x1]
    %17 = vrot.lane.b32.xlu0 %v16, 32
    %v18 = vpop.permute.xlu0 %17
    %vm19 = vcmask 392448
    %20 = vst.msk [vmem:[#allocation0] sm:$0x1] %vm19, %v18
    %s21 = scalar_lea.vmem [#allocation1], 1
    %v22 = vld [vmem:[%s21] sm:$0x1]
    %23 = vrot.lane.b32.xlu0 %v22, 16
    %v24 = vpop.permute.xlu0 %23
    %vm25 = vcmask 261248
    %26 = vst.msk [vmem:[#allocation0] sm:$0x1] %vm25, %v24
    %s28 = sshllo.u32 0, 1
    %v30 = vld [vmem:[#allocation0] sm:%s28]
    %s31 = sshllo.u32 0, 1
    %32 = vst [vmem:[%s1] sm:%s31] %v30

// kernel: _lambda_.42
$region0: #{_lambda_.42}
  #allocation0 [shape = 'u32[]', space=smem, size = 0x4, offset = 0x4, fixed_abs, tag = 'smem constant byte address 0x4 - core index']
  #allocation1 [shape = 'u32[144,128]{1,0:T(1,128)}', space=vmem, size = 0x12000, scoped, tag = 'internal scratch']
  %s0 = inlined_call_operand.vmem [shape: bf16[128,128], index: 0, kind: input, shape index: {}]
  %s1 = inlined_call_operand.vmem [shape: bf16[128,128], index: 1, kind: input, shape index: {}]
  %s2 = inlined_call_operand.vmem [shape: f32[1,128], index: 2, kind: input, shape index: {}]
  %s3 = inlined_call_operand.vmem [shape: bf16[128,128], index: 3, kind: output, shape index: {}]
  %s4 = sld [smem:[#allocation0]]
  $region22: #{_lambda_.42} parent=0
    _
  %s6 = ssub.s32 1, %s4
  %s7 = scalar_select 0, %s6, %s4
  // Predicated region
  $region2: #{_lambda_.42} parent=0 // pred_check
    _
  $region3: #{_lambda_.42} parent=0 // pred_check_branch
    %9 = sbr.rel (0) target = $region5
  $region4: #{_lambda_.42} parent=0 // pred_region
    _
  $region5: #{_lambda_.42} parent=0 // pred_fallthru
    _
  // Predicated region
  $region6: #{_lambda_.42} parent=0 // pred_check
    _
  $region7: #{_lambda_.42} parent=0 // pred_check_branch
    %11 = sbr.rel (0) target = $region9
  $region8: #{_lambda_.42} parent=0 // pred_region
    _
  $region9: #{_lambda_.42} parent=0 // pred_fallthru
    _
  // Predicated region
  $region10: #{_lambda_.42} parent=0 // pred_check
    _
  $region11: #{_lambda_.42} parent=0 // pred_check_branch
    %13 = sbr.rel (0) target = $region13
  $region12: #{_lambda_.42} parent=0 // pred_region
    _
  $region13: #{_lambda_.42} parent=0 // pred_fallthru
    _
  %v15 = vld [vmem:[%s0] sm:$0xf]
  %v16 = vld [vmem:[%s0 + $0x4] sm:$0xf]
  %v17 = vld [vmem:[%s0 + $0x8] sm:$0xf]
  %v18 = vld [vmem:[%s0 + $0xc] sm:$0xf]
  %v19 = vld [vmem:[%s0 + $0x10] sm:$0xf]
  %v20 = vld [vmem:[%s0 + $0x14] sm:$0xf]
  %v21 = vld [vmem:[%s0 + $0x18] sm:$0xf]
  %v22 = vld [vmem:[%s0 + $0x1c] sm:$0xf]
  %v23 = vld [vmem:[%s0 + $0x20] sm:$0xf]
  %v24 = vld [vmem:[%s0 + $0x24] sm:$0xf]
  %v25 = vld [vmem:[%s0 + $0x28] sm:$0xf]
  %v26 = vld [vmem:[%s0 + $0x2c] sm:$0xf]
  %v27 = vld [vmem:[%s0 + $0x30] sm:$0xf]
  %v28 = vld [vmem:[%s0 + $0x34] sm:$0xf]
  %v29 = vld [vmem:[%s0 + $0x38] sm:$0xf]
  %v30 = vld [vmem:[%s0 + $0x3c] sm:$0xf]
  %v31 = vld [vmem:[%s1] sm:$0xf]
  %v32 = vld [vmem:[%s1 + $0x4] sm:$0xf]
  %v33 = vld [vmem:[%s1 + $0x8] sm:$0xf]
  %v34 = vld [vmem:[%s1 + $0xc] sm:$0xf]
  %v35 = vld [vmem:[%s1 + $0x10] sm:$0xf]
  %v36 = vld [vmem:[%s1 + $0x14] sm:$0xf]
  %v37 = vld [vmem:[%s1 + $0x18] sm:$0xf]
  %v38 = vld [vmem:[%s1 + $0x1c] sm:$0xf]
  %v39 = vld [vmem:[%s1 + $0x20] sm:$0xf]
  %v40 = vld [vmem:[%s1 + $0x24] sm:$0xf]
  %v41 = vld [vmem:[%s1 + $0x28] sm:$0xf]
  %v42 = vld [vmem:[%s1 + $0x2c] sm:$0xf]
  %v43 = vld [vmem:[%s1 + $0x30] sm:$0xf]
  %v44 = vld [vmem:[%s1 + $0x34] sm:$0xf]
  %v45 = vld [vmem:[%s1 + $0x38] sm:$0xf]
  %v46 = vld [vmem:[%s1 + $0x3c] sm:$0xf]
  %v47 = vld [vmem:[%s2] sm:$0x1]
  %v49 = vlaneseq
  %v50 = vshrl.u32 %v49, 7
  %v51 = vsub.s32 0, %v50
  %v52 = vrot.slane %v47, %v51
  %v70 = vunpack.c.l.b16 %v15
  %v71 = vunpack.c.l.b16 %v16
  %v72 = vunpack.c.l.b16 %v17
  %v73 = vunpack.c.l.b16 %v18
  %v74 = vunpack.c.l.b16 %v19
  %v75 = vunpack.c.l.b16 %v20
  %v76 = vunpack.c.l.b16 %v21
  %v77 = vunpack.c.l.b16 %v22
  %v78 = vunpack.c.l.b16 %v23
  %v79 = vunpack.c.l.b16 %v24
  %v80 = vunpack.c.l.b16 %v25
  %v81 = vunpack.c.l.b16 %v26
  %v82 = vunpack.c.l.b16 %v27
  %v83 = vunpack.c.l.b16 %v28
  %v84 = vunpack.c.l.b16 %v29
  %v85 = vunpack.c.l.b16 %v30
  %v86 = vpack.c.b16 %v71, %v70
  %v87 = vpack.c.b16 %v73, %v72
  %v88 = vpack.c.b16 %v75, %v74
  %v89 = vpack.c.b16 %v77, %v76
  %v90 = vpack.c.b16 %v79, %v78
  %v91 = vpack.c.b16 %v81, %v80
  %v92 = vpack.c.b16 %v83, %v82
  %v93 = vpack.c.b16 %v85, %v84
  %v118 = vunpack.c.l.b16 %v31
  %v119 = vunpack.c.l.b16 %v32
  %v120 = vunpack.c.l.b16 %v33
  %v121 = vunpack.c.l.b16 %v34
  %v122 = vunpack.c.l.b16 %v35
  %v123 = vunpack.c.l.b16 %v36
  %v124 = vunpack.c.l.b16 %v37
  %v125 = vunpack.c.l.b16 %v38
  %v126 = vunpack.c.l.b16 %v39
  %v127 = vunpack.c.l.b16 %v40
  %v128 = vunpack.c.l.b16 %v41
  %v129 = vunpack.c.l.b16 %v42
  %v130 = vunpack.c.l.b16 %v43
  %v131 = vunpack.c.l.b16 %v44
  %v132 = vunpack.c.l.b16 %v45
  %v133 = vunpack.c.l.b16 %v46
  %v134 = vpack.c.b16 %v119, %v118
  %v135 = vpack.c.b16 %v121, %v120
  %v136 = vpack.c.b16 %v123, %v122
  %v137 = vpack.c.b16 %v125, %v124
  %v138 = vpack.c.b16 %v127, %v126
  %v139 = vpack.c.b16 %v129, %v128
  %v140 = vpack.c.b16 %v131, %v130
  %v141 = vpack.c.b16 %v133, %v132
  %150 = vmatprep.subr.bf16.mxu0 0
  %151 = vmatpush1.bf16.msra.mxu0 %v134
  %152 = vmatprep.subr.bf16.mxu0 0
  %153 = vmatpush1.bf16.msra.mxu0 %v135
  %154 = vmatprep.subr.bf16.mxu0 0
  %155 = vmatpush1.bf16.msra.mxu0 %v136
  %156 = vmatprep.subr.bf16.mxu0 0
  %157 = vmatpush1.bf16.msra.mxu0 %v137
  %158 = vmatprep.subr.bf16.mxu0 0
  %159 = vmatpush1.bf16.msra.mxu0 %v138
  %160 = vmatprep.subr.bf16.mxu0 0
  %161 = vmatpush1.bf16.msra.mxu0 %v139
  %162 = vmatprep.subr.bf16.mxu0 0
  %163 = vmatpush1.bf16.msra.mxu0 %v140
  %164 = vmatprep.subr.bf16.mxu0 0
  %165 = vmatpush1.bf16.msra.mxu0 %v141
  %166 = vmatprep.subr.bf16.mxu0 0
  %167 = vmatpush1.bf16.msra.mxu0 0
  %168 = vmatprep.subr.bf16.mxu0 0
  %169 = vmatpush1.bf16.msra.mxu0 0
  %170 = vmatprep.subr.bf16.mxu0 0
  %171 = vmatpush1.bf16.msra.mxu0 0
  %172 = vmatprep.subr.bf16.mxu0 0
  %173 = vmatpush1.bf16.msra.mxu0 0
  %174 = vmatprep.subr.bf16.mxu0 0
  %175 = vmatpush1.bf16.msra.mxu0 0
  %176 = vmatprep.subr.bf16.mxu0 0
  %177 = vmatpush1.bf16.msra.mxu0 0
  %178 = vmatprep.subr.bf16.mxu0 0
  %179 = vmatpush1.bf16.msra.mxu0 0
  %180 = vmatprep.subr.bf16.mxu0 0
  %181 = vmatpush1.bf16.msra.mxu0 0
  %182 = vmatprep.mubr.bf16.mxu0 0
  %183 = vmatmul.mubr.bf16.gmra.mrb[0].mxu0 %v86
  %v184 = vpop.f32.mrb[0].mxu0
  %v185 = vadd.f32 %v52, %v184
  %v186 = vpop.f32.mrb[0].mxu0
  %v187 = vpop.f32.mrb[0].mxu0
  %v188 = vadd.f32 %v52, %v187
  %v189 = vpop.f32.mrb[0].mxu0
  %190 = vmatprep.mubr.bf16.mxu0 0
  %191 = vmatmul.mubr.bf16.gmra.mrb[0].mxu0 %v87
  %v192 = vpop.f32.mrb[0].mxu0
  %v193 = vadd.f32 %v52, %v192
  %v194 = vpop.f32.mrb[0].mxu0
  %v195 = vpop.f32.mrb[0].mxu0
  %v196 = vadd.f32 %v52, %v195
  %v197 = vpop.f32.mrb[0].mxu0
  %198 = vmatprep.mubr.bf16.mxu0 0
  %199 = vmatmul.mubr.bf16.gmra.mrb[0].mxu0 %v88
  %v200 = vpop.f32.mrb[0].mxu0
  %v201 = vadd.f32 %v52, %v200
  %v202 = vpop.f32.mrb[0].mxu0
  %v203 = vpop.f32.mrb[0].mxu0
  %v204 = vadd.f32 %v52, %v203
  %v205 = vpop.f32.mrb[0].mxu0
  %206 = vmatprep.mubr.bf16.mxu0 0
  %207 = vmatmul.mubr.bf16.gmra.mrb[0].mxu0 %v89
  %v208 = vpop.f32.mrb[0].mxu0
  %v209 = vadd.f32 %v52, %v208
  %v210 = vpop.f32.mrb[0].mxu0
  %v211 = vpop.f32.mrb[0].mxu0
  %v212 = vadd.f32 %v52, %v211
  %v213 = vpop.f32.mrb[0].mxu0
  %214 = vmatprep.mubr.bf16.mxu0 0
  %215 = vmatmul.mubr.bf16.gmra.mrb[0].mxu0 %v90
  %v216 = vpop.f32.mrb[0].mxu0
  %v217 = vadd.f32 %v52, %v216
  %v218 = vpop.f32.mrb[0].mxu0
  %v219 = vpop.f32.mrb[0].mxu0
  %v220 = vadd.f32 %v52, %v219
  %v221 = vpop.f32.mrb[0].mxu0
  %222 = vmatprep.mubr.bf16.mxu0 0
  %223 = vmatmul.mubr.bf16.gmra.mrb[0].mxu0 %v91
  %v224 = vpop.f32.mrb[0].mxu0
  %v225 = vadd.f32 %v52, %v224
  %v226 = vpop.f32.mrb[0].mxu0
  %v227 = vpop.f32.mrb[0].mxu0
  %v228 = vadd.f32 %v52, %v227
  %v229 = vpop.f32.mrb[0].mxu0
  %230 = vmatprep.mubr.bf16.mxu0 0
  %231 = vmatmul.mubr.bf16.gmra.mrb[0].mxu0 %v92
  %v232 = vpop.f32.mrb[0].mxu0
  %v233 = vadd.f32 %v52, %v232
  %v234 = vpop.f32.mrb[0].mxu0
  %v235 = vpop.f32.mrb[0].mxu0
  %v236 = vadd.f32 %v52, %v235
  %v237 = vpop.f32.mrb[0].mxu0
  %238 = vmatprep.mubr.bf16.mxu0 0
  %239 = vmatmul.mubr.bf16.gmra.mrb[0].mxu0 %v93
  %v240 = vpop.f32.mrb[0].mxu0
  %v241 = vadd.f32 %v52, %v240
  %v242 = vpop.f32.mrb[0].mxu0
  %v243 = vpop.f32.mrb[0].mxu0
  %v244 = vadd.f32 %v52, %v243
  %v245 = vpop.f32.mrb[0].mxu0
  %246 = vdwg.mxu0
  %v247 = vpack.c.bf16 %v188, %v185
  %v248 = vpack.c.bf16 %v196, %v193
  %v249 = vpack.c.bf16 %v204, %v201
  %v250 = vpack.c.bf16 %v212, %v209
  %v251 = vpack.c.bf16 %v220, %v217
  %v252 = vpack.c.bf16 %v228, %v225
  %v253 = vpack.c.bf16 %v236, %v233
  %v254 = vpack.c.bf16 %v244, %v241
  %v263 = vunpack.c.l.b16 %v247
  %v264 = vunpack.c.h.b16 %v247
  %v265 = vunpack.c.l.b16 %v248
  %v266 = vunpack.c.h.b16 %v248
  %v267 = vunpack.c.l.b16 %v249
  %v268 = vunpack.c.h.b16 %v249
  %v269 = vunpack.c.l.b16 %v250
  %v270 = vunpack.c.h.b16 %v250
  %v271 = vunpack.c.l.b16 %v251
  %v272 = vunpack.c.h.b16 %v251
  %v273 = vunpack.c.l.b16 %v252
  %v274 = vunpack.c.h.b16 %v252
  %v275 = vunpack.c.l.b16 %v253
  %v276 = vunpack.c.h.b16 %v253
  %v277 = vunpack.c.l.b16 %v254
  %v278 = vunpack.c.h.b16 %v254
  %v279 = vpack.c.b16 %v263, %v263
  %v280 = vpack.c.b16 %v264, %v264
  %v281 = vpack.c.b16 %v265, %v265
  %v282 = vpack.c.b16 %v266, %v266
  %v283 = vpack.c.b16 %v267, %v267
  %v284 = vpack.c.b16 %v268, %v268
  %v285 = vpack.c.b16 %v269, %v269
  %v286 = vpack.c.b16 %v270, %v270
  %v287 = vpack.c.b16 %v271, %v271
  %v288 = vpack.c.b16 %v272, %v272
  %v289 = vpack.c.b16 %v273, %v273
  %v290 = vpack.c.b16 %v274, %v274
  %v291 = vpack.c.b16 %v275, %v275
  %v292 = vpack.c.b16 %v276, %v276
  %v293 = vpack.c.b16 %v277, %v277
  %v294 = vpack.c.b16 %v278, %v278
  %311 = vst [vmem:[%s3] sm:$0xf] %v279
  %312 = vst [vmem:[%s3 + $0x4] sm:$0xf] %v280
  %313 = vst [vmem:[%s3 + $0x8] sm:$0xf] %v281
  %314 = vst [vmem:[%s3 + $0xc] sm:$0xf] %v282
  %315 = vst [vmem:[%s3 + $0x10] sm:$0xf] %v283
  %316 = vst [vmem:[%s3 + $0x14] sm:$0xf] %v284
  %317 = vst [vmem:[%s3 + $0x18] sm:$0xf] %v285
  %318 = vst [vmem:[%s3 + $0x1c] sm:$0xf] %v286
  %319 = vst [vmem:[%s3 + $0x20] sm:$0xf] %v287
  %320 = vst [vmem:[%s3 + $0x24] sm:$0xf] %v288
  %321 = vst [vmem:[%s3 + $0x28] sm:$0xf] %v289
  %322 = vst [vmem:[%s3 + $0x2c] sm:$0xf] %v290
  %323 = vst [vmem:[%s3 + $0x30] sm:$0xf] %v291
  %324 = vst [vmem:[%s3 + $0x34] sm:$0xf] %v292
  %325 = vst [vmem:[%s3 + $0x38] sm:$0xf] %v293
  %326 = vst [vmem:[%s3 + $0x3c] sm:$0xf] %v294
  // Predicated region
  $region14: #{_lambda_.42} parent=0 // pred_check
    _
  $region15: #{_lambda_.42} parent=0 // pred_check_branch
    %328 = sbr.rel (0) target = $region17
  $region16: #{_lambda_.42} parent=0 // pred_region
    _
  $region17: #{_lambda_.42} parent=0 // pred_fallthru
    _
  // Predicated region
  $region18: #{_lambda_.42} parent=0 // pred_check
    _
  $region19: #{_lambda_.42} parent=0 // pred_check_branch
    %330 = sbr.rel (0) target = $region21
  $region20: #{_lambda_.42} parent=0 // pred_region
    _
  $region21: #{_lambda_.42} parent=0 // pred_fallthru
    _

// kernel: _lambda_.40
$region0: #{_lambda_.40}
  #allocation0 [shape = 'u32[]', space=smem, size = 0x4, offset = 0x4, fixed_abs, tag = 'smem constant byte address 0x4 - core index']
  #allocation1 [shape = 'u32[144,128]{1,0:T(1,128)}', space=vmem, size = 0x12000, scoped, tag = 'internal scratch']
  %s0 = inlined_call_operand.vmem [shape: bf16[128,128], index: 0, kind: input, shape index: {}]
  %s1 = inlined_call_operand.vmem [shape: bf16[128,128], index: 1, kind: input, shape index: {}]
  %s2 = inlined_call_operand.vmem [shape: bf16[128,128], index: 2, kind: input, shape index: {}]
  %s3 = inlined_call_operand.vmem [shape: f32[1,128], index: 3, kind: input, shape index: {}]
  %s4 = inlined_call_operand.vmem [shape: f32[1,128], index: 4, kind: input, shape index: {}]
  %s5 = inlined_call_operand.vmem [shape: f32[1,128], index: 5, kind: input, shape index: {}]
  %s6 = inlined_call_operand.vmem [shape: bf16[128,128], index: 6, kind: input, shape index: {}]
  %s7 = inlined_call_operand.vmem [shape: f32[1,128], index: 7, kind: input, shape index: {}]
  %s8 = inlined_call_operand.vmem [shape: f32[1,128], index: 8, kind: input, shape index: {}]
  %s9 = inlined_call_operand.vmem [shape: f32[1,128], index: 9, kind: input, shape index: {}]
  %s10 = inlined_call_operand.vmem [shape: bf16[128,128], index: 10, kind: input, shape index: {}]
  %s11 = inlined_call_operand.vmem [shape: f32[1,128], index: 11, kind: input, shape index: {}]
  %s12 = inlined_call_operand.vmem [shape: f32[1,128], index: 12, kind: input, shape index: {}]
  %s13 = inlined_call_operand.vmem [shape: f32[1,128], index: 13, kind: input, shape index: {}]
  %s14 = inlined_call_operand.vmem [shape: bf16[128,128], index: 14, kind: output, shape index: {}]
  %s15 = sld [smem:[#allocation0]]
  $region66: #{_lambda_.40} parent=0
    _
  %s17 = ssub.s32 1, %s15
  %s18 = scalar_select 0, %s17, %s15
  // Predicated region
  $region2: #{_lambda_.40} parent=0 // pred_check
    _
  $region3: #{_lambda_.40} parent=0 // pred_check_branch
    %20 = sbr.rel (0) target = $region5
  $region4: #{_lambda_.40} parent=0 // pred_region
    _
  $region5: #{_lambda_.40} parent=0 // pred_fallthru
    _
  // Predicated region
  $region6: #{_lambda_.40} parent=0 // pred_check
    _
  $region7: #{_lambda_.40} parent=0 // pred_check_branch
    %22 = sbr.rel (0) target = $region9
  $region8: #{_lambda_.40} parent=0 // pred_region
    _
  $region9: #{_lambda_.40} parent=0 // pred_fallthru
    _
  // Predicated region
  $region10: #{_lambda_.40} parent=0 // pred_check
    _
  $region11: #{_lambda_.40} parent=0 // pred_check_branch
    %24 = sbr.rel (0) target = $region13
  $region12: #{_lambda_.40} parent=0 // pred_region
    _
  $region13: #{_lambda_.40} parent=0 // pred_fallthru
    _
  // Predicated region
  $region14: #{_lambda_.40} parent=0 // pred_check
    _
  $region15: #{_lambda_.40} parent=0 // pred_check_branch
    %26 = sbr.rel (0) target = $region17
  $region16: #{_lambda_.40} parent=0 // pred_region
    _
  $region17: #{_lambda_.40} parent=0 // pred_fallthru
    _
  // Predicated region
  $region18: #{_lambda_.40} parent=0 // pred_check
    _
  $region19: #{_lambda_.40} parent=0 // pred_check_branch
    %28 = sbr.rel (0) target = $region21
  $region20: #{_lambda_.40} parent=0 // pred_region
    _
  $region21: #{_lambda_.40} parent=0 // pred_fallthru
    _
  // Predicated region
  $region22: #{_lambda_.40} parent=0 // pred_check
    _
  $region23: #{_lambda_.40} parent=0 // pred_check_branch
    %30 = sbr.rel (0) target = $region25
  $region24: #{_lambda_.40} parent=0 // pred_region
    _
  $region25: #{_lambda_.40} parent=0 // pred_fallthru
    _
  // Predicated region
  $region26: #{_lambda_.40} parent=0 // pred_check
    _
  $region27: #{_lambda_.40} parent=0 // pred_check_branch
    %32 = sbr.rel (0) target = $region29
  $region28: #{_lambda_.40} parent=0 // pred_region
    _
  $region29: #{_lambda_.40} parent=0 // pred_fallthru
    _
  // Predicated region
  $region30: #{_lambda_.40} parent=0 // pred_check
    _
  $region31: #{_lambda_.40} parent=0 // pred_check_branch
    %34 = sbr.rel (0) target = $region33
  $region32: #{_lambda_.40} parent=0 // pred_region
    _
  $region33: #{_lambda_.40} parent=0 // pred_fallthru
    _
  // Predicated region
  $region34: #{_lambda_.40} parent=0 // pred_check
    _
  $region35: #{_lambda_.40} parent=0 // pred_check_branch
    %36 = sbr.rel (0) target = $region37
  $region36: #{_lambda_.40} parent=0 // pred_region
    _
  $region37: #{_lambda_.40} parent=0 // pred_fallthru
    _
  // Predicated region
  $region38: #{_lambda_.40} parent=0 // pred_check
    _
  $region39: #{_lambda_.40} parent=0 // pred_check_branch
    %38 = sbr.rel (0) target = $region41
  $region40: #{_lambda_.40} parent=0 // pred_region
    _
  $region41: #{_lambda_.40} parent=0 // pred_fallthru
    _
  // Predicated region
  $region42: #{_lambda_.40} parent=0 // pred_check
    _
  $region43: #{_lambda_.40} parent=0 // pred_check_branch
    %40 = sbr.rel (0) target = $region45
  $region44: #{_lambda_.40} parent=0 // pred_region
    _
  $region45: #{_lambda_.40} parent=0 // pred_fallthru
    _
  // Predicated region
  $region46: #{_lambda_.40} parent=0 // pred_check
    _
  $region47: #{_lambda_.40} parent=0 // pred_check_branch
    %42 = sbr.rel (0) target = $region49
  $region48: #{_lambda_.40} parent=0 // pred_region
    _
  $region49: #{_lambda_.40} parent=0 // pred_fallthru
    _
  // Predicated region
  $region50: #{_lambda_.40} parent=0 // pred_check
    _
  $region51: #{_lambda_.40} parent=0 // pred_check_branch
    %44 = sbr.rel (0) target = $region53
  $region52: #{_lambda_.40} parent=0 // pred_region
    _
  $region53: #{_lambda_.40} parent=0 // pred_fallthru
    _
  // Predicated region
  $region54: #{_lambda_.40} parent=0 // pred_check
    _
  $region55: #{_lambda_.40} parent=0 // pred_check_branch
    %46 = sbr.rel (0) target = $region57
  $region56: #{_lambda_.40} parent=0 // pred_region
    _
  $region57: #{_lambda_.40} parent=0 // pred_fallthru
    _
  %v48 = vlaneseq
  %v49 = vshrl.u32 %v48, 7
  %v50 = vadd.s32 %v49, 8
  %v51 = vadd.s32 %v49, 16
  %v52 = vadd.s32 %v49, 24
  %v53 = vadd.s32 %v49, 32
  %v54 = vadd.s32 %v49, 40
  %v55 = vadd.s32 %v49, 48
  %v56 = vadd.s32 %v49, 56
  %v57 = vadd.s32 %v49, 64
  %v58 = vadd.s32 %v49, 72
  %v59 = vadd.s32 %v49, 80
  %v60 = vadd.s32 %v49, 88
  %v61 = vadd.s32 %v49, 96
  %v62 = vadd.s32 %v49, 104
  %v63 = vadd.s32 %v49, 112
  %v64 = vadd.s32 %v49, 120
  %vm65 = vcmp.lt.s32.totalorder %v49, 128
  %vm66 = vcmp.lt.s32.totalorder %v50, 128
  %vm67 = vcmp.lt.s32.totalorder %v51, 128
  %vm68 = vcmp.lt.s32.totalorder %v52, 128
  %vm69 = vcmp.lt.s32.totalorder %v53, 128
  %vm70 = vcmp.lt.s32.totalorder %v54, 128
  %vm71 = vcmp.lt.s32.totalorder %v55, 128
  %vm72 = vcmp.lt.s32.totalorder %v56, 128
  %vm73 = vcmp.lt.s32.totalorder %v57, 128
  %vm74 = vcmp.lt.s32.totalorder %v58, 128
  %vm75 = vcmp.lt.s32.totalorder %v59, 128
  %vm76 = vcmp.lt.s32.totalorder %v60, 128
  %vm77 = vcmp.lt.s32.totalorder %v61, 128
  %vm78 = vcmp.lt.s32.totalorder %v62, 128
  %vm79 = vcmp.lt.s32.totalorder %v63, 128
  %vm80 = vcmp.lt.s32.totalorder %v64, 128
  %v81 = vsel %vm65, 1, 0
  %v82 = vsel %vm66, 1, 0
  %v83 = vsel %vm67, 1, 0
  %v84 = vsel %vm68, 1, 0
  %v85 = vsel %vm69, 1, 0
  %v86 = vsel %vm70, 1, 0
  %v87 = vsel %vm71, 1, 0
  %v88 = vsel %vm72, 1, 0
  %v89 = vsel %vm73, 1, 0
  %v90 = vsel %vm74, 1, 0
  %v91 = vsel %vm75, 1, 0
  %v92 = vsel %vm76, 1, 0
  %v93 = vsel %vm77, 1, 0
  %v94 = vsel %vm78, 1, 0
  %v95 = vsel %vm79, 1, 0
  %v96 = vsel %vm80, 1, 0
  %v97 = vcvt.s32.f32 %v81
  %v98 = vcvt.s32.f32 %v82
  %v99 = vcvt.s32.f32 %v83
  %v100 = vcvt.s32.f32 %v84
  %v101 = vcvt.s32.f32 %v85
  %v102 = vcvt.s32.f32 %v86
  %v103 = vcvt.s32.f32 %v87
  %v104 = vcvt.s32.f32 %v88
  %v105 = vcvt.s32.f32 %v89
  %v106 = vcvt.s32.f32 %v90
  %v107 = vcvt.s32.f32 %v91
  %v108 = vcvt.s32.f32 %v92
  %v109 = vcvt.s32.f32 %v93
  %v110 = vcvt.s32.f32 %v94
  %v111 = vcvt.s32.f32 %v95
  %v112 = vcvt.s32.f32 %v96
  %v113 = vld [vmem:[%s0] sm:$0xf]
  %v114 = vld [vmem:[%s0 + $0x4] sm:$0xf]
  %v115 = vld [vmem:[%s0 + $0x8] sm:$0xf]
  %v116 = vld [vmem:[%s0 + $0xc] sm:$0xf]
  %v117 = vld [vmem:[%s0 + $0x10] sm:$0xf]
  %v118 = vld [vmem:[%s0 + $0x14] sm:$0xf]
  %v119 = vld [vmem:[%s0 + $0x18] sm:$0xf]
  %v120 = vld [vmem:[%s0 + $0x1c] sm:$0xf]
  %v121 = vld [vmem:[%s0 + $0x20] sm:$0xf]
  %v122 = vld [vmem:[%s0 + $0x24] sm:$0xf]
  %v123 = vld [vmem:[%s0 + $0x28] sm:$0xf]
  %v124 = vld [vmem:[%s0 + $0x2c] sm:$0xf]
  %v125 = vld [vmem:[%s0 + $0x30] sm:$0xf]
  %v126 = vld [vmem:[%s0 + $0x34] sm:$0xf]
  %v127 = vld [vmem:[%s0 + $0x38] sm:$0xf]
  %v128 = vld [vmem:[%s0 + $0x3c] sm:$0xf]
  %v129 = vld [vmem:[%s2] sm:$0xf]
  %v130 = vld [vmem:[%s2 + $0x4] sm:$0xf]
  %v131 = vld [vmem:[%s2 + $0x8] sm:$0xf]
  %v132 = vld [vmem:[%s2 + $0xc] sm:$0xf]
  %v133 = vld [vmem:[%s2 + $0x10] sm:$0xf]
  %v134 = vld [vmem:[%s2 + $0x14] sm:$0xf]
  %v135 = vld [vmem:[%s2 + $0x18] sm:$0xf]
  %v136 = vld [vmem:[%s2 + $0x1c] sm:$0xf]
  %v137 = vld [vmem:[%s2 + $0x20] sm:$0xf]
  %v138 = vld [vmem:[%s2 + $0x24] sm:$0xf]
  %v139 = vld [vmem:[%s2 + $0x28] sm:$0xf]
  %v140 = vld [vmem:[%s2 + $0x2c] sm:$0xf]
  %v141 = vld [vmem:[%s2 + $0x30] sm:$0xf]
  %v142 = vld [vmem:[%s2 + $0x34] sm:$0xf]
  %v143 = vld [vmem:[%s2 + $0x38] sm:$0xf]
  %v144 = vld [vmem:[%s2 + $0x3c] sm:$0xf]
  %v145 = vld [vmem:[%s3] sm:$0x1]
  %v147 = vlaneseq
  %v148 = vshrl.u32 %v147, 7
  %v149 = vsub.s32 0, %v148
  %v150 = vrot.slane %v145, %v149
  %v168 = vunpack.c.l.b16 %v113
  %v169 = vunpack.c.l.b16 %v114
  %v170 = vunpack.c.l.b16 %v115
  %v171 = vunpack.c.l.b16 %v116
  %v172 = vunpack.c.l.b16 %v117
  %v173 = vunpack.c.l.b16 %v118
  %v174 = vunpack.c.l.b16 %v119
  %v175 = vunpack.c.l.b16 %v120
  %v176 = vunpack.c.l.b16 %v121
  %v177 = vunpack.c.l.b16 %v122
  %v178 = vunpack.c.l.b16 %v123
  %v179 = vunpack.c.l.b16 %v124
  %v180 = vunpack.c.l.b16 %v125
  %v181 = vunpack.c.l.b16 %v126
  %v182 = vunpack.c.l.b16 %v127
  %v183 = vunpack.c.l.b16 %v128
  %v184 = vpack.c.b16 %v169, %v168
  %v185 = vpack.c.b16 %v171, %v170
  %v186 = vpack.c.b16 %v173, %v172
  %v187 = vpack.c.b16 %v175, %v174
  %v188 = vpack.c.b16 %v177, %v176
  %v189 = vpack.c.b16 %v179, %v178
  %v190 = vpack.c.b16 %v181, %v180
  %v191 = vpack.c.b16 %v183, %v182
  %v216 = vunpack.c.l.b16 %v129
  %v217 = vunpack.c.l.b16 %v130
  %v218 = vunpack.c.l.b16 %v131
  %v219 = vunpack.c.l.b16 %v132
  %v220 = vunpack.c.l.b16 %v133
  %v221 = vunpack.c.l.b16 %v134
  %v222 = vunpack.c.l.b16 %v135
  %v223 = vunpack.c.l.b16 %v136
  %v224 = vunpack.c.l.b16 %v137
  %v225 = vunpack.c.l.b16 %v138
  %v226 = vunpack.c.l.b16 %v139
  %v227 = vunpack.c.l.b16 %v140
  %v228 = vunpack.c.l.b16 %v141
  %v229 = vunpack.c.l.b16 %v142
  %v230 = vunpack.c.l.b16 %v143
  %v231 = vunpack.c.l.b16 %v144
  %v232 = vpack.c.b16 %v217, %v216
  %v233 = vpack.c.b16 %v219, %v218
  %v234 = vpack.c.b16 %v221, %v220
  %v235 = vpack.c.b16 %v223, %v222
  %v236 = vpack.c.b16 %v225, %v224
  %v237 = vpack.c.b16 %v227, %v226
  %v238 = vpack.c.b16 %v229, %v228
  %v239 = vpack.c.b16 %v231, %v230
  %248 = vmatprep.subr.bf16.mxu0 0
  %249 = vmatpush1.bf16.msra.mxu0 %v232
  %250 = vmatprep.subr.bf16.mxu0 0
  %251 = vmatpush1.bf16.msra.mxu0 %v233
  %252 = vmatprep.subr.bf16.mxu0 0
  %253 = vmatpush1.bf16.msra.mxu0 %v234
  %254 = vmatprep.subr.bf16.mxu0 0
  %255 = vmatpush1.bf16.msra.mxu0 %v235
  %256 = vmatprep.subr.bf16.mxu0 0
  %257 = vmatpush1.bf16.msra.mxu0 %v236
  %258 = vmatprep.subr.bf16.mxu0 0
  %259 = vmatpush1.bf16.msra.mxu0 %v237
  %260 = vmatprep.subr.bf16.mxu0 0
  %261 = vmatpush1.bf16.msra.mxu0 %v238
  %262 = vmatprep.subr.bf16.mxu0 0
  %263 = vmatpush1.bf16.msra.mxu0 %v239
  %264 = vmatprep.subr.bf16.mxu0 0
  %265 = vmatpush1.bf16.msra.mxu0 0
  %266 = vmatprep.subr.bf16.mxu0 0
  %267 = vmatpush1.bf16.msra.mxu0 0
  %268 = vmatprep.subr.bf16.mxu0 0
  %269 = vmatpush1.bf16.msra.mxu0 0
  %270 = vmatprep.subr.bf16.mxu0 0
  %271 = vmatpush1.bf16.msra.mxu0 0
  %272 = vmatprep.subr.bf16.mxu0 0
  %273 = vmatpush1.bf16.msra.mxu0 0
  %274 = vmatprep.subr.bf16.mxu0 0
  %275 = vmatpush1.bf16.msra.mxu0 0
  %276 = vmatprep.subr.bf16.mxu0 0
  %277 = vmatpush1.bf16.msra.mxu0 0
  %278 = vmatprep.subr.bf16.mxu0 0
  %279 = vmatpush1.bf16.msra.mxu0 0
  %280 = vmatprep.mubr.bf16.mxu0 0
  %281 = vmatmul.mubr.bf16.gmra.mrb[0].mxu0 %v184
  %v282 = vpop.f32.mrb[0].mxu0
  %v283 = vadd.f32 %v150, %v282
  %v284 = vpop.f32.mrb[0].mxu0
  %v285 = vpop.f32.mrb[0].mxu0
  %v286 = vadd.f32 %v150, %v285
  %v287 = vpop.f32.mrb[0].mxu0
  %288 = vmatprep.mubr.bf16.mxu0 0
  %289 = vmatmul.mubr.bf16.gmra.mrb[0].mxu0 %v185
  %v290 = vpop.f32.mrb[0].mxu0
  %v291 = vadd.f32 %v150, %v290
  %v292 = vpop.f32.mrb[0].mxu0
  %v293 = vpop.f32.mrb[0].mxu0
  %v294 = vadd.f32 %v150, %v293
  %v295 = vpop.f32.mrb[0].mxu0
  %296 = vmatprep.mubr.bf16.mxu0 0
  %297 = vmatmul.mubr.bf16.gmra.mrb[0].mxu0 %v186
  %v298 = vpop.f32.mrb[0].mxu0
  %v299 = vadd.f32 %v150, %v298
  %v300 = vpop.f32.mrb[0].mxu0
  %v301 = vpop.f32.mrb[0].mxu0
  %v302 = vadd.f32 %v150, %v301
  %v303 = vpop.f32.mrb[0].mxu0
  %304 = vmatprep.mubr.bf16.mxu0 0
  %305 = vmatmul.mubr.bf16.gmra.mrb[0].mxu0 %v187
  %v306 = vpop.f32.mrb[0].mxu0
  %v307 = vadd.f32 %v150, %v306
  %v308 = vpop.f32.mrb[0].mxu0
  %v309 = vpop.f32.mrb[0].mxu0
  %v310 = vadd.f32 %v150, %v309
  %v311 = vpop.f32.mrb[0].mxu0
  %312 = vmatprep.mubr.bf16.mxu0 0
  %313 = vmatmul.mubr.bf16.gmra.mrb[0].mxu0 %v188
  %v314 = vpop.f32.mrb[0].mxu0
  %v315 = vadd.f32 %v150, %v314
  %v316 = vpop.f32.mrb[0].mxu0
  %v317 = vpop.f32.mrb[0].mxu0
  %v318 = vadd.f32 %v150, %v317
  %v319 = vpop.f32.mrb[0].mxu0
  %320 = vmatprep.mubr.bf16.mxu0 0
  %321 = vmatmul.mubr.bf16.gmra.mrb[0].mxu0 %v189
  %v322 = vpop.f32.mrb[0].mxu0
  %v323 = vadd.f32 %v150, %v322
  %v324 = vpop.f32.mrb[0].mxu0
  %v325 = vpop.f32.mrb[0].mxu0
  %v326 = vadd.f32 %v150, %v325
  %v327 = vpop.f32.mrb[0].mxu0
  %328 = vmatprep.mubr.bf16.mxu0 0
  %329 = vmatmul.mubr.bf16.gmra.mrb[0].mxu0 %v190
  %v330 = vpop.f32.mrb[0].mxu0
  %v331 = vadd.f32 %v150, %v330
  %v332 = vpop.f32.mrb[0].mxu0
  %v333 = vpop.f32.mrb[0].mxu0
  %v334 = vadd.f32 %v150, %v333
  %v335 = vpop.f32.mrb[0].mxu0
  %336 = vmatprep.mubr.bf16.mxu0 0
  %337 = vmatmul.mubr.bf16.gmra.mrb[0].mxu0 %v191
  %v338 = vpop.f32.mrb[0].mxu0
  %v339 = vadd.f32 %v150, %v338
  %v340 = vpop.f32.mrb[0].mxu0
  %v341 = vpop.f32.mrb[0].mxu0
  %v342 = vadd.f32 %v150, %v341
  %v343 = vpop.f32.mrb[0].mxu0
  %344 = vdwg.mxu0
  %v345 = vld [vmem:[%s4] sm:$0x1]
  %v346 = vld [vmem:[%s5] sm:$0x1]
  %v347 = vmul.f32 %v283, %v97
  %v348 = vmul.f32 %v286, %v98
  %v349 = vmul.f32 %v291, %v99
  %v350 = vmul.f32 %v294, %v100
  %v351 = vmul.f32 %v299, %v101
  %v352 = vmul.f32 %v302, %v102
  %v353 = vmul.f32 %v307, %v103
  %v354 = vmul.f32 %v310, %v104
  %v355 = vmul.f32 %v315, %v105
  %v356 = vmul.f32 %v318, %v106
  %v357 = vmul.f32 %v323, %v107
  %v358 = vmul.f32 %v326, %v108
  %v359 = vmul.f32 %v331, %v109
  %v360 = vmul.f32 %v334, %v110
  %v361 = vmul.f32 %v339, %v111
  %v362 = vmul.f32 %v342, %v112
  %v363 = vadd.f32 %v347, %v348
  %v364 = vadd.f32 %v363, %v349
  %v365 = vadd.f32 %v364, %v350
  %v366 = vadd.f32 %v365, %v351
  %v367 = vadd.f32 %v366, %v352
  %v368 = vadd.f32 %v367, %v353
  %v369 = vadd.f32 %v368, %v354
  %v370 = vadd.f32 %v369, %v355
  %v371 = vadd.f32 %v370, %v356
  %v372 = vadd.f32 %v371, %v357
  %v373 = vadd.f32 %v372, %v358
  %v374 = vadd.f32 %v373, %v359
  %v375 = vadd.f32 %v374, %v360
  %v376 = vadd.f32 %v375, %v361
  %v377 = vadd.f32 %v376, %v362
  %v378 = vrot.slane %v377, 4
  %v379 = vadd.f32 %v377, %v378
  %v380 = vrot.slane %v379, 2
  %v381 = vadd.f32 %v379, %v380
  %v382 = vrot.slane %v381, 1
  %v383 = vadd.f32 %v381, %v382
  %v384 = vmul.f32 %v383, 0.0078125
  %v385 = vsub.f32 %v283, %v384
  %v386 = vsub.f32 %v286, %v384
  %v387 = vsub.f32 %v291, %v384
  %v388 = vsub.f32 %v294, %v384
  %v389 = vsub.f32 %v299, %v384
  %v390 = vsub.f32 %v302, %v384
  %v391 = vsub.f32 %v307, %v384
  %v392 = vsub.f32 %v310, %v384
  %v393 = vsub.f32 %v315, %v384
  %v394 = vsub.f32 %v318, %v384
  %v395 = vsub.f32 %v323, %v384
  %v396 = vsub.f32 %v326, %v384
  %v397 = vsub.f32 %v331, %v384
  %v398 = vsub.f32 %v334, %v384
  %v399 = vsub.f32 %v339, %v384
  %v400 = vsub.f32 %v342, %v384
  %v401 = vmul.f32 %v385, %v97
  %v402 = vmul.f32 %v386, %v98
  %v403 = vmul.f32 %v387, %v99
  %v404 = vmul.f32 %v388, %v100
  %v405 = vmul.f32 %v389, %v101
  %v406 = vmul.f32 %v390, %v102
  %v407 = vmul.f32 %v391, %v103
  %v408 = vmul.f32 %v392, %v104
  %v409 = vmul.f32 %v393, %v105
  %v410 = vmul.f32 %v394, %v106
  %v411 = vmul.f32 %v395, %v107
  %v412 = vmul.f32 %v396, %v108
  %v413 = vmul.f32 %v397, %v109
  %v414 = vmul.f32 %v398, %v110
  %v415 = vmul.f32 %v399, %v111
  %v416 = vmul.f32 %v400, %v112
  %v417 = vmul.f32 %v401, %v401
  %v418 = vmul.f32 %v402, %v402
  %v419 = vmul.f32 %v403, %v403
  %v420 = vmul.f32 %v404, %v404
  %v421 = vmul.f32 %v405, %v405
  %v422 = vmul.f32 %v406, %v406
  %v423 = vmul.f32 %v407, %v407
  %v424 = vmul.f32 %v408, %v408
  %v425 = vmul.f32 %v409, %v409
  %v426 = vmul.f32 %v410, %v410
  %v427 = vmul.f32 %v411, %v411
  %v428 = vmul.f32 %v412, %v412
  %v429 = vmul.f32 %v413, %v413
  %v430 = vmul.f32 %v414, %v414
  %v431 = vmul.f32 %v415, %v415
  %v432 = vmul.f32 %v416, %v416
  %v433 = vadd.f32 %v417, %v418
  %v434 = vadd.f32 %v433, %v419
  %v435 = vadd.f32 %v434, %v420
  %v436 = vadd.f32 %v435, %v421
  %v437 = vadd.f32 %v436, %v422
  %v438 = vadd.f32 %v437, %v423
  %v439 = vadd.f32 %v438, %v424
  %v440 = vadd.f32 %v439, %v425
  %v441 = vadd.f32 %v440, %v426
  %v442 = vadd.f32 %v441, %v427
  %v443 = vadd.f32 %v442, %v428
  %v444 = vadd.f32 %v443, %v429
  %v445 = vadd.f32 %v444, %v430
  %v446 = vadd.f32 %v445, %v431
  %v447 = vadd.f32 %v446, %v432
  %v448 = vrot.slane %v447, 4
  %v449 = vadd.f32 %v447, %v448
  %v450 = vrot.slane %v449, 2
  %v451 = vadd.f32 %v449, %v450
  %v452 = vrot.slane %v451, 1
  %v453 = vadd.f32 %v451, %v452
  %v454 = vmul.f32 %v453, 0.0078125
  %v455 = vadd.f32 %v454, 1e-05
  %v456 = vrsqrt.pop %v455
  %v457 = vmul.f32 %v385, %v456
  %v458 = vmul.f32 %v386, %v456
  %v459 = vmul.f32 %v387, %v456
  %v460 = vmul.f32 %v388, %v456
  %v461 = vmul.f32 %v389, %v456
  %v462 = vmul.f32 %v390, %v456
  %v463 = vmul.f32 %v391, %v456
  %v464 = vmul.f32 %v392, %v456
  %v465 = vmul.f32 %v393, %v456
  %v466 = vmul.f32 %v394, %v456
  %v467 = vmul.f32 %v395, %v456
  %v468 = vmul.f32 %v396, %v456
  %v469 = vmul.f32 %v397, %v456
  %v470 = vmul.f32 %v398, %v456
  %v471 = vmul.f32 %v399, %v456
  %v472 = vmul.f32 %v400, %v456
  %v474 = vlaneseq
  %v475 = vshrl.u32 %v474, 7
  %v476 = vsub.s32 0, %v475
  %v477 = vrot.slane %v345, %v476
  %v479 = vmul.f32 %v457, %v477
  %v480 = vmul.f32 %v458, %v477
  %v481 = vmul.f32 %v459, %v477
  %v482 = vmul.f32 %v460, %v477
  %v483 = vmul.f32 %v461, %v477
  %v484 = vmul.f32 %v462, %v477
  %v485 = vmul.f32 %v463, %v477
  %v486 = vmul.f32 %v464, %v477
  %v487 = vmul.f32 %v465, %v477
  %v488 = vmul.f32 %v466, %v477
  %v489 = vmul.f32 %v467, %v477
  %v490 = vmul.f32 %v468, %v477
  %v491 = vmul.f32 %v469, %v477
  %v492 = vmul.f32 %v470, %v477
  %v493 = vmul.f32 %v471, %v477
  %v494 = vmul.f32 %v472, %v477
  %v496 = vlaneseq
  %v497 = vshrl.u32 %v496, 7
  %v498 = vsub.s32 0, %v497
  %v499 = vrot.slane %v346, %v498
  %v501 = vadd.f32 %v479, %v499
  %v502 = vadd.f32 %v480, %v499
  %v503 = vadd.f32 %v481, %v499
  %v504 = vadd.f32 %v482, %v499
  %v505 = vadd.f32 %v483, %v499
  %v506 = vadd.f32 %v484, %v499
  %v507 = vadd.f32 %v485, %v499
  %v508 = vadd.f32 %v486, %v499
  %v509 = vadd.f32 %v487, %v499
  %v510 = vadd.f32 %v488, %v499
  %v511 = vadd.f32 %v489, %v499
  %v512 = vadd.f32 %v490, %v499
  %v513 = vadd.f32 %v491, %v499
  %v514 = vadd.f32 %v492, %v499
  %v515 = vadd.f32 %v493, %v499
  %v516 = vadd.f32 %v494, %v499
  %v517 = vld [vmem:[%s1] sm:$0xf]
  %v518 = vld [vmem:[%s1 + $0x4] sm:$0xf]
  %v519 = vld [vmem:[%s1 + $0x8] sm:$0xf]
  %v520 = vld [vmem:[%s1 + $0xc] sm:$0xf]
  %v521 = vld [vmem:[%s1 + $0x10] sm:$0xf]
  %v522 = vld [vmem:[%s1 + $0x14] sm:$0xf]
  %v523 = vld [vmem:[%s1 + $0x18] sm:$0xf]
  %v524 = vld [vmem:[%s1 + $0x1c] sm:$0xf]
  %v525 = vld [vmem:[%s1 + $0x20] sm:$0xf]
  %v526 = vld [vmem:[%s1 + $0x24] sm:$0xf]
  %v527 = vld [vmem:[%s1 + $0x28] sm:$0xf]
  %v528 = vld [vmem:[%s1 + $0x2c] sm:$0xf]
  %v529 = vld [vmem:[%s1 + $0x30] sm:$0xf]
  %v530 = vld [vmem:[%s1 + $0x34] sm:$0xf]
  %v531 = vld [vmem:[%s1 + $0x38] sm:$0xf]
  %v532 = vld [vmem:[%s1 + $0x3c] sm:$0xf]
  %v533 = vld [vmem:[%s6] sm:$0xf]
  %v534 = vld [vmem:[%s6 + $0x4] sm:$0xf]
  %v535 = vld [vmem:[%s6 + $0x8] sm:$0xf]
  %v536 = vld [vmem:[%s6 + $0xc] sm:$0xf]
  %v537 = vld [vmem:[%s6 + $0x10] sm:$0xf]
  %v538 = vld [vmem:[%s6 + $0x14] sm:$0xf]
  %v539 = vld [vmem:[%s6 + $0x18] sm:$0xf]
  %v540 = vld [vmem:[%s6 + $0x1c] sm:$0xf]
  %v541 = vld [vmem:[%s6 + $0x20] sm:$0xf]
  %v542 = vld [vmem:[%s6 + $0x24] sm:$0xf]
  %v543 = vld [vmem:[%s6 + $0x28] sm:$0xf]
  %v544 = vld [vmem:[%s6 + $0x2c] sm:$0xf]
  %v545 = vld [vmem:[%s6 + $0x30] sm:$0xf]
  %v546 = vld [vmem:[%s6 + $0x34] sm:$0xf]
  %v547 = vld [vmem:[%s6 + $0x38] sm:$0xf]
  %v548 = vld [vmem:[%s6 + $0x3c] sm:$0xf]
  %v549 = vld [vmem:[%s7] sm:$0x1]
  %v551 = vlaneseq
  %v552 = vshrl.u32 %v551, 7
  %v553 = vsub.s32 0, %v552
  %v554 = vrot.slane %v549, %v553
  %v572 = vunpack.c.l.b16 %v517
  %v573 = vunpack.c.l.b16 %v518
  %v574 = vunpack.c.l.b16 %v519
  %v575 = vunpack.c.l.b16 %v520
  %v576 = vunpack.c.l.b16 %v521
  %v577 = vunpack.c.l.b16 %v522
  %v578 = vunpack.c.l.b16 %v523
  %v579 = vunpack.c.l.b16 %v524
  %v580 = vunpack.c.l.b16 %v525
  %v581 = vunpack.c.l.b16 %v526
  %v582 = vunpack.c.l.b16 %v527
  %v583 = vunpack.c.l.b16 %v528
  %v584 = vunpack.c.l.b16 %v529
  %v585 = vunpack.c.l.b16 %v530
  %v586 = vunpack.c.l.b16 %v531
  %v587 = vunpack.c.l.b16 %v532
  %v588 = vpack.c.b16 %v573, %v572
  %v589 = vpack.c.b16 %v575, %v574
  %v590 = vpack.c.b16 %v577, %v576
  %v591 = vpack.c.b16 %v579, %v578
  %v592 = vpack.c.b16 %v581, %v580
  %v593 = vpack.c.b16 %v583, %v582
  %v594 = vpack.c.b16 %v585, %v584
  %v595 = vpack.c.b16 %v587, %v586
  %v620 = vunpack.c.l.b16 %v533
  %v621 = vunpack.c.l.b16 %v534
  %v622 = vunpack.c.l.b16 %v535
  %v623 = vunpack.c.l.b16 %v536
  %v624 = vunpack.c.l.b16 %v537
  %v625 = vunpack.c.l.b16 %v538
  %v626 = vunpack.c.l.b16 %v539
  %v627 = vunpack.c.l.b16 %v540
  %v628 = vunpack.c.l.b16 %v541
  %v629 = vunpack.c.l.b16 %v542
  %v630 = vunpack.c.l.b16 %v543
  %v631 = vunpack.c.l.b16 %v544
  %v632 = vunpack.c.l.b16 %v545
  %v633 = vunpack.c.l.b16 %v546
  %v634 = vunpack.c.l.b16 %v547
  %v635 = vunpack.c.l.b16 %v548
  %v636 = vpack.c.b16 %v621, %v620
  %v637 = vpack.c.b16 %v623, %v622
  %v638 = vpack.c.b16 %v625, %v624
  %v639 = vpack.c.b16 %v627, %v626
  %v640 = vpack.c.b16 %v629, %v628
  %v641 = vpack.c.b16 %v631, %v630
  %v642 = vpack.c.b16 %v633, %v632
  %v643 = vpack.c.b16 %v635, %v634
  %652 = vmatprep.subr.bf16.mxu0 0
  %653 = vmatpush1.bf16.msra.mxu0 %v636
  %654 = vmatprep.subr.bf16.mxu0 0
  %655 = vmatpush1.bf16.msra.mxu0 %v637
  %656 = vmatprep.subr.bf16.mxu0 0
  %657 = vmatpush1.bf16.msra.mxu0 %v638
  %658 = vmatprep.subr.bf16.mxu0 0
  %659 = vmatpush1.bf16.msra.mxu0 %v639
  %660 = vmatprep.subr.bf16.mxu0 0
  %661 = vmatpush1.bf16.msra.mxu0 %v640
  %662 = vmatprep.subr.bf16.mxu0 0
  %663 = vmatpush1.bf16.msra.mxu0 %v641
  %664 = vmatprep.subr.bf16.mxu0 0
  %665 = vmatpush1.bf16.msra.mxu0 %v642
  %666 = vmatprep.subr.bf16.mxu0 0
  %667 = vmatpush1.bf16.msra.mxu0 %v643
  %668 = vmatprep.subr.bf16.mxu0 0
  %669 = vmatpush1.bf16.msra.mxu0 0
  %670 = vmatprep.subr.bf16.mxu0 0
  %671 = vmatpush1.bf16.msra.mxu0 0
  %672 = vmatprep.subr.bf16.mxu0 0
  %673 = vmatpush1.bf16.msra.mxu0 0
  %674 = vmatprep.subr.bf16.mxu0 0
  %675 = vmatpush1.bf16.msra.mxu0 0
  %676 = vmatprep.subr.bf16.mxu0 0
  %677 = vmatpush1.bf16.msra.mxu0 0
  %678 = vmatprep.subr.bf16.mxu0 0
  %679 = vmatpush1.bf16.msra.mxu0 0
  %680 = vmatprep.subr.bf16.mxu0 0
  %681 = vmatpush1.bf16.msra.mxu0 0
  %682 = vmatprep.subr.bf16.mxu0 0
  %683 = vmatpush1.bf16.msra.mxu0 0
  %684 = vmatprep.mubr.bf16.mxu0 0
  %685 = vmatmul.mubr.bf16.gmra.mrb[0].mxu0 %v588
  %v686 = vpop.f32.mrb[0].mxu0
  %v687 = vadd.f32 %v554, %v686
  %v688 = vpop.f32.mrb[0].mxu0
  %v689 = vpop.f32.mrb[0].mxu0
  %v690 = vadd.f32 %v554, %v689
  %v691 = vpop.f32.mrb[0].mxu0
  %692 = vmatprep.mubr.bf16.mxu0 0
  %693 = vmatmul.mubr.bf16.gmra.mrb[0].mxu0 %v589
  %v694 = vpop.f32.mrb[0].mxu0
  %v695 = vadd.f32 %v554, %v694
  %v696 = vpop.f32.mrb[0].mxu0
  %v697 = vpop.f32.mrb[0].mxu0
  %v698 = vadd.f32 %v554, %v697
  %v699 = vpop.f32.mrb[0].mxu0
  %700 = vmatprep.mubr.bf16.mxu0 0
  %701 = vmatmul.mubr.bf16.gmra.mrb[0].mxu0 %v590
  %v702 = vpop.f32.mrb[0].mxu0
  %v703 = vadd.f32 %v554, %v702
  %v704 = vpop.f32.mrb[0].mxu0
  %v705 = vpop.f32.mrb[0].mxu0
  %v706 = vadd.f32 %v554, %v705
  %v707 = vpop.f32.mrb[0].mxu0
  %708 = vmatprep.mubr.bf16.mxu0 0
  %709 = vmatmul.mubr.bf16.gmra.mrb[0].mxu0 %v591
  %v710 = vpop.f32.mrb[0].mxu0
  %v711 = vadd.f32 %v554, %v710
  %v712 = vpop.f32.mrb[0].mxu0
  %v713 = vpop.f32.mrb[0].mxu0
  %v714 = vadd.f32 %v554, %v713
  %v715 = vpop.f32.mrb[0].mxu0
  %716 = vmatprep.mubr.bf16.mxu0 0
  %717 = vmatmul.mubr.bf16.gmra.mrb[0].mxu0 %v592
  %v718 = vpop.f32.mrb[0].mxu0
  %v719 = vadd.f32 %v554, %v718
  %v720 = vpop.f32.mrb[0].mxu0
  %v721 = vpop.f32.mrb[0].mxu0
  %v722 = vadd.f32 %v554, %v721
  %v723 = vpop.f32.mrb[0].mxu0
  %724 = vmatprep.mubr.bf16.mxu0 0
  %725 = vmatmul.mubr.bf16.gmra.mrb[0].mxu0 %v593
  %v726 = vpop.f32.mrb[0].mxu0
  %v727 = vadd.f32 %v554, %v726
  %v728 = vpop.f32.mrb[0].mxu0
  %v729 = vpop.f32.mrb[0].mxu0
  %v730 = vadd.f32 %v554, %v729
  %v731 = vpop.f32.mrb[0].mxu0
  %732 = vmatprep.mubr.bf16.mxu0 0
  %733 = vmatmul.mubr.bf16.gmra.mrb[0].mxu0 %v594
  %v734 = vpop.f32.mrb[0].mxu0
  %v735 = vadd.f32 %v554, %v734
  %v736 = vpop.f32.mrb[0].mxu0
  %v737 = vpop.f32.mrb[0].mxu0
  %v738 = vadd.f32 %v554, %v737
  %v739 = vpop.f32.mrb[0].mxu0
  %740 = vmatprep.mubr.bf16.mxu0 0
  %741 = vmatmul.mubr.bf16.gmra.mrb[0].mxu0 %v595
  %v742 = vpop.f32.mrb[0].mxu0
  %v743 = vadd.f32 %v554, %v742
  %v744 = vpop.f32.mrb[0].mxu0
  %v745 = vpop.f32.mrb[0].mxu0
  %v746 = vadd.f32 %v554, %v745
  %v747 = vpop.f32.mrb[0].mxu0
  %748 = vdwg.mxu0
  %v749 = vld [vmem:[%s8] sm:$0x1]
  %v750 = vld [vmem:[%s9] sm:$0x1]
  %v751 = vmul.f32 %v687, %v97
  %v752 = vmul.f32 %v690, %v98
  %v753 = vmul.f32 %v695, %v99
  %v754 = vmul.f32 %v698, %v100
  %v755 = vmul.f32 %v703, %v101
  %v756 = vmul.f32 %v706, %v102
  %v757 = vmul.f32 %v711, %v103
  %v758 = vmul.f32 %v714, %v104
  %v759 = vmul.f32 %v719, %v105
  %v760 = vmul.f32 %v722, %v106
  %v761 = vmul.f32 %v727, %v107
  %v762 = vmul.f32 %v730, %v108
  %v763 = vmul.f32 %v735, %v109
  %v764 = vmul.f32 %v738, %v110
  %v765 = vmul.f32 %v743, %v111
  %v766 = vmul.f32 %v746, %v112
  %v767 = vadd.f32 %v751, %v752
  %v768 = vadd.f32 %v767, %v753
  %v769 = vadd.f32 %v768, %v754
  %v770 = vadd.f32 %v769, %v755
  %v771 = vadd.f32 %v770, %v756
  %v772 = vadd.f32 %v771, %v757
  %v773 = vadd.f32 %v772, %v758
  %v774 = vadd.f32 %v773, %v759
  %v775 = vadd.f32 %v774, %v760
  %v776 = vadd.f32 %v775, %v761
  %v777 = vadd.f32 %v776, %v762
  %v778 = vadd.f32 %v777, %v763
  %v779 = vadd.f32 %v778, %v764
  %v780 = vadd.f32 %v779, %v765
  %v781 = vadd.f32 %v780, %v766
  %v782 = vrot.slane %v781, 4
  %v783 = vadd.f32 %v781, %v782
  %v784 = vrot.slane %v783, 2
  %v785 = vadd.f32 %v783, %v784
  %v786 = vrot.slane %v785, 1
  %v787 = vadd.f32 %v785, %v786
  %v788 = vmul.f32 %v787, 0.0078125
  %v789 = vsub.f32 %v687, %v788
  %v790 = vsub.f32 %v690, %v788
  %v791 = vsub.f32 %v695, %v788
  %v792 = vsub.f32 %v698, %v788
  %v793 = vsub.f32 %v703, %v788
  %v794 = vsub.f32 %v706, %v788
  %v795 = vsub.f32 %v711, %v788
  %v796 = vsub.f32 %v714, %v788
  %v797 = vsub.f32 %v719, %v788
  %v798 = vsub.f32 %v722, %v788
  %v799 = vsub.f32 %v727, %v788
  %v800 = vsub.f32 %v730, %v788
  %v801 = vsub.f32 %v735, %v788
  %v802 = vsub.f32 %v738, %v788
  %v803 = vsub.f32 %v743, %v788
  %v804 = vsub.f32 %v746, %v788
  %v805 = vmul.f32 %v789, %v97
  %v806 = vmul.f32 %v790, %v98
  %v807 = vmul.f32 %v791, %v99
  %v808 = vmul.f32 %v792, %v100
  %v809 = vmul.f32 %v793, %v101
  %v810 = vmul.f32 %v794, %v102
  %v811 = vmul.f32 %v795, %v103
  %v812 = vmul.f32 %v796, %v104
  %v813 = vmul.f32 %v797, %v105
  %v814 = vmul.f32 %v798, %v106
  %v815 = vmul.f32 %v799, %v107
  %v816 = vmul.f32 %v800, %v108
  %v817 = vmul.f32 %v801, %v109
  %v818 = vmul.f32 %v802, %v110
  %v819 = vmul.f32 %v803, %v111
  %v820 = vmul.f32 %v804, %v112
  %v821 = vmul.f32 %v805, %v805
  %v822 = vmul.f32 %v806, %v806
  %v823 = vmul.f32 %v807, %v807
  %v824 = vmul.f32 %v808, %v808
  %v825 = vmul.f32 %v809, %v809
  %v826 = vmul.f32 %v810, %v810
  %v827 = vmul.f32 %v811, %v811
  %v828 = vmul.f32 %v812, %v812
  %v829 = vmul.f32 %v813, %v813
  %v830 = vmul.f32 %v814, %v814
  %v831 = vmul.f32 %v815, %v815
  %v832 = vmul.f32 %v816, %v816
  %v833 = vmul.f32 %v817, %v817
  %v834 = vmul.f32 %v818, %v818
  %v835 = vmul.f32 %v819, %v819
  %v836 = vmul.f32 %v820, %v820
  %v837 = vadd.f32 %v821, %v822
  %v838 = vadd.f32 %v837, %v823
  %v839 = vadd.f32 %v838, %v824
  %v840 = vadd.f32 %v839, %v825
  %v841 = vadd.f32 %v840, %v826
  %v842 = vadd.f32 %v841, %v827
  %v843 = vadd.f32 %v842, %v828
  %v844 = vadd.f32 %v843, %v829
  %v845 = vadd.f32 %v844, %v830
  %v846 = vadd.f32 %v845, %v831
  %v847 = vadd.f32 %v846, %v832
  %v848 = vadd.f32 %v847, %v833
  %v849 = vadd.f32 %v848, %v834
  %v850 = vadd.f32 %v849, %v835
  %v851 = vadd.f32 %v850, %v836
  %v852 = vrot.slane %v851, 4
  %v853 = vadd.f32 %v851, %v852
  %v854 = vrot.slane %v853, 2
  %v855 = vadd.f32 %v853, %v854
  %v856 = vrot.slane %v855, 1
  %v857 = vadd.f32 %v855, %v856
  %v858 = vmul.f32 %v857, 0.0078125
  %v859 = vadd.f32 %v858, 1e-05
  %v860 = vrsqrt.pop %v859
  %v861 = vmul.f32 %v789, %v860
  %v862 = vmul.f32 %v790, %v860
  %v863 = vmul.f32 %v791, %v860
  %v864 = vmul.f32 %v792, %v860
  %v865 = vmul.f32 %v793, %v860
  %v866 = vmul.f32 %v794, %v860
  %v867 = vmul.f32 %v795, %v860
  %v868 = vmul.f32 %v796, %v860
  %v869 = vmul.f32 %v797, %v860
  %v870 = vmul.f32 %v798, %v860
  %v871 = vmul.f32 %v799, %v860
  %v872 = vmul.f32 %v800, %v860
  %v873 = vmul.f32 %v801, %v860
  %v874 = vmul.f32 %v802, %v860
  %v875 = vmul.f32 %v803, %v860
  %v876 = vmul.f32 %v804, %v860
  %v878 = vlaneseq
  %v879 = vshrl.u32 %v878, 7
  %v880 = vsub.s32 0, %v879
  %v881 = vrot.slane %v749, %v880
  %v883 = vmul.f32 %v861, %v881
  %v884 = vmul.f32 %v862, %v881
  %v885 = vmul.f32 %v863, %v881
  %v886 = vmul.f32 %v864, %v881
  %v887 = vmul.f32 %v865, %v881
  %v888 = vmul.f32 %v866, %v881
  %v889 = vmul.f32 %v867, %v881
  %v890 = vmul.f32 %v868, %v881
  %v891 = vmul.f32 %v869, %v881
  %v892 = vmul.f32 %v870, %v881
  %v893 = vmul.f32 %v871, %v881
  %v894 = vmul.f32 %v872, %v881
  %v895 = vmul.f32 %v873, %v881
  %v896 = vmul.f32 %v874, %v881
  %v897 = vmul.f32 %v875, %v881
  %v898 = vmul.f32 %v876, %v881
  %v900 = vlaneseq
  %v901 = vshrl.u32 %v900, 7
  %v902 = vsub.s32 0, %v901
  %v903 = vrot.slane %v750, %v902
  %v905 = vadd.f32 %v883, %v903
  %v906 = vadd.f32 %v884, %v903
  %v907 = vadd.f32 %v885, %v903
  %v908 = vadd.f32 %v886, %v903
  %v909 = vadd.f32 %v887, %v903
  %v910 = vadd.f32 %v888, %v903
  %v911 = vadd.f32 %v889, %v903
  %v912 = vadd.f32 %v890, %v903
  %v913 = vadd.f32 %v891, %v903
  %v914 = vadd.f32 %v892, %v903
  %v915 = vadd.f32 %v893, %v903
  %v916 = vadd.f32 %v894, %v903
  %v917 = vadd.f32 %v895, %v903
  %v918 = vadd.f32 %v896, %v903
  %v919 = vadd.f32 %v897, %v903
  %v920 = vadd.f32 %v898, %v903
  %v921 = vadd.f32 %v501, %v905
  %v922 = vadd.f32 %v502, %v906
  %v923 = vadd.f32 %v503, %v907
  %v924 = vadd.f32 %v504, %v908
  %v925 = vadd.f32 %v505, %v909
  %v926 = vadd.f32 %v506, %v910
  %v927 = vadd.f32 %v507, %v911
  %v928 = vadd.f32 %v508, %v912
  %v929 = vadd.f32 %v509, %v913
  %v930 = vadd.f32 %v510, %v914
  %v931 = vadd.f32 %v511, %v915
  %v932 = vadd.f32 %v512, %v916
  %v933 = vadd.f32 %v513, %v917
  %v934 = vadd.f32 %v514, %v918
  %v935 = vadd.f32 %v515, %v919
  %v936 = vadd.f32 %v516, %v920
  %v937 = vmax.f32 %v921, 0.0
  %v938 = vmax.f32 %v922, 0.0
  %v939 = vmax.f32 %v923, 0.0
  %v940 = vmax.f32 %v924, 0.0
  %v941 = vmax.f32 %v925, 0.0
  %v942 = vmax.f32 %v926, 0.0
  %v943 = vmax.f32 %v927, 0.0
  %v944 = vmax.f32 %v928, 0.0
  %v945 = vmax.f32 %v929, 0.0
  %v946 = vmax.f32 %v930, 0.0
  %v947 = vmax.f32 %v931, 0.0
  %v948 = vmax.f32 %v932, 0.0
  %v949 = vmax.f32 %v933, 0.0
  %v950 = vmax.f32 %v934, 0.0
  %v951 = vmax.f32 %v935, 0.0
  %v952 = vmax.f32 %v936, 0.0
  %v953 = vpack.c.bf16 %v938, %v937
  %v954 = vpack.c.bf16 %v940, %v939
  %v955 = vpack.c.bf16 %v942, %v941
  %v956 = vpack.c.bf16 %v944, %v943
  %v957 = vpack.c.bf16 %v946, %v945
  %v958 = vpack.c.bf16 %v948, %v947
  %v959 = vpack.c.bf16 %v950, %v949
  %v960 = vpack.c.bf16 %v952, %v951
  %v961 = vld [vmem:[%s10] sm:$0xf]
  %v962 = vld [vmem:[%s10 + $0x4] sm:$0xf]
  %v963 = vld [vmem:[%s10 + $0x8] sm:$0xf]
  %v964 = vld [vmem:[%s10 + $0xc] sm:$0xf]
  %v965 = vld [vmem:[%s10 + $0x10] sm:$0xf]
  %v966 = vld [vmem:[%s10 + $0x14] sm:$0xf]
  %v967 = vld [vmem:[%s10 + $0x18] sm:$0xf]
  %v968 = vld [vmem:[%s10 + $0x1c] sm:$0xf]
  %v969 = vld [vmem:[%s10 + $0x20] sm:$0xf]
  %v970 = vld [vmem:[%s10 + $0x24] sm:$0xf]
  %v971 = vld [vmem:[%s10 + $0x28] sm:$0xf]
  %v972 = vld [vmem:[%s10 + $0x2c] sm:$0xf]
  %v973 = vld [vmem:[%s10 + $0x30] sm:$0xf]
  %v974 = vld [vmem:[%s10 + $0x34] sm:$0xf]
  %v975 = vld [vmem:[%s10 + $0x38] sm:$0xf]
  %v976 = vld [vmem:[%s10 + $0x3c] sm:$0xf]
  %v977 = vld [vmem:[%s11] sm:$0x1]
  %v979 = vlaneseq
  %v980 = vshrl.u32 %v979, 7
  %v981 = vsub.s32 0, %v980
  %v982 = vrot.slane %v977, %v981
  %v1000 = vunpack.c.l.b16 %v961
  %v1001 = vunpack.c.l.b16 %v962
  %v1002 = vunpack.c.l.b16 %v963
  %v1003 = vunpack.c.l.b16 %v964
  %v1004 = vunpack.c.l.b16 %v965
  %v1005 = vunpack.c.l.b16 %v966
  %v1006 = vunpack.c.l.b16 %v967
  %v1007 = vunpack.c.l.b16 %v968
  %v1008 = vunpack.c.l.b16 %v969
  %v1009 = vunpack.c.l.b16 %v970
  %v1010 = vunpack.c.l.b16 %v971
  %v1011 = vunpack.c.l.b16 %v972
  %v1012 = vunpack.c.l.b16 %v973
  %v1013 = vunpack.c.l.b16 %v974
  %v1014 = vunpack.c.l.b16 %v975
  %v1015 = vunpack.c.l.b16 %v976
  %v1016 = vpack.c.b16 %v1001, %v1000
  %v1017 = vpack.c.b16 %v1003, %v1002
  %v1018 = vpack.c.b16 %v1005, %v1004
  %v1019 = vpack.c.b16 %v1007, %v1006
  %v1020 = vpack.c.b16 %v1009, %v1008
  %v1021 = vpack.c.b16 %v1011, %v1010
  %v1022 = vpack.c.b16 %v1013, %v1012
  %v1023 = vpack.c.b16 %v1015, %v1014
  %1032 = vmatprep.subr.bf16.mxu0 0
  %1033 = vmatpush1.bf16.msra.mxu0 %v1016
  %1034 = vmatprep.subr.bf16.mxu0 0
  %1035 = vmatpush1.bf16.msra.mxu0 %v1017
  %1036 = vmatprep.subr.bf16.mxu0 0
  %1037 = vmatpush1.bf16.msra.mxu0 %v1018
  %1038 = vmatprep.subr.bf16.mxu0 0
  %1039 = vmatpush1.bf16.msra.mxu0 %v1019
  %1040 = vmatprep.subr.bf16.mxu0 0
  %1041 = vmatpush1.bf16.msra.mxu0 %v1020
  %1042 = vmatprep.subr.bf16.mxu0 0
  %1043 = vmatpush1.bf16.msra.mxu0 %v1021
  %1044 = vmatprep.subr.bf16.mxu0 0
  %1045 = vmatpush1.bf16.msra.mxu0 %v1022
  %1046 = vmatprep.subr.bf16.mxu0 0
  %1047 = vmatpush1.bf16.msra.mxu0 %v1023
  %1048 = vmatprep.subr.bf16.mxu0 0
  %1049 = vmatpush1.bf16.msra.mxu0 0
  %1050 = vmatprep.subr.bf16.mxu0 0
  %1051 = vmatpush1.bf16.msra.mxu0 0
  %1052 = vmatprep.subr.bf16.mxu0 0
  %1053 = vmatpush1.bf16.msra.mxu0 0
  %1054 = vmatprep.subr.bf16.mxu0 0
  %1055 = vmatpush1.bf16.msra.mxu0 0
  %1056 = vmatprep.subr.bf16.mxu0 0
  %1057 = vmatpush1.bf16.msra.mxu0 0
  %1058 = vmatprep.subr.bf16.mxu0 0
  %1059 = vmatpush1.bf16.msra.mxu0 0
  %1060 = vmatprep.subr.bf16.mxu0 0
  %1061 = vmatpush1.bf16.msra.mxu0 0
  %1062 = vmatprep.subr.bf16.mxu0 0
  %1063 = vmatpush1.bf16.msra.mxu0 0
  %1064 = vmatprep.mubr.bf16.mxu0 0
  %1065 = vmatmul.mubr.bf16.gmra.mrb[0].mxu0 %v953
  %v1066 = vpop.f32.mrb[0].mxu0
  %v1067 = vadd.f32 %v982, %v1066
  %v1068 = vpop.f32.mrb[0].mxu0
  %v1069 = vpop.f32.mrb[0].mxu0
  %v1070 = vadd.f32 %v982, %v1069
  %v1071 = vpop.f32.mrb[0].mxu0
  %1072 = vmatprep.mubr.bf16.mxu0 0
  %1073 = vmatmul.mubr.bf16.gmra.mrb[0].mxu0 %v954
  %v1074 = vpop.f32.mrb[0].mxu0
  %v1075 = vadd.f32 %v982, %v1074
  %v1076 = vpop.f32.mrb[0].mxu0
  %v1077 = vpop.f32.mrb[0].mxu0
  %v1078 = vadd.f32 %v982, %v1077
  %v1079 = vpop.f32.mrb[0].mxu0
  %1080 = vmatprep.mubr.bf16.mxu0 0
  %1081 = vmatmul.mubr.bf16.gmra.mrb[0].mxu0 %v955
  %v1082 = vpop.f32.mrb[0].mxu0
  %v1083 = vadd.f32 %v982, %v1082
  %v1084 = vpop.f32.mrb[0].mxu0
  %v1085 = vpop.f32.mrb[0].mxu0
  %v1086 = vadd.f32 %v982, %v1085
  %v1087 = vpop.f32.mrb[0].mxu0
  %1088 = vmatprep.mubr.bf16.mxu0 0
  %1089 = vmatmul.mubr.bf16.gmra.mrb[0].mxu0 %v956
  %v1090 = vpop.f32.mrb[0].mxu0
  %v1091 = vadd.f32 %v982, %v1090
  %v1092 = vpop.f32.mrb[0].mxu0
  %v1093 = vpop.f32.mrb[0].mxu0
  %v1094 = vadd.f32 %v982, %v1093
  %v1095 = vpop.f32.mrb[0].mxu0
  %1096 = vmatprep.mubr.bf16.mxu0 0
  %1097 = vmatmul.mubr.bf16.gmra.mrb[0].mxu0 %v957
  %v1098 = vpop.f32.mrb[0].mxu0
  %v1099 = vadd.f32 %v982, %v1098
  %v1100 = vpop.f32.mrb[0].mxu0
  %v1101 = vpop.f32.mrb[0].mxu0
  %v1102 = vadd.f32 %v982, %v1101
  %v1103 = vpop.f32.mrb[0].mxu0
  %1104 = vmatprep.mubr.bf16.mxu0 0
  %1105 = vmatmul.mubr.bf16.gmra.mrb[0].mxu0 %v958
  %v1106 = vpop.f32.mrb[0].mxu0
  %v1107 = vadd.f32 %v982, %v1106
  %v1108 = vpop.f32.mrb[0].mxu0
  %v1109 = vpop.f32.mrb[0].mxu0
  %v1110 = vadd.f32 %v982, %v1109
  %v1111 = vpop.f32.mrb[0].mxu0
  %1112 = vmatprep.mubr.bf16.mxu0 0
  %1113 = vmatmul.mubr.bf16.gmra.mrb[0].mxu0 %v959
  %v1114 = vpop.f32.mrb[0].mxu0
  %v1115 = vadd.f32 %v982, %v1114
  %v1116 = vpop.f32.mrb[0].mxu0
  %v1117 = vpop.f32.mrb[0].mxu0
  %v1118 = vadd.f32 %v982, %v1117
  %v1119 = vpop.f32.mrb[0].mxu0
  %1120 = vmatprep.mubr.bf16.mxu0 0
  %1121 = vmatmul.mubr.bf16.gmra.mrb[0].mxu0 %v960
  %v1122 = vpop.f32.mrb[0].mxu0
  %v1123 = vadd.f32 %v982, %v1122
  %v1124 = vpop.f32.mrb[0].mxu0
  %v1125 = vpop.f32.mrb[0].mxu0
  %v1126 = vadd.f32 %v982, %v1125
  %v1127 = vpop.f32.mrb[0].mxu0
  %1128 = vdwg.mxu0
  %v1129 = vld [vmem:[%s12] sm:$0x1]
  %v1130 = vld [vmem:[%s13] sm:$0x1]
  %v1131 = vmul.f32 %v1067, %v97
  %v1132 = vmul.f32 %v1070, %v98
  %v1133 = vmul.f32 %v1075, %v99
  %v1134 = vmul.f32 %v1078, %v100
  %v1135 = vmul.f32 %v1083, %v101
  %v1136 = vmul.f32 %v1086, %v102
  %v1137 = vmul.f32 %v1091, %v103
  %v1138 = vmul.f32 %v1094, %v104
  %v1139 = vmul.f32 %v1099, %v105
  %v1140 = vmul.f32 %v1102, %v106
  %v1141 = vmul.f32 %v1107, %v107
  %v1142 = vmul.f32 %v1110, %v108
  %v1143 = vmul.f32 %v1115, %v109
  %v1144 = vmul.f32 %v1118, %v110
  %v1145 = vmul.f32 %v1123, %v111
  %v1146 = vmul.f32 %v1126, %v112
  %v1147 = vadd.f32 %v1131, %v1132
  %v1148 = vadd.f32 %v1147, %v1133
  %v1149 = vadd.f32 %v1148, %v1134
  %v1150 = vadd.f32 %v1149, %v1135
  %v1151 = vadd.f32 %v1150, %v1136
  %v1152 = vadd.f32 %v1151, %v1137
  %v1153 = vadd.f32 %v1152, %v1138
  %v1154 = vadd.f32 %v1153, %v1139
  %v1155 = vadd.f32 %v1154, %v1140
  %v1156 = vadd.f32 %v1155, %v1141
  %v1157 = vadd.f32 %v1156, %v1142
  %v1158 = vadd.f32 %v1157, %v1143
  %v1159 = vadd.f32 %v1158, %v1144
  %v1160 = vadd.f32 %v1159, %v1145
  %v1161 = vadd.f32 %v1160, %v1146
  %v1162 = vrot.slane %v1161, 4
  %v1163 = vadd.f32 %v1161, %v1162
  %v1164 = vrot.slane %v1163, 2
  %v1165 = vadd.f32 %v1163, %v1164
  %v1166 = vrot.slane %v1165, 1
  %v1167 = vadd.f32 %v1165, %v1166
  %v1168 = vmul.f32 %v1167, 0.0078125
  %v1169 = vsub.f32 %v1067, %v1168
  %v1170 = vsub.f32 %v1070, %v1168
  %v1171 = vsub.f32 %v1075, %v1168
  %v1172 = vsub.f32 %v1078, %v1168
  %v1173 = vsub.f32 %v1083, %v1168
  %v1174 = vsub.f32 %v1086, %v1168
  %v1175 = vsub.f32 %v1091, %v1168
  %v1176 = vsub.f32 %v1094, %v1168
  %v1177 = vsub.f32 %v1099, %v1168
  %v1178 = vsub.f32 %v1102, %v1168
  %v1179 = vsub.f32 %v1107, %v1168
  %v1180 = vsub.f32 %v1110, %v1168
  %v1181 = vsub.f32 %v1115, %v1168
  %v1182 = vsub.f32 %v1118, %v1168
  %v1183 = vsub.f32 %v1123, %v1168
  %v1184 = vsub.f32 %v1126, %v1168
  %v1185 = vmul.f32 %v1169, %v97
  %v1186 = vmul.f32 %v1170, %v98
  %v1187 = vmul.f32 %v1171, %v99
  %v1188 = vmul.f32 %v1172, %v100
  %v1189 = vmul.f32 %v1173, %v101
  %v1190 = vmul.f32 %v1174, %v102
  %v1191 = vmul.f32 %v1175, %v103
  %v1192 = vmul.f32 %v1176, %v104
  %v1193 = vmul.f32 %v1177, %v105
  %v1194 = vmul.f32 %v1178, %v106
  %v1195 = vmul.f32 %v1179, %v107
  %v1196 = vmul.f32 %v1180, %v108
  %v1197 = vmul.f32 %v1181, %v109
  %v1198 = vmul.f32 %v1182, %v110
  %v1199 = vmul.f32 %v1183, %v111
  %v1200 = vmul.f32 %v1184, %v112
  %v1201 = vmul.f32 %v1185, %v1185
  %v1202 = vmul.f32 %v1186, %v1186
  %v1203 = vmul.f32 %v1187, %v1187
  %v1204 = vmul.f32 %v1188, %v1188
  %v1205 = vmul.f32 %v1189, %v1189
  %v1206 = vmul.f32 %v1190, %v1190
  %v1207 = vmul.f32 %v1191, %v1191
  %v1208 = vmul.f32 %v1192, %v1192
  %v1209 = vmul.f32 %v1193, %v1193
  %v1210 = vmul.f32 %v1194, %v1194
  %v1211 = vmul.f32 %v1195, %v1195
  %v1212 = vmul.f32 %v1196, %v1196
  %v1213 = vmul.f32 %v1197, %v1197
  %v1214 = vmul.f32 %v1198, %v1198
  %v1215 = vmul.f32 %v1199, %v1199
  %v1216 = vmul.f32 %v1200, %v1200
  %v1217 = vadd.f32 %v1201, %v1202
  %v1218 = vadd.f32 %v1217, %v1203
  %v1219 = vadd.f32 %v1218, %v1204
  %v1220 = vadd.f32 %v1219, %v1205
  %v1221 = vadd.f32 %v1220, %v1206
  %v1222 = vadd.f32 %v1221, %v1207
  %v1223 = vadd.f32 %v1222, %v1208
  %v1224 = vadd.f32 %v1223, %v1209
  %v1225 = vadd.f32 %v1224, %v1210
  %v1226 = vadd.f32 %v1225, %v1211
  %v1227 = vadd.f32 %v1226, %v1212
  %v1228 = vadd.f32 %v1227, %v1213
  %v1229 = vadd.f32 %v1228, %v1214
  %v1230 = vadd.f32 %v1229, %v1215
  %v1231 = vadd.f32 %v1230, %v1216
  %v1232 = vrot.slane %v1231, 4
  %v1233 = vadd.f32 %v1231, %v1232
  %v1234 = vrot.slane %v1233, 2
  %v1235 = vadd.f32 %v1233, %v1234
  %v1236 = vrot.slane %v1235, 1
  %v1237 = vadd.f32 %v1235, %v1236
  %v1238 = vmul.f32 %v1237, 0.0078125
  %v1239 = vadd.f32 %v1238, 1e-05
  %v1240 = vrsqrt.pop %v1239
  %v1241 = vmul.f32 %v1169, %v1240
  %v1242 = vmul.f32 %v1170, %v1240
  %v1243 = vmul.f32 %v1171, %v1240
  %v1244 = vmul.f32 %v1172, %v1240
  %v1245 = vmul.f32 %v1173, %v1240
  %v1246 = vmul.f32 %v1174, %v1240
  %v1247 = vmul.f32 %v1175, %v1240
  %v1248 = vmul.f32 %v1176, %v1240
  %v1249 = vmul.f32 %v1177, %v1240
  %v1250 = vmul.f32 %v1178, %v1240
  %v1251 = vmul.f32 %v1179, %v1240
  %v1252 = vmul.f32 %v1180, %v1240
  %v1253 = vmul.f32 %v1181, %v1240
  %v1254 = vmul.f32 %v1182, %v1240
  %v1255 = vmul.f32 %v1183, %v1240
  %v1256 = vmul.f32 %v1184, %v1240
  %v1258 = vlaneseq
  %v1259 = vshrl.u32 %v1258, 7
  %v1260 = vsub.s32 0, %v1259
  %v1261 = vrot.slane %v1129, %v1260
  %v1263 = vmul.f32 %v1241, %v1261
  %v1264 = vmul.f32 %v1242, %v1261
  %v1265 = vmul.f32 %v1243, %v1261
  %v1266 = vmul.f32 %v1244, %v1261
  %v1267 = vmul.f32 %v1245, %v1261
  %v1268 = vmul.f32 %v1246, %v1261
  %v1269 = vmul.f32 %v1247, %v1261
  %v1270 = vmul.f32 %v1248, %v1261
  %v1271 = vmul.f32 %v1249, %v1261
  %v1272 = vmul.f32 %v1250, %v1261
  %v1273 = vmul.f32 %v1251, %v1261
  %v1274 = vmul.f32 %v1252, %v1261
  %v1275 = vmul.f32 %v1253, %v1261
  %v1276 = vmul.f32 %v1254, %v1261
  %v1277 = vmul.f32 %v1255, %v1261
  %v1278 = vmul.f32 %v1256, %v1261
  %v1280 = vlaneseq
  %v1281 = vshrl.u32 %v1280, 7
  %v1282 = vsub.s32 0, %v1281
  %v1283 = vrot.slane %v1130, %v1282
  %v1285 = vadd.f32 %v1263, %v1283
  %v1286 = vadd.f32 %v1264, %v1283
  %v1287 = vadd.f32 %v1265, %v1283
  %v1288 = vadd.f32 %v1266, %v1283
  %v1289 = vadd.f32 %v1267, %v1283
  %v1290 = vadd.f32 %v1268, %v1283
  %v1291 = vadd.f32 %v1269, %v1283
  %v1292 = vadd.f32 %v1270, %v1283
  %v1293 = vadd.f32 %v1271, %v1283
  %v1294 = vadd.f32 %v1272, %v1283
  %v1295 = vadd.f32 %v1273, %v1283
  %v1296 = vadd.f32 %v1274, %v1283
  %v1297 = vadd.f32 %v1275, %v1283
  %v1298 = vadd.f32 %v1276, %v1283
  %v1299 = vadd.f32 %v1277, %v1283
  %v1300 = vadd.f32 %v1278, %v1283
  %v1301 = vsub.f32 0.0, %v1285
  %v1302 = vsub.f32 0.0, %v1286
  %v1303 = vsub.f32 0.0, %v1287
  %v1304 = vsub.f32 0.0, %v1288
  %v1305 = vsub.f32 0.0, %v1289
  %v1306 = vsub.f32 0.0, %v1290
  %v1307 = vsub.f32 0.0, %v1291
  %v1308 = vsub.f32 0.0, %v1292
  %v1309 = vsub.f32 0.0, %v1293
  %v1310 = vsub.f32 0.0, %v1294
  %v1311 = vsub.f32 0.0, %v1295
  %v1312 = vsub.f32 0.0, %v1296
  %v1313 = vsub.f32 0.0, %v1297
  %v1314 = vsub.f32 0.0, %v1298
  %v1315 = vsub.f32 0.0, %v1299
  %v1316 = vsub.f32 0.0, %v1300
  %v1317 = vmul.f32 %v1301, 1.442695
  %v1318 = vpow.pop %v1317
  %v1319 = vmul.f32 %v1302, 1.442695
  %v1320 = vpow.pop %v1319
  %v1321 = vmul.f32 %v1303, 1.442695
  %v1322 = vpow.pop %v1321
  %v1323 = vmul.f32 %v1304, 1.442695
  %v1324 = vpow.pop %v1323
  %v1325 = vmul.f32 %v1305, 1.442695
  %v1326 = vpow.pop %v1325
  %v1327 = vmul.f32 %v1306, 1.442695
  %v1328 = vpow.pop %v1327
  %v1329 = vmul.f32 %v1307, 1.442695
  %v1330 = vpow.pop %v1329
  %v1331 = vmul.f32 %v1308, 1.442695
  %v1332 = vpow.pop %v1331
  %v1333 = vmul.f32 %v1309, 1.442695
  %v1334 = vpow.pop %v1333
  %v1335 = vmul.f32 %v1310, 1.442695
  %v1336 = vpow.pop %v1335
  %v1337 = vmul.f32 %v1311, 1.442695
  %v1338 = vpow.pop %v1337
  %v1339 = vmul.f32 %v1312, 1.442695
  %v1340 = vpow.pop %v1339
  %v1341 = vmul.f32 %v1313, 1.442695
  %v1342 = vpow.pop %v1341
  %v1343 = vmul.f32 %v1314, 1.442695
  %v1344 = vpow.pop %v1343
  %v1345 = vmul.f32 %v1315, 1.442695
  %v1346 = vpow.pop %v1345
  %v1347 = vmul.f32 %v1316, 1.442695
  %v1348 = vpow.pop %v1347
  %v1349 = vadd.f32 %v1318, 1.0
  %v1350 = vadd.f32 %v1320, 1.0
  %v1351 = vadd.f32 %v1322, 1.0
  %v1352 = vadd.f32 %v1324, 1.0
  %v1353 = vadd.f32 %v1326, 1.0
  %v1354 = vadd.f32 %v1328, 1.0
  %v1355 = vadd.f32 %v1330, 1.0
  %v1356 = vadd.f32 %v1332, 1.0
  %v1357 = vadd.f32 %v1334, 1.0
  %v1358 = vadd.f32 %v1336, 1.0
  %v1359 = vadd.f32 %v1338, 1.0
  %v1360 = vadd.f32 %v1340, 1.0
  %v1361 = vadd.f32 %v1342, 1.0
  %v1362 = vadd.f32 %v1344, 1.0
  %v1363 = vadd.f32 %v1346, 1.0
  %v1364 = vadd.f32 %v1348, 1.0
  %v1365 = vrcp.pop %v1349
  %v1366 = vmul.f32 1.0, %v1365
  %v1367 = vrcp.pop %v1350
  %v1368 = vmul.f32 1.0, %v1367
  %v1369 = vrcp.pop %v1351
  %v1370 = vmul.f32 1.0, %v1369
  %v1371 = vrcp.pop %v1352
  %v1372 = vmul.f32 1.0, %v1371
  %v1373 = vrcp.pop %v1353
  %v1374 = vmul.f32 1.0, %v1373
  %v1375 = vrcp.pop %v1354
  %v1376 = vmul.f32 1.0, %v1375
  %v1377 = vrcp.pop %v1355
  %v1378 = vmul.f32 1.0, %v1377
  %v1379 = vrcp.pop %v1356
  %v1380 = vmul.f32 1.0, %v1379
  %v1381 = vrcp.pop %v1357
  %v1382 = vmul.f32 1.0, %v1381
  %v1383 = vrcp.pop %v1358
  %v1384 = vmul.f32 1.0, %v1383
  %v1385 = vrcp.pop %v1359
  %v1386 = vmul.f32 1.0, %v1385
  %v1387 = vrcp.pop %v1360
  %v1388 = vmul.f32 1.0, %v1387
  %v1389 = vrcp.pop %v1361
  %v1390 = vmul.f32 1.0, %v1389
  %v1391 = vrcp.pop %v1362
  %v1392 = vmul.f32 1.0, %v1391
  %v1393 = vrcp.pop %v1363
  %v1394 = vmul.f32 1.0, %v1393
  %v1395 = vrcp.pop %v1364
  %v1396 = vmul.f32 1.0, %v1395
  %v1397 = vunpack.c.l.bf16 %v517
  %v1398 = vunpack.c.l.bf16 %v518
  %v1399 = vunpack.c.l.bf16 %v519
  %v1400 = vunpack.c.l.bf16 %v520
  %v1401 = vunpack.c.l.bf16 %v521
  %v1402 = vunpack.c.l.bf16 %v522
  %v1403 = vunpack.c.l.bf16 %v523
  %v1404 = vunpack.c.l.bf16 %v524
  %v1405 = vunpack.c.l.bf16 %v525
  %v1406 = vunpack.c.l.bf16 %v526
  %v1407 = vunpack.c.l.bf16 %v527
  %v1408 = vunpack.c.l.bf16 %v528
  %v1409 = vunpack.c.l.bf16 %v529
  %v1410 = vunpack.c.l.bf16 %v530
  %v1411 = vunpack.c.l.bf16 %v531
  %v1412 = vunpack.c.l.bf16 %v532
  %1414 = vset.pattern.permute.xlu0 0
  %1415 = vperm.xlu0 %1414, %v1366
  %v1416 = vpop.permute.xlu0 %1415
  %1419 = vset.pattern.permute.xlu0 0
  %1420 = vperm.xlu0 %1419, %v1368
  %v1421 = vpop.permute.xlu0 %1420
  %1424 = vset.pattern.permute.xlu0 0
  %1425 = vperm.xlu0 %1424, %v1370
  %v1426 = vpop.permute.xlu0 %1425
  %1429 = vset.pattern.permute.xlu0 0
  %1430 = vperm.xlu0 %1429, %v1372
  %v1431 = vpop.permute.xlu0 %1430
  %1434 = vset.pattern.permute.xlu0 0
  %1435 = vperm.xlu0 %1434, %v1374
  %v1436 = vpop.permute.xlu0 %1435
  %1439 = vset.pattern.permute.xlu0 0
  %1440 = vperm.xlu0 %1439, %v1376
  %v1441 = vpop.permute.xlu0 %1440
  %1444 = vset.pattern.permute.xlu0 0
  %1445 = vperm.xlu0 %1444, %v1378
  %v1446 = vpop.permute.xlu0 %1445
  %1449 = vset.pattern.permute.xlu0 0
  %1450 = vperm.xlu0 %1449, %v1380
  %v1451 = vpop.permute.xlu0 %1450
  %1454 = vset.pattern.permute.xlu0 0
  %1455 = vperm.xlu0 %1454, %v1382
  %v1456 = vpop.permute.xlu0 %1455
  %1459 = vset.pattern.permute.xlu0 0
  %1460 = vperm.xlu0 %1459, %v1384
  %v1461 = vpop.permute.xlu0 %1460
  %1464 = vset.pattern.permute.xlu0 0
  %1465 = vperm.xlu0 %1464, %v1386
  %v1466 = vpop.permute.xlu0 %1465
  %1469 = vset.pattern.permute.xlu0 0
  %1470 = vperm.xlu0 %1469, %v1388
  %v1471 = vpop.permute.xlu0 %1470
  %1474 = vset.pattern.permute.xlu0 0
  %1475 = vperm.xlu0 %1474, %v1390
  %v1476 = vpop.permute.xlu0 %1475
  %1479 = vset.pattern.permute.xlu0 0
  %1480 = vperm.xlu0 %1479, %v1392
  %v1481 = vpop.permute.xlu0 %1480
  %1484 = vset.pattern.permute.xlu0 0
  %1485 = vperm.xlu0 %1484, %v1394
  %v1486 = vpop.permute.xlu0 %1485
  %1489 = vset.pattern.permute.xlu0 0
  %1490 = vperm.xlu0 %1489, %v1396
  %v1491 = vpop.permute.xlu0 %1490
  %v1493 = vmul.f32 %v1397, %v1416
  %v1494 = vmul.f32 %v1398, %v1421
  %v1495 = vmul.f32 %v1399, %v1426
  %v1496 = vmul.f32 %v1400, %v1431
  %v1497 = vmul.f32 %v1401, %v1436
  %v1498 = vmul.f32 %v1402, %v1441
  %v1499 = vmul.f32 %v1403, %v1446
  %v1500 = vmul.f32 %v1404, %v1451
  %v1501 = vmul.f32 %v1405, %v1456
  %v1502 = vmul.f32 %v1406, %v1461
  %v1503 = vmul.f32 %v1407, %v1466
  %v1504 = vmul.f32 %v1408, %v1471
  %v1505 = vmul.f32 %v1409, %v1476
  %v1506 = vmul.f32 %v1410, %v1481
  %v1507 = vmul.f32 %v1411, %v1486
  %v1508 = vmul.f32 %v1412, %v1491
  %v1509 = vpack.c.bf16 %v1494, %v1493
  %v1510 = vpack.c.bf16 %v1496, %v1495
  %v1511 = vpack.c.bf16 %v1498, %v1497
  %v1512 = vpack.c.bf16 %v1500, %v1499
  %v1513 = vpack.c.bf16 %v1502, %v1501
  %v1514 = vpack.c.bf16 %v1504, %v1503
  %v1515 = vpack.c.bf16 %v1506, %v1505
  %v1516 = vpack.c.bf16 %v1508, %v1507
  %v1525 = vunpack.c.l.b16 %v1509
  %v1526 = vunpack.c.h.b16 %v1509
  %v1527 = vunpack.c.l.b16 %v1510
  %v1528 = vunpack.c.h.b16 %v1510
  %v1529 = vunpack.c.l.b16 %v1511
  %v1530 = vunpack.c.h.b16 %v1511
  %v1531 = vunpack.c.l.b16 %v1512
  %v1532 = vunpack.c.h.b16 %v1512
  %v1533 = vunpack.c.l.b16 %v1513
  %v1534 = vunpack.c.h.b16 %v1513
  %v1535 = vunpack.c.l.b16 %v1514
  %v1536 = vunpack.c.h.b16 %v1514
  %v1537 = vunpack.c.l.b16 %v1515
  %v1538 = vunpack.c.h.b16 %v1515
  %v1539 = vunpack.c.l.b16 %v1516
  %v1540 = vunpack.c.h.b16 %v1516
  %v1541 = vpack.c.b16 %v1525, %v1525
  %v1542 = vpack.c.b16 %v1526, %v1526
  %v1543 = vpack.c.b16 %v1527, %v1527
  %v1544 = vpack.c.b16 %v1528, %v1528
  %v1545 = vpack.c.b16 %v1529, %v1529
  %v1546 = vpack.c.b16 %v1530, %v1530
  %v1547 = vpack.c.b16 %v1531, %v1531
  %v1548 = vpack.c.b16 %v1532, %v1532
  %v1549 = vpack.c.b16 %v1533, %v1533
  %v1550 = vpack.c.b16 %v1534, %v1534
  %v1551 = vpack.c.b16 %v1535, %v1535
  %v1552 = vpack.c.b16 %v1536, %v1536
  %v1553 = vpack.c.b16 %v1537, %v1537
  %v1554 = vpack.c.b16 %v1538, %v1538
  %v1555 = vpack.c.b16 %v1539, %v1539
  %v1556 = vpack.c.b16 %v1540, %v1540
  %1573 = vst [vmem:[%s14] sm:$0xf] %v1541
  %1574 = vst [vmem:[%s14 + $0x4] sm:$0xf] %v1542
  %1575 = vst [vmem:[%s14 + $0x8] sm:$0xf] %v1543
  %1576 = vst [vmem:[%s14 + $0xc] sm:$0xf] %v1544
  %1577 = vst [vmem:[%s14 + $0x10] sm:$0xf] %v1545
  %1578 = vst [vmem:[%s14 + $0x14] sm:$0xf] %v1546
  %1579 = vst [vmem:[%s14 + $0x18] sm:$0xf] %v1547
  %1580 = vst [vmem:[%s14 + $0x1c] sm:$0xf] %v1548
  %1581 = vst [vmem:[%s14 + $0x20] sm:$0xf] %v1549
  %1582 = vst [vmem:[%s14 + $0x24] sm:$0xf] %v1550
  %1583 = vst [vmem:[%s14 + $0x28] sm:$0xf] %v1551
  %1584 = vst [vmem:[%s14 + $0x2c] sm:$0xf] %v1552
  %1585 = vst [vmem:[%s14 + $0x30] sm:$0xf] %v1553
  %1586 = vst [vmem:[%s14 + $0x34] sm:$0xf] %v1554
  %1587 = vst [vmem:[%s14 + $0x38] sm:$0xf] %v1555
  %1588 = vst [vmem:[%s14 + $0x3c] sm:$0xf] %v1556
  // Predicated region
  $region58: #{_lambda_.40} parent=0 // pred_check
    _
  $region59: #{_lambda_.40} parent=0 // pred_check_branch
    %1590 = sbr.rel (0) target = $region61
  $region60: #{_lambda_.40} parent=0 // pred_region
    _
  $region61: #{_lambda_.40} parent=0 // pred_fallthru
    _
  // Predicated region
  $region62: #{_lambda_.40} parent=0 // pred_check
    _
  $region63: #{_lambda_.40} parent=0 // pred_check_branch
    %1592 = sbr.rel (0) target = $region65
  $region64: #{_lambda_.40} parent=0 // pred_region
    _
  $region65: #{_lambda_.40} parent=0 // pred_fallthru
    _

// kernel: _lambda_.44
$region0: #{_lambda_.44}
  #allocation0 [shape = 'u32[]', space=smem, size = 0x4, offset = 0x4, fixed_abs, tag = 'smem constant byte address 0x4 - core index']
  #allocation1 [shape = 'u32[144,128]{1,0:T(1,128)}', space=vmem, size = 0x12000, scoped, tag = 'internal scratch']
  %s0 = inlined_call_operand.vmem [shape: f32[512,128], index: 0, kind: input, shape index: {}]
  %s1 = inlined_call_operand.vmem [shape: f32[1,128], index: 1, kind: input, shape index: {}]
  %s2 = inlined_call_operand.vmem [shape: f32[1,128], index: 2, kind: input, shape index: {}]
  %s3 = inlined_call_operand.vmem [shape: f32[1,128], index: 3, kind: input, shape index: {}]
  %s4 = inlined_call_operand.vmem [shape: f32[1,128], index: 4, kind: input, shape index: {}]
  %s5 = inlined_call_operand.vmem [shape: bf16[512,128], index: 5, kind: output, shape index: {}]
  %s6 = sld [smem:[#allocation0]]
  $region53: #{_lambda_.44} parent=0
    _
  %s8 = ssub.s32 1, %s6
  %s9 = scalar_select 0, %s8, %s6
  loop: start=0, step=1, limit=4
  $region2: #{_lambda_.44} parent=0 // loop_pre_header
    _
  $region3: #{_lambda_.44} parent=0 // loop_header
    %s11 = sphi 0, %s15
    %p12 = scmp.ge.s32.totalorder %s11, 4
    %s21 = sphi 0, %s23
    %s24 = sphi 0, %s21
    %s25 = sphi 0, %s24
    %s41 = sphi 0, %s25
    %s45 = sphi 0, %s45
    %s47 = sphi 0, %s45
    %s48 = sphi 0, %s47
    %s62 = sphi 0, %s48
    %s66 = sphi 0, %s66
    %s68 = sphi 0, %s66
    %s69 = sphi 0, %s68
    %s83 = sphi 0, %s69
    %s87 = sphi 0, %s87
    %s89 = sphi 0, %s87
    %s90 = sphi 0, %s89
    %s104 = sphi 0, %s90
    %s108 = sphi 0, %s108
    %s110 = sphi 0, %s108
    %s111 = sphi 0, %s110
    %s125 = sphi 0, %s111
    %s131 = sphi 0, %s133
    %s134 = sphi 0, %s131
    %s135 = sphi 0, %s134
    %s151 = sphi 0, %s135
  $region4: #{_lambda_.44} parent=0 // loop_header_branch
    %14 = sbr.rel (%p12) target = $region8
  $region5: #{_lambda_.44} parent=0 // loop_body
    %s16 = ssub.s32 %s11, 1
    %s17 = ssub.s32 %s11, 2
    %s18 = sadd.s32 %s11, 1
    %s19 = ssub.s32 %s11, %s18
    %p20 = scmp.eq.s32.totalorder %s19, 0
    %s22 = sadd.s32 %s21, 1
    %s23 = scalar_select %p20, %s21, %s22
    %p26 = pneg %p20
    %p27 = scmp.eq.s32.totalorder %s11, 1
    %p28 = por %p26, %p27
    %p29 = scmp.ne.s32.totalorder %s21, %s24
    %p30 = scmp.eq.s32.totalorder %s11, 0
    %p31 = por %p29, %p30
    %p32 = scmp.ne.s32.totalorder %s21, %s24
    %p33 = scmp.eq.s32.totalorder %s16, 1
    %p34 = por %p32, %p33
    %p35 = scmp.ne.s32.totalorder %s24, %s25
    %p36 = scmp.eq.s32.totalorder %s16, 0
    %p37 = por %p35, %p36
    %p38 = scmp.ne.s32.totalorder %s24, %s25
    %p39 = scmp.eq.s32.totalorder %s17, 1
    %p40 = por %p38, %p39
    %p42 = scmp.ne.s32.totalorder %s25, %s41
    %p43 = scmp.eq.s32.totalorder %s17, 0
    %p44 = por %p42, %p43
    %s46 = sadd.s32 %s45, 1
    %p49 = scmp.eq.s32.totalorder %s11, 1
    %p50 = scmp.ne.s32.totalorder %s45, %s47
    %p51 = scmp.eq.s32.totalorder %s11, 0
    %p52 = por %p50, %p51
    %p53 = scmp.ne.s32.totalorder %s45, %s47
    %p54 = scmp.eq.s32.totalorder %s16, 1
    %p55 = por %p53, %p54
    %p56 = scmp.ne.s32.totalorder %s47, %s48
    %p57 = scmp.eq.s32.totalorder %s16, 0
    %p58 = por %p56, %p57
    %p59 = scmp.ne.s32.totalorder %s47, %s48
    %p60 = scmp.eq.s32.totalorder %s17, 1
    %p61 = por %p59, %p60
    %p63 = scmp.ne.s32.totalorder %s48, %s62
    %p64 = scmp.eq.s32.totalorder %s17, 0
    %p65 = por %p63, %p64
    %s67 = sadd.s32 %s66, 1
    %p70 = scmp.eq.s32.totalorder %s11, 1
    %p71 = scmp.ne.s32.totalorder %s66, %s68
    %p72 = scmp.eq.s32.totalorder %s11, 0
    %p73 = por %p71, %p72
    %p74 = scmp.ne.s32.totalorder %s66, %s68
    %p75 = scmp.eq.s32.totalorder %s16, 1
    %p76 = por %p74, %p75
    %p77 = scmp.ne.s32.totalorder %s68, %s69
    %p78 = scmp.eq.s32.totalorder %s16, 0
    %p79 = por %p77, %p78
    %p80 = scmp.ne.s32.totalorder %s68, %s69
    %p81 = scmp.eq.s32.totalorder %s17, 1
    %p82 = por %p80, %p81
    %p84 = scmp.ne.s32.totalorder %s69, %s83
    %p85 = scmp.eq.s32.totalorder %s17, 0
    %p86 = por %p84, %p85
    %s88 = sadd.s32 %s87, 1
    %p91 = scmp.eq.s32.totalorder %s11, 1
    %p92 = scmp.ne.s32.totalorder %s87, %s89
    %p93 = scmp.eq.s32.totalorder %s11, 0
    %p94 = por %p92, %p93
    %p95 = scmp.ne.s32.totalorder %s87, %s89
    %p96 = scmp.eq.s32.totalorder %s16, 1
    %p97 = por %p95, %p96
    %p98 = scmp.ne.s32.totalorder %s89, %s90
    %p99 = scmp.eq.s32.totalorder %s16, 0
    %p100 = por %p98, %p99
    %p101 = scmp.ne.s32.totalorder %s89, %s90
    %p102 = scmp.eq.s32.totalorder %s17, 1
    %p103 = por %p101, %p102
    %p105 = scmp.ne.s32.totalorder %s90, %s104
    %p106 = scmp.eq.s32.totalorder %s17, 0
    %p107 = por %p105, %p106
    %s109 = sadd.s32 %s108, 1
    %p112 = scmp.eq.s32.totalorder %s11, 1
    %p113 = scmp.ne.s32.totalorder %s108, %s110
    %p114 = scmp.eq.s32.totalorder %s11, 0
    %p115 = por %p113, %p114
    %p116 = scmp.ne.s32.totalorder %s108, %s110
    %p117 = scmp.eq.s32.totalorder %s16, 1
    %p118 = por %p116, %p117
    %p119 = scmp.ne.s32.totalorder %s110, %s111
    %p120 = scmp.eq.s32.totalorder %s16, 0
    %p121 = por %p119, %p120
    %p122 = scmp.ne.s32.totalorder %s110, %s111
    %p123 = scmp.eq.s32.totalorder %s17, 1
    %p124 = por %p122, %p123
    %p126 = scmp.ne.s32.totalorder %s111, %s125
    %p127 = scmp.eq.s32.totalorder %s17, 0
    %p128 = por %p126, %p127
    %s129 = ssub.s32 %s11, %s18
    %p130 = scmp.eq.s32.totalorder %s129, 0
    %s132 = sadd.s32 %s131, 1
    %s133 = scalar_select %p130, %s131, %s132
    %p136 = pneg %p130
    %p137 = scmp.eq.s32.totalorder %s11, 1
    %p138 = por %p136, %p137
    %p139 = scmp.ne.s32.totalorder %s131, %s134
    %p140 = scmp.eq.s32.totalorder %s11, 0
    %p141 = por %p139, %p140
    %p142 = scmp.ne.s32.totalorder %s131, %s134
    %p143 = scmp.eq.s32.totalorder %s16, 1
    %p144 = por %p142, %p143
    %p145 = scmp.ne.s32.totalorder %s134, %s135
    %p146 = scmp.eq.s32.totalorder %s16, 0
    %p147 = por %p145, %p146
    %p148 = scmp.ne.s32.totalorder %s134, %s135
    %p149 = scmp.eq.s32.totalorder %s17, 1
    %p150 = por %p148, %p149
    %p152 = scmp.ne.s32.totalorder %s135, %s151
    %p153 = scmp.eq.s32.totalorder %s17, 0
    %p154 = por %p152, %p153
    %p155 = scmp.le.s32.totalorder 1, %s11
    %p156 = scmp.lt.s32.totalorder %s11, 3
    %p157 = pnand %p155, %p156
    %p158 = pneg %p157
    // Predicated region
    $region9: #{_lambda_.44} parent=5 // pred_check
      _
    $region10: #{_lambda_.44} parent=5 // pred_check_branch
      %160 = sbr.rel (%p157) target = $region12
    $region11: #{_lambda_.44} parent=5 // pred_region
      %s161 = ssub.s32 %s11, 1
      // Predicated region
      $region13: #{_lambda_.44} parent=11 // pred_check
        %p162 = pneg %p58
      $region14: #{_lambda_.44} parent=11 // pred_check_branch
        %164 = sbr.rel (%p162) target = $region16
      $region15: #{_lambda_.44} parent=11 // pred_region
        _
      $region16: #{_lambda_.44} parent=11 // pred_fallthru
        _
      // Predicated region
      $region17: #{_lambda_.44} parent=11 // pred_check
        %p165 = pneg %p79
      $region18: #{_lambda_.44} parent=11 // pred_check_branch
        %167 = sbr.rel (%p165) target = $region20
      $region19: #{_lambda_.44} parent=11 // pred_region
        _
      $region20: #{_lambda_.44} parent=11 // pred_fallthru
        _
      // Predicated region
      $region21: #{_lambda_.44} parent=11 // pred_check
        %p168 = pneg %p100
      $region22: #{_lambda_.44} parent=11 // pred_check_branch
        %170 = sbr.rel (%p168) target = $region24
      $region23: #{_lambda_.44} parent=11 // pred_region
        _
      $region24: #{_lambda_.44} parent=11 // pred_fallthru
        _
      // Predicated region
      $region25: #{_lambda_.44} parent=11 // pred_check
        %p171 = pneg %p121
      $region26: #{_lambda_.44} parent=11 // pred_check_branch
        %173 = sbr.rel (%p171) target = $region28
      $region27: #{_lambda_.44} parent=11 // pred_region
        _
      $region28: #{_lambda_.44} parent=11 // pred_fallthru
        _
    $region12: #{_lambda_.44} parent=5 // pred_fallthru
      _
    %p174 = scmp.lt.s32.totalorder %s11, 2
    // Predicated region
    $region29: #{_lambda_.44} parent=5 // pred_check
      %p175 = pneg %p174
    $region30: #{_lambda_.44} parent=5 // pred_check_branch
      %177 = sbr.rel (%p175) target = $region32
    $region31: #{_lambda_.44} parent=5 // pred_region
      // Predicated region
      $region33: #{_lambda_.44} parent=31 // pred_check
        %p178 = pneg %p31
      $region34: #{_lambda_.44} parent=31 // pred_check_branch
        %180 = sbr.rel (%p178) target = $region36
      $region35: #{_lambda_.44} parent=31 // pred_region
        %s181 = smul.u32 32, %s11
        %p182 = scmp.lt.s32.totalorder %s181, 63
        %s183 = scalar_select %p182, %s181, 63
        %s184 = smul.addr %s183, 8
        %s185 = scalar_lea.vmem %s0, %s184
        %s186 = smul.u32 32, %s11
      $region36: #{_lambda_.44} parent=31 // pred_fallthru
        _
    $region32: #{_lambda_.44} parent=5 // pred_fallthru
      _
    %p187 = scmp.le.s32.totalorder 1, %s11
    %p188 = scmp.lt.s32.totalorder %s11, 3
    %p189 = pnand %p187, %p188
    %p190 = pneg %p189
    // Predicated region
    $region37: #{_lambda_.44} parent=5 // pred_check
      _
    $region38: #{_lambda_.44} parent=5 // pred_check_branch
      %192 = sbr.rel (%p189) target = $region40
    $region39: #{_lambda_.44} parent=5 // pred_region
      %s193 = ssub.s32 %s11, 1
      %s194 = smul.u32 32, %s16
      %p195 = scmp.lt.s32.totalorder %s194, 63
      %s196 = scalar_select %p195, %s194, 63
      %s197 = smul.addr %s196, 8
      %s198 = scalar_lea.vmem %s0, %s197
      %p199 = pneg %p37
      %p200 = pneg %p34
      %p201 = pneg %p58
      %p202 = pneg %p55
      %p203 = pneg %p79
      %p204 = pneg %p76
      %p205 = pneg %p100
      %p206 = pneg %p97
      %p207 = pneg %p121
      %p208 = pneg %p118
      %p209 = pneg %p147
      %p210 = pneg %p144
      %s211 = smul.u32 32, %s16
      %p212 = scmp.lt.s32.totalorder %s211, 63
      %s213 = scalar_select %p212, %s211, 63
      %s214 = smul.addr %s213, 4
      %s215 = scalar_lea.vmem %s5, %s214
      %s216 = smul.u32 32, %s16
      %p217 = scmp.lt.s32.totalorder %s216, 63
      %s218 = scalar_select %p217, %s216, 63
      %s219 = smul.addr %s218, 8
      %s220 = scalar_lea.vmem %s0, %s219
      %s221 = smul.u32 32, %s16
      %s222 = smul.u32 32, %s16
      %p223 = scmp.lt.s32.totalorder %s222, 63
      %s224 = scalar_select %p223, %s222, 63
      %s225 = smul.addr %s224, 4
      %s226 = scalar_lea.vmem %s5, %s225
      %s227 = smul.u32 32, %s16
      %v228 = vld [vmem:[%s1] sm:$0x1]
      %v229 = vmul.f32 %v228, 0.001953125
      %v230 = vld [vmem:[%s2] sm:$0x1]
      %v231 = vmul.f32 %v230, 0.001953125
      %v232 = vmul.f32 %v229, %v229
      %v233 = vsub.f32 %v231, %v232
      %v234 = vmax.f32 %v233, 0.0
      %v235 = vld [vmem:[%s220] sm:$0xff]
      %v236 = vld [vmem:[%s220 + $0x8] sm:$0xff]
      %v237 = vld [vmem:[%s220 + $0x10] sm:$0xff]
      %v238 = vld [vmem:[%s220 + $0x18] sm:$0xff]
      %v239 = vld [vmem:[%s220 + $0x20] sm:$0xff]
      %v240 = vld [vmem:[%s220 + $0x28] sm:$0xff]
      %v241 = vld [vmem:[%s220 + $0x30] sm:$0xff]
      %v242 = vld [vmem:[%s220 + $0x38] sm:$0xff]
      %v243 = vld [vmem:[%s220 + $0x40] sm:$0xff]
      %v244 = vld [vmem:[%s220 + $0x48] sm:$0xff]
      %v245 = vld [vmem:[%s220 + $0x50] sm:$0xff]
      %v246 = vld [vmem:[%s220 + $0x58] sm:$0xff]
      %v247 = vld [vmem:[%s220 + $0x60] sm:$0xff]
      %v248 = vld [vmem:[%s220 + $0x68] sm:$0xff]
      %v249 = vld [vmem:[%s220 + $0x70] sm:$0xff]
      %v250 = vld [vmem:[%s220 + $0x78] sm:$0xff]
      %v251 = vld [vmem:[%s220 + $0x80] sm:$0xff]
      %v252 = vld [vmem:[%s220 + $0x88] sm:$0xff]
      %v253 = vld [vmem:[%s220 + $0x90] sm:$0xff]
      %v254 = vld [vmem:[%s220 + $0x98] sm:$0xff]
      %v255 = vld [vmem:[%s220 + $0xa0] sm:$0xff]
      %v256 = vld [vmem:[%s220 + $0xa8] sm:$0xff]
      %v257 = vld [vmem:[%s220 + $0xb0] sm:$0xff]
      %v258 = vld [vmem:[%s220 + $0xb8] sm:$0xff]
      %v259 = vld [vmem:[%s220 + $0xc0] sm:$0xff]
      %v260 = vld [vmem:[%s220 + $0xc8] sm:$0xff]
      %v261 = vld [vmem:[%s220 + $0xd0] sm:$0xff]
      %v262 = vld [vmem:[%s220 + $0xd8] sm:$0xff]
      %v263 = vld [vmem:[%s220 + $0xe0] sm:$0xff]
      %v264 = vld [vmem:[%s220 + $0xe8] sm:$0xff]
      %v265 = vld [vmem:[%s220 + $0xf0] sm:$0xff]
      %v266 = vld [vmem:[%s220 + $0xf8] sm:$0xff]
      %v268 = vlaneseq
      %v269 = vshrl.u32 %v268, 7
      %v270 = vsub.s32 0, %v269
      %v271 = vrot.slane %v229, %v270
      %v273 = vsub.f32 %v235, %v271
      %v274 = vsub.f32 %v236, %v271
      %v275 = vsub.f32 %v237, %v271
      %v276 = vsub.f32 %v238, %v271
      %v277 = vsub.f32 %v239, %v271
      %v278 = vsub.f32 %v240, %v271
      %v279 = vsub.f32 %v241, %v271
      %v280 = vsub.f32 %v242, %v271
      %v281 = vsub.f32 %v243, %v271
      %v282 = vsub.f32 %v244, %v271
      %v283 = vsub.f32 %v245, %v271
      %v284 = vsub.f32 %v246, %v271
      %v285 = vsub.f32 %v247, %v271
      %v286 = vsub.f32 %v248, %v271
      %v287 = vsub.f32 %v249, %v271
      %v288 = vsub.f32 %v250, %v271
      %v289 = vsub.f32 %v251, %v271
      %v290 = vsub.f32 %v252, %v271
      %v291 = vsub.f32 %v253, %v271
      %v292 = vsub.f32 %v254, %v271
      %v293 = vsub.f32 %v255, %v271
      %v294 = vsub.f32 %v256, %v271
      %v295 = vsub.f32 %v257, %v271
      %v296 = vsub.f32 %v258, %v271
      %v297 = vsub.f32 %v259, %v271
      %v298 = vsub.f32 %v260, %v271
      %v299 = vsub.f32 %v261, %v271
      %v300 = vsub.f32 %v262, %v271
      %v301 = vsub.f32 %v263, %v271
      %v302 = vsub.f32 %v264, %v271
      %v303 = vsub.f32 %v265, %v271
      %v304 = vsub.f32 %v266, %v271
      %v305 = vadd.f32 %v234, 1e-05
      %v306 = vrsqrt.pop %v305
      %v308 = vlaneseq
      %v309 = vshrl.u32 %v308, 7
      %v310 = vsub.s32 0, %v309
      %v311 = vrot.slane %v306, %v310
      %v313 = vmul.f32 %v273, %v311
      %v314 = vmul.f32 %v274, %v311
      %v315 = vmul.f32 %v275, %v311
      %v316 = vmul.f32 %v276, %v311
      %v317 = vmul.f32 %v277, %v311
      %v318 = vmul.f32 %v278, %v311
      %v319 = vmul.f32 %v279, %v311
      %v320 = vmul.f32 %v280, %v311
      %v321 = vmul.f32 %v281, %v311
      %v322 = vmul.f32 %v282, %v311
      %v323 = vmul.f32 %v283, %v311
      %v324 = vmul.f32 %v284, %v311
      %v325 = vmul.f32 %v285, %v311
      %v326 = vmul.f32 %v286, %v311
      %v327 = vmul.f32 %v287, %v311
      %v328 = vmul.f32 %v288, %v311
      %v329 = vmul.f32 %v289, %v311
      %v330 = vmul.f32 %v290, %v311
      %v331 = vmul.f32 %v291, %v311
      %v332 = vmul.f32 %v292, %v311
      %v333 = vmul.f32 %v293, %v311
      %v334 = vmul.f32 %v294, %v311
      %v335 = vmul.f32 %v295, %v311
      %v336 = vmul.f32 %v296, %v311
      %v337 = vmul.f32 %v297, %v311
      %v338 = vmul.f32 %v298, %v311
      %v339 = vmul.f32 %v299, %v311
      %v340 = vmul.f32 %v300, %v311
      %v341 = vmul.f32 %v301, %v311
      %v342 = vmul.f32 %v302, %v311
      %v343 = vmul.f32 %v303, %v311
      %v344 = vmul.f32 %v304, %v311
      %v345 = vld [vmem:[%s3] sm:$0x1]
      %v347 = vlaneseq
      %v348 = vshrl.u32 %v347, 7
      %v349 = vsub.s32 0, %v348
      %v350 = vrot.slane %v345, %v349
      %v352 = vmul.f32 %v313, %v350
      %v353 = vmul.f32 %v314, %v350
      %v354 = vmul.f32 %v315, %v350
      %v355 = vmul.f32 %v316, %v350
      %v356 = vmul.f32 %v317, %v350
      %v357 = vmul.f32 %v318, %v350
      %v358 = vmul.f32 %v319, %v350
      %v359 = vmul.f32 %v320, %v350
      %v360 = vmul.f32 %v321, %v350
      %v361 = vmul.f32 %v322, %v350
      %v362 = vmul.f32 %v323, %v350
      %v363 = vmul.f32 %v324, %v350
      %v364 = vmul.f32 %v325, %v350
      %v365 = vmul.f32 %v326, %v350
      %v366 = vmul.f32 %v327, %v350
      %v367 = vmul.f32 %v328, %v350
      %v368 = vmul.f32 %v329, %v350
      %v369 = vmul.f32 %v330, %v350
      %v370 = vmul.f32 %v331, %v350
      %v371 = vmul.f32 %v332, %v350
      %v372 = vmul.f32 %v333, %v350
      %v373 = vmul.f32 %v334, %v350
      %v374 = vmul.f32 %v335, %v350
      %v375 = vmul.f32 %v336, %v350
      %v376 = vmul.f32 %v337, %v350
      %v377 = vmul.f32 %v338, %v350
      %v378 = vmul.f32 %v339, %v350
      %v379 = vmul.f32 %v340, %v350
      %v380 = vmul.f32 %v341, %v350
      %v381 = vmul.f32 %v342, %v350
      %v382 = vmul.f32 %v343, %v350
      %v383 = vmul.f32 %v344, %v350
      %v384 = vld [vmem:[%s4] sm:$0x1]
      %v386 = vlaneseq
      %v387 = vshrl.u32 %v386, 7
      %v388 = vsub.s32 0, %v387
      %v389 = vrot.slane %v384, %v388
      %v391 = vadd.f32 %v352, %v389
      %v392 = vadd.f32 %v353, %v389
      %v393 = vadd.f32 %v354, %v389
      %v394 = vadd.f32 %v355, %v389
      %v395 = vadd.f32 %v356, %v389
      %v396 = vadd.f32 %v357, %v389
      %v397 = vadd.f32 %v358, %v389
      %v398 = vadd.f32 %v359, %v389
      %v399 = vadd.f32 %v360, %v389
      %v400 = vadd.f32 %v361, %v389
      %v401 = vadd.f32 %v362, %v389
      %v402 = vadd.f32 %v363, %v389
      %v403 = vadd.f32 %v364, %v389
      %v404 = vadd.f32 %v365, %v389
      %v405 = vadd.f32 %v366, %v389
      %v406 = vadd.f32 %v367, %v389
      %v407 = vadd.f32 %v368, %v389
      %v408 = vadd.f32 %v369, %v389
      %v409 = vadd.f32 %v370, %v389
      %v410 = vadd.f32 %v371, %v389
      %v411 = vadd.f32 %v372, %v389
      %v412 = vadd.f32 %v373, %v389
      %v413 = vadd.f32 %v374, %v389
      %v414 = vadd.f32 %v375, %v389
      %v415 = vadd.f32 %v376, %v389
      %v416 = vadd.f32 %v377, %v389
      %v417 = vadd.f32 %v378, %v389
      %v418 = vadd.f32 %v379, %v389
      %v419 = vadd.f32 %v380, %v389
      %v420 = vadd.f32 %v381, %v389
      %v421 = vadd.f32 %v382, %v389
      %v422 = vadd.f32 %v383, %v389
      %v423 = vmax.f32 %v391, 0.0
      %v424 = vmax.f32 %v392, 0.0
      %v425 = vmax.f32 %v393, 0.0
      %v426 = vmax.f32 %v394, 0.0
      %v427 = vmax.f32 %v395, 0.0
      %v428 = vmax.f32 %v396, 0.0
      %v429 = vmax.f32 %v397, 0.0
      %v430 = vmax.f32 %v398, 0.0
      %v431 = vmax.f32 %v399, 0.0
      %v432 = vmax.f32 %v400, 0.0
      %v433 = vmax.f32 %v401, 0.0
      %v434 = vmax.f32 %v402, 0.0
      %v435 = vmax.f32 %v403, 0.0
      %v436 = vmax.f32 %v404, 0.0
      %v437 = vmax.f32 %v405, 0.0
      %v438 = vmax.f32 %v406, 0.0
      %v439 = vmax.f32 %v407, 0.0
      %v440 = vmax.f32 %v408, 0.0
      %v441 = vmax.f32 %v409, 0.0
      %v442 = vmax.f32 %v410, 0.0
      %v443 = vmax.f32 %v411, 0.0
      %v444 = vmax.f32 %v412, 0.0
      %v445 = vmax.f32 %v413, 0.0
      %v446 = vmax.f32 %v414, 0.0
      %v447 = vmax.f32 %v415, 0.0
      %v448 = vmax.f32 %v416, 0.0
      %v449 = vmax.f32 %v417, 0.0
      %v450 = vmax.f32 %v418, 0.0
      %v451 = vmax.f32 %v419, 0.0
      %v452 = vmax.f32 %v420, 0.0
      %v453 = vmax.f32 %v421, 0.0
      %v454 = vmax.f32 %v422, 0.0
      %v455 = vpack.c.bf16 %v424, %v423
      %v456 = vpack.c.bf16 %v426, %v425
      %v457 = vpack.c.bf16 %v428, %v427
      %v458 = vpack.c.bf16 %v430, %v429
      %v459 = vpack.c.bf16 %v432, %v431
      %v460 = vpack.c.bf16 %v434, %v433
      %v461 = vpack.c.bf16 %v436, %v435
      %v462 = vpack.c.bf16 %v438, %v437
      %v463 = vpack.c.bf16 %v440, %v439
      %v464 = vpack.c.bf16 %v442, %v441
      %v465 = vpack.c.bf16 %v444, %v443
      %v466 = vpack.c.bf16 %v446, %v445
      %v467 = vpack.c.bf16 %v448, %v447
      %v468 = vpack.c.bf16 %v450, %v449
      %v469 = vpack.c.bf16 %v452, %v451
      %v470 = vpack.c.bf16 %v454, %v453
      %v487 = vunpack.c.l.b16 %v455
      %v488 = vunpack.c.h.b16 %v455
      %v489 = vunpack.c.l.b16 %v456
      %v490 = vunpack.c.h.b16 %v456
      %v491 = vunpack.c.l.b16 %v457
      %v492 = vunpack.c.h.b16 %v457
      %v493 = vunpack.c.l.b16 %v458
      %v494 = vunpack.c.h.b16 %v458
      %v495 = vunpack.c.l.b16 %v459
      %v496 = vunpack.c.h.b16 %v459
      %v497 = vunpack.c.l.b16 %v460
      %v498 = vunpack.c.h.b16 %v460
      %v499 = vunpack.c.l.b16 %v461
      %v500 = vunpack.c.h.b16 %v461
      %v501 = vunpack.c.l.b16 %v462
      %v502 = vunpack.c.h.b16 %v462
      %v503 = vunpack.c.l.b16 %v463
      %v504 = vunpack.c.h.b16 %v463
      %v505 = vunpack.c.l.b16 %v464
      %v506 = vunpack.c.h.b16 %v464
      %v507 = vunpack.c.l.b16 %v465
      %v508 = vunpack.c.h.b16 %v465
      %v509 = vunpack.c.l.b16 %v466
      %v510 = vunpack.c.h.b16 %v466
      %v511 = vunpack.c.l.b16 %v467
      %v512 = vunpack.c.h.b16 %v467
      %v513 = vunpack.c.l.b16 %v468
      %v514 = vunpack.c.h.b16 %v468
      %v515 = vunpack.c.l.b16 %v469
      %v516 = vunpack.c.h.b16 %v469
      %v517 = vunpack.c.l.b16 %v470
      %v518 = vunpack.c.h.b16 %v470
      %v519 = vpack.c.b16 %v487, %v487
      %v520 = vpack.c.b16 %v488, %v488
      %v521 = vpack.c.b16 %v489, %v489
      %v522 = vpack.c.b16 %v490, %v490
      %v523 = vpack.c.b16 %v491, %v491
      %v524 = vpack.c.b16 %v492, %v492
      %v525 = vpack.c.b16 %v493, %v493
      %v526 = vpack.c.b16 %v494, %v494
      %v527 = vpack.c.b16 %v495, %v495
      %v528 = vpack.c.b16 %v496, %v496
      %v529 = vpack.c.b16 %v497, %v497
      %v530 = vpack.c.b16 %v498, %v498
      %v531 = vpack.c.b16 %v499, %v499
      %v532 = vpack.c.b16 %v500, %v500
      %v533 = vpack.c.b16 %v501, %v501
      %v534 = vpack.c.b16 %v502, %v502
      %v535 = vpack.c.b16 %v503, %v503
      %v536 = vpack.c.b16 %v504, %v504
      %v537 = vpack.c.b16 %v505, %v505
      %v538 = vpack.c.b16 %v506, %v506
      %v539 = vpack.c.b16 %v507, %v507
      %v540 = vpack.c.b16 %v508, %v508
      %v541 = vpack.c.b16 %v509, %v509
      %v542 = vpack.c.b16 %v510, %v510
      %v543 = vpack.c.b16 %v511, %v511
      %v544 = vpack.c.b16 %v512, %v512
      %v545 = vpack.c.b16 %v513, %v513
      %v546 = vpack.c.b16 %v514, %v514
      %v547 = vpack.c.b16 %v515, %v515
      %v548 = vpack.c.b16 %v516, %v516
      %v549 = vpack.c.b16 %v517, %v517
      %v550 = vpack.c.b16 %v518, %v518
      %583 = vst [vmem:[%s226] sm:$0xf] %v519
      %584 = vst [vmem:[%s226 + $0x4] sm:$0xf] %v520
      %585 = vst [vmem:[%s226 + $0x8] sm:$0xf] %v521
      %586 = vst [vmem:[%s226 + $0xc] sm:$0xf] %v522
      %587 = vst [vmem:[%s226 + $0x10] sm:$0xf] %v523
      %588 = vst [vmem:[%s226 + $0x14] sm:$0xf] %v524
      %589 = vst [vmem:[%s226 + $0x18] sm:$0xf] %v525
      %590 = vst [vmem:[%s226 + $0x1c] sm:$0xf] %v526
      %591 = vst [vmem:[%s226 + $0x20] sm:$0xf] %v527
      %592 = vst [vmem:[%s226 + $0x24] sm:$0xf] %v528
      %593 = vst [vmem:[%s226 + $0x28] sm:$0xf] %v529
      %594 = vst [vmem:[%s226 + $0x2c] sm:$0xf] %v530
      %595 = vst [vmem:[%s226 + $0x30] sm:$0xf] %v531
      %596 = vst [vmem:[%s226 + $0x34] sm:$0xf] %v532
      %597 = vst [vmem:[%s226 + $0x38] sm:$0xf] %v533
      %598 = vst [vmem:[%s226 + $0x3c] sm:$0xf] %v534
      %599 = vst [vmem:[%s226 + $0x40] sm:$0xf] %v535
      %600 = vst [vmem:[%s226 + $0x44] sm:$0xf] %v536
      %601 = vst [vmem:[%s226 + $0x48] sm:$0xf] %v537
      %602 = vst [vmem:[%s226 + $0x4c] sm:$0xf] %v538
      %603 = vst [vmem:[%s226 + $0x50] sm:$0xf] %v539
      %604 = vst [vmem:[%s226 + $0x54] sm:$0xf] %v540
      %605 = vst [vmem:[%s226 + $0x58] sm:$0xf] %v541
      %606 = vst [vmem:[%s226 + $0x5c] sm:$0xf] %v542
      %607 = vst [vmem:[%s226 + $0x60] sm:$0xf] %v543
      %608 = vst [vmem:[%s226 + $0x64] sm:$0xf] %v544
      %609 = vst [vmem:[%s226 + $0x68] sm:$0xf] %v545
      %610 = vst [vmem:[%s226 + $0x6c] sm:$0xf] %v546
      %611 = vst [vmem:[%s226 + $0x70] sm:$0xf] %v547
      %612 = vst [vmem:[%s226 + $0x74] sm:$0xf] %v548
      %613 = vst [vmem:[%s226 + $0x78] sm:$0xf] %v549
      %614 = vst [vmem:[%s226 + $0x7c] sm:$0xf] %v550
      %s615 = smul.u32 32, %s16
      %p616 = scmp.lt.s32.totalorder %s615, 63
      %s617 = scalar_select %p616, %s615, 63
      %s618 = smul.addr %s617, 4
      %s619 = scalar_lea.vmem %s5, %s618
      // Predicated region
      $region41: #{_lambda_.44} parent=39 // pred_check
        %p620 = pneg %p144
      $region42: #{_lambda_.44} parent=39 // pred_check_branch
        %622 = sbr.rel (%p620) target = $region44
      $region43: #{_lambda_.44} parent=39 // pred_region
        %s623 = smul.u32 32, %s16
      $region44: #{_lambda_.44} parent=39 // pred_fallthru
        _
    $region40: #{_lambda_.44} parent=5 // pred_fallthru
      _
    %p624 = scmp.le.s32.totalorder 2, %s11
    // Predicated region
    $region45: #{_lambda_.44} parent=5 // pred_check
      %p625 = pneg %p624
    $region46: #{_lambda_.44} parent=5 // pred_check_branch
      %627 = sbr.rel (%p625) target = $region48
    $region47: #{_lambda_.44} parent=5 // pred_region
      %s628 = ssub.s32 %s11, 2
      // Predicated region
      $region49: #{_lambda_.44} parent=47 // pred_check
        %p629 = pneg %p150
      $region50: #{_lambda_.44} parent=47 // pred_check_branch
        %631 = sbr.rel (%p629) target = $region52
      $region51: #{_lambda_.44} parent=47 // pred_region
        %s632 = smul.u32 32, %s17
        %p633 = scmp.lt.s32.totalorder %s632, 63
        %s634 = scalar_select %p633, %s632, 63
        %s635 = smul.addr %s634, 4
        %s636 = scalar_lea.vmem %s5, %s635
      $region52: #{_lambda_.44} parent=47 // pred_fallthru
        _
    $region48: #{_lambda_.44} parent=5 // pred_fallthru
      _
  $region6: #{_lambda_.44} parent=0 // loop_footer
    %s15 = sadd.s32 1, %s11
  $region7: #{_lambda_.44} parent=0 // loop_footer_branch
    %10 = sbr.rel target = $region3
  $region8: #{_lambda_.44} parent=0 // loop_exit
    _

// kernel: _lambda_.43
$region0: #{_lambda_.43}
  #allocation0 [shape = 'u32[]', space=smem, size = 0x4, offset = 0x4, fixed_abs, tag = 'smem constant byte address 0x4 - core index']
  #allocation1 [shape = 'u32[144,128]{1,0:T(1,128)}', space=vmem, size = 0x12000, scoped, tag = 'internal scratch']
  %s0 = inlined_call_operand.vmem [shape: bf16[512,256], index: 0, kind: input, shape index: {}]
  %s1 = inlined_call_operand.vmem [shape: bf16[256,128], index: 1, kind: input, shape index: {}]
  %s2 = inlined_call_operand.vmem [shape: f32[1,128], index: 2, kind: input, shape index: {}]
  %s3 = inlined_call_operand.vmem [shape: f32[512,128], index: 3, kind: output, shape index: {0}]
  %s4 = inlined_call_operand.vmem [shape: f32[1,128], index: 4, kind: output, shape index: {1}]
  %s5 = inlined_call_operand.vmem [shape: f32[1,128], index: 5, kind: output, shape index: {2}]
  %6 = xla_tuple %s3, %s4, %s5
  %s7 = sld [smem:[#allocation0]]
  $region65: #{_lambda_.43} parent=0
    _
  %s9 = ssub.s32 1, %s7
  %s10 = scalar_select 0, %s9, %s7
  loop: start=0, step=1, limit=4
  $region2: #{_lambda_.43} parent=0 // loop_pre_header
    _
  $region3: #{_lambda_.43} parent=0 // loop_header
    %s12 = sphi 0, %s16
    %p13 = scmp.ge.s32.totalorder %s12, 4
    %s22 = sphi 0, %s24
    %s25 = sphi 0, %s22
    %s26 = sphi 0, %s25
    %s42 = sphi 0, %s26
    %s46 = sphi 0, %s46
    %s48 = sphi 0, %s46
    %s49 = sphi 0, %s48
    %s63 = sphi 0, %s49
    %s67 = sphi 0, %s67
    %s69 = sphi 0, %s67
    %s70 = sphi 0, %s69
    %s84 = sphi 0, %s70
    %s90 = sphi 0, %s92
    %s93 = sphi 0, %s90
    %s94 = sphi 0, %s93
    %s110 = sphi 0, %s94
    %s114 = sphi 0, %s114
    %s116 = sphi 0, %s114
    %s117 = sphi 0, %s116
    %s131 = sphi 0, %s117
    %s135 = sphi 0, %s135
    %s137 = sphi 0, %s135
    %s138 = sphi 0, %s137
    %s152 = sphi 0, %s138
  $region4: #{_lambda_.43} parent=0 // loop_header_branch
    %15 = sbr.rel (%p13) target = $region8
  $region5: #{_lambda_.43} parent=0 // loop_body
    %s17 = ssub.s32 %s12, 1
    %s18 = ssub.s32 %s12, 2
    %s19 = sadd.s32 %s12, 1
    %s20 = ssub.s32 %s12, %s19
    %p21 = scmp.eq.s32.totalorder %s20, 0
    %s23 = sadd.s32 %s22, 1
    %s24 = scalar_select %p21, %s22, %s23
    %p27 = pneg %p21
    %p28 = scmp.eq.s32.totalorder %s12, 1
    %p29 = por %p27, %p28
    %p30 = scmp.ne.s32.totalorder %s22, %s25
    %p31 = scmp.eq.s32.totalorder %s12, 0
    %p32 = por %p30, %p31
    %p33 = scmp.ne.s32.totalorder %s22, %s25
    %p34 = scmp.eq.s32.totalorder %s17, 1
    %p35 = por %p33, %p34
    %p36 = scmp.ne.s32.totalorder %s25, %s26
    %p37 = scmp.eq.s32.totalorder %s17, 0
    %p38 = por %p36, %p37
    %p39 = scmp.ne.s32.totalorder %s25, %s26
    %p40 = scmp.eq.s32.totalorder %s18, 1
    %p41 = por %p39, %p40
    %p43 = scmp.ne.s32.totalorder %s26, %s42
    %p44 = scmp.eq.s32.totalorder %s18, 0
    %p45 = por %p43, %p44
    %s47 = sadd.s32 %s46, 1
    %p50 = scmp.eq.s32.totalorder %s12, 1
    %p51 = scmp.ne.s32.totalorder %s46, %s48
    %p52 = scmp.eq.s32.totalorder %s12, 0
    %p53 = por %p51, %p52
    %p54 = scmp.ne.s32.totalorder %s46, %s48
    %p55 = scmp.eq.s32.totalorder %s17, 1
    %p56 = por %p54, %p55
    %p57 = scmp.ne.s32.totalorder %s48, %s49
    %p58 = scmp.eq.s32.totalorder %s17, 0
    %p59 = por %p57, %p58
    %p60 = scmp.ne.s32.totalorder %s48, %s49
    %p61 = scmp.eq.s32.totalorder %s18, 1
    %p62 = por %p60, %p61
    %p64 = scmp.ne.s32.totalorder %s49, %s63
    %p65 = scmp.eq.s32.totalorder %s18, 0
    %p66 = por %p64, %p65
    %s68 = sadd.s32 %s67, 1
    %p71 = scmp.eq.s32.totalorder %s12, 1
    %p72 = scmp.ne.s32.totalorder %s67, %s69
    %p73 = scmp.eq.s32.totalorder %s12, 0
    %p74 = por %p72, %p73
    %p75 = scmp.ne.s32.totalorder %s67, %s69
    %p76 = scmp.eq.s32.totalorder %s17, 1
    %p77 = por %p75, %p76
    %p78 = scmp.ne.s32.totalorder %s69, %s70
    %p79 = scmp.eq.s32.totalorder %s17, 0
    %p80 = por %p78, %p79
    %p81 = scmp.ne.s32.totalorder %s69, %s70
    %p82 = scmp.eq.s32.totalorder %s18, 1
    %p83 = por %p81, %p82
    %p85 = scmp.ne.s32.totalorder %s70, %s84
    %p86 = scmp.eq.s32.totalorder %s18, 0
    %p87 = por %p85, %p86
    %s88 = ssub.s32 %s12, %s19
    %p89 = scmp.eq.s32.totalorder %s88, 0
    %s91 = sadd.s32 %s90, 1
    %s92 = scalar_select %p89, %s90, %s91
    %p95 = pneg %p89
    %p96 = scmp.eq.s32.totalorder %s12, 1
    %p97 = por %p95, %p96
    %p98 = scmp.ne.s32.totalorder %s90, %s93
    %p99 = scmp.eq.s32.totalorder %s12, 0
    %p100 = por %p98, %p99
    %p101 = scmp.ne.s32.totalorder %s90, %s93
    %p102 = scmp.eq.s32.totalorder %s17, 1
    %p103 = por %p101, %p102
    %p104 = scmp.ne.s32.totalorder %s93, %s94
    %p105 = scmp.eq.s32.totalorder %s17, 0
    %p106 = por %p104, %p105
    %p107 = scmp.ne.s32.totalorder %s93, %s94
    %p108 = scmp.eq.s32.totalorder %s18, 1
    %p109 = por %p107, %p108
    %p111 = scmp.ne.s32.totalorder %s94, %s110
    %p112 = scmp.eq.s32.totalorder %s18, 0
    %p113 = por %p111, %p112
    %s115 = sadd.s32 %s114, 1
    %p118 = scmp.eq.s32.totalorder %s12, 1
    %p119 = scmp.ne.s32.totalorder %s114, %s116
    %p120 = scmp.eq.s32.totalorder %s12, 0
    %p121 = por %p119, %p120
    %p122 = scmp.ne.s32.totalorder %s114, %s116
    %p123 = scmp.eq.s32.totalorder %s17, 1
    %p124 = por %p122, %p123
    %p125 = scmp.ne.s32.totalorder %s116, %s117
    %p126 = scmp.eq.s32.totalorder %s17, 0
    %p127 = por %p125, %p126
    %p128 = scmp.ne.s32.totalorder %s116, %s117
    %p129 = scmp.eq.s32.totalorder %s18, 1
    %p130 = por %p128, %p129
    %p132 = scmp.ne.s32.totalorder %s117, %s131
    %p133 = scmp.eq.s32.totalorder %s18, 0
    %p134 = por %p132, %p133
    %s136 = sadd.s32 %s135, 1
    %p139 = scmp.eq.s32.totalorder %s12, 1
    %p140 = scmp.ne.s32.totalorder %s135, %s137
    %p141 = scmp.eq.s32.totalorder %s12, 0
    %p142 = por %p140, %p141
    %p143 = scmp.ne.s32.totalorder %s135, %s137
    %p144 = scmp.eq.s32.totalorder %s17, 1
    %p145 = por %p143, %p144
    %p146 = scmp.ne.s32.totalorder %s137, %s138
    %p147 = scmp.eq.s32.totalorder %s17, 0
    %p148 = por %p146, %p147
    %p149 = scmp.ne.s32.totalorder %s137, %s138
    %p150 = scmp.eq.s32.totalorder %s18, 1
    %p151 = por %p149, %p150
    %p153 = scmp.ne.s32.totalorder %s138, %s152
    %p154 = scmp.eq.s32.totalorder %s18, 0
    %p155 = por %p153, %p154
    %p156 = scmp.le.s32.totalorder 1, %s12
    %p157 = scmp.lt.s32.totalorder %s12, 3
    %p158 = pnand %p156, %p157
    %p159 = pneg %p158
    // Predicated region
    $region9: #{_lambda_.43} parent=5 // pred_check
      _
    $region10: #{_lambda_.43} parent=5 // pred_check_branch
      %161 = sbr.rel (%p158) target = $region12
    $region11: #{_lambda_.43} parent=5 // pred_region
      %s162 = ssub.s32 %s12, 1
      // Predicated region
      $region13: #{_lambda_.43} parent=11 // pred_check
        %p163 = pneg %p59
      $region14: #{_lambda_.43} parent=11 // pred_check_branch
        %165 = sbr.rel (%p163) target = $region16
      $region15: #{_lambda_.43} parent=11 // pred_region
        _
      $region16: #{_lambda_.43} parent=11 // pred_fallthru
        _
      // Predicated region
      $region17: #{_lambda_.43} parent=11 // pred_check
        %p166 = pneg %p80
      $region18: #{_lambda_.43} parent=11 // pred_check_branch
        %168 = sbr.rel (%p166) target = $region20
      $region19: #{_lambda_.43} parent=11 // pred_region
        _
      $region20: #{_lambda_.43} parent=11 // pred_fallthru
        _
    $region12: #{_lambda_.43} parent=5 // pred_fallthru
      _
    %p169 = scmp.lt.s32.totalorder %s12, 2
    // Predicated region
    $region21: #{_lambda_.43} parent=5 // pred_check
      %p170 = pneg %p169
    $region22: #{_lambda_.43} parent=5 // pred_check_branch
      %172 = sbr.rel (%p170) target = $region24
    $region23: #{_lambda_.43} parent=5 // pred_region
      // Predicated region
      $region25: #{_lambda_.43} parent=23 // pred_check
        %p173 = pneg %p32
      $region26: #{_lambda_.43} parent=23 // pred_check_branch
        %175 = sbr.rel (%p173) target = $region28
      $region27: #{_lambda_.43} parent=23 // pred_region
        %s176 = smul.u32 32, %s12
        %p177 = scmp.lt.s32.totalorder %s176, 63
        %s178 = scalar_select %p177, %s176, 63
        %s179 = smul.addr %s178, 2
        %s180 = smul.addr %s179, 4
        %s181 = scalar_lea.vmem %s0, %s180
        %s182 = smul.u32 32, %s12
      $region28: #{_lambda_.43} parent=23 // pred_fallthru
        _
    $region24: #{_lambda_.43} parent=5 // pred_fallthru
      _
    %p183 = scmp.le.s32.totalorder 1, %s12
    %p184 = scmp.lt.s32.totalorder %s12, 3
    %p185 = pnand %p183, %p184
    %p186 = pneg %p185
    // Predicated region
    $region29: #{_lambda_.43} parent=5 // pred_check
      _
    $region30: #{_lambda_.43} parent=5 // pred_check_branch
      %188 = sbr.rel (%p185) target = $region32
    $region31: #{_lambda_.43} parent=5 // pred_region
      %s189 = ssub.s32 %s12, 1
      %s190 = smul.u32 32, %s17
      %p191 = scmp.lt.s32.totalorder %s190, 63
      %s192 = scalar_select %p191, %s190, 63
      %s193 = smul.addr %s192, 2
      %s194 = smul.addr %s193, 4
      %s195 = scalar_lea.vmem %s0, %s194
      %p196 = pneg %p38
      %p197 = pneg %p35
      %p198 = pneg %p59
      %p199 = pneg %p56
      %p200 = pneg %p80
      %p201 = pneg %p77
      %p202 = pneg %p106
      %p203 = pneg %p103
      %s204 = smul.u32 32, %s17
      %p205 = scmp.lt.s32.totalorder %s204, 63
      %s206 = scalar_select %p205, %s204, 63
      %s207 = smul.addr %s206, 8
      %s208 = scalar_lea.vmem %s3, %s207
      %p209 = pneg %p127
      %p210 = pneg %p124
      %p211 = pneg %p148
      %p212 = pneg %p145
      %s213 = smul.u32 32, %s17
      %p214 = scmp.lt.s32.totalorder %s213, 63
      %s215 = scalar_select %p214, %s213, 63
      %s216 = smul.addr %s215, 2
      %s217 = smul.addr %s216, 4
      %s218 = scalar_lea.vmem %s0, %s217
      %s219 = smul.u32 32, %s17
      %s220 = smul.u32 32, %s17
      %p221 = scmp.lt.s32.totalorder %s220, 63
      %s222 = scalar_select %p221, %s220, 63
      %s223 = smul.addr %s222, 8
      %s224 = scalar_lea.vmem %s3, %s223
      %s225 = smul.u32 32, %s17
      %v227 = vld [vmem:[%s218] sm:$0xff]
      %v228 = vld [vmem:[%s218 + $0x8] sm:$0xff]
      %v229 = vld [vmem:[%s218 + $0x10] sm:$0xff]
      %v230 = vld [vmem:[%s218 + $0x18] sm:$0xff]
      %v231 = vld [vmem:[%s218 + $0x20] sm:$0xff]
      %v232 = vld [vmem:[%s218 + $0x28] sm:$0xff]
      %v233 = vld [vmem:[%s218 + $0x30] sm:$0xff]
      %v234 = vld [vmem:[%s218 + $0x38] sm:$0xff]
      %v235 = vld [vmem:[%s218 + $0x40] sm:$0xff]
      %v236 = vld [vmem:[%s218 + $0x48] sm:$0xff]
      %v237 = vld [vmem:[%s218 + $0x50] sm:$0xff]
      %v238 = vld [vmem:[%s218 + $0x58] sm:$0xff]
      %v239 = vld [vmem:[%s218 + $0x60] sm:$0xff]
      %v240 = vld [vmem:[%s218 + $0x68] sm:$0xff]
      %v241 = vld [vmem:[%s218 + $0x70] sm:$0xff]
      %v242 = vld [vmem:[%s218 + $0x78] sm:$0xff]
      %v243 = vld [vmem:[%s218 + $0x80] sm:$0xff]
      %v244 = vld [vmem:[%s218 + $0x88] sm:$0xff]
      %v245 = vld [vmem:[%s218 + $0x90] sm:$0xff]
      %v246 = vld [vmem:[%s218 + $0x98] sm:$0xff]
      %v247 = vld [vmem:[%s218 + $0xa0] sm:$0xff]
      %v248 = vld [vmem:[%s218 + $0xa8] sm:$0xff]
      %v249 = vld [vmem:[%s218 + $0xb0] sm:$0xff]
      %v250 = vld [vmem:[%s218 + $0xb8] sm:$0xff]
      %v251 = vld [vmem:[%s218 + $0xc0] sm:$0xff]
      %v252 = vld [vmem:[%s218 + $0xc8] sm:$0xff]
      %v253 = vld [vmem:[%s218 + $0xd0] sm:$0xff]
      %v254 = vld [vmem:[%s218 + $0xd8] sm:$0xff]
      %v255 = vld [vmem:[%s218 + $0xe0] sm:$0xff]
      %v256 = vld [vmem:[%s218 + $0xe8] sm:$0xff]
      %v257 = vld [vmem:[%s218 + $0xf0] sm:$0xff]
      %v258 = vld [vmem:[%s218 + $0xf8] sm:$0xff]
      %v259 = vld [vmem:[%s1] sm:$0xf]
      %v260 = vld [vmem:[%s1 + $0x4] sm:$0xf]
      %v261 = vld [vmem:[%s1 + $0x8] sm:$0xf]
      %v262 = vld [vmem:[%s1 + $0xc] sm:$0xf]
      %v263 = vld [vmem:[%s1 + $0x10] sm:$0xf]
      %v264 = vld [vmem:[%s1 + $0x14] sm:$0xf]
      %v265 = vld [vmem:[%s1 + $0x18] sm:$0xf]
      %v266 = vld [vmem:[%s1 + $0x1c] sm:$0xf]
      %v267 = vld [vmem:[%s1 + $0x20] sm:$0xf]
      %v268 = vld [vmem:[%s1 + $0x24] sm:$0xf]
      %v269 = vld [vmem:[%s1 + $0x28] sm:$0xf]
      %v270 = vld [vmem:[%s1 + $0x2c] sm:$0xf]
      %v271 = vld [vmem:[%s1 + $0x30] sm:$0xf]
      %v272 = vld [vmem:[%s1 + $0x34] sm:$0xf]
      %v273 = vld [vmem:[%s1 + $0x38] sm:$0xf]
      %v274 = vld [vmem:[%s1 + $0x3c] sm:$0xf]
      %v275 = vld [vmem:[%s1 + $0x40] sm:$0xf]
      %v276 = vld [vmem:[%s1 + $0x44] sm:$0xf]
      %v277 = vld [vmem:[%s1 + $0x48] sm:$0xf]
      %v278 = vld [vmem:[%s1 + $0x4c] sm:$0xf]
      %v279 = vld [vmem:[%s1 + $0x50] sm:$0xf]
      %v280 = vld [vmem:[%s1 + $0x54] sm:$0xf]
      %v281 = vld [vmem:[%s1 + $0x58] sm:$0xf]
      %v282 = vld [vmem:[%s1 + $0x5c] sm:$0xf]
      %v283 = vld [vmem:[%s1 + $0x60] sm:$0xf]
      %v284 = vld [vmem:[%s1 + $0x64] sm:$0xf]
      %v285 = vld [vmem:[%s1 + $0x68] sm:$0xf]
      %v286 = vld [vmem:[%s1 + $0x6c] sm:$0xf]
      %v287 = vld [vmem:[%s1 + $0x70] sm:$0xf]
      %v288 = vld [vmem:[%s1 + $0x74] sm:$0xf]
      %v289 = vld [vmem:[%s1 + $0x78] sm:$0xf]
      %v290 = vld [vmem:[%s1 + $0x7c] sm:$0xf]
      %v291 = vld [vmem:[%s2] sm:$0x1]
      %v293 = vlaneseq
      %v294 = vshrl.u32 %v293, 7
      %v295 = vsub.s32 0, %v294
      %v296 = vrot.slane %v291, %v295
      %v330 = vunpack.c.l.b16 %v227
      %v331 = vunpack.c.h.b16 %v227
      %v332 = vunpack.c.l.b16 %v228
      %v333 = vunpack.c.h.b16 %v228
      %v334 = vunpack.c.l.b16 %v229
      %v335 = vunpack.c.h.b16 %v229
      %v336 = vunpack.c.l.b16 %v230
      %v337 = vunpack.c.h.b16 %v230
      %v338 = vunpack.c.l.b16 %v231
      %v339 = vunpack.c.h.b16 %v231
      %v340 = vunpack.c.l.b16 %v232
      %v341 = vunpack.c.h.b16 %v232
      %v342 = vunpack.c.l.b16 %v233
      %v343 = vunpack.c.h.b16 %v233
      %v344 = vunpack.c.l.b16 %v234
      %v345 = vunpack.c.h.b16 %v234
      %v346 = vunpack.c.l.b16 %v235
      %v347 = vunpack.c.h.b16 %v235
      %v348 = vunpack.c.l.b16 %v236
      %v349 = vunpack.c.h.b16 %v236
      %v350 = vunpack.c.l.b16 %v237
      %v351 = vunpack.c.h.b16 %v237
      %v352 = vunpack.c.l.b16 %v238
      %v353 = vunpack.c.h.b16 %v238
      %v354 = vunpack.c.l.b16 %v239
      %v355 = vunpack.c.h.b16 %v239
      %v356 = vunpack.c.l.b16 %v240
      %v357 = vunpack.c.h.b16 %v240
      %v358 = vunpack.c.l.b16 %v241
      %v359 = vunpack.c.h.b16 %v241
      %v360 = vunpack.c.l.b16 %v242
      %v361 = vunpack.c.h.b16 %v242
      %v362 = vunpack.c.l.b16 %v243
      %v363 = vunpack.c.h.b16 %v243
      %v364 = vunpack.c.l.b16 %v244
      %v365 = vunpack.c.h.b16 %v244
      %v366 = vunpack.c.l.b16 %v245
      %v367 = vunpack.c.h.b16 %v245
      %v368 = vunpack.c.l.b16 %v246
      %v369 = vunpack.c.h.b16 %v246
      %v370 = vunpack.c.l.b16 %v247
      %v371 = vunpack.c.h.b16 %v247
      %v372 = vunpack.c.l.b16 %v248
      %v373 = vunpack.c.h.b16 %v248
      %v374 = vunpack.c.l.b16 %v249
      %v375 = vunpack.c.h.b16 %v249
      %v376 = vunpack.c.l.b16 %v250
      %v377 = vunpack.c.h.b16 %v250
      %v378 = vunpack.c.l.b16 %v251
      %v379 = vunpack.c.h.b16 %v251
      %v380 = vunpack.c.l.b16 %v252
      %v381 = vunpack.c.h.b16 %v252
      %v382 = vunpack.c.l.b16 %v253
      %v383 = vunpack.c.h.b16 %v253
      %v384 = vunpack.c.l.b16 %v254
      %v385 = vunpack.c.h.b16 %v254
      %v386 = vunpack.c.l.b16 %v255
      %v387 = vunpack.c.h.b16 %v255
      %v388 = vunpack.c.l.b16 %v256
      %v389 = vunpack.c.h.b16 %v256
      %v390 = vunpack.c.l.b16 %v257
      %v391 = vunpack.c.h.b16 %v257
      %v392 = vunpack.c.l.b16 %v258
      %v393 = vunpack.c.h.b16 %v258
      %v394 = vpack.c.b16 %v332, %v330
      %v395 = vpack.c.b16 %v333, %v331
      %v396 = vpack.c.b16 %v336, %v334
      %v397 = vpack.c.b16 %v337, %v335
      %v398 = vpack.c.b16 %v340, %v338
      %v399 = vpack.c.b16 %v341, %v339
      %v400 = vpack.c.b16 %v344, %v342
      %v401 = vpack.c.b16 %v345, %v343
      %v402 = vpack.c.b16 %v348, %v346
      %v403 = vpack.c.b16 %v349, %v347
      %v404 = vpack.c.b16 %v352, %v350
      %v405 = vpack.c.b16 %v353, %v351
      %v406 = vpack.c.b16 %v356, %v354
      %v407 = vpack.c.b16 %v357, %v355
      %v408 = vpack.c.b16 %v360, %v358
      %v409 = vpack.c.b16 %v361, %v359
      %v410 = vpack.c.b16 %v364, %v362
      %v411 = vpack.c.b16 %v365, %v363
      %v412 = vpack.c.b16 %v368, %v366
      %v413 = vpack.c.b16 %v369, %v367
      %v414 = vpack.c.b16 %v372, %v370
      %v415 = vpack.c.b16 %v373, %v371
      %v416 = vpack.c.b16 %v376, %v374
      %v417 = vpack.c.b16 %v377, %v375
      %v418 = vpack.c.b16 %v380, %v378
      %v419 = vpack.c.b16 %v381, %v379
      %v420 = vpack.c.b16 %v384, %v382
      %v421 = vpack.c.b16 %v385, %v383
      %v422 = vpack.c.b16 %v388, %v386
      %v423 = vpack.c.b16 %v389, %v387
      %v424 = vpack.c.b16 %v392, %v390
      %v425 = vpack.c.b16 %v393, %v391
      %v490 = vunpack.c.l.b16 %v259
      %v491 = vunpack.c.l.b16 %v260
      %v492 = vunpack.c.l.b16 %v261
      %v493 = vunpack.c.l.b16 %v262
      %v494 = vunpack.c.l.b16 %v263
      %v495 = vunpack.c.l.b16 %v264
      %v496 = vunpack.c.l.b16 %v265
      %v497 = vunpack.c.l.b16 %v266
      %v498 = vunpack.c.l.b16 %v267
      %v499 = vunpack.c.l.b16 %v268
      %v500 = vunpack.c.l.b16 %v269
      %v501 = vunpack.c.l.b16 %v270
      %v502 = vunpack.c.l.b16 %v271
      %v503 = vunpack.c.l.b16 %v272
      %v504 = vunpack.c.l.b16 %v273
      %v505 = vunpack.c.l.b16 %v274
      %v506 = vunpack.c.l.b16 %v275
      %v507 = vunpack.c.l.b16 %v276
      %v508 = vunpack.c.l.b16 %v277
      %v509 = vunpack.c.l.b16 %v278
      %v510 = vunpack.c.l.b16 %v279
      %v511 = vunpack.c.l.b16 %v280
      %v512 = vunpack.c.l.b16 %v281
      %v513 = vunpack.c.l.b16 %v282
      %v514 = vunpack.c.l.b16 %v283
      %v515 = vunpack.c.l.b16 %v284
      %v516 = vunpack.c.l.b16 %v285
      %v517 = vunpack.c.l.b16 %v286
      %v518 = vunpack.c.l.b16 %v287
      %v519 = vunpack.c.l.b16 %v288
      %v520 = vunpack.c.l.b16 %v289
      %v521 = vunpack.c.l.b16 %v290
      %v522 = vpack.c.b16 %v491, %v490
      %v523 = vpack.c.b16 %v493, %v492
      %v524 = vpack.c.b16 %v495, %v494
      %v525 = vpack.c.b16 %v497, %v496
      %v526 = vpack.c.b16 %v499, %v498
      %v527 = vpack.c.b16 %v501, %v500
      %v528 = vpack.c.b16 %v503, %v502
      %v529 = vpack.c.b16 %v505, %v504
      %v530 = vpack.c.b16 %v507, %v506
      %v531 = vpack.c.b16 %v509, %v508
      %v532 = vpack.c.b16 %v511, %v510
      %v533 = vpack.c.b16 %v513, %v512
      %v534 = vpack.c.b16 %v515, %v514
      %v535 = vpack.c.b16 %v517, %v516
      %v536 = vpack.c.b16 %v519, %v518
      %v537 = vpack.c.b16 %v521, %v520
      %554 = vmatprep.subr.bf16.mxu0 0
      %555 = vmatpush1.bf16.msra.mxu0 %v522
      %556 = vmatprep.subr.bf16.mxu0 0
      %557 = vmatpush1.bf16.msra.mxu0 %v523
      %558 = vmatprep.subr.bf16.mxu0 0
      %559 = vmatpush1.bf16.msra.mxu0 %v524
      %560 = vmatprep.subr.bf16.mxu0 0
      %561 = vmatpush1.bf16.msra.mxu0 %v525
      %562 = vmatprep.subr.bf16.mxu0 0
      %563 = vmatpush1.bf16.msra.mxu0 %v526
      %564 = vmatprep.subr.bf16.mxu0 0
      %565 = vmatpush1.bf16.msra.mxu0 %v527
      %566 = vmatprep.subr.bf16.mxu0 0
      %567 = vmatpush1.bf16.msra.mxu0 %v528
      %568 = vmatprep.subr.bf16.mxu0 0
      %569 = vmatpush1.bf16.msra.mxu0 %v529
      %570 = vmatprep.subr.bf16.mxu0 0
      %571 = vmatpush1.bf16.msra.mxu0 %v530
      %572 = vmatprep.subr.bf16.mxu0 0
      %573 = vmatpush1.bf16.msra.mxu0 %v531
      %574 = vmatprep.subr.bf16.mxu0 0
      %575 = vmatpush1.bf16.msra.mxu0 %v532
      %576 = vmatprep.subr.bf16.mxu0 0
      %577 = vmatpush1.bf16.msra.mxu0 %v533
      %578 = vmatprep.subr.bf16.mxu0 0
      %579 = vmatpush1.bf16.msra.mxu0 %v534
      %580 = vmatprep.subr.bf16.mxu0 0
      %581 = vmatpush1.bf16.msra.mxu0 %v535
      %582 = vmatprep.subr.bf16.mxu0 0
      %583 = vmatpush1.bf16.msra.mxu0 %v536
      %584 = vmatprep.subr.bf16.mxu0 0
      %585 = vmatpush1.bf16.msra.mxu0 %v537
      %586 = vmatprep.mubr.bf16.mxu0 %v395
      %587 = vmatmul.mubr.bf16.gmra.mrb[0].mxu0 %v394
      %v588 = vpop.f32.mrb[0].mxu0
      %v589 = vadd.f32 %v296, %v588
      %v590 = vpop.f32.mrb[0].mxu0
      %v591 = vpop.f32.mrb[0].mxu0
      %v592 = vadd.f32 %v296, %v591
      %v593 = vpop.f32.mrb[0].mxu0
      %594 = vmatprep.mubr.bf16.mxu0 %v397
      %595 = vmatmul.mubr.bf16.gmra.mrb[0].mxu0 %v396
      %v596 = vpop.f32.mrb[0].mxu0
      %v597 = vadd.f32 %v296, %v596
      %v598 = vpop.f32.mrb[0].mxu0
      %v599 = vpop.f32.mrb[0].mxu0
      %v600 = vadd.f32 %v296, %v599
      %v601 = vpop.f32.mrb[0].mxu0
      %602 = vmatprep.mubr.bf16.mxu0 %v399
      %603 = vmatmul.mubr.bf16.gmra.mrb[0].mxu0 %v398
      %v604 = vpop.f32.mrb[0].mxu0
      %v605 = vadd.f32 %v296, %v604
      %v606 = vpop.f32.mrb[0].mxu0
      %v607 = vpop.f32.mrb[0].mxu0
      %v608 = vadd.f32 %v296, %v607
      %v609 = vpop.f32.mrb[0].mxu0
      %610 = vmatprep.mubr.bf16.mxu0 %v401
      %611 = vmatmul.mubr.bf16.gmra.mrb[0].mxu0 %v400
      %v612 = vpop.f32.mrb[0].mxu0
      %v613 = vadd.f32 %v296, %v612
      %v614 = vpop.f32.mrb[0].mxu0
      %v615 = vpop.f32.mrb[0].mxu0
      %v616 = vadd.f32 %v296, %v615
      %v617 = vpop.f32.mrb[0].mxu0
      %618 = vmatprep.mubr.bf16.mxu0 %v403
      %619 = vmatmul.mubr.bf16.gmra.mrb[0].mxu0 %v402
      %v620 = vpop.f32.mrb[0].mxu0
      %v621 = vadd.f32 %v296, %v620
      %v622 = vpop.f32.mrb[0].mxu0
      %v623 = vpop.f32.mrb[0].mxu0
      %v624 = vadd.f32 %v296, %v623
      %v625 = vpop.f32.mrb[0].mxu0
      %626 = vmatprep.mubr.bf16.mxu0 %v405
      %627 = vmatmul.mubr.bf16.gmra.mrb[0].mxu0 %v404
      %v628 = vpop.f32.mrb[0].mxu0
      %v629 = vadd.f32 %v296, %v628
      %v630 = vpop.f32.mrb[0].mxu0
      %v631 = vpop.f32.mrb[0].mxu0
      %v632 = vadd.f32 %v296, %v631
      %v633 = vpop.f32.mrb[0].mxu0
      %634 = vmatprep.mubr.bf16.mxu0 %v407
      %635 = vmatmul.mubr.bf16.gmra.mrb[0].mxu0 %v406
      %v636 = vpop.f32.mrb[0].mxu0
      %v637 = vadd.f32 %v296, %v636
      %v638 = vpop.f32.mrb[0].mxu0
      %v639 = vpop.f32.mrb[0].mxu0
      %v640 = vadd.f32 %v296, %v639
      %v641 = vpop.f32.mrb[0].mxu0
      %642 = vmatprep.mubr.bf16.mxu0 %v409
      %643 = vmatmul.mubr.bf16.gmra.mrb[0].mxu0 %v408
      %v644 = vpop.f32.mrb[0].mxu0
      %v645 = vadd.f32 %v296, %v644
      %v646 = vpop.f32.mrb[0].mxu0
      %v647 = vpop.f32.mrb[0].mxu0
      %v648 = vadd.f32 %v296, %v647
      %v649 = vpop.f32.mrb[0].mxu0
      %650 = vmatprep.mubr.bf16.mxu0 %v411
      %651 = vmatmul.mubr.bf16.gmra.mrb[0].mxu0 %v410
      %v652 = vpop.f32.mrb[0].mxu0
      %v653 = vadd.f32 %v296, %v652
      %v654 = vpop.f32.mrb[0].mxu0
      %v655 = vpop.f32.mrb[0].mxu0
      %v656 = vadd.f32 %v296, %v655
      %v657 = vpop.f32.mrb[0].mxu0
      %658 = vmatprep.mubr.bf16.mxu0 %v413
      %659 = vmatmul.mubr.bf16.gmra.mrb[0].mxu0 %v412
      %v660 = vpop.f32.mrb[0].mxu0
      %v661 = vadd.f32 %v296, %v660
      %v662 = vpop.f32.mrb[0].mxu0
      %v663 = vpop.f32.mrb[0].mxu0
      %v664 = vadd.f32 %v296, %v663
      %v665 = vpop.f32.mrb[0].mxu0
      %666 = vmatprep.mubr.bf16.mxu0 %v415
      %667 = vmatmul.mubr.bf16.gmra.mrb[0].mxu0 %v414
      %v668 = vpop.f32.mrb[0].mxu0
      %v669 = vadd.f32 %v296, %v668
      %v670 = vpop.f32.mrb[0].mxu0
      %v671 = vpop.f32.mrb[0].mxu0
      %v672 = vadd.f32 %v296, %v671
      %v673 = vpop.f32.mrb[0].mxu0
      %674 = vmatprep.mubr.bf16.mxu0 %v417
      %675 = vmatmul.mubr.bf16.gmra.mrb[0].mxu0 %v416
      %v676 = vpop.f32.mrb[0].mxu0
      %v677 = vadd.f32 %v296, %v676
      %v678 = vpop.f32.mrb[0].mxu0
      %v679 = vpop.f32.mrb[0].mxu0
      %v680 = vadd.f32 %v296, %v679
      %v681 = vpop.f32.mrb[0].mxu0
      %682 = vmatprep.mubr.bf16.mxu0 %v419
      %683 = vmatmul.mubr.bf16.gmra.mrb[0].mxu0 %v418
      %v684 = vpop.f32.mrb[0].mxu0
      %v685 = vadd.f32 %v296, %v684
      %v686 = vpop.f32.mrb[0].mxu0
      %v687 = vpop.f32.mrb[0].mxu0
      %v688 = vadd.f32 %v296, %v687
      %v689 = vpop.f32.mrb[0].mxu0
      %690 = vmatprep.mubr.bf16.mxu0 %v421
      %691 = vmatmul.mubr.bf16.gmra.mrb[0].mxu0 %v420
      %v692 = vpop.f32.mrb[0].mxu0
      %v693 = vadd.f32 %v296, %v692
      %v694 = vpop.f32.mrb[0].mxu0
      %v695 = vpop.f32.mrb[0].mxu0
      %v696 = vadd.f32 %v296, %v695
      %v697 = vpop.f32.mrb[0].mxu0
      %698 = vmatprep.mubr.bf16.mxu0 %v423
      %699 = vmatmul.mubr.bf16.gmra.mrb[0].mxu0 %v422
      %v700 = vpop.f32.mrb[0].mxu0
      %v701 = vadd.f32 %v296, %v700
      %v702 = vpop.f32.mrb[0].mxu0
      %v703 = vpop.f32.mrb[0].mxu0
      %v704 = vadd.f32 %v296, %v703
      %v705 = vpop.f32.mrb[0].mxu0
      %706 = vmatprep.mubr.bf16.mxu0 %v425
      %707 = vmatmul.mubr.bf16.gmra.mrb[0].mxu0 %v424
      %v708 = vpop.f32.mrb[0].mxu0
      %v709 = vadd.f32 %v296, %v708
      %v710 = vpop.f32.mrb[0].mxu0
      %v711 = vpop.f32.mrb[0].mxu0
      %v712 = vadd.f32 %v296, %v711
      %v713 = vpop.f32.mrb[0].mxu0
      %714 = vdwg.mxu0
      %715 = vst [vmem:[%s224] sm:$0xff] %v589
      %716 = vst [vmem:[%s224 + $0x8] sm:$0xff] %v592
      %717 = vst [vmem:[%s224 + $0x10] sm:$0xff] %v597
      %718 = vst [vmem:[%s224 + $0x18] sm:$0xff] %v600
      %719 = vst [vmem:[%s224 + $0x20] sm:$0xff] %v605
      %720 = vst [vmem:[%s224 + $0x28] sm:$0xff] %v608
      %721 = vst [vmem:[%s224 + $0x30] sm:$0xff] %v613
      %722 = vst [vmem:[%s224 + $0x38] sm:$0xff] %v616
      %723 = vst [vmem:[%s224 + $0x40] sm:$0xff] %v621
      %724 = vst [vmem:[%s224 + $0x48] sm:$0xff] %v624
      %725 = vst [vmem:[%s224 + $0x50] sm:$0xff] %v629
      %726 = vst [vmem:[%s224 + $0x58] sm:$0xff] %v632
      %727 = vst [vmem:[%s224 + $0x60] sm:$0xff] %v637
      %728 = vst [vmem:[%s224 + $0x68] sm:$0xff] %v640
      %729 = vst [vmem:[%s224 + $0x70] sm:$0xff] %v645
      %730 = vst [vmem:[%s224 + $0x78] sm:$0xff] %v648
      %731 = vst [vmem:[%s224 + $0x80] sm:$0xff] %v653
      %732 = vst [vmem:[%s224 + $0x88] sm:$0xff] %v656
      %733 = vst [vmem:[%s224 + $0x90] sm:$0xff] %v661
      %734 = vst [vmem:[%s224 + $0x98] sm:$0xff] %v664
      %735 = vst [vmem:[%s224 + $0xa0] sm:$0xff] %v669
      %736 = vst [vmem:[%s224 + $0xa8] sm:$0xff] %v672
      %737 = vst [vmem:[%s224 + $0xb0] sm:$0xff] %v677
      %738 = vst [vmem:[%s224 + $0xb8] sm:$0xff] %v680
      %739 = vst [vmem:[%s224 + $0xc0] sm:$0xff] %v685
      %740 = vst [vmem:[%s224 + $0xc8] sm:$0xff] %v688
      %741 = vst [vmem:[%s224 + $0xd0] sm:$0xff] %v693
      %742 = vst [vmem:[%s224 + $0xd8] sm:$0xff] %v696
      %743 = vst [vmem:[%s224 + $0xe0] sm:$0xff] %v701
      %744 = vst [vmem:[%s224 + $0xe8] sm:$0xff] %v704
      %745 = vst [vmem:[%s224 + $0xf0] sm:$0xff] %v709
      %746 = vst [vmem:[%s224 + $0xf8] sm:$0xff] %v712
      %v747 = vlaneseq
      %v748 = vshrl.u32 %v747, 7
      %v749 = vadd.s32 %v748, 8
      %v750 = vadd.s32 %v748, 16
      %v751 = vadd.s32 %v748, 24
      %v752 = vadd.s32 %v748, 32
      %v753 = vadd.s32 %v748, 40
      %v754 = vadd.s32 %v748, 48
      %v755 = vadd.s32 %v748, 56
      %v756 = vadd.s32 %v748, 64
      %v757 = vadd.s32 %v748, 72
      %v758 = vadd.s32 %v748, 80
      %v759 = vadd.s32 %v748, 88
      %v760 = vadd.s32 %v748, 96
      %v761 = vadd.s32 %v748, 104
      %v762 = vadd.s32 %v748, 112
      %v763 = vadd.s32 %v748, 120
      %v764 = vadd.s32 %v748, 128
      %v765 = vadd.s32 %v748, 136
      %v766 = vadd.s32 %v748, 144
      %v767 = vadd.s32 %v748, 152
      %v768 = vadd.s32 %v748, 160
      %v769 = vadd.s32 %v748, 168
      %v770 = vadd.s32 %v748, 176
      %v771 = vadd.s32 %v748, 184
      %v772 = vadd.s32 %v748, 192
      %v773 = vadd.s32 %v748, 200
      %v774 = vadd.s32 %v748, 208
      %v775 = vadd.s32 %v748, 216
      %v776 = vadd.s32 %v748, 224
      %v777 = vadd.s32 %v748, 232
      %v778 = vadd.s32 %v748, 240
      %v779 = vadd.s32 %v748, 248
      %s780 = smul.u32 %s17, 256
      %v781 = vstv %s780
      %v782 = vadd.s32 %v748, %v781
      %v783 = vadd.s32 %v749, %v781
      %v784 = vadd.s32 %v750, %v781
      %v785 = vadd.s32 %v751, %v781
      %v786 = vadd.s32 %v752, %v781
      %v787 = vadd.s32 %v753, %v781
      %v788 = vadd.s32 %v754, %v781
      %v789 = vadd.s32 %v755, %v781
      %v790 = vadd.s32 %v756, %v781
      %v791 = vadd.s32 %v757, %v781
      %v792 = vadd.s32 %v758, %v781
      %v793 = vadd.s32 %v759, %v781
      %v794 = vadd.s32 %v760, %v781
      %v795 = vadd.s32 %v761, %v781
      %v796 = vadd.s32 %v762, %v781
      %v797 = vadd.s32 %v763, %v781
      %v798 = vadd.s32 %v764, %v781
      %v799 = vadd.s32 %v765, %v781
      %v800 = vadd.s32 %v766, %v781
      %v801 = vadd.s32 %v767, %v781
      %v802 = vadd.s32 %v768, %v781
      %v803 = vadd.s32 %v769, %v781
      %v804 = vadd.s32 %v770, %v781
      %v805 = vadd.s32 %v771, %v781
      %v806 = vadd.s32 %v772, %v781
      %v807 = vadd.s32 %v773, %v781
      %v808 = vadd.s32 %v774, %v781
      %v809 = vadd.s32 %v775, %v781
      %v810 = vadd.s32 %v776, %v781
      %v811 = vadd.s32 %v777, %v781
      %v812 = vadd.s32 %v778, %v781
      %v813 = vadd.s32 %v779, %v781
      %vm814 = vcmp.lt.s32.totalorder %v782, 512
      %vm815 = vcmp.lt.s32.totalorder %v783, 512
      %vm816 = vcmp.lt.s32.totalorder %v784, 512
      %vm817 = vcmp.lt.s32.totalorder %v785, 512
      %vm818 = vcmp.lt.s32.totalorder %v786, 512
      %vm819 = vcmp.lt.s32.totalorder %v787, 512
      %vm820 = vcmp.lt.s32.totalorder %v788, 512
      %vm821 = vcmp.lt.s32.totalorder %v789, 512
      %vm822 = vcmp.lt.s32.totalorder %v790, 512
      %vm823 = vcmp.lt.s32.totalorder %v791, 512
      %vm824 = vcmp.lt.s32.totalorder %v792, 512
      %vm825 = vcmp.lt.s32.totalorder %v793, 512
      %vm826 = vcmp.lt.s32.totalorder %v794, 512
      %vm827 = vcmp.lt.s32.totalorder %v795, 512
      %vm828 = vcmp.lt.s32.totalorder %v796, 512
      %vm829 = vcmp.lt.s32.totalorder %v797, 512
      %vm830 = vcmp.lt.s32.totalorder %v798, 512
      %vm831 = vcmp.lt.s32.totalorder %v799, 512
      %vm832 = vcmp.lt.s32.totalorder %v800, 512
      %vm833 = vcmp.lt.s32.totalorder %v801, 512
      %vm834 = vcmp.lt.s32.totalorder %v802, 512
      %vm835 = vcmp.lt.s32.totalorder %v803, 512
      %vm836 = vcmp.lt.s32.totalorder %v804, 512
      %vm837 = vcmp.lt.s32.totalorder %v805, 512
      %vm838 = vcmp.lt.s32.totalorder %v806, 512
      %vm839 = vcmp.lt.s32.totalorder %v807, 512
      %vm840 = vcmp.lt.s32.totalorder %v808, 512
      %vm841 = vcmp.lt.s32.totalorder %v809, 512
      %vm842 = vcmp.lt.s32.totalorder %v810, 512
      %vm843 = vcmp.lt.s32.totalorder %v811, 512
      %vm844 = vcmp.lt.s32.totalorder %v812, 512
      %vm845 = vcmp.lt.s32.totalorder %v813, 512
      %v846 = vsel %vm814, 1, 0
      %v847 = vsel %vm815, 1, 0
      %v848 = vsel %vm816, 1, 0
      %v849 = vsel %vm817, 1, 0
      %v850 = vsel %vm818, 1, 0
      %v851 = vsel %vm819, 1, 0
      %v852 = vsel %vm820, 1, 0
      %v853 = vsel %vm821, 1, 0
      %v854 = vsel %vm822, 1, 0
      %v855 = vsel %vm823, 1, 0
      %v856 = vsel %vm824, 1, 0
      %v857 = vsel %vm825, 1, 0
      %v858 = vsel %vm826, 1, 0
      %v859 = vsel %vm827, 1, 0
      %v860 = vsel %vm828, 1, 0
      %v861 = vsel %vm829, 1, 0
      %v862 = vsel %vm830, 1, 0
      %v863 = vsel %vm831, 1, 0
      %v864 = vsel %vm832, 1, 0
      %v865 = vsel %vm833, 1, 0
      %v866 = vsel %vm834, 1, 0
      %v867 = vsel %vm835, 1, 0
      %v868 = vsel %vm836, 1, 0
      %v869 = vsel %vm837, 1, 0
      %v870 = vsel %vm838, 1, 0
      %v871 = vsel %vm839, 1, 0
      %v872 = vsel %vm840, 1, 0
      %v873 = vsel %vm841, 1, 0
      %v874 = vsel %vm842, 1, 0
      %v875 = vsel %vm843, 1, 0
      %v876 = vsel %vm844, 1, 0
      %v877 = vsel %vm845, 1, 0
      %vm878 = vcmp.eq.s32.totalorder %v846, 1
      %vm879 = vcmp.eq.s32.totalorder %v847, 1
      %vm880 = vcmp.eq.s32.totalorder %v848, 1
      %vm881 = vcmp.eq.s32.totalorder %v849, 1
      %vm882 = vcmp.eq.s32.totalorder %v850, 1
      %vm883 = vcmp.eq.s32.totalorder %v851, 1
      %vm884 = vcmp.eq.s32.totalorder %v852, 1
      %vm885 = vcmp.eq.s32.totalorder %v853, 1
      %vm886 = vcmp.eq.s32.totalorder %v854, 1
      %vm887 = vcmp.eq.s32.totalorder %v855, 1
      %vm888 = vcmp.eq.s32.totalorder %v856, 1
      %vm889 = vcmp.eq.s32.totalorder %v857, 1
      %vm890 = vcmp.eq.s32.totalorder %v858, 1
      %vm891 = vcmp.eq.s32.totalorder %v859, 1
      %vm892 = vcmp.eq.s32.totalorder %v860, 1
      %vm893 = vcmp.eq.s32.totalorder %v861, 1
      %vm894 = vcmp.eq.s32.totalorder %v862, 1
      %vm895 = vcmp.eq.s32.totalorder %v863, 1
      %vm896 = vcmp.eq.s32.totalorder %v864, 1
      %vm897 = vcmp.eq.s32.totalorder %v865, 1
      %vm898 = vcmp.eq.s32.totalorder %v866, 1
      %vm899 = vcmp.eq.s32.totalorder %v867, 1
      %vm900 = vcmp.eq.s32.totalorder %v868, 1
      %vm901 = vcmp.eq.s32.totalorder %v869, 1
      %vm902 = vcmp.eq.s32.totalorder %v870, 1
      %vm903 = vcmp.eq.s32.totalorder %v871, 1
      %vm904 = vcmp.eq.s32.totalorder %v872, 1
      %vm905 = vcmp.eq.s32.totalorder %v873, 1
      %vm906 = vcmp.eq.s32.totalorder %v874, 1
      %vm907 = vcmp.eq.s32.totalorder %v875, 1
      %vm908 = vcmp.eq.s32.totalorder %v876, 1
      %vm909 = vcmp.eq.s32.totalorder %v877, 1
      %v910 = vsel %vm878, %v589, 0.0
      %v911 = vsel %vm879, %v592, 0.0
      %v912 = vsel %vm880, %v597, 0.0
      %v913 = vsel %vm881, %v600, 0.0
      %v914 = vsel %vm882, %v605, 0.0
      %v915 = vsel %vm883, %v608, 0.0
      %v916 = vsel %vm884, %v613, 0.0
      %v917 = vsel %vm885, %v616, 0.0
      %v918 = vsel %vm886, %v621, 0.0
      %v919 = vsel %vm887, %v624, 0.0
      %v920 = vsel %vm888, %v629, 0.0
      %v921 = vsel %vm889, %v632, 0.0
      %v922 = vsel %vm890, %v637, 0.0
      %v923 = vsel %vm891, %v640, 0.0
      %v924 = vsel %vm892, %v645, 0.0
      %v925 = vsel %vm893, %v648, 0.0
      %v926 = vsel %vm894, %v653, 0.0
      %v927 = vsel %vm895, %v656, 0.0
      %v928 = vsel %vm896, %v661, 0.0
      %v929 = vsel %vm897, %v664, 0.0
      %v930 = vsel %vm898, %v669, 0.0
      %v931 = vsel %vm899, %v672, 0.0
      %v932 = vsel %vm900, %v677, 0.0
      %v933 = vsel %vm901, %v680, 0.0
      %v934 = vsel %vm902, %v685, 0.0
      %v935 = vsel %vm903, %v688, 0.0
      %v936 = vsel %vm904, %v693, 0.0
      %v937 = vsel %vm905, %v696, 0.0
      %v938 = vsel %vm906, %v701, 0.0
      %v939 = vsel %vm907, %v704, 0.0
      %v940 = vsel %vm908, %v709, 0.0
      %v941 = vsel %vm909, %v712, 0.0
      %p942 = scmp.eq.s32.totalorder %s17, 0
      // Predicated region
      $region33: #{_lambda_.43} parent=31 // pred_check
        %p943 = pneg %p942
      $region34: #{_lambda_.43} parent=31 // pred_check_branch
        %945 = sbr.rel (%p943) target = $region36
      $region35: #{_lambda_.43} parent=31 // pred_region
        %946 = vst [vmem:[%s4] sm:$0x1] 0.0
        %947 = vst [vmem:[%s5] sm:$0x1] 0.0
      $region36: #{_lambda_.43} parent=31 // pred_fallthru
        _
      %v948 = vld [vmem:[%s4] sm:$0x1]
      %v949 = vadd.f32 %v910, %v911
      %v950 = vadd.f32 %v949, %v912
      %v951 = vadd.f32 %v950, %v913
      %v952 = vadd.f32 %v951, %v914
      %v953 = vadd.f32 %v952, %v915
      %v954 = vadd.f32 %v953, %v916
      %v955 = vadd.f32 %v954, %v917
      %v956 = vadd.f32 %v955, %v918
      %v957 = vadd.f32 %v956, %v919
      %v958 = vadd.f32 %v957, %v920
      %v959 = vadd.f32 %v958, %v921
      %v960 = vadd.f32 %v959, %v922
      %v961 = vadd.f32 %v960, %v923
      %v962 = vadd.f32 %v961, %v924
      %v963 = vadd.f32 %v962, %v925
      %v964 = vadd.f32 %v963, %v926
      %v965 = vadd.f32 %v964, %v927
      %v966 = vadd.f32 %v965, %v928
      %v967 = vadd.f32 %v966, %v929
      %v968 = vadd.f32 %v967, %v930
      %v969 = vadd.f32 %v968, %v931
      %v970 = vadd.f32 %v969, %v932
      %v971 = vadd.f32 %v970, %v933
      %v972 = vadd.f32 %v971, %v934
      %v973 = vadd.f32 %v972, %v935
      %v974 = vadd.f32 %v973, %v936
      %v975 = vadd.f32 %v974, %v937
      %v976 = vadd.f32 %v975, %v938
      %v977 = vadd.f32 %v976, %v939
      %v978 = vadd.f32 %v977, %v940
      %v979 = vadd.f32 %v978, %v941
      %v980 = vrot.slane %v979, 4
      %v981 = vadd.f32 %v979, %v980
      %v982 = vrot.slane %v981, 2
      %v983 = vadd.f32 %v981, %v982
      %v984 = vrot.slane %v983, 1
      %v985 = vadd.f32 %v983, %v984
      %v986 = vadd.f32 %v948, %v985
      %987 = vst [vmem:[%s4] sm:$0x1] %v986
      %v988 = vld [vmem:[%s5] sm:$0x1]
      %v989 = vmul.f32 %v910, %v910
      %v990 = vmul.f32 %v911, %v911
      %v991 = vmul.f32 %v912, %v912
      %v992 = vmul.f32 %v913, %v913
      %v993 = vmul.f32 %v914, %v914
      %v994 = vmul.f32 %v915, %v915
      %v995 = vmul.f32 %v916, %v916
      %v996 = vmul.f32 %v917, %v917
      %v997 = vmul.f32 %v918, %v918
      %v998 = vmul.f32 %v919, %v919
      %v999 = vmul.f32 %v920, %v920
      %v1000 = vmul.f32 %v921, %v921
      %v1001 = vmul.f32 %v922, %v922
      %v1002 = vmul.f32 %v923, %v923
      %v1003 = vmul.f32 %v924, %v924
      %v1004 = vmul.f32 %v925, %v925
      %v1005 = vmul.f32 %v926, %v926
      %v1006 = vmul.f32 %v927, %v927
      %v1007 = vmul.f32 %v928, %v928
      %v1008 = vmul.f32 %v929, %v929
      %v1009 = vmul.f32 %v930, %v930
      %v1010 = vmul.f32 %v931, %v931
      %v1011 = vmul.f32 %v932, %v932
      %v1012 = vmul.f32 %v933, %v933
      %v1013 = vmul.f32 %v934, %v934
      %v1014 = vmul.f32 %v935, %v935
      %v1015 = vmul.f32 %v936, %v936
      %v1016 = vmul.f32 %v937, %v937
      %v1017 = vmul.f32 %v938, %v938
      %v1018 = vmul.f32 %v939, %v939
      %v1019 = vmul.f32 %v940, %v940
      %v1020 = vmul.f32 %v941, %v941
      %v1021 = vadd.f32 %v989, %v990
      %v1022 = vadd.f32 %v1021, %v991
      %v1023 = vadd.f32 %v1022, %v992
      %v1024 = vadd.f32 %v1023, %v993
      %v1025 = vadd.f32 %v1024, %v994
      %v1026 = vadd.f32 %v1025, %v995
      %v1027 = vadd.f32 %v1026, %v996
      %v1028 = vadd.f32 %v1027, %v997
      %v1029 = vadd.f32 %v1028, %v998
      %v1030 = vadd.f32 %v1029, %v999
      %v1031 = vadd.f32 %v1030, %v1000
      %v1032 = vadd.f32 %v1031, %v1001
      %v1033 = vadd.f32 %v1032, %v1002
      %v1034 = vadd.f32 %v1033, %v1003
      %v1035 = vadd.f32 %v1034, %v1004
      %v1036 = vadd.f32 %v1035, %v1005
      %v1037 = vadd.f32 %v1036, %v1006
      %v1038 = vadd.f32 %v1037, %v1007
      %v1039 = vadd.f32 %v1038, %v1008
      %v1040 = vadd.f32 %v1039, %v1009
      %v1041 = vadd.f32 %v1040, %v1010
      %v1042 = vadd.f32 %v1041, %v1011
      %v1043 = vadd.f32 %v1042, %v1012
      %v1044 = vadd.f32 %v1043, %v1013
      %v1045 = vadd.f32 %v1044, %v1014
      %v1046 = vadd.f32 %v1045, %v1015
      %v1047 = vadd.f32 %v1046, %v1016
      %v1048 = vadd.f32 %v1047, %v1017
      %v1049 = vadd.f32 %v1048, %v1018
      %v1050 = vadd.f32 %v1049, %v1019
      %v1051 = vadd.f32 %v1050, %v1020
      %v1052 = vrot.slane %v1051, 4
      %v1053 = vadd.f32 %v1051, %v1052
      %v1054 = vrot.slane %v1053, 2
      %v1055 = vadd.f32 %v1053, %v1054
      %v1056 = vrot.slane %v1055, 1
      %v1057 = vadd.f32 %v1055, %v1056
      %v1058 = vadd.f32 %v988, %v1057
      %1059 = vst [vmem:[%s5] sm:$0x1] %v1058
      %s1060 = smul.u32 32, %s17
      %p1061 = scmp.lt.s32.totalorder %s1060, 63
      %s1062 = scalar_select %p1061, %s1060, 63
      %s1063 = smul.addr %s1062, 8
      %s1064 = scalar_lea.vmem %s3, %s1063
      // Predicated region
      $region37: #{_lambda_.43} parent=31 // pred_check
        %p1065 = pneg %p103
      $region38: #{_lambda_.43} parent=31 // pred_check_branch
        %1067 = sbr.rel (%p1065) target = $region40
      $region39: #{_lambda_.43} parent=31 // pred_region
        %s1068 = smul.u32 32, %s17
      $region40: #{_lambda_.43} parent=31 // pred_fallthru
        _
      // Predicated region
      $region41: #{_lambda_.43} parent=31 // pred_check
        %p1069 = pneg %p124
      $region42: #{_lambda_.43} parent=31 // pred_check_branch
        %1071 = sbr.rel (%p1069) target = $region44
      $region43: #{_lambda_.43} parent=31 // pred_region
        _
      $region44: #{_lambda_.43} parent=31 // pred_fallthru
        _
      // Predicated region
      $region45: #{_lambda_.43} parent=31 // pred_check
        %p1072 = pneg %p145
      $region46: #{_lambda_.43} parent=31 // pred_check_branch
        %1074 = sbr.rel (%p1072) target = $region48
      $region47: #{_lambda_.43} parent=31 // pred_region
        _
      $region48: #{_lambda_.43} parent=31 // pred_fallthru
        _
      // Predicated region
      $region49: #{_lambda_.43} parent=31 // pred_check
        %p1075 = pneg %p124
      $region50: #{_lambda_.43} parent=31 // pred_check_branch
        %1077 = sbr.rel (%p1075) target = $region52
      $region51: #{_lambda_.43} parent=31 // pred_region
        _
      $region52: #{_lambda_.43} parent=31 // pred_fallthru
        _
      // Predicated region
      $region53: #{_lambda_.43} parent=31 // pred_check
        %p1078 = pneg %p145
      $region54: #{_lambda_.43} parent=31 // pred_check_branch
        %1080 = sbr.rel (%p1078) target = $region56
      $region55: #{_lambda_.43} parent=31 // pred_region
        _
      $region56: #{_lambda_.43} parent=31 // pred_fallthru
        _
    $region32: #{_lambda_.43} parent=5 // pred_fallthru
      _
    %p1081 = scmp.le.s32.totalorder 2, %s12
    // Predicated region
    $region57: #{_lambda_.43} parent=5 // pred_check
      %p1082 = pneg %p1081
    $region58: #{_lambda_.43} parent=5 // pred_check_branch
      %1084 = sbr.rel (%p1082) target = $region60
    $region59: #{_lambda_.43} parent=5 // pred_region
      %s1085 = ssub.s32 %s12, 2
      // Predicated region
      $region61: #{_lambda_.43} parent=59 // pred_check
        %p1086 = pneg %p109
      $region62: #{_lambda_.43} parent=59 // pred_check_branch
        %1088 = sbr.rel (%p1086) target = $region64
      $region63: #{_lambda_.43} parent=59 // pred_region
        %s1089 = smul.u32 32, %s18
        %p1090 = scmp.lt.s32.totalorder %s1089, 63
        %s1091 = scalar_select %p1090, %s1089, 63
        %s1092 = smul.addr %s1091, 8
        %s1093 = scalar_lea.vmem %s3, %s1092
      $region64: #{_lambda_.43} parent=59 // pred_fallthru
        _
    $region60: #{_lambda_.43} parent=5 // pred_fallthru
      _
  $region6: #{_lambda_.43} parent=0 // loop_footer
    %s16 = sadd.s32 1, %s12
  $region7: #{_lambda_.43} parent=0 // loop_footer_branch
    %11 = sbr.rel target = $region3
  $region8: #{_lambda_.43} parent=0 // loop_exit
    _

// kernel: _lambda_.47
$region0: #{_lambda_.47}
  #allocation0 [shape = 'u32[]', space=smem, size = 0x4, offset = 0x4, fixed_abs, tag = 'smem constant byte address 0x4 - core index']
  #allocation1 [shape = 'u32[144,128]{1,0:T(1,128)}', space=vmem, size = 0x12000, scoped, tag = 'internal scratch']
  %s0 = inlined_call_operand.vmem [shape: bf16[512,128], index: 0, kind: input, shape index: {}]
  %s1 = inlined_call_operand.vmem [shape: bf16[128,128], index: 1, kind: input, shape index: {}]
  %s2 = inlined_call_operand.vmem [shape: f32[1,128], index: 2, kind: input, shape index: {}]
  %s3 = inlined_call_operand.vmem [shape: f32[512,128], index: 3, kind: output, shape index: {}]
  %s4 = sld [smem:[#allocation0]]
  $region45: #{_lambda_.47} parent=0
    _
  %s6 = ssub.s32 1, %s4
  %s7 = scalar_select 0, %s6, %s4
  loop: start=0, step=1, limit=4
  $region2: #{_lambda_.47} parent=0 // loop_pre_header
    _
  $region3: #{_lambda_.47} parent=0 // loop_header
    %s9 = sphi 0, %s13
    %p10 = scmp.ge.s32.totalorder %s9, 4
    %s19 = sphi 0, %s21
    %s22 = sphi 0, %s19
    %s23 = sphi 0, %s22
    %s39 = sphi 0, %s23
    %s43 = sphi 0, %s43
    %s45 = sphi 0, %s43
    %s46 = sphi 0, %s45
    %s60 = sphi 0, %s46
    %s64 = sphi 0, %s64
    %s66 = sphi 0, %s64
    %s67 = sphi 0, %s66
    %s81 = sphi 0, %s67
    %s87 = sphi 0, %s89
    %s90 = sphi 0, %s87
    %s91 = sphi 0, %s90
    %s107 = sphi 0, %s91
  $region4: #{_lambda_.47} parent=0 // loop_header_branch
    %12 = sbr.rel (%p10) target = $region8
  $region5: #{_lambda_.47} parent=0 // loop_body
    %s14 = ssub.s32 %s9, 1
    %s15 = ssub.s32 %s9, 2
    %s16 = sadd.s32 %s9, 1
    %s17 = ssub.s32 %s9, %s16
    %p18 = scmp.eq.s32.totalorder %s17, 0
    %s20 = sadd.s32 %s19, 1
    %s21 = scalar_select %p18, %s19, %s20
    %p24 = pneg %p18
    %p25 = scmp.eq.s32.totalorder %s9, 1
    %p26 = por %p24, %p25
    %p27 = scmp.ne.s32.totalorder %s19, %s22
    %p28 = scmp.eq.s32.totalorder %s9, 0
    %p29 = por %p27, %p28
    %p30 = scmp.ne.s32.totalorder %s19, %s22
    %p31 = scmp.eq.s32.totalorder %s14, 1
    %p32 = por %p30, %p31
    %p33 = scmp.ne.s32.totalorder %s22, %s23
    %p34 = scmp.eq.s32.totalorder %s14, 0
    %p35 = por %p33, %p34
    %p36 = scmp.ne.s32.totalorder %s22, %s23
    %p37 = scmp.eq.s32.totalorder %s15, 1
    %p38 = por %p36, %p37
    %p40 = scmp.ne.s32.totalorder %s23, %s39
    %p41 = scmp.eq.s32.totalorder %s15, 0
    %p42 = por %p40, %p41
    %s44 = sadd.s32 %s43, 1
    %p47 = scmp.eq.s32.totalorder %s9, 1
    %p48 = scmp.ne.s32.totalorder %s43, %s45
    %p49 = scmp.eq.s32.totalorder %s9, 0
    %p50 = por %p48, %p49
    %p51 = scmp.ne.s32.totalorder %s43, %s45
    %p52 = scmp.eq.s32.totalorder %s14, 1
    %p53 = por %p51, %p52
    %p54 = scmp.ne.s32.totalorder %s45, %s46
    %p55 = scmp.eq.s32.totalorder %s14, 0
    %p56 = por %p54, %p55
    %p57 = scmp.ne.s32.totalorder %s45, %s46
    %p58 = scmp.eq.s32.totalorder %s15, 1
    %p59 = por %p57, %p58
    %p61 = scmp.ne.s32.totalorder %s46, %s60
    %p62 = scmp.eq.s32.totalorder %s15, 0
    %p63 = por %p61, %p62
    %s65 = sadd.s32 %s64, 1
    %p68 = scmp.eq.s32.totalorder %s9, 1
    %p69 = scmp.ne.s32.totalorder %s64, %s66
    %p70 = scmp.eq.s32.totalorder %s9, 0
    %p71 = por %p69, %p70
    %p72 = scmp.ne.s32.totalorder %s64, %s66
    %p73 = scmp.eq.s32.totalorder %s14, 1
    %p74 = por %p72, %p73
    %p75 = scmp.ne.s32.totalorder %s66, %s67
    %p76 = scmp.eq.s32.totalorder %s14, 0
    %p77 = por %p75, %p76
    %p78 = scmp.ne.s32.totalorder %s66, %s67
    %p79 = scmp.eq.s32.totalorder %s15, 1
    %p80 = por %p78, %p79
    %p82 = scmp.ne.s32.totalorder %s67, %s81
    %p83 = scmp.eq.s32.totalorder %s15, 0
    %p84 = por %p82, %p83
    %s85 = ssub.s32 %s9, %s16
    %p86 = scmp.eq.s32.totalorder %s85, 0
    %s88 = sadd.s32 %s87, 1
    %s89 = scalar_select %p86, %s87, %s88
    %p92 = pneg %p86
    %p93 = scmp.eq.s32.totalorder %s9, 1
    %p94 = por %p92, %p93
    %p95 = scmp.ne.s32.totalorder %s87, %s90
    %p96 = scmp.eq.s32.totalorder %s9, 0
    %p97 = por %p95, %p96
    %p98 = scmp.ne.s32.totalorder %s87, %s90
    %p99 = scmp.eq.s32.totalorder %s14, 1
    %p100 = por %p98, %p99
    %p101 = scmp.ne.s32.totalorder %s90, %s91
    %p102 = scmp.eq.s32.totalorder %s14, 0
    %p103 = por %p101, %p102
    %p104 = scmp.ne.s32.totalorder %s90, %s91
    %p105 = scmp.eq.s32.totalorder %s15, 1
    %p106 = por %p104, %p105
    %p108 = scmp.ne.s32.totalorder %s91, %s107
    %p109 = scmp.eq.s32.totalorder %s15, 0
    %p110 = por %p108, %p109
    %p111 = scmp.le.s32.totalorder 1, %s9
    %p112 = scmp.lt.s32.totalorder %s9, 3
    %p113 = pnand %p111, %p112
    %p114 = pneg %p113
    // Predicated region
    $region9: #{_lambda_.47} parent=5 // pred_check
      _
    $region10: #{_lambda_.47} parent=5 // pred_check_branch
      %116 = sbr.rel (%p113) target = $region12
    $region11: #{_lambda_.47} parent=5 // pred_region
      %s117 = ssub.s32 %s9, 1
      // Predicated region
      $region13: #{_lambda_.47} parent=11 // pred_check
        %p118 = pneg %p56
      $region14: #{_lambda_.47} parent=11 // pred_check_branch
        %120 = sbr.rel (%p118) target = $region16
      $region15: #{_lambda_.47} parent=11 // pred_region
        _
      $region16: #{_lambda_.47} parent=11 // pred_fallthru
        _
      // Predicated region
      $region17: #{_lambda_.47} parent=11 // pred_check
        %p121 = pneg %p77
      $region18: #{_lambda_.47} parent=11 // pred_check_branch
        %123 = sbr.rel (%p121) target = $region20
      $region19: #{_lambda_.47} parent=11 // pred_region
        _
      $region20: #{_lambda_.47} parent=11 // pred_fallthru
        _
    $region12: #{_lambda_.47} parent=5 // pred_fallthru
      _
    %p124 = scmp.lt.s32.totalorder %s9, 2
    // Predicated region
    $region21: #{_lambda_.47} parent=5 // pred_check
      %p125 = pneg %p124
    $region22: #{_lambda_.47} parent=5 // pred_check_branch
      %127 = sbr.rel (%p125) target = $region24
    $region23: #{_lambda_.47} parent=5 // pred_region
      // Predicated region
      $region25: #{_lambda_.47} parent=23 // pred_check
        %p128 = pneg %p29
      $region26: #{_lambda_.47} parent=23 // pred_check_branch
        %130 = sbr.rel (%p128) target = $region28
      $region27: #{_lambda_.47} parent=23 // pred_region
        %s131 = smul.u32 32, %s9
        %p132 = scmp.lt.s32.totalorder %s131, 63
        %s133 = scalar_select %p132, %s131, 63
        %s134 = smul.addr %s133, 4
        %s135 = scalar_lea.vmem %s0, %s134
        %s136 = smul.u32 32, %s9
      $region28: #{_lambda_.47} parent=23 // pred_fallthru
        _
    $region24: #{_lambda_.47} parent=5 // pred_fallthru
      _
    %p137 = scmp.le.s32.totalorder 1, %s9
    %p138 = scmp.lt.s32.totalorder %s9, 3
    %p139 = pnand %p137, %p138
    %p140 = pneg %p139
    // Predicated region
    $region29: #{_lambda_.47} parent=5 // pred_check
      _
    $region30: #{_lambda_.47} parent=5 // pred_check_branch
      %142 = sbr.rel (%p139) target = $region32
    $region31: #{_lambda_.47} parent=5 // pred_region
      %s143 = ssub.s32 %s9, 1
      %s144 = smul.u32 32, %s14
      %p145 = scmp.lt.s32.totalorder %s144, 63
      %s146 = scalar_select %p145, %s144, 63
      %s147 = smul.addr %s146, 4
      %s148 = scalar_lea.vmem %s0, %s147
      %p149 = pneg %p35
      %p150 = pneg %p32
      %p151 = pneg %p56
      %p152 = pneg %p53
      %p153 = pneg %p77
      %p154 = pneg %p74
      %p155 = pneg %p103
      %p156 = pneg %p100
      %s157 = smul.u32 32, %s14
      %p158 = scmp.lt.s32.totalorder %s157, 63
      %s159 = scalar_select %p158, %s157, 63
      %s160 = smul.addr %s159, 8
      %s161 = scalar_lea.vmem %s3, %s160
      %s162 = smul.u32 32, %s14
      %p163 = scmp.lt.s32.totalorder %s162, 63
      %s164 = scalar_select %p163, %s162, 63
      %s165 = smul.addr %s164, 4
      %s166 = scalar_lea.vmem %s0, %s165
      %s167 = smul.u32 32, %s14
      %s168 = smul.u32 32, %s14
      %p169 = scmp.lt.s32.totalorder %s168, 63
      %s170 = scalar_select %p169, %s168, 63
      %s171 = smul.addr %s170, 8
      %s172 = scalar_lea.vmem %s3, %s171
      %s173 = smul.u32 32, %s14
      %v175 = vld [vmem:[%s166] sm:$0xf]
      %v176 = vld [vmem:[%s166 + $0x4] sm:$0xf]
      %v177 = vld [vmem:[%s166 + $0x8] sm:$0xf]
      %v178 = vld [vmem:[%s166 + $0xc] sm:$0xf]
      %v179 = vld [vmem:[%s166 + $0x10] sm:$0xf]
      %v180 = vld [vmem:[%s166 + $0x14] sm:$0xf]
      %v181 = vld [vmem:[%s166 + $0x18] sm:$0xf]
      %v182 = vld [vmem:[%s166 + $0x1c] sm:$0xf]
      %v183 = vld [vmem:[%s166 + $0x20] sm:$0xf]
      %v184 = vld [vmem:[%s166 + $0x24] sm:$0xf]
      %v185 = vld [vmem:[%s166 + $0x28] sm:$0xf]
      %v186 = vld [vmem:[%s166 + $0x2c] sm:$0xf]
      %v187 = vld [vmem:[%s166 + $0x30] sm:$0xf]
      %v188 = vld [vmem:[%s166 + $0x34] sm:$0xf]
      %v189 = vld [vmem:[%s166 + $0x38] sm:$0xf]
      %v190 = vld [vmem:[%s166 + $0x3c] sm:$0xf]
      %v191 = vld [vmem:[%s166 + $0x40] sm:$0xf]
      %v192 = vld [vmem:[%s166 + $0x44] sm:$0xf]
      %v193 = vld [vmem:[%s166 + $0x48] sm:$0xf]
      %v194 = vld [vmem:[%s166 + $0x4c] sm:$0xf]
      %v195 = vld [vmem:[%s166 + $0x50] sm:$0xf]
      %v196 = vld [vmem:[%s166 + $0x54] sm:$0xf]
      %v197 = vld [vmem:[%s166 + $0x58] sm:$0xf]
      %v198 = vld [vmem:[%s166 + $0x5c] sm:$0xf]
      %v199 = vld [vmem:[%s166 + $0x60] sm:$0xf]
      %v200 = vld [vmem:[%s166 + $0x64] sm:$0xf]
      %v201 = vld [vmem:[%s166 + $0x68] sm:$0xf]
      %v202 = vld [vmem:[%s166 + $0x6c] sm:$0xf]
      %v203 = vld [vmem:[%s166 + $0x70] sm:$0xf]
      %v204 = vld [vmem:[%s166 + $0x74] sm:$0xf]
      %v205 = vld [vmem:[%s166 + $0x78] sm:$0xf]
      %v206 = vld [vmem:[%s166 + $0x7c] sm:$0xf]
      %v207 = vld [vmem:[%s1] sm:$0xf]
      %v208 = vld [vmem:[%s1 + $0x4] sm:$0xf]
      %v209 = vld [vmem:[%s1 + $0x8] sm:$0xf]
      %v210 = vld [vmem:[%s1 + $0xc] sm:$0xf]
      %v211 = vld [vmem:[%s1 + $0x10] sm:$0xf]
      %v212 = vld [vmem:[%s1 + $0x14] sm:$0xf]
      %v213 = vld [vmem:[%s1 + $0x18] sm:$0xf]
      %v214 = vld [vmem:[%s1 + $0x1c] sm:$0xf]
      %v215 = vld [vmem:[%s1 + $0x20] sm:$0xf]
      %v216 = vld [vmem:[%s1 + $0x24] sm:$0xf]
      %v217 = vld [vmem:[%s1 + $0x28] sm:$0xf]
      %v218 = vld [vmem:[%s1 + $0x2c] sm:$0xf]
      %v219 = vld [vmem:[%s1 + $0x30] sm:$0xf]
      %v220 = vld [vmem:[%s1 + $0x34] sm:$0xf]
      %v221 = vld [vmem:[%s1 + $0x38] sm:$0xf]
      %v222 = vld [vmem:[%s1 + $0x3c] sm:$0xf]
      %v223 = vld [vmem:[%s2] sm:$0x1]
      %v225 = vlaneseq
      %v226 = vshrl.u32 %v225, 7
      %v227 = vsub.s32 0, %v226
      %v228 = vrot.slane %v223, %v227
      %v262 = vunpack.c.l.b16 %v175
      %v263 = vunpack.c.l.b16 %v176
      %v264 = vunpack.c.l.b16 %v177
      %v265 = vunpack.c.l.b16 %v178
      %v266 = vunpack.c.l.b16 %v179
      %v267 = vunpack.c.l.b16 %v180
      %v268 = vunpack.c.l.b16 %v181
      %v269 = vunpack.c.l.b16 %v182
      %v270 = vunpack.c.l.b16 %v183
      %v271 = vunpack.c.l.b16 %v184
      %v272 = vunpack.c.l.b16 %v185
      %v273 = vunpack.c.l.b16 %v186
      %v274 = vunpack.c.l.b16 %v187
      %v275 = vunpack.c.l.b16 %v188
      %v276 = vunpack.c.l.b16 %v189
      %v277 = vunpack.c.l.b16 %v190
      %v278 = vunpack.c.l.b16 %v191
      %v279 = vunpack.c.l.b16 %v192
      %v280 = vunpack.c.l.b16 %v193
      %v281 = vunpack.c.l.b16 %v194
      %v282 = vunpack.c.l.b16 %v195
      %v283 = vunpack.c.l.b16 %v196
      %v284 = vunpack.c.l.b16 %v197
      %v285 = vunpack.c.l.b16 %v198
      %v286 = vunpack.c.l.b16 %v199
      %v287 = vunpack.c.l.b16 %v200
      %v288 = vunpack.c.l.b16 %v201
      %v289 = vunpack.c.l.b16 %v202
      %v290 = vunpack.c.l.b16 %v203
      %v291 = vunpack.c.l.b16 %v204
      %v292 = vunpack.c.l.b16 %v205
      %v293 = vunpack.c.l.b16 %v206
      %v294 = vpack.c.b16 %v263, %v262
      %v295 = vpack.c.b16 %v265, %v264
      %v296 = vpack.c.b16 %v267, %v266
      %v297 = vpack.c.b16 %v269, %v268
      %v298 = vpack.c.b16 %v271, %v270
      %v299 = vpack.c.b16 %v273, %v272
      %v300 = vpack.c.b16 %v275, %v274
      %v301 = vpack.c.b16 %v277, %v276
      %v302 = vpack.c.b16 %v279, %v278
      %v303 = vpack.c.b16 %v281, %v280
      %v304 = vpack.c.b16 %v283, %v282
      %v305 = vpack.c.b16 %v285, %v284
      %v306 = vpack.c.b16 %v287, %v286
      %v307 = vpack.c.b16 %v289, %v288
      %v308 = vpack.c.b16 %v291, %v290
      %v309 = vpack.c.b16 %v293, %v292
      %v342 = vunpack.c.l.b16 %v207
      %v343 = vunpack.c.l.b16 %v208
      %v344 = vunpack.c.l.b16 %v209
      %v345 = vunpack.c.l.b16 %v210
      %v346 = vunpack.c.l.b16 %v211
      %v347 = vunpack.c.l.b16 %v212
      %v348 = vunpack.c.l.b16 %v213
      %v349 = vunpack.c.l.b16 %v214
      %v350 = vunpack.c.l.b16 %v215
      %v351 = vunpack.c.l.b16 %v216
      %v352 = vunpack.c.l.b16 %v217
      %v353 = vunpack.c.l.b16 %v218
      %v354 = vunpack.c.l.b16 %v219
      %v355 = vunpack.c.l.b16 %v220
      %v356 = vunpack.c.l.b16 %v221
      %v357 = vunpack.c.l.b16 %v222
      %v358 = vpack.c.b16 %v343, %v342
      %v359 = vpack.c.b16 %v345, %v344
      %v360 = vpack.c.b16 %v347, %v346
      %v361 = vpack.c.b16 %v349, %v348
      %v362 = vpack.c.b16 %v351, %v350
      %v363 = vpack.c.b16 %v353, %v352
      %v364 = vpack.c.b16 %v355, %v354
      %v365 = vpack.c.b16 %v357, %v356
      %374 = vmatprep.subr.bf16.mxu0 0
      %375 = vmatpush1.bf16.msra.mxu0 %v358
      %376 = vmatprep.subr.bf16.mxu0 0
      %377 = vmatpush1.bf16.msra.mxu0 %v359
      %378 = vmatprep.subr.bf16.mxu0 0
      %379 = vmatpush1.bf16.msra.mxu0 %v360
      %380 = vmatprep.subr.bf16.mxu0 0
      %381 = vmatpush1.bf16.msra.mxu0 %v361
      %382 = vmatprep.subr.bf16.mxu0 0
      %383 = vmatpush1.bf16.msra.mxu0 %v362
      %384 = vmatprep.subr.bf16.mxu0 0
      %385 = vmatpush1.bf16.msra.mxu0 %v363
      %386 = vmatprep.subr.bf16.mxu0 0
      %387 = vmatpush1.bf16.msra.mxu0 %v364
      %388 = vmatprep.subr.bf16.mxu0 0
      %389 = vmatpush1.bf16.msra.mxu0 %v365
      %390 = vmatprep.subr.bf16.mxu0 0
      %391 = vmatpush1.bf16.msra.mxu0 0
      %392 = vmatprep.subr.bf16.mxu0 0
      %393 = vmatpush1.bf16.msra.mxu0 0
      %394 = vmatprep.subr.bf16.mxu0 0
      %395 = vmatpush1.bf16.msra.mxu0 0
      %396 = vmatprep.subr.bf16.mxu0 0
      %397 = vmatpush1.bf16.msra.mxu0 0
      %398 = vmatprep.subr.bf16.mxu0 0
      %399 = vmatpush1.bf16.msra.mxu0 0
      %400 = vmatprep.subr.bf16.mxu0 0
      %401 = vmatpush1.bf16.msra.mxu0 0
      %402 = vmatprep.subr.bf16.mxu0 0
      %403 = vmatpush1.bf16.msra.mxu0 0
      %404 = vmatprep.subr.bf16.mxu0 0
      %405 = vmatpush1.bf16.msra.mxu0 0
      %406 = vmatprep.mubr.bf16.mxu0 0
      %407 = vmatmul.mubr.bf16.gmra.mrb[0].mxu0 %v294
      %v408 = vpop.f32.mrb[0].mxu0
      %v409 = vadd.f32 %v228, %v408
      %v410 = vpop.f32.mrb[0].mxu0
      %v411 = vpop.f32.mrb[0].mxu0
      %v412 = vadd.f32 %v228, %v411
      %v413 = vpop.f32.mrb[0].mxu0
      %414 = vmatprep.mubr.bf16.mxu0 0
      %415 = vmatmul.mubr.bf16.gmra.mrb[0].mxu0 %v295
      %v416 = vpop.f32.mrb[0].mxu0
      %v417 = vadd.f32 %v228, %v416
      %v418 = vpop.f32.mrb[0].mxu0
      %v419 = vpop.f32.mrb[0].mxu0
      %v420 = vadd.f32 %v228, %v419
      %v421 = vpop.f32.mrb[0].mxu0
      %422 = vmatprep.mubr.bf16.mxu0 0
      %423 = vmatmul.mubr.bf16.gmra.mrb[0].mxu0 %v296
      %v424 = vpop.f32.mrb[0].mxu0
      %v425 = vadd.f32 %v228, %v424
      %v426 = vpop.f32.mrb[0].mxu0
      %v427 = vpop.f32.mrb[0].mxu0
      %v428 = vadd.f32 %v228, %v427
      %v429 = vpop.f32.mrb[0].mxu0
      %430 = vmatprep.mubr.bf16.mxu0 0
      %431 = vmatmul.mubr.bf16.gmra.mrb[0].mxu0 %v297
      %v432 = vpop.f32.mrb[0].mxu0
      %v433 = vadd.f32 %v228, %v432
      %v434 = vpop.f32.mrb[0].mxu0
      %v435 = vpop.f32.mrb[0].mxu0
      %v436 = vadd.f32 %v228, %v435
      %v437 = vpop.f32.mrb[0].mxu0
      %438 = vmatprep.mubr.bf16.mxu0 0
      %439 = vmatmul.mubr.bf16.gmra.mrb[0].mxu0 %v298
      %v440 = vpop.f32.mrb[0].mxu0
      %v441 = vadd.f32 %v228, %v440
      %v442 = vpop.f32.mrb[0].mxu0
      %v443 = vpop.f32.mrb[0].mxu0
      %v444 = vadd.f32 %v228, %v443
      %v445 = vpop.f32.mrb[0].mxu0
      %446 = vmatprep.mubr.bf16.mxu0 0
      %447 = vmatmul.mubr.bf16.gmra.mrb[0].mxu0 %v299
      %v448 = vpop.f32.mrb[0].mxu0
      %v449 = vadd.f32 %v228, %v448
      %v450 = vpop.f32.mrb[0].mxu0
      %v451 = vpop.f32.mrb[0].mxu0
      %v452 = vadd.f32 %v228, %v451
      %v453 = vpop.f32.mrb[0].mxu0
      %454 = vmatprep.mubr.bf16.mxu0 0
      %455 = vmatmul.mubr.bf16.gmra.mrb[0].mxu0 %v300
      %v456 = vpop.f32.mrb[0].mxu0
      %v457 = vadd.f32 %v228, %v456
      %v458 = vpop.f32.mrb[0].mxu0
      %v459 = vpop.f32.mrb[0].mxu0
      %v460 = vadd.f32 %v228, %v459
      %v461 = vpop.f32.mrb[0].mxu0
      %462 = vmatprep.mubr.bf16.mxu0 0
      %463 = vmatmul.mubr.bf16.gmra.mrb[0].mxu0 %v301
      %v464 = vpop.f32.mrb[0].mxu0
      %v465 = vadd.f32 %v228, %v464
      %v466 = vpop.f32.mrb[0].mxu0
      %v467 = vpop.f32.mrb[0].mxu0
      %v468 = vadd.f32 %v228, %v467
      %v469 = vpop.f32.mrb[0].mxu0
      %470 = vmatprep.mubr.bf16.mxu0 0
      %471 = vmatmul.mubr.bf16.gmra.mrb[0].mxu0 %v302
      %v472 = vpop.f32.mrb[0].mxu0
      %v473 = vadd.f32 %v228, %v472
      %v474 = vpop.f32.mrb[0].mxu0
      %v475 = vpop.f32.mrb[0].mxu0
      %v476 = vadd.f32 %v228, %v475
      %v477 = vpop.f32.mrb[0].mxu0
      %478 = vmatprep.mubr.bf16.mxu0 0
      %479 = vmatmul.mubr.bf16.gmra.mrb[0].mxu0 %v303
      %v480 = vpop.f32.mrb[0].mxu0
      %v481 = vadd.f32 %v228, %v480
      %v482 = vpop.f32.mrb[0].mxu0
      %v483 = vpop.f32.mrb[0].mxu0
      %v484 = vadd.f32 %v228, %v483
      %v485 = vpop.f32.mrb[0].mxu0
      %486 = vmatprep.mubr.bf16.mxu0 0
      %487 = vmatmul.mubr.bf16.gmra.mrb[0].mxu0 %v304
      %v488 = vpop.f32.mrb[0].mxu0
      %v489 = vadd.f32 %v228, %v488
      %v490 = vpop.f32.mrb[0].mxu0
      %v491 = vpop.f32.mrb[0].mxu0
      %v492 = vadd.f32 %v228, %v491
      %v493 = vpop.f32.mrb[0].mxu0
      %494 = vmatprep.mubr.bf16.mxu0 0
      %495 = vmatmul.mubr.bf16.gmra.mrb[0].mxu0 %v305
      %v496 = vpop.f32.mrb[0].mxu0
      %v497 = vadd.f32 %v228, %v496
      %v498 = vpop.f32.mrb[0].mxu0
      %v499 = vpop.f32.mrb[0].mxu0
      %v500 = vadd.f32 %v228, %v499
      %v501 = vpop.f32.mrb[0].mxu0
      %502 = vmatprep.mubr.bf16.mxu0 0
      %503 = vmatmul.mubr.bf16.gmra.mrb[0].mxu0 %v306
      %v504 = vpop.f32.mrb[0].mxu0
      %v505 = vadd.f32 %v228, %v504
      %v506 = vpop.f32.mrb[0].mxu0
      %v507 = vpop.f32.mrb[0].mxu0
      %v508 = vadd.f32 %v228, %v507
      %v509 = vpop.f32.mrb[0].mxu0
      %510 = vmatprep.mubr.bf16.mxu0 0
      %511 = vmatmul.mubr.bf16.gmra.mrb[0].mxu0 %v307
      %v512 = vpop.f32.mrb[0].mxu0
      %v513 = vadd.f32 %v228, %v512
      %v514 = vpop.f32.mrb[0].mxu0
      %v515 = vpop.f32.mrb[0].mxu0
      %v516 = vadd.f32 %v228, %v515
      %v517 = vpop.f32.mrb[0].mxu0
      %518 = vmatprep.mubr.bf16.mxu0 0
      %519 = vmatmul.mubr.bf16.gmra.mrb[0].mxu0 %v308
      %v520 = vpop.f32.mrb[0].mxu0
      %v521 = vadd.f32 %v228, %v520
      %v522 = vpop.f32.mrb[0].mxu0
      %v523 = vpop.f32.mrb[0].mxu0
      %v524 = vadd.f32 %v228, %v523
      %v525 = vpop.f32.mrb[0].mxu0
      %526 = vmatprep.mubr.bf16.mxu0 0
      %527 = vmatmul.mubr.bf16.gmra.mrb[0].mxu0 %v309
      %v528 = vpop.f32.mrb[0].mxu0
      %v529 = vadd.f32 %v228, %v528
      %v530 = vpop.f32.mrb[0].mxu0
      %v531 = vpop.f32.mrb[0].mxu0
      %v532 = vadd.f32 %v228, %v531
      %v533 = vpop.f32.mrb[0].mxu0
      %534 = vdwg.mxu0
      %535 = vst [vmem:[%s172] sm:$0xff] %v409
      %536 = vst [vmem:[%s172 + $0x8] sm:$0xff] %v412
      %537 = vst [vmem:[%s172 + $0x10] sm:$0xff] %v417
      %538 = vst [vmem:[%s172 + $0x18] sm:$0xff] %v420
      %539 = vst [vmem:[%s172 + $0x20] sm:$0xff] %v425
      %540 = vst [vmem:[%s172 + $0x28] sm:$0xff] %v428
      %541 = vst [vmem:[%s172 + $0x30] sm:$0xff] %v433
      %542 = vst [vmem:[%s172 + $0x38] sm:$0xff] %v436
      %543 = vst [vmem:[%s172 + $0x40] sm:$0xff] %v441
      %544 = vst [vmem:[%s172 + $0x48] sm:$0xff] %v444
      %545 = vst [vmem:[%s172 + $0x50] sm:$0xff] %v449
      %546 = vst [vmem:[%s172 + $0x58] sm:$0xff] %v452
      %547 = vst [vmem:[%s172 + $0x60] sm:$0xff] %v457
      %548 = vst [vmem:[%s172 + $0x68] sm:$0xff] %v460
      %549 = vst [vmem:[%s172 + $0x70] sm:$0xff] %v465
      %550 = vst [vmem:[%s172 + $0x78] sm:$0xff] %v468
      %551 = vst [vmem:[%s172 + $0x80] sm:$0xff] %v473
      %552 = vst [vmem:[%s172 + $0x88] sm:$0xff] %v476
      %553 = vst [vmem:[%s172 + $0x90] sm:$0xff] %v481
      %554 = vst [vmem:[%s172 + $0x98] sm:$0xff] %v484
      %555 = vst [vmem:[%s172 + $0xa0] sm:$0xff] %v489
      %556 = vst [vmem:[%s172 + $0xa8] sm:$0xff] %v492
      %557 = vst [vmem:[%s172 + $0xb0] sm:$0xff] %v497
      %558 = vst [vmem:[%s172 + $0xb8] sm:$0xff] %v500
      %559 = vst [vmem:[%s172 + $0xc0] sm:$0xff] %v505
      %560 = vst [vmem:[%s172 + $0xc8] sm:$0xff] %v508
      %561 = vst [vmem:[%s172 + $0xd0] sm:$0xff] %v513
      %562 = vst [vmem:[%s172 + $0xd8] sm:$0xff] %v516
      %563 = vst [vmem:[%s172 + $0xe0] sm:$0xff] %v521
      %564 = vst [vmem:[%s172 + $0xe8] sm:$0xff] %v524
      %565 = vst [vmem:[%s172 + $0xf0] sm:$0xff] %v529
      %566 = vst [vmem:[%s172 + $0xf8] sm:$0xff] %v532
      %s567 = smul.u32 32, %s14
      %p568 = scmp.lt.s32.totalorder %s567, 63
      %s569 = scalar_select %p568, %s567, 63
      %s570 = smul.addr %s569, 8
      %s571 = scalar_lea.vmem %s3, %s570
      // Predicated region
      $region33: #{_lambda_.47} parent=31 // pred_check
        %p572 = pneg %p100
      $region34: #{_lambda_.47} parent=31 // pred_check_branch
        %574 = sbr.rel (%p572) target = $region36
      $region35: #{_lambda_.47} parent=31 // pred_region
        %s575 = smul.u32 32, %s14
      $region36: #{_lambda_.47} parent=31 // pred_fallthru
        _
    $region32: #{_lambda_.47} parent=5 // pred_fallthru
      _
    %p576 = scmp.le.s32.totalorder 2, %s9
    // Predicated region
    $region37: #{_lambda_.47} parent=5 // pred_check
      %p577 = pneg %p576
    $region38: #{_lambda_.47} parent=5 // pred_check_branch
      %579 = sbr.rel (%p577) target = $region40
    $region39: #{_lambda_.47} parent=5 // pred_region
      %s580 = ssub.s32 %s9, 2
      // Predicated region
      $region41: #{_lambda_.47} parent=39 // pred_check
        %p581 = pneg %p106
      $region42: #{_lambda_.47} parent=39 // pred_check_branch
        %583 = sbr.rel (%p581) target = $region44
      $region43: #{_lambda_.47} parent=39 // pred_region
        %s584 = smul.u32 32, %s15
        %p585 = scmp.lt.s32.totalorder %s584, 63
        %s586 = scalar_select %p585, %s584, 63
        %s587 = smul.addr %s586, 8
        %s588 = scalar_lea.vmem %s3, %s587
      $region44: #{_lambda_.47} parent=39 // pred_fallthru
        _
    $region40: #{_lambda_.47} parent=5 // pred_fallthru
      _
  $region6: #{_lambda_.47} parent=0 // loop_footer
    %s13 = sadd.s32 1, %s9
  $region7: #{_lambda_.47} parent=0 // loop_footer_branch
    %8 = sbr.rel target = $region3
  $region8: #{_lambda_.47} parent=0 // loop_exit
    _

</llo_original>
